<compile_context>
chip_gen: v7x
topology: tpu7x:2x2x1
jax: 0.10.0
libtpu: 0.0.40
codegen_flags: <defaults>
</compile_context>

<pallas_src>
import functools
import math

import jax
import jax.numpy as jnp
from jax.experimental import pallas as pl
from jax.experimental.pallas import tpu as pltpu


# ----------------------------------------------------------------------------
# Kernel 1: fused per-level tower
#   [3x3 Conv+BN+SiLU (cv2_0|cv3_0)] -> [3x3 Conv+BN+SiLU block-diag (cv2_1|cv3_1)]
#   -> [1x1 Conv + bias (cv2_2|cv3_2)]    all intermediates stay in VMEM.
# Spatial layout: zero-padded plane flattened to rows (positions on sublanes,
# channels on lanes); a 3x3 tap is a contiguous row-window at offset kh*Wp+kw.
# ----------------------------------------------------------------------------
def _level_kernel(x_ref, mask_ref, w0_ref, s0_ref, b0_ref,
                  w1_ref, s1_ref, b1_ref, wh_ref, bh_ref,
                  o_ref, a0_scr, *, H, W):
    Wp = W + 2
    nv = H * Wp                                  # rows computed per 3x3 conv

    def conv3x3_bn_silu(load_tap, w_ref, s_ref, b_ref):
        acc = jnp.dot(load_tap(0), w_ref[0], preferred_element_type=jnp.float32)
        for t in range(1, 9):
            d = (t // 3) * Wp + (t % 3)
            acc += jnp.dot(load_tap(d), w_ref[t], preferred_element_type=jnp.float32)
        acc = acc * s_ref[...] + b_ref[...]      # folded BatchNorm
        return acc * jax.nn.sigmoid(acc)         # SiLU

    valid = mask_ref[pl.ds(Wp + 1, nv), :]       # 1.0 at real pixels, 0.0 at pad columns

    # ---- cv2[0] | cv3[0]: fused 3x3 Conv+BN+SiLU on the raw (bf16) input -----------
    a0 = conv3x3_bn_silu(lambda d: x_ref[0, pl.ds(d, nv), :],
                         w0_ref, s0_ref, b0_ref) * valid
    a0_scr[...] = jnp.zeros_like(a0_scr)         # zero borders == conv zero padding
    a0_scr[pl.ds(Wp + 1, nv), :] = a0

    # ---- cv2[1] | cv3[1]: block-diagonal fused 3x3 Conv+BN+SiLU ---------------------
    a1 = conv3x3_bn_silu(lambda d: a0_scr[pl.ds(d, nv), :].astype(jnp.bfloat16),
                         w1_ref, s1_ref, b1_ref)

    # ---- cv2[2] | cv3[2]: fused 1x1 conv + bias -> (box | cls) channels -------------
    o_ref[0] = (jnp.dot(a1.astype(jnp.bfloat16), wh_ref[...],
                        preferred_element_type=jnp.float32)
                + bh_ref[...]).astype(o_ref.dtype)


def _run_level(xpf, mask, p, H, W):
    """xpf: (B, P2, Cin) bf16 padded-flat input; returns (B, H*(W+2), no) f32."""
    B, P2, Cin = xpf.shape
    Wp = W + 2
    nv = H * Wp
    Nmid = p["w0"].shape[-1]
    NO = p["wh"].shape[-1]
    kernel = functools.partial(_level_kernel, H=H, W=W)
    return pl.pallas_call(
        kernel,
        out_shape=jax.ShapeDtypeStruct((B, nv, NO), jnp.float32),
        grid_spec=pltpu.PrefetchScalarGridSpec(
            num_scalar_prefetch=0,
            grid=(B,),
            in_specs=[
                pl.BlockSpec((1, P2, Cin), lambda b: (b, 0, 0)),   # input plane
                pl.BlockSpec((P2, 1), lambda b: (0, 0)),           # validity mask
                pl.BlockSpec((9, Cin, Nmid), lambda b: (0, 0, 0)),
                pl.BlockSpec((1, Nmid), lambda b: (0, 0)),
                pl.BlockSpec((1, Nmid), lambda b: (0, 0)),
                pl.BlockSpec((9, Nmid, Nmid), lambda b: (0, 0, 0)),
                pl.BlockSpec((1, Nmid), lambda b: (0, 0)),
                pl.BlockSpec((1, Nmid), lambda b: (0, 0)),
                pl.BlockSpec((Nmid, NO), lambda b: (0, 0)),
                pl.BlockSpec((1, NO), lambda b: (0, 0)),
            ],
            out_specs=pl.BlockSpec((1, nv, NO), lambda b: (b, 0, 0)),
            scratch_shapes=[pltpu.VMEM((P2, Nmid), jnp.float32)],
        ),
        compiler_params=pltpu.CompilerParams(dimension_semantics=("parallel",)),
    )(xpf, mask, p["w0"], p["s0"], p["b0"], p["w1"], p["s1"], p["b1"], p["wh"], p["bh"])


# ----------------------------------------------------------------------------
# Kernel 2: fused decode = DFL softmax-expectation + dist2bbox + stride + sigmoid + cat
# ----------------------------------------------------------------------------
def _decode_kernel(x_ref, anch_ref, stride_ref, o_ref, *, reg_max, nc):
    A = x_ref.shape[-1]
    idx = jax.lax.broadcasted_iota(jnp.int32, (reg_max, A), 0).astype(jnp.float32)
    dist = []
    for g in range(4):                                       # lt_x, lt_y, rb_x, rb_y
        lg = x_ref[0, pl.ds(g * reg_max, reg_max), :]        # (reg_max, A)
        m = jnp.max(lg, axis=0, keepdims=True)               # sublane reduction
        e = jnp.exp(lg - m)
        dist.append(jnp.sum(e * idx, axis=0, keepdims=True)
                    / jnp.sum(e, axis=0, keepdims=True))     # (1, A)
    lt_x, lt_y, rb_x, rb_y = dist
    ax = anch_ref[0:1, :]
    ay = anch_ref[1:2, :]
    x1, y1 = ax - lt_x, ay - lt_y
    x2, y2 = ax + rb_x, ay + rb_y
    s = stride_ref[...]
    box = jnp.concatenate(
        [(x1 + x2) * 0.5, (y1 + y2) * 0.5, x2 - x1, y2 - y1], axis=0) * s
    o_ref[0, pl.ds(0, 4), :] = box.astype(o_ref.dtype)
    o_ref[0, pl.ds(4, nc), :] = jax.nn.sigmoid(
        x_ref[0, pl.ds(4 * reg_max, nc), :]).astype(o_ref.dtype)


def _decode(x_cat, anchors, strides, reg_max, nc):
    B, no, A = x_cat.shape
    kernel = functools.partial(_decode_kernel, reg_max=reg_max, nc=nc)
    return pl.pallas_call(
        kernel,
        out_shape=jax.ShapeDtypeStruct((B, 4 + nc, A), jnp.float32),
        grid_spec=pltpu.PrefetchScalarGridSpec(
            num_scalar_prefetch=0,
            grid=(B,),
            in_specs=[
                pl.BlockSpec((1, no, A), lambda b: (b, 0, 0)),
                pl.BlockSpec((2, A), lambda b: (0, 0)),
                pl.BlockSpec((1, A), lambda b: (0, 0)),
            ],
            out_specs=pl.BlockSpec((1, 4 + nc, A), lambda b: (b, 0, 0)),
        ),
        compiler_params=pltpu.CompilerParams(dimension_semantics=("parallel",)),
    )(x_cat, anchors, strides)


# ----------------------------------------------------------------------------
# Anchors (same as ultralytics make_anchors)
# ----------------------------------------------------------------------------
def make_anchors(shapes, strides, offset=0.5):
    anchor_points, stride_tensor = [], []
    for (h, w), s in zip(shapes, strides):
        sx = jnp.arange(w, dtype=jnp.float32) + offset
        sy = jnp.arange(h, dtype=jnp.float32) + offset
        syy, sxx = jnp.meshgrid(sy, sx, indexing="ij")
        anchor_points.append(jnp.stack((sxx, syy), axis=-1).reshape(-1, 2))
        stride_tensor.append(jnp.full((h * w, 1), s, dtype=jnp.float32))
    return jnp.concatenate(anchor_points, axis=0), jnp.concatenate(stride_tensor, axis=0)


# ----------------------------------------------------------------------------
# Parameters (BN folded into per-channel scale/bias; inference semantics)
# ----------------------------------------------------------------------------
def _conv_bn_params(key, cin, cout):
    kw, kg, kb, km, kv = jax.random.split(key, 5)
    w = jax.random.normal(kw, (3, 3, cin, cout), jnp.float32) / math.sqrt(9 * cin)
    gamma = 1.0 + 0.1 * jax.random.normal(kg, (cout,), jnp.float32)
    beta = 0.1 * jax.random.normal(kb, (cout,), jnp.float32)
    mean = 0.1 * jax.random.normal(km, (cout,), jnp.float32)
    var = 1.0 + 0.5 * jax.random.uniform(kv, (cout,), jnp.float32)
    scale = gamma / jnp.sqrt(var + 1e-5)                     # BatchNorm2d eps
    return w, scale, beta - mean * scale


def _conv1x1_params(key, cin, cout):
    kw, kb = jax.random.split(key)
    w = jax.random.normal(kw, (cin, cout), jnp.float32) / math.sqrt(cin)
    b = 0.1 * jax.random.normal(kb, (cout,), jnp.float32)
    return w, b


class Detect:
    """JAX/Pallas port of the PyTorch Detect head (inference, non-export path)."""

    def __init__(self, nc=80, ch=(), *, key):
        self.nc = nc
        self.nl = len(ch)
        self.reg_max = 16
        self.no = nc + self.reg_max * 4
        self.stride = jnp.zeros((self.nl,), jnp.float32)
        self.c2 = max(16, ch[0] // 4, self.reg_max * 4)
        self.c3 = max(ch[0], nc)
        keys = jax.random.split(key, self.nl)
        self.params = [self._pack_level(keys[i], cin) for i, cin in enumerate(ch)]

    def _pack_level(self, key, cin):
        """Pack cv2/cv3 branches into fused (concat / block-diagonal) bf16 weights."""
        c2, c3, rm, nc = self.c2, self.c3, self.reg_max, self.nc
        nmid, no = c2 + c3, 4 * rm + nc
        k = jax.random.split(key, 6)
        w20, s20, b20 = _conv_bn_params(k[0], cin, c2)
        w21, s21, b21 = _conv_bn_params(k[1], c2, c2)
        w22, bh2 = _conv1x1_params(k[2], c2, 4 * rm)
        w30, s30, b30 = _conv_bn_params(k[3], cin, c3)
        w31, s31, b31 = _conv_bn_params(k[4], c3, c3)
        w32, bh3 = _conv1x1_params(k[5], c3, nc)
        w0 = jnp.concatenate([w20, w30], axis=-1)                       # (3,3,cin,nmid)
        w1 = jnp.zeros((3, 3, nmid, nmid), jnp.float32)
        w1 = w1.at[:, :, :c2, :c2].set(w21).at[:, :, c2:, c2:].set(w31)
        wh = jnp.zeros((nmid, no), jnp.float32)
        wh = wh.at[:c2, :4 * rm].set(w22).at[c2:, 4 * rm:].set(w32)
        cat = lambda a, b: jnp.concatenate([a, b])[None, :]
        return dict(
            w0=w0.reshape(9, cin, nmid).astype(jnp.bfloat16),
            s0=cat(s20, s30), b0=cat(b20, b30),
            w1=w1.reshape(9, nmid, nmid).astype(jnp.bfloat16),
            s1=cat(s21, s31), b1=cat(b21, b31),
            wh=wh.astype(jnp.bfloat16), bh=cat(bh2, bh3))

    def __call__(self, x_list):
        B = x_list[0].shape[0]
        x_out, flat, shapes = [], [], []
        for i in range(self.nl):
            p = self.params[i]
            xi = jnp.transpose(x_list[i], (0, 2, 3, 1))        # NCHW -> NHWC
            H, W = xi.shape[1], xi.shape[2]
            shapes.append((H, W))
            Hp, Wp = H + 2, W + 2
            P = Hp * Wp
            P2 = ((P + 2 + 7) // 8) * 8                        # room for the last tap window
            xpf = jnp.pad(xi, ((0, 0), (1, 1), (1, 1), (0, 0))).reshape(B, P, xi.shape[-1])
            xpf = jnp.pad(xpf, ((0, 0), (0, P2 - P), (0, 0))).astype(jnp.bfloat16)
            mask = jnp.zeros((Hp, Wp), jnp.float32).at[1:H + 1, 1:W + 1].set(1.0)
            mask = jnp.pad(mask.reshape(P, 1), ((0, P2 - P), (0, 0)))
            out = _run_level(xpf, mask, p, H, W)               # (B, H*Wp, no) f32
            feat = out.reshape(B, H, Wp, self.no)[:, :, :W, :]  # drop the pad columns
            xo = jnp.transpose(feat, (0, 3, 1, 2))             # (B, no, H, W)
            x_out.append(xo)
            flat.append(xo.reshape(B, self.no, H * W))
        x_cat = jnp.concatenate(flat, axis=2)                  # (B, no, A)
        ap, st = make_anchors(shapes, self.stride, 0.5)
        y = _decode(x_cat, jnp.transpose(ap), jnp.transpose(st), self.reg_max, self.nc)
        return y, x_out


# ----------------------------------------------------------------------------
# Pure-JAX reference (same bf16 operand rounding as the kernels, fp32 accumulation)
# ----------------------------------------------------------------------------
def _ref_forward(det, x_list):
    hp = jax.lax.Precision.HIGHEST
    f32 = jnp.float32
    rbf = lambda a: a.astype(jnp.bfloat16).astype(f32)

    def conv_bn_silu(x, w9, s, b):
        ci, co = w9.shape[1], w9.shape[2]
        w = w9.astype(f32).reshape(3, 3, ci, co)
        y = jax.lax.conv_general_dilated(
            x, w, (1, 1), ((1, 1), (1, 1)),
            dimension_numbers=("NHWC", "HWIO", "NHWC"), precision=hp)
        y = y * s.reshape(1, 1, 1, -1) + b.reshape(1, 1, 1, -1)
        return y * jax.nn.sigmoid(y)

    B = x_list[0].shape[0]
    x_out, flat, shapes = [], [], []
    for i in range(det.nl):
        p = det.params[i]
        xi = rbf(jnp.transpose(x_list[i], (0, 2, 3, 1)))
        H, W = xi.shape[1], xi.shape[2]
        shapes.append((H, W))
        a0 = rbf(conv_bn_silu(xi, p["w0"], p["s0"], p["b0"]))
        a1 = rbf(conv_bn_silu(a0, p["w1"], p["s1"], p["b1"]))
        feat = jnp.einsum("bhwc,cd->bhwd", a1, p["wh"].astype(f32),
                          precision=hp) + p["bh"].reshape(1, 1, 1, -1)
        xo = jnp.transpose(feat, (0, 3, 1, 2))
        x_out.append(xo)
        flat.append(xo.reshape(B, det.no, H * W))
    x_cat = jnp.concatenate(flat, axis=2)
    box = x_cat[:, :4 * det.reg_max, :]
    cls = x_cat[:, 4 * det.reg_max:, :]
    A = box.shape[-1]

    prob = jax.nn.softmax(box.reshape(B, 4, det.reg_max, A), axis=2)
    dist = jnp.einsum("bgra,r->bga", prob, jnp.arange(det.reg_max, dtype=f32))
    ap, st = make_anchors(shapes, det.stride, 0.5)
    anch = jnp.transpose(ap)[None]
    strides = jnp.transpose(st)
    lt, rb = dist[:, :2], dist[:, 2:]
    x1y1 = anch - lt
    x2y2 = anch + rb
    dbox = jnp.concatenate([(x1y1 + x2y2) * 0.5, x2y2 - x1y1], axis=1) * strides
    y = jnp.concatenate([dbox, jax.nn.sigmoid(cls)], axis=1)
    return y, x_out


if __name__ == "__main__":
    key = jax.random.PRNGKey(0)
    kp, kx0, kx1, kx2 = jax.random.split(key, 4)

    B, nc = 2, 16
    ch = (32, 48, 64)
    hw = (16, 8, 4)

    det = Detect(nc=nc, ch=ch, key=kp)
    det.stride = jnp.array([8.0, 16.0, 32.0], jnp.float32)   # set at model build time (as in YOLO)

    xs = [jax.random.normal(k, (B, c, s, s), jnp.float32)
          for k, c, s in zip((kx0, kx1, kx2), ch, hw)]

    y, x_out = det(xs)
    y = jax.block_until_ready(y)

    # Correctness check vs pure-JAX reference.
    y_ref, x_ref = _ref_forward(det, xs)
    A = sum(s * s for s in hw)
    assert y.shape == (B, 4 + nc, A), (y.shape, (B, 4 + nc, A))
    assert jnp.allclose(y, y_ref, atol=1e-2, rtol=1e-2), float(jnp.abs(y - y_ref).max())
    for a, b in zip(x_out, x_ref):
        assert a.shape == b.shape, (a.shape, b.shape)
        assert jnp.allclose(a, b, atol=1e-2, rtol=1e-2), float(jnp.abs(a - b).max())

    print("KERNEL_OK")
</pallas_src>

<mosaic_0001>
module attributes {stable_mosaic.version = 11 : i64} {
  func.func @_level_kernel(%arg0: i32, %arg1: memref<1x328x32xbf16, #tpu.memory_space<vmem>>, %arg2: memref<328x1xf32, #tpu.memory_space<vmem>>, %arg3: memref<9x32x96xbf16, #tpu.memory_space<vmem>>, %arg4: memref<1x96xf32, #tpu.memory_space<vmem>>, %arg5: memref<1x96xf32, #tpu.memory_space<vmem>>, %arg6: memref<9x96x96xbf16, #tpu.memory_space<vmem>>, %arg7: memref<1x96xf32, #tpu.memory_space<vmem>>, %arg8: memref<1x96xf32, #tpu.memory_space<vmem>>, %arg9: memref<96x80xbf16, #tpu.memory_space<vmem>>, %arg10: memref<1x80xf32, #tpu.memory_space<vmem>>, %arg11: memref<1x288x80xf32, #tpu.memory_space<vmem>>, %arg12: memref<328x96xf32, #tpu.memory_space<vmem>>) attributes {dimension_semantics = [#tpu.dimension_semantics<parallel>], iteration_bounds = array<i64: 2>, scalar_prefetch = 0 : i64, scratch_operands = 1 : i64, tpu.core_type = #tpu.core_type<tc>, window_params = [{transform_indices = @transform_0, window_bounds = array<i64: 1, 328, 32>}, {pipeline_mode = #tpu.pipeline_mode<synchronous>, transform_indices = @transform_1, window_bounds = array<i64: 328, 1>}, {pipeline_mode = #tpu.pipeline_mode<synchronous>, transform_indices = @transform_2, window_bounds = array<i64: 9, 32, 96>}, {pipeline_mode = #tpu.pipeline_mode<synchronous>, transform_indices = @transform_3, window_bounds = array<i64: 1, 96>}, {pipeline_mode = #tpu.pipeline_mode<synchronous>, transform_indices = @transform_4, window_bounds = array<i64: 1, 96>}, {pipeline_mode = #tpu.pipeline_mode<synchronous>, transform_indices = @transform_5, window_bounds = array<i64: 9, 96, 96>}, {pipeline_mode = #tpu.pipeline_mode<synchronous>, transform_indices = @transform_6, window_bounds = array<i64: 1, 96>}, {pipeline_mode = #tpu.pipeline_mode<synchronous>, transform_indices = @transform_7, window_bounds = array<i64: 1, 96>}, {pipeline_mode = #tpu.pipeline_mode<synchronous>, transform_indices = @transform_8, window_bounds = array<i64: 96, 80>}, {pipeline_mode = #tpu.pipeline_mode<synchronous>, transform_indices = @transform_9, window_bounds = array<i64: 1, 80>}, {transform_indices = @transform_10, window_bounds = array<i64: 1, 288, 80>}]} {
    %c19 = arith.constant 19 : index
    %c0 = arith.constant 0 : index
    %0 = vector.load %arg2[%c19, %c0] : memref<328x1xf32, #tpu.memory_space<vmem>>, vector<288x1xf32>
    %c0_0 = arith.constant 0 : index
    %c0_1 = arith.constant 0 : index
    %c0_2 = arith.constant 0 : index
    %1 = vector.load %arg1[%c0_0, %c0_1, %c0_2] : memref<1x328x32xbf16, #tpu.memory_space<vmem>>, vector<1x288x32xbf16>
    %2 = vector.shape_cast %1 : vector<1x288x32xbf16> to vector<288x32xbf16>
    %c0_3 = arith.constant 0 : index
    %c0_4 = arith.constant 0 : index
    %c0_5 = arith.constant 0 : index
    %3 = vector.load %arg3[%c0_3, %c0_4, %c0_5] : memref<9x32x96xbf16, #tpu.memory_space<vmem>>, vector<1x32x96xbf16>
    %4 = vector.shape_cast %3 : vector<1x32x96xbf16> to vector<32x96xbf16>
    %cst = arith.constant dense<0.000000e+00> : vector<288x96xf32>
    %5 = tpu.matmul %2, %4, %cst {dimension_numbers = #tpu.dot_dimension_numbers<[1], [0], [0], [1], [0, 0, 1, 1], [], []>} : vector<288x32xbf16>, vector<32x96xbf16>, vector<288x96xf32> -> vector<288x96xf32>
    %c0_6 = arith.constant 0 : index
    %c1 = arith.constant 1 : index
    %c0_7 = arith.constant 0 : index
    %6 = vector.load %arg1[%c0_6, %c1, %c0_7] : memref<1x328x32xbf16, #tpu.memory_space<vmem>>, vector<1x288x32xbf16>
    %7 = vector.shape_cast %6 : vector<1x288x32xbf16> to vector<288x32xbf16>
    %c1_8 = arith.constant 1 : index
    %c0_9 = arith.constant 0 : index
    %c0_10 = arith.constant 0 : index
    %8 = vector.load %arg3[%c1_8, %c0_9, %c0_10] : memref<9x32x96xbf16, #tpu.memory_space<vmem>>, vector<1x32x96xbf16>
    %9 = vector.shape_cast %8 : vector<1x32x96xbf16> to vector<32x96xbf16>
    %cst_11 = arith.constant dense<0.000000e+00> : vector<288x96xf32>
    %10 = tpu.matmul %7, %9, %cst_11 {dimension_numbers = #tpu.dot_dimension_numbers<[1], [0], [0], [1], [0, 0, 1, 1], [], []>} : vector<288x32xbf16>, vector<32x96xbf16>, vector<288x96xf32> -> vector<288x96xf32>
    %11 = arith.addf %5, %10 : vector<288x96xf32>
    %c0_12 = arith.constant 0 : index
    %c2 = arith.constant 2 : index
    %c0_13 = arith.constant 0 : index
    %12 = vector.load %arg1[%c0_12, %c2, %c0_13] : memref<1x328x32xbf16, #tpu.memory_space<vmem>>, vector<1x288x32xbf16>
    %13 = vector.shape_cast %12 : vector<1x288x32xbf16> to vector<288x32xbf16>
    %c2_14 = arith.constant 2 : index
    %c0_15 = arith.constant 0 : index
    %c0_16 = arith.constant 0 : index
    %14 = vector.load %arg3[%c2_14, %c0_15, %c0_16] : memref<9x32x96xbf16, #tpu.memory_space<vmem>>, vector<1x32x96xbf16>
    %15 = vector.shape_cast %14 : vector<1x32x96xbf16> to vector<32x96xbf16>
    %cst_17 = arith.constant dense<0.000000e+00> : vector<288x96xf32>
    %16 = tpu.matmul %13, %15, %cst_17 {dimension_numbers = #tpu.dot_dimension_numbers<[1], [0], [0], [1], [0, 0, 1, 1], [], []>} : vector<288x32xbf16>, vector<32x96xbf16>, vector<288x96xf32> -> vector<288x96xf32>
    %17 = arith.addf %11, %16 : vector<288x96xf32>
    %c0_18 = arith.constant 0 : index
    %c18 = arith.constant 18 : index
    %c0_19 = arith.constant 0 : index
    %18 = vector.load %arg1[%c0_18, %c18, %c0_19] : memref<1x328x32xbf16, #tpu.memory_space<vmem>>, vector<1x288x32xbf16>
    %19 = vector.shape_cast %18 : vector<1x288x32xbf16> to vector<288x32xbf16>
    %c3 = arith.constant 3 : index
    %c0_20 = arith.constant 0 : index
    %c0_21 = arith.constant 0 : index
    %20 = vector.load %arg3[%c3, %c0_20, %c0_21] : memref<9x32x96xbf16, #tpu.memory_space<vmem>>, vector<1x32x96xbf16>
    %21 = vector.shape_cast %20 : vector<1x32x96xbf16> to vector<32x96xbf16>
    %cst_22 = arith.constant dense<0.000000e+00> : vector<288x96xf32>
    %22 = tpu.matmul %19, %21, %cst_22 {dimension_numbers = #tpu.dot_dimension_numbers<[1], [0], [0], [1], [0, 0, 1, 1], [], []>} : vector<288x32xbf16>, vector<32x96xbf16>, vector<288x96xf32> -> vector<288x96xf32>
    %23 = arith.addf %17, %22 : vector<288x96xf32>
    %c0_23 = arith.constant 0 : index
    %c19_24 = arith.constant 19 : index
    %c0_25 = arith.constant 0 : index
    %24 = vector.load %arg1[%c0_23, %c19_24, %c0_25] : memref<1x328x32xbf16, #tpu.memory_space<vmem>>, vector<1x288x32xbf16>
    %25 = vector.shape_cast %24 : vector<1x288x32xbf16> to vector<288x32xbf16>
    %c4 = arith.constant 4 : index
    %c0_26 = arith.constant 0 : index
    %c0_27 = arith.constant 0 : index
    %26 = vector.load %arg3[%c4, %c0_26, %c0_27] : memref<9x32x96xbf16, #tpu.memory_space<vmem>>, vector<1x32x96xbf16>
    %27 = vector.shape_cast %26 : vector<1x32x96xbf16> to vector<32x96xbf16>
    %cst_28 = arith.constant dense<0.000000e+00> : vector<288x96xf32>
    %28 = tpu.matmul %25, %27, %cst_28 {dimension_numbers = #tpu.dot_dimension_numbers<[1], [0], [0], [1], [0, 0, 1, 1], [], []>} : vector<288x32xbf16>, vector<32x96xbf16>, vector<288x96xf32> -> vector<288x96xf32>
    %29 = arith.addf %23, %28 : vector<288x96xf32>
    %c0_29 = arith.constant 0 : index
    %c20 = arith.constant 20 : index
    %c0_30 = arith.constant 0 : index
    %30 = vector.load %arg1[%c0_29, %c20, %c0_30] : memref<1x328x32xbf16, #tpu.memory_space<vmem>>, vector<1x288x32xbf16>
    %31 = vector.shape_cast %30 : vector<1x288x32xbf16> to vector<288x32xbf16>
    %c5 = arith.constant 5 : index
    %c0_31 = arith.constant 0 : index
    %c0_32 = arith.constant 0 : index
    %32 = vector.load %arg3[%c5, %c0_31, %c0_32] : memref<9x32x96xbf16, #tpu.memory_space<vmem>>, vector<1x32x96xbf16>
    %33 = vector.shape_cast %32 : vector<1x32x96xbf16> to vector<32x96xbf16>
    %cst_33 = arith.constant dense<0.000000e+00> : vector<288x96xf32>
    %34 = tpu.matmul %31, %33, %cst_33 {dimension_numbers = #tpu.dot_dimension_numbers<[1], [0], [0], [1], [0, 0, 1, 1], [], []>} : vector<288x32xbf16>, vector<32x96xbf16>, vector<288x96xf32> -> vector<288x96xf32>
    %35 = arith.addf %29, %34 : vector<288x96xf32>
    %c0_34 = arith.constant 0 : index
    %c36 = arith.constant 36 : index
    %c0_35 = arith.constant 0 : index
    %36 = vector.load %arg1[%c0_34, %c36, %c0_35] : memref<1x328x32xbf16, #tpu.memory_space<vmem>>, vector<1x288x32xbf16>
    %37 = vector.shape_cast %36 : vector<1x288x32xbf16> to vector<288x32xbf16>
    %c6 = arith.constant 6 : index
    %c0_36 = arith.constant 0 : index
    %c0_37 = arith.constant 0 : index
    %38 = vector.load %arg3[%c6, %c0_36, %c0_37] : memref<9x32x96xbf16, #tpu.memory_space<vmem>>, vector<1x32x96xbf16>
    %39 = vector.shape_cast %38 : vector<1x32x96xbf16> to vector<32x96xbf16>
    %cst_38 = arith.constant dense<0.000000e+00> : vector<288x96xf32>
    %40 = tpu.matmul %37, %39, %cst_38 {dimension_numbers = #tpu.dot_dimension_numbers<[1], [0], [0], [1], [0, 0, 1, 1], [], []>} : vector<288x32xbf16>, vector<32x96xbf16>, vector<288x96xf32> -> vector<288x96xf32>
    %41 = arith.addf %35, %40 : vector<288x96xf32>
    %c0_39 = arith.constant 0 : index
    %c37 = arith.constant 37 : index
    %c0_40 = arith.constant 0 : index
    %42 = vector.load %arg1[%c0_39, %c37, %c0_40] : memref<1x328x32xbf16, #tpu.memory_space<vmem>>, vector<1x288x32xbf16>
    %43 = vector.shape_cast %42 : vector<1x288x32xbf16> to vector<288x32xbf16>
    %c7 = arith.constant 7 : index
    %c0_41 = arith.constant 0 : index
    %c0_42 = arith.constant 0 : index
    %44 = vector.load %arg3[%c7, %c0_41, %c0_42] : memref<9x32x96xbf16, #tpu.memory_space<vmem>>, vector<1x32x96xbf16>
    %45 = vector.shape_cast %44 : vector<1x32x96xbf16> to vector<32x96xbf16>
    %cst_43 = arith.constant dense<0.000000e+00> : vector<288x96xf32>
    %46 = tpu.matmul %43, %45, %cst_43 {dimension_numbers = #tpu.dot_dimension_numbers<[1], [0], [0], [1], [0, 0, 1, 1], [], []>} : vector<288x32xbf16>, vector<32x96xbf16>, vector<288x96xf32> -> vector<288x96xf32>
    %47 = arith.addf %41, %46 : vector<288x96xf32>
    %c0_44 = arith.constant 0 : index
    %c38 = arith.constant 38 : index
    %c0_45 = arith.constant 0 : index
    %48 = vector.load %arg1[%c0_44, %c38, %c0_45] : memref<1x328x32xbf16, #tpu.memory_space<vmem>>, vector<1x288x32xbf16>
    %49 = vector.shape_cast %48 : vector<1x288x32xbf16> to vector<288x32xbf16>
    %c8 = arith.constant 8 : index
    %c0_46 = arith.constant 0 : index
    %c0_47 = arith.constant 0 : index
    %50 = vector.load %arg3[%c8, %c0_46, %c0_47] : memref<9x32x96xbf16, #tpu.memory_space<vmem>>, vector<1x32x96xbf16>
    %51 = vector.shape_cast %50 : vector<1x32x96xbf16> to vector<32x96xbf16>
    %cst_48 = arith.constant dense<0.000000e+00> : vector<288x96xf32>
    %52 = tpu.matmul %49, %51, %cst_48 {dimension_numbers = #tpu.dot_dimension_numbers<[1], [0], [0], [1], [0, 0, 1, 1], [], []>} : vector<288x32xbf16>, vector<32x96xbf16>, vector<288x96xf32> -> vector<288x96xf32>
    %53 = arith.addf %47, %52 : vector<288x96xf32>
    %c0_49 = arith.constant 0 : index
    %c0_50 = arith.constant 0 : index
    %54 = vector.load %arg4[%c0_49, %c0_50] : memref<1x96xf32, #tpu.memory_space<vmem>>, vector<1x96xf32>
    %55 = vector.broadcast %54 : vector<1x96xf32> to vector<288x96xf32>
    %56 = arith.mulf %53, %55 : vector<288x96xf32>
    %c0_51 = arith.constant 0 : index
    %c0_52 = arith.constant 0 : index
    %57 = vector.load %arg5[%c0_51, %c0_52] : memref<1x96xf32, #tpu.memory_space<vmem>>, vector<1x96xf32>
    %58 = vector.broadcast %57 : vector<1x96xf32> to vector<288x96xf32>
    %59 = arith.addf %56, %58 : vector<288x96xf32>
    %60 = arith.negf %59 : vector<288x96xf32>
    %61 = math.exp %60 : vector<288x96xf32>
    %cst_53 = arith.constant 1.000000e+00 : f32
    %62 = vector.broadcast %cst_53 : f32 to vector<288x96xf32>
    %63 = arith.addf %62, %61 : vector<288x96xf32>
    %64 = arith.divf %62, %63 : vector<288x96xf32>
    %65 = arith.mulf %59, %64 : vector<288x96xf32>
    %66 = vector.broadcast %0 : vector<288x1xf32> to vector<288x96xf32>
    %67 = arith.mulf %65, %66 : vector<288x96xf32>
    %cst_54 = arith.constant 0.000000e+00 : f32
    %68 = vector.broadcast %cst_54 : f32 to vector<328x96xf32>
    %c0_55 = arith.constant 0 : index
    %c0_56 = arith.constant 0 : index
    %69 = vector.load %arg12[%c0_55, %c0_56] : memref<328x96xf32, #tpu.memory_space<vmem>>, vector<328x96xf32>
    tpu.vector_store %arg12[%c0_55, %c0_56], %68 {strides = array<i32>} : memref<328x96xf32, #tpu.memory_space<vmem>>, vector<328x96xf32>,
    %c19_57 = arith.constant 19 : index
    %c0_58 = arith.constant 0 : index
    %70 = vector.load %arg12[%c19_57, %c0_58] : memref<328x96xf32, #tpu.memory_space<vmem>>, vector<288x96xf32>
    tpu.vector_store %arg12[%c19_57, %c0_58], %67 {strides = array<i32>} : memref<328x96xf32, #tpu.memory_space<vmem>>, vector<288x96xf32>,
    %c0_59 = arith.constant 0 : index
    %c0_60 = arith.constant 0 : index
    %71 = vector.load %arg12[%c0_59, %c0_60] : memref<328x96xf32, #tpu.memory_space<vmem>>, vector<288x96xf32>
    %72 = arith.truncf %71 : vector<288x96xf32> to vector<288x96xbf16>
    %c0_61 = arith.constant 0 : index
    %c0_62 = arith.constant 0 : index
    %c0_63 = arith.constant 0 : index
    %73 = vector.load %arg6[%c0_61, %c0_62, %c0_63] : memref<9x96x96xbf16, #tpu.memory_space<vmem>>, vector<1x96x96xbf16>
    %74 = vector.shape_cast %73 : vector<1x96x96xbf16> to vector<96x96xbf16>
    %cst_64 = arith.constant dense<0.000000e+00> : vector<288x96xf32>
    %75 = tpu.matmul %72, %74, %cst_64 {dimension_numbers = #tpu.dot_dimension_numbers<[1], [0], [0], [1], [0, 0, 1, 1], [], []>} : vector<288x96xbf16>, vector<96x96xbf16>, vector<288x96xf32> -> vector<288x96xf32>
    %c1_65 = arith.constant 1 : index
    %c0_66 = arith.constant 0 : index
    %76 = vector.load %arg12[%c1_65, %c0_66] : memref<328x96xf32, #tpu.memory_space<vmem>>, vector<288x96xf32>
    %77 = arith.truncf %76 : vector<288x96xf32> to vector<288x96xbf16>
    %c1_67 = arith.constant 1 : index
    %c0_68 = arith.constant 0 : index
    %c0_69 = arith.constant 0 : index
    %78 = vector.load %arg6[%c1_67, %c0_68, %c0_69] : memref<9x96x96xbf16, #tpu.memory_space<vmem>>, vector<1x96x96xbf16>
    %79 = vector.shape_cast %78 : vector<1x96x96xbf16> to vector<96x96xbf16>
    %cst_70 = arith.constant dense<0.000000e+00> : vector<288x96xf32>
    %80 = tpu.matmul %77, %79, %cst_70 {dimension_numbers = #tpu.dot_dimension_numbers<[1], [0], [0], [1], [0, 0, 1, 1], [], []>} : vector<288x96xbf16>, vector<96x96xbf16>, vector<288x96xf32> -> vector<288x96xf32>
    %81 = arith.addf %75, %80 : vector<288x96xf32>
    %c2_71 = arith.constant 2 : index
    %c0_72 = arith.constant 0 : index
    %82 = vector.load %arg12[%c2_71, %c0_72] : memref<328x96xf32, #tpu.memory_space<vmem>>, vector<288x96xf32>
    %83 = arith.truncf %82 : vector<288x96xf32> to vector<288x96xbf16>
    %c2_73 = arith.constant 2 : index
    %c0_74 = arith.constant 0 : index
    %c0_75 = arith.constant 0 : index
    %84 = vector.load %arg6[%c2_73, %c0_74, %c0_75] : memref<9x96x96xbf16, #tpu.memory_space<vmem>>, vector<1x96x96xbf16>
    %85 = vector.shape_cast %84 : vector<1x96x96xbf16> to vector<96x96xbf16>
    %cst_76 = arith.constant dense<0.000000e+00> : vector<288x96xf32>
    %86 = tpu.matmul %83, %85, %cst_76 {dimension_numbers = #tpu.dot_dimension_numbers<[1], [0], [0], [1], [0, 0, 1, 1], [], []>} : vector<288x96xbf16>, vector<96x96xbf16>, vector<288x96xf32> -> vector<288x96xf32>
    %87 = arith.addf %81, %86 : vector<288x96xf32>
    %c18_77 = arith.constant 18 : index
    %c0_78 = arith.constant 0 : index
    %88 = vector.load %arg12[%c18_77, %c0_78] : memref<328x96xf32, #tpu.memory_space<vmem>>, vector<288x96xf32>
    %89 = arith.truncf %88 : vector<288x96xf32> to vector<288x96xbf16>
    %c3_79 = arith.constant 3 : index
    %c0_80 = arith.constant 0 : index
    %c0_81 = arith.constant 0 : index
    %90 = vector.load %arg6[%c3_79, %c0_80, %c0_81] : memref<9x96x96xbf16, #tpu.memory_space<vmem>>, vector<1x96x96xbf16>
    %91 = vector.shape_cast %90 : vector<1x96x96xbf16> to vector<96x96xbf16>
    %cst_82 = arith.constant dense<0.000000e+00> : vector<288x96xf32>
    %92 = tpu.matmul %89, %91, %cst_82 {dimension_numbers = #tpu.dot_dimension_numbers<[1], [0], [0], [1], [0, 0, 1, 1], [], []>} : vector<288x96xbf16>, vector<96x96xbf16>, vector<288x96xf32> -> vector<288x96xf32>
    %93 = arith.addf %87, %92 : vector<288x96xf32>
    %c19_83 = arith.constant 19 : index
    %c0_84 = arith.constant 0 : index
    %94 = vector.load %arg12[%c19_83, %c0_84] : memref<328x96xf32, #tpu.memory_space<vmem>>, vector<288x96xf32>
    %95 = arith.truncf %94 : vector<288x96xf32> to vector<288x96xbf16>
    %c4_85 = arith.constant 4 : index
    %c0_86 = arith.constant 0 : index
    %c0_87 = arith.constant 0 : index
    %96 = vector.load %arg6[%c4_85, %c0_86, %c0_87] : memref<9x96x96xbf16, #tpu.memory_space<vmem>>, vector<1x96x96xbf16>
    %97 = vector.shape_cast %96 : vector<1x96x96xbf16> to vector<96x96xbf16>
    %cst_88 = arith.constant dense<0.000000e+00> : vector<288x96xf32>
    %98 = tpu.matmul %95, %97, %cst_88 {dimension_numbers = #tpu.dot_dimension_numbers<[1], [0], [0], [1], [0, 0, 1, 1], [], []>} : vector<288x96xbf16>, vector<96x96xbf16>, vector<288x96xf32> -> vector<288x96xf32>
    %99 = arith.addf %93, %98 : vector<288x96xf32>
    %c20_89 = arith.constant 20 : index
    %c0_90 = arith.constant 0 : index
    %100 = vector.load %arg12[%c20_89, %c0_90] : memref<328x96xf32, #tpu.memory_space<vmem>>, vector<288x96xf32>
    %101 = arith.truncf %100 : vector<288x96xf32> to vector<288x96xbf16>
    %c5_91 = arith.constant 5 : index
    %c0_92 = arith.constant 0 : index
    %c0_93 = arith.constant 0 : index
    %102 = vector.load %arg6[%c5_91, %c0_92, %c0_93] : memref<9x96x96xbf16, #tpu.memory_space<vmem>>, vector<1x96x96xbf16>
    %103 = vector.shape_cast %102 : vector<1x96x96xbf16> to vector<96x96xbf16>
    %cst_94 = arith.constant dense<0.000000e+00> : vector<288x96xf32>
    %104 = tpu.matmul %101, %103, %cst_94 {dimension_numbers = #tpu.dot_dimension_numbers<[1], [0], [0], [1], [0, 0, 1, 1], [], []>} : vector<288x96xbf16>, vector<96x96xbf16>, vector<288x96xf32> -> vector<288x96xf32>
    %105 = arith.addf %99, %104 : vector<288x96xf32>
    %c36_95 = arith.constant 36 : index
    %c0_96 = arith.constant 0 : index
    %106 = vector.load %arg12[%c36_95, %c0_96] : memref<328x96xf32, #tpu.memory_space<vmem>>, vector<288x96xf32>
    %107 = arith.truncf %106 : vector<288x96xf32> to vector<288x96xbf16>
    %c6_97 = arith.constant 6 : index
    %c0_98 = arith.constant 0 : index
    %c0_99 = arith.constant 0 : index
    %108 = vector.load %arg6[%c6_97, %c0_98, %c0_99] : memref<9x96x96xbf16, #tpu.memory_space<vmem>>, vector<1x96x96xbf16>
    %109 = vector.shape_cast %108 : vector<1x96x96xbf16> to vector<96x96xbf16>
    %cst_100 = arith.constant dense<0.000000e+00> : vector<288x96xf32>
    %110 = tpu.matmul %107, %109, %cst_100 {dimension_numbers = #tpu.dot_dimension_numbers<[1], [0], [0], [1], [0, 0, 1, 1], [], []>} : vector<288x96xbf16>, vector<96x96xbf16>, vector<288x96xf32> -> vector<288x96xf32>
    %111 = arith.addf %105, %110 : vector<288x96xf32>
    %c37_101 = arith.constant 37 : index
    %c0_102 = arith.constant 0 : index
    %112 = vector.load %arg12[%c37_101, %c0_102] : memref<328x96xf32, #tpu.memory_space<vmem>>, vector<288x96xf32>
    %113 = arith.truncf %112 : vector<288x96xf32> to vector<288x96xbf16>
    %c7_103 = arith.constant 7 : index
    %c0_104 = arith.constant 0 : index
    %c0_105 = arith.constant 0 : index
    %114 = vector.load %arg6[%c7_103, %c0_104, %c0_105] : memref<9x96x96xbf16, #tpu.memory_space<vmem>>, vector<1x96x96xbf16>
    %115 = vector.shape_cast %114 : vector<1x96x96xbf16> to vector<96x96xbf16>
    %cst_106 = arith.constant dense<0.000000e+00> : vector<288x96xf32>
    %116 = tpu.matmul %113, %115, %cst_106 {dimension_numbers = #tpu.dot_dimension_numbers<[1], [0], [0], [1], [0, 0, 1, 1], [], []>} : vector<288x96xbf16>, vector<96x96xbf16>, vector<288x96xf32> -> vector<288x96xf32>
    %117 = arith.addf %111, %116 : vector<288x96xf32>
    %c38_107 = arith.constant 38 : index
    %c0_108 = arith.constant 0 : index
    %118 = vector.load %arg12[%c38_107, %c0_108] : memref<328x96xf32, #tpu.memory_space<vmem>>, vector<288x96xf32>
    %119 = arith.truncf %118 : vector<288x96xf32> to vector<288x96xbf16>
    %c8_109 = arith.constant 8 : index
    %c0_110 = arith.constant 0 : index
    %c0_111 = arith.constant 0 : index
    %120 = vector.load %arg6[%c8_109, %c0_110, %c0_111] : memref<9x96x96xbf16, #tpu.memory_space<vmem>>, vector<1x96x96xbf16>
    %121 = vector.shape_cast %120 : vector<1x96x96xbf16> to vector<96x96xbf16>
    %cst_112 = arith.constant dense<0.000000e+00> : vector<288x96xf32>
    %122 = tpu.matmul %119, %121, %cst_112 {dimension_numbers = #tpu.dot_dimension_numbers<[1], [0], [0], [1], [0, 0, 1, 1], [], []>} : vector<288x96xbf16>, vector<96x96xbf16>, vector<288x96xf32> -> vector<288x96xf32>
    %123 = arith.addf %117, %122 : vector<288x96xf32>
    %c0_113 = arith.constant 0 : index
    %c0_114 = arith.constant 0 : index
    %124 = vector.load %arg7[%c0_113, %c0_114] : memref<1x96xf32, #tpu.memory_space<vmem>>, vector<1x96xf32>
    %125 = vector.broadcast %124 : vector<1x96xf32> to vector<288x96xf32>
    %126 = arith.mulf %123, %125 : vector<288x96xf32>
    %c0_115 = arith.constant 0 : index
    %c0_116 = arith.constant 0 : index
    %127 = vector.load %arg8[%c0_115, %c0_116] : memref<1x96xf32, #tpu.memory_space<vmem>>, vector<1x96xf32>
    %128 = vector.broadcast %127 : vector<1x96xf32> to vector<288x96xf32>
    %129 = arith.addf %126, %128 : vector<288x96xf32>
    %130 = arith.negf %129 : vector<288x96xf32>
    %131 = math.exp %130 : vector<288x96xf32>
    %cst_117 = arith.constant 1.000000e+00 : f32
    %132 = vector.broadcast %cst_117 : f32 to vector<288x96xf32>
    %133 = arith.addf %132, %131 : vector<288x96xf32>
    %134 = arith.divf %132, %133 : vector<288x96xf32>
    %135 = arith.mulf %129, %134 : vector<288x96xf32>
    %136 = arith.truncf %135 : vector<288x96xf32> to vector<288x96xbf16>
    %c0_118 = arith.constant 0 : index
    %c0_119 = arith.constant 0 : index
    %137 = vector.load %arg9[%c0_118, %c0_119] : memref<96x80xbf16, #tpu.memory_space<vmem>>, vector<96x80xbf16>
    %cst_120 = arith.constant dense<0.000000e+00> : vector<288x80xf32>
    %138 = tpu.matmul %136, %137, %cst_120 {dimension_numbers = #tpu.dot_dimension_numbers<[1], [0], [0], [1], [0, 0, 1, 1], [], []>} : vector<288x96xbf16>, vector<96x80xbf16>, vector<288x80xf32> -> vector<288x80xf32>
    %c0_121 = arith.constant 0 : index
    %c0_122 = arith.constant 0 : index
    %139 = vector.load %arg10[%c0_121, %c0_122] : memref<1x80xf32, #tpu.memory_space<vmem>>, vector<1x80xf32>
    %140 = vector.broadcast %139 : vector<1x80xf32> to vector<288x80xf32>
    %141 = arith.addf %138, %140 : vector<288x80xf32>
    %c0_123 = arith.constant 0 : index
    %c0_124 = arith.constant 0 : index
    %c0_125 = arith.constant 0 : index
    %142 = vector.load %arg11[%c0_123, %c0_124, %c0_125] : memref<1x288x80xf32, #tpu.memory_space<vmem>>, vector<1x288x80xf32>
    %143 = vector.shape_cast %142 : vector<1x288x80xf32> to vector<288x80xf32>
    %144 = vector.shape_cast %141 : vector<288x80xf32> to vector<1x288x80xf32>
    tpu.vector_store %arg11[%c0_123, %c0_124, %c0_125], %144 {strides = array<i32>} : memref<1x288x80xf32, #tpu.memory_space<vmem>>, vector<1x288x80xf32>,
    return
  }
  func.func @transform_0(%arg0: i32) -> (i32, i32, i32) {
    %c0_i32 = arith.constant 0 : i32
    %c0_i32_0 = arith.constant 0 : i32
    %c0_i32_1 = arith.constant 0 : i32
    return %arg0, %c0_i32, %c0_i32_0 : i32, i32, i32
  }
  func.func @transform_1(%arg0: i32) -> (i32, i32) {
    %c0_i32 = arith.constant 0 : i32
    %c0_i32_0 = arith.constant 0 : i32
    %c0_i32_1 = arith.constant 0 : i32
    return %c0_i32, %c0_i32_0 : i32, i32
  }
  func.func @transform_2(%arg0: i32) -> (i32, i32, i32) {
    %c0_i32 = arith.constant 0 : i32
    %c0_i32_0 = arith.constant 0 : i32
    %c0_i32_1 = arith.constant 0 : i32
    %c0_i32_2 = arith.constant 0 : i32
    return %c0_i32, %c0_i32_0, %c0_i32_1 : i32, i32, i32
  }
  func.func @transform_3(%arg0: i32) -> (i32, i32) {
    %c0_i32 = arith.constant 0 : i32
    %c0_i32_0 = arith.constant 0 : i32
    %c0_i32_1 = arith.constant 0 : i32
    return %c0_i32, %c0_i32_0 : i32, i32
  }
  func.func @transform_4(%arg0: i32) -> (i32, i32) {
    %c0_i32 = arith.constant 0 : i32
    %c0_i32_0 = arith.constant 0 : i32
    %c0_i32_1 = arith.constant 0 : i32
    return %c0_i32, %c0_i32_0 : i32, i32
  }
  func.func @transform_5(%arg0: i32) -> (i32, i32, i32) {
    %c0_i32 = arith.constant 0 : i32
    %c0_i32_0 = arith.constant 0 : i32
    %c0_i32_1 = arith.constant 0 : i32
    %c0_i32_2 = arith.constant 0 : i32
    return %c0_i32, %c0_i32_0, %c0_i32_1 : i32, i32, i32
  }
  func.func @transform_6(%arg0: i32) -> (i32, i32) {
    %c0_i32 = arith.constant 0 : i32
    %c0_i32_0 = arith.constant 0 : i32
    %c0_i32_1 = arith.constant 0 : i32
    return %c0_i32, %c0_i32_0 : i32, i32
  }
  func.func @transform_7(%arg0: i32) -> (i32, i32) {
    %c0_i32 = arith.constant 0 : i32
    %c0_i32_0 = arith.constant 0 : i32
    %c0_i32_1 = arith.constant 0 : i32
    return %c0_i32, %c0_i32_0 : i32, i32
  }
  func.func @transform_8(%arg0: i32) -> (i32, i32) {
    %c0_i32 = arith.constant 0 : i32
    %c0_i32_0 = arith.constant 0 : i32
    %c0_i32_1 = arith.constant 0 : i32
    return %c0_i32, %c0_i32_0 : i32, i32
  }
  func.func @transform_9(%arg0: i32) -> (i32, i32) {
    %c0_i32 = arith.constant 0 : i32
    %c0_i32_0 = arith.constant 0 : i32
    %c0_i32_1 = arith.constant 0 : i32
    return %c0_i32, %c0_i32_0 : i32, i32
  }
  func.func @transform_10(%arg0: i32) -> (i32, i32, i32) {
    %c0_i32 = arith.constant 0 : i32
    %c0_i32_0 = arith.constant 0 : i32
    %c0_i32_1 = arith.constant 0 : i32
    return %arg0, %c0_i32, %c0_i32_0 : i32, i32, i32
  }
}

</mosaic_0001>

<llo_original>
// kernel: tpu_custom_call.1
$region0: #{tpu_custom_call.1}
  #allocation0 [shape = 'u32[]', space=smem, size = 0x4, offset = 0x4, fixed_abs, tag = 'smem constant byte address 0x4 - core index']
  #allocation1 [shape = 'u32[144,128]{1,0:T(1,128)}', space=vmem, size = 0x12000, scoped, tag = 'internal scratch']
  #allocation2 [shape = 'f32[328,96]{1,0:T(8,128)}', space=vmem, size = 0x29000, scoped, tag = 'scratch operand']
  %s0 = inlined_call_operand.vmem [shape: bf16[2,328,32], index: 0, kind: input, shape index: {}]
  %s1 = inlined_call_operand.vmem [shape: f32[328,1], index: 1, kind: input, shape index: {}]
  %s2 = inlined_call_operand.vmem [shape: bf16[9,32,96], index: 2, kind: input, shape index: {}]
  %s3 = inlined_call_operand.vmem [shape: f32[1,96], index: 3, kind: input, shape index: {}]
  %s4 = inlined_call_operand.vmem [shape: f32[1,96], index: 4, kind: input, shape index: {}]
  %s5 = inlined_call_operand.vmem [shape: bf16[9,96,96], index: 5, kind: input, shape index: {}]
  %s6 = inlined_call_operand.vmem [shape: f32[1,96], index: 6, kind: input, shape index: {}]
  %s7 = inlined_call_operand.vmem [shape: f32[1,96], index: 7, kind: input, shape index: {}]
  %s8 = inlined_call_operand.vmem [shape: bf16[96,80], index: 8, kind: input, shape index: {}]
  %s9 = inlined_call_operand.vmem [shape: f32[1,80], index: 9, kind: input, shape index: {}]
  %s10 = inlined_call_operand.vmem [shape: f32[2,288,80], index: 10, kind: output, shape index: {}]
  %s11 = sld [smem:[#allocation0]]
  $region73: #{tpu_custom_call.1} parent=0
    _
  %s13 = ssub.s32 1, %s11
  %s14 = scalar_select 0, %s13, %s11
  loop: start=0, step=1, limit=4
  $region2: #{tpu_custom_call.1} parent=0 // loop_pre_header
    _
  $region3: #{tpu_custom_call.1} parent=0 // loop_header
    %s16 = sphi 0, %s20
    %p17 = scmp.ge.s32.totalorder %s16, 4
    %s26 = sphi 0, %s28
    %s29 = sphi 0, %s26
    %s30 = sphi 0, %s29
    %s46 = sphi 0, %s30
    %s50 = sphi 0, %s50
    %s52 = sphi 0, %s50
    %s53 = sphi 0, %s52
    %s67 = sphi 0, %s53
    %s71 = sphi 0, %s71
    %s73 = sphi 0, %s71
    %s74 = sphi 0, %s73
    %s88 = sphi 0, %s74
    %s92 = sphi 0, %s92
    %s94 = sphi 0, %s92
    %s95 = sphi 0, %s94
    %s109 = sphi 0, %s95
    %s113 = sphi 0, %s113
    %s115 = sphi 0, %s113
    %s116 = sphi 0, %s115
    %s130 = sphi 0, %s116
    %s134 = sphi 0, %s134
    %s136 = sphi 0, %s134
    %s137 = sphi 0, %s136
    %s151 = sphi 0, %s137
    %s155 = sphi 0, %s155
    %s157 = sphi 0, %s155
    %s158 = sphi 0, %s157
    %s172 = sphi 0, %s158
    %s176 = sphi 0, %s176
    %s178 = sphi 0, %s176
    %s179 = sphi 0, %s178
    %s193 = sphi 0, %s179
    %s197 = sphi 0, %s197
    %s199 = sphi 0, %s197
    %s200 = sphi 0, %s199
    %s214 = sphi 0, %s200
    %s218 = sphi 0, %s218
    %s220 = sphi 0, %s218
    %s221 = sphi 0, %s220
    %s235 = sphi 0, %s221
    %s241 = sphi 0, %s243
    %s244 = sphi 0, %s241
    %s245 = sphi 0, %s244
    %s261 = sphi 0, %s245
  $region4: #{tpu_custom_call.1} parent=0 // loop_header_branch
    %19 = sbr.rel (%p17) target = $region8
  $region5: #{tpu_custom_call.1} parent=0 // loop_body
    %s21 = ssub.s32 %s16, 1
    %s22 = ssub.s32 %s16, 2
    %s23 = sadd.s32 %s16, 1
    %s24 = ssub.s32 %s16, %s23
    %p25 = scmp.eq.s32.totalorder %s24, 0
    %s27 = sadd.s32 %s26, 1
    %s28 = scalar_select %p25, %s26, %s27
    %p31 = pneg %p25
    %p32 = scmp.eq.s32.totalorder %s16, 1
    %p33 = por %p31, %p32
    %p34 = scmp.ne.s32.totalorder %s26, %s29
    %p35 = scmp.eq.s32.totalorder %s16, 0
    %p36 = por %p34, %p35
    %p37 = scmp.ne.s32.totalorder %s26, %s29
    %p38 = scmp.eq.s32.totalorder %s21, 1
    %p39 = por %p37, %p38
    %p40 = scmp.ne.s32.totalorder %s29, %s30
    %p41 = scmp.eq.s32.totalorder %s21, 0
    %p42 = por %p40, %p41
    %p43 = scmp.ne.s32.totalorder %s29, %s30
    %p44 = scmp.eq.s32.totalorder %s22, 1
    %p45 = por %p43, %p44
    %p47 = scmp.ne.s32.totalorder %s30, %s46
    %p48 = scmp.eq.s32.totalorder %s22, 0
    %p49 = por %p47, %p48
    %s51 = sadd.s32 %s50, 1
    %p54 = scmp.eq.s32.totalorder %s16, 1
    %p55 = scmp.ne.s32.totalorder %s50, %s52
    %p56 = scmp.eq.s32.totalorder %s16, 0
    %p57 = por %p55, %p56
    %p58 = scmp.ne.s32.totalorder %s50, %s52
    %p59 = scmp.eq.s32.totalorder %s21, 1
    %p60 = por %p58, %p59
    %p61 = scmp.ne.s32.totalorder %s52, %s53
    %p62 = scmp.eq.s32.totalorder %s21, 0
    %p63 = por %p61, %p62
    %p64 = scmp.ne.s32.totalorder %s52, %s53
    %p65 = scmp.eq.s32.totalorder %s22, 1
    %p66 = por %p64, %p65
    %p68 = scmp.ne.s32.totalorder %s53, %s67
    %p69 = scmp.eq.s32.totalorder %s22, 0
    %p70 = por %p68, %p69
    %s72 = sadd.s32 %s71, 1
    %p75 = scmp.eq.s32.totalorder %s16, 1
    %p76 = scmp.ne.s32.totalorder %s71, %s73
    %p77 = scmp.eq.s32.totalorder %s16, 0
    %p78 = por %p76, %p77
    %p79 = scmp.ne.s32.totalorder %s71, %s73
    %p80 = scmp.eq.s32.totalorder %s21, 1
    %p81 = por %p79, %p80
    %p82 = scmp.ne.s32.totalorder %s73, %s74
    %p83 = scmp.eq.s32.totalorder %s21, 0
    %p84 = por %p82, %p83
    %p85 = scmp.ne.s32.totalorder %s73, %s74
    %p86 = scmp.eq.s32.totalorder %s22, 1
    %p87 = por %p85, %p86
    %p89 = scmp.ne.s32.totalorder %s74, %s88
    %p90 = scmp.eq.s32.totalorder %s22, 0
    %p91 = por %p89, %p90
    %s93 = sadd.s32 %s92, 1
    %p96 = scmp.eq.s32.totalorder %s16, 1
    %p97 = scmp.ne.s32.totalorder %s92, %s94
    %p98 = scmp.eq.s32.totalorder %s16, 0
    %p99 = por %p97, %p98
    %p100 = scmp.ne.s32.totalorder %s92, %s94
    %p101 = scmp.eq.s32.totalorder %s21, 1
    %p102 = por %p100, %p101
    %p103 = scmp.ne.s32.totalorder %s94, %s95
    %p104 = scmp.eq.s32.totalorder %s21, 0
    %p105 = por %p103, %p104
    %p106 = scmp.ne.s32.totalorder %s94, %s95
    %p107 = scmp.eq.s32.totalorder %s22, 1
    %p108 = por %p106, %p107
    %p110 = scmp.ne.s32.totalorder %s95, %s109
    %p111 = scmp.eq.s32.totalorder %s22, 0
    %p112 = por %p110, %p111
    %s114 = sadd.s32 %s113, 1
    %p117 = scmp.eq.s32.totalorder %s16, 1
    %p118 = scmp.ne.s32.totalorder %s113, %s115
    %p119 = scmp.eq.s32.totalorder %s16, 0
    %p120 = por %p118, %p119
    %p121 = scmp.ne.s32.totalorder %s113, %s115
    %p122 = scmp.eq.s32.totalorder %s21, 1
    %p123 = por %p121, %p122
    %p124 = scmp.ne.s32.totalorder %s115, %s116
    %p125 = scmp.eq.s32.totalorder %s21, 0
    %p126 = por %p124, %p125
    %p127 = scmp.ne.s32.totalorder %s115, %s116
    %p128 = scmp.eq.s32.totalorder %s22, 1
    %p129 = por %p127, %p128
    %p131 = scmp.ne.s32.totalorder %s116, %s130
    %p132 = scmp.eq.s32.totalorder %s22, 0
    %p133 = por %p131, %p132
    %s135 = sadd.s32 %s134, 1
    %p138 = scmp.eq.s32.totalorder %s16, 1
    %p139 = scmp.ne.s32.totalorder %s134, %s136
    %p140 = scmp.eq.s32.totalorder %s16, 0
    %p141 = por %p139, %p140
    %p142 = scmp.ne.s32.totalorder %s134, %s136
    %p143 = scmp.eq.s32.totalorder %s21, 1
    %p144 = por %p142, %p143
    %p145 = scmp.ne.s32.totalorder %s136, %s137
    %p146 = scmp.eq.s32.totalorder %s21, 0
    %p147 = por %p145, %p146
    %p148 = scmp.ne.s32.totalorder %s136, %s137
    %p149 = scmp.eq.s32.totalorder %s22, 1
    %p150 = por %p148, %p149
    %p152 = scmp.ne.s32.totalorder %s137, %s151
    %p153 = scmp.eq.s32.totalorder %s22, 0
    %p154 = por %p152, %p153
    %s156 = sadd.s32 %s155, 1
    %p159 = scmp.eq.s32.totalorder %s16, 1
    %p160 = scmp.ne.s32.totalorder %s155, %s157
    %p161 = scmp.eq.s32.totalorder %s16, 0
    %p162 = por %p160, %p161
    %p163 = scmp.ne.s32.totalorder %s155, %s157
    %p164 = scmp.eq.s32.totalorder %s21, 1
    %p165 = por %p163, %p164
    %p166 = scmp.ne.s32.totalorder %s157, %s158
    %p167 = scmp.eq.s32.totalorder %s21, 0
    %p168 = por %p166, %p167
    %p169 = scmp.ne.s32.totalorder %s157, %s158
    %p170 = scmp.eq.s32.totalorder %s22, 1
    %p171 = por %p169, %p170
    %p173 = scmp.ne.s32.totalorder %s158, %s172
    %p174 = scmp.eq.s32.totalorder %s22, 0
    %p175 = por %p173, %p174
    %s177 = sadd.s32 %s176, 1
    %p180 = scmp.eq.s32.totalorder %s16, 1
    %p181 = scmp.ne.s32.totalorder %s176, %s178
    %p182 = scmp.eq.s32.totalorder %s16, 0
    %p183 = por %p181, %p182
    %p184 = scmp.ne.s32.totalorder %s176, %s178
    %p185 = scmp.eq.s32.totalorder %s21, 1
    %p186 = por %p184, %p185
    %p187 = scmp.ne.s32.totalorder %s178, %s179
    %p188 = scmp.eq.s32.totalorder %s21, 0
    %p189 = por %p187, %p188
    %p190 = scmp.ne.s32.totalorder %s178, %s179
    %p191 = scmp.eq.s32.totalorder %s22, 1
    %p192 = por %p190, %p191
    %p194 = scmp.ne.s32.totalorder %s179, %s193
    %p195 = scmp.eq.s32.totalorder %s22, 0
    %p196 = por %p194, %p195
    %s198 = sadd.s32 %s197, 1
    %p201 = scmp.eq.s32.totalorder %s16, 1
    %p202 = scmp.ne.s32.totalorder %s197, %s199
    %p203 = scmp.eq.s32.totalorder %s16, 0
    %p204 = por %p202, %p203
    %p205 = scmp.ne.s32.totalorder %s197, %s199
    %p206 = scmp.eq.s32.totalorder %s21, 1
    %p207 = por %p205, %p206
    %p208 = scmp.ne.s32.totalorder %s199, %s200
    %p209 = scmp.eq.s32.totalorder %s21, 0
    %p210 = por %p208, %p209
    %p211 = scmp.ne.s32.totalorder %s199, %s200
    %p212 = scmp.eq.s32.totalorder %s22, 1
    %p213 = por %p211, %p212
    %p215 = scmp.ne.s32.totalorder %s200, %s214
    %p216 = scmp.eq.s32.totalorder %s22, 0
    %p217 = por %p215, %p216
    %s219 = sadd.s32 %s218, 1
    %p222 = scmp.eq.s32.totalorder %s16, 1
    %p223 = scmp.ne.s32.totalorder %s218, %s220
    %p224 = scmp.eq.s32.totalorder %s16, 0
    %p225 = por %p223, %p224
    %p226 = scmp.ne.s32.totalorder %s218, %s220
    %p227 = scmp.eq.s32.totalorder %s21, 1
    %p228 = por %p226, %p227
    %p229 = scmp.ne.s32.totalorder %s220, %s221
    %p230 = scmp.eq.s32.totalorder %s21, 0
    %p231 = por %p229, %p230
    %p232 = scmp.ne.s32.totalorder %s220, %s221
    %p233 = scmp.eq.s32.totalorder %s22, 1
    %p234 = por %p232, %p233
    %p236 = scmp.ne.s32.totalorder %s221, %s235
    %p237 = scmp.eq.s32.totalorder %s22, 0
    %p238 = por %p236, %p237
    %s239 = ssub.s32 %s16, %s23
    %p240 = scmp.eq.s32.totalorder %s239, 0
    %s242 = sadd.s32 %s241, 1
    %s243 = scalar_select %p240, %s241, %s242
    %p246 = pneg %p240
    %p247 = scmp.eq.s32.totalorder %s16, 1
    %p248 = por %p246, %p247
    %p249 = scmp.ne.s32.totalorder %s241, %s244
    %p250 = scmp.eq.s32.totalorder %s16, 0
    %p251 = por %p249, %p250
    %p252 = scmp.ne.s32.totalorder %s241, %s244
    %p253 = scmp.eq.s32.totalorder %s21, 1
    %p254 = por %p252, %p253
    %p255 = scmp.ne.s32.totalorder %s244, %s245
    %p256 = scmp.eq.s32.totalorder %s21, 0
    %p257 = por %p255, %p256
    %p258 = scmp.ne.s32.totalorder %s244, %s245
    %p259 = scmp.eq.s32.totalorder %s22, 1
    %p260 = por %p258, %p259
    %p262 = scmp.ne.s32.totalorder %s245, %s261
    %p263 = scmp.eq.s32.totalorder %s22, 0
    %p264 = por %p262, %p263
    %p265 = scmp.le.s32.totalorder 1, %s16
    %p266 = scmp.lt.s32.totalorder %s16, 3
    %p267 = pnand %p265, %p266
    %p268 = pneg %p267
    // Predicated region
    $region9: #{tpu_custom_call.1} parent=5 // pred_check
      _
    $region10: #{tpu_custom_call.1} parent=5 // pred_check_branch
      %270 = sbr.rel (%p267) target = $region12
    $region11: #{tpu_custom_call.1} parent=5 // pred_region
      %s271 = ssub.s32 %s16, 1
      // Predicated region
      $region13: #{tpu_custom_call.1} parent=11 // pred_check
        %p272 = pneg %p63
      $region14: #{tpu_custom_call.1} parent=11 // pred_check_branch
        %274 = sbr.rel (%p272) target = $region16
      $region15: #{tpu_custom_call.1} parent=11 // pred_region
        _
      $region16: #{tpu_custom_call.1} parent=11 // pred_fallthru
        _
      // Predicated region
      $region17: #{tpu_custom_call.1} parent=11 // pred_check
        %p275 = pneg %p84
      $region18: #{tpu_custom_call.1} parent=11 // pred_check_branch
        %277 = sbr.rel (%p275) target = $region20
      $region19: #{tpu_custom_call.1} parent=11 // pred_region
        _
      $region20: #{tpu_custom_call.1} parent=11 // pred_fallthru
        _
      // Predicated region
      $region21: #{tpu_custom_call.1} parent=11 // pred_check
        %p278 = pneg %p105
      $region22: #{tpu_custom_call.1} parent=11 // pred_check_branch
        %280 = sbr.rel (%p278) target = $region24
      $region23: #{tpu_custom_call.1} parent=11 // pred_region
        _
      $region24: #{tpu_custom_call.1} parent=11 // pred_fallthru
        _
      // Predicated region
      $region25: #{tpu_custom_call.1} parent=11 // pred_check
        %p281 = pneg %p126
      $region26: #{tpu_custom_call.1} parent=11 // pred_check_branch
        %283 = sbr.rel (%p281) target = $region28
      $region27: #{tpu_custom_call.1} parent=11 // pred_region
        _
      $region28: #{tpu_custom_call.1} parent=11 // pred_fallthru
        _
      // Predicated region
      $region29: #{tpu_custom_call.1} parent=11 // pred_check
        %p284 = pneg %p147
      $region30: #{tpu_custom_call.1} parent=11 // pred_check_branch
        %286 = sbr.rel (%p284) target = $region32
      $region31: #{tpu_custom_call.1} parent=11 // pred_region
        _
      $region32: #{tpu_custom_call.1} parent=11 // pred_fallthru
        _
      // Predicated region
      $region33: #{tpu_custom_call.1} parent=11 // pred_check
        %p287 = pneg %p168
      $region34: #{tpu_custom_call.1} parent=11 // pred_check_branch
        %289 = sbr.rel (%p287) target = $region36
      $region35: #{tpu_custom_call.1} parent=11 // pred_region
        _
      $region36: #{tpu_custom_call.1} parent=11 // pred_fallthru
        _
      // Predicated region
      $region37: #{tpu_custom_call.1} parent=11 // pred_check
        %p290 = pneg %p189
      $region38: #{tpu_custom_call.1} parent=11 // pred_check_branch
        %292 = sbr.rel (%p290) target = $region40
      $region39: #{tpu_custom_call.1} parent=11 // pred_region
        _
      $region40: #{tpu_custom_call.1} parent=11 // pred_fallthru
        _
      // Predicated region
      $region41: #{tpu_custom_call.1} parent=11 // pred_check
        %p293 = pneg %p210
      $region42: #{tpu_custom_call.1} parent=11 // pred_check_branch
        %295 = sbr.rel (%p293) target = $region44
      $region43: #{tpu_custom_call.1} parent=11 // pred_region
        _
      $region44: #{tpu_custom_call.1} parent=11 // pred_fallthru
        _
      // Predicated region
      $region45: #{tpu_custom_call.1} parent=11 // pred_check
        %p296 = pneg %p231
      $region46: #{tpu_custom_call.1} parent=11 // pred_check_branch
        %298 = sbr.rel (%p296) target = $region48
      $region47: #{tpu_custom_call.1} parent=11 // pred_region
        _
      $region48: #{tpu_custom_call.1} parent=11 // pred_fallthru
        _
    $region12: #{tpu_custom_call.1} parent=5 // pred_fallthru
      _
    %p299 = scmp.lt.s32.totalorder %s16, 2
    // Predicated region
    $region49: #{tpu_custom_call.1} parent=5 // pred_check
      %p300 = pneg %p299
    $region50: #{tpu_custom_call.1} parent=5 // pred_check_branch
      %302 = sbr.rel (%p300) target = $region52
    $region51: #{tpu_custom_call.1} parent=5 // pred_region
      // Predicated region
      $region53: #{tpu_custom_call.1} parent=51 // pred_check
        %p303 = pneg %p36
      $region54: #{tpu_custom_call.1} parent=51 // pred_check_branch
        %305 = sbr.rel (%p303) target = $region56
      $region55: #{tpu_custom_call.1} parent=51 // pred_region
        %p306 = scmp.lt.s32.totalorder %s16, 1
        %s307 = scalar_select %p306, %s16, 1
        %s308 = smul.addr %s307, 41
        %s309 = smul.addr %s308, 4
        %s310 = scalar_lea.vmem %s0, %s309
      $region56: #{tpu_custom_call.1} parent=51 // pred_fallthru
        _
    $region52: #{tpu_custom_call.1} parent=5 // pred_fallthru
      _
    %p311 = scmp.le.s32.totalorder 1, %s16
    %p312 = scmp.lt.s32.totalorder %s16, 3
    %p313 = pnand %p311, %p312
    %p314 = pneg %p313
    // Predicated region
    $region57: #{tpu_custom_call.1} parent=5 // pred_check
      _
    $region58: #{tpu_custom_call.1} parent=5 // pred_check_branch
      %316 = sbr.rel (%p313) target = $region60
    $region59: #{tpu_custom_call.1} parent=5 // pred_region
      %s317 = ssub.s32 %s16, 1
      %p318 = scmp.lt.s32.totalorder %s21, 1
      %s319 = scalar_select %p318, %s21, 1
      %s320 = smul.addr %s319, 41
      %s321 = smul.addr %s320, 4
      %s322 = scalar_lea.vmem %s0, %s321
      %p323 = pneg %p42
      %p324 = pneg %p39
      %p325 = pneg %p63
      %p326 = pneg %p60
      %p327 = pneg %p84
      %p328 = pneg %p81
      %p329 = pneg %p105
      %p330 = pneg %p102
      %p331 = pneg %p126
      %p332 = pneg %p123
      %p333 = pneg %p147
      %p334 = pneg %p144
      %p335 = pneg %p168
      %p336 = pneg %p165
      %p337 = pneg %p189
      %p338 = pneg %p186
      %p339 = pneg %p210
      %p340 = pneg %p207
      %p341 = pneg %p231
      %p342 = pneg %p228
      %p343 = pneg %p257
      %p344 = pneg %p254
      %p345 = scmp.lt.s32.totalorder %s21, 1
      %s346 = scalar_select %p345, %s21, 1
      %s347 = smul.addr %s346, 36
      %s348 = smul.addr %s347, 8
      %s349 = scalar_lea.vmem %s10, %s348
      %p350 = scmp.lt.s32.totalorder %s21, 1
      %s351 = scalar_select %p350, %s21, 1
      %s352 = smul.addr %s351, 41
      %s353 = smul.addr %s352, 4
      %s354 = scalar_lea.vmem %s0, %s353
      %p355 = scmp.lt.s32.totalorder %s21, 1
      %s356 = scalar_select %p355, %s21, 1
      %s357 = smul.addr %s356, 36
      %s358 = smul.addr %s357, 8
      %s359 = scalar_lea.vmem %s10, %s358
      %v361 = vld [vmem:[%s1 + $0x13] sm:$0xff]
      %v362 = vld [vmem:[%s1 + $0x1b] sm:$0xff]
      %v363 = vld [vmem:[%s1 + $0x23] sm:$0xff]
      %v364 = vld [vmem:[%s1 + $0x2b] sm:$0xff]
      %v365 = vld [vmem:[%s1 + $0x33] sm:$0xff]
      %v366 = vld [vmem:[%s1 + $0x3b] sm:$0xff]
      %v367 = vld [vmem:[%s1 + $0x43] sm:$0xff]
      %v368 = vld [vmem:[%s1 + $0x4b] sm:$0xff]
      %v369 = vld [vmem:[%s1 + $0x53] sm:$0xff]
      %v370 = vld [vmem:[%s1 + $0x5b] sm:$0xff]
      %v371 = vld [vmem:[%s1 + $0x63] sm:$0xff]
      %v372 = vld [vmem:[%s1 + $0x6b] sm:$0xff]
      %v373 = vld [vmem:[%s1 + $0x73] sm:$0xff]
      %v374 = vld [vmem:[%s1 + $0x7b] sm:$0xff]
      %v375 = vld [vmem:[%s1 + $0x83] sm:$0xff]
      %v376 = vld [vmem:[%s1 + $0x8b] sm:$0xff]
      %v377 = vld [vmem:[%s1 + $0x93] sm:$0xff]
      %v378 = vld [vmem:[%s1 + $0x9b] sm:$0xff]
      %v379 = vld [vmem:[%s1 + $0xa3] sm:$0xff]
      %v380 = vld [vmem:[%s1 + $0xab] sm:$0xff]
      %v381 = vld [vmem:[%s1 + $0xb3] sm:$0xff]
      %v382 = vld [vmem:[%s1 + $0xbb] sm:$0xff]
      %v383 = vld [vmem:[%s1 + $0xc3] sm:$0xff]
      %v384 = vld [vmem:[%s1 + $0xcb] sm:$0xff]
      %v385 = vld [vmem:[%s1 + $0xd3] sm:$0xff]
      %v386 = vld [vmem:[%s1 + $0xdb] sm:$0xff]
      %v387 = vld [vmem:[%s1 + $0xe3] sm:$0xff]
      %v388 = vld [vmem:[%s1 + $0xeb] sm:$0xff]
      %v389 = vld [vmem:[%s1 + $0xf3] sm:$0xff]
      %v390 = vld [vmem:[%s1 + $0xfb] sm:$0xff]
      %v391 = vld [vmem:[%s1 + $0x103] sm:$0xff]
      %v392 = vld [vmem:[%s1 + $0x10b] sm:$0xff]
      %v393 = vld [vmem:[%s1 + $0x113] sm:$0xff]
      %v394 = vld [vmem:[%s1 + $0x11b] sm:$0xff]
      %v395 = vld [vmem:[%s1 + $0x123] sm:$0xff]
      %v396 = vld [vmem:[%s1 + $0x12b] sm:$0xff]
      %v397 = vld [vmem:[%s354] sm:$0xf]
      %v398 = vld [vmem:[%s354 + $0x4] sm:$0xf]
      %v399 = vld [vmem:[%s354 + $0x8] sm:$0xf]
      %v400 = vld [vmem:[%s354 + $0xc] sm:$0xf]
      %v401 = vld [vmem:[%s354 + $0x10] sm:$0xf]
      %v402 = vld [vmem:[%s354 + $0x14] sm:$0xf]
      %v403 = vld [vmem:[%s354 + $0x18] sm:$0xf]
      %v404 = vld [vmem:[%s354 + $0x1c] sm:$0xf]
      %v405 = vld [vmem:[%s354 + $0x20] sm:$0xf]
      %v406 = vld [vmem:[%s354 + $0x24] sm:$0xf]
      %v407 = vld [vmem:[%s354 + $0x28] sm:$0xf]
      %v408 = vld [vmem:[%s354 + $0x2c] sm:$0xf]
      %v409 = vld [vmem:[%s354 + $0x30] sm:$0xf]
      %v410 = vld [vmem:[%s354 + $0x34] sm:$0xf]
      %v411 = vld [vmem:[%s354 + $0x38] sm:$0xf]
      %v412 = vld [vmem:[%s354 + $0x3c] sm:$0xf]
      %v413 = vld [vmem:[%s354 + $0x40] sm:$0xf]
      %v414 = vld [vmem:[%s354 + $0x44] sm:$0xf]
      %v415 = vld [vmem:[%s354 + $0x48] sm:$0xf]
      %v416 = vld [vmem:[%s354 + $0x4c] sm:$0xf]
      %v417 = vld [vmem:[%s354 + $0x50] sm:$0xf]
      %v418 = vld [vmem:[%s354 + $0x54] sm:$0xf]
      %v419 = vld [vmem:[%s354 + $0x58] sm:$0xf]
      %v420 = vld [vmem:[%s354 + $0x5c] sm:$0xf]
      %v421 = vld [vmem:[%s354 + $0x60] sm:$0xf]
      %v422 = vld [vmem:[%s354 + $0x64] sm:$0xf]
      %v423 = vld [vmem:[%s354 + $0x68] sm:$0xf]
      %v424 = vld [vmem:[%s354 + $0x6c] sm:$0xf]
      %v425 = vld [vmem:[%s354 + $0x70] sm:$0xf]
      %v426 = vld [vmem:[%s354 + $0x74] sm:$0xf]
      %v427 = vld [vmem:[%s354 + $0x78] sm:$0xf]
      %v428 = vld [vmem:[%s354 + $0x7c] sm:$0xf]
      %v429 = vld [vmem:[%s354 + $0x80] sm:$0xf]
      %v430 = vld [vmem:[%s354 + $0x84] sm:$0xf]
      %v431 = vld [vmem:[%s354 + $0x88] sm:$0xf]
      %v432 = vld [vmem:[%s354 + $0x8c] sm:$0xf]
      %v433 = vld [vmem:[%s2] sm:$0xf]
      %v434 = vld [vmem:[%s2 + $0x4] sm:$0xf]
      %v435 = vld [vmem:[%s2 + $0x8] sm:$0xf]
      %v436 = vld [vmem:[%s2 + $0xc] sm:$0xf]
      %v437 = vld [vmem:[%s354 + $0x90] sm:$0x1]
      %s438 = scalar_lea.vmem %s2, 16
      %v439 = vld [vmem:[%s438] sm:$0xf]
      %v440 = vld [vmem:[%s438 + $0x4] sm:$0xf]
      %v441 = vld [vmem:[%s438 + $0x8] sm:$0xf]
      %v442 = vld [vmem:[%s438 + $0xc] sm:$0xf]
      %v480 = vunpack.c.l.b16 %v397
      %v481 = vunpack.c.l.b16 %v398
      %v482 = vunpack.c.l.b16 %v399
      %v483 = vunpack.c.l.b16 %v400
      %v484 = vunpack.c.l.b16 %v401
      %v485 = vunpack.c.l.b16 %v402
      %v486 = vunpack.c.l.b16 %v403
      %v487 = vunpack.c.l.b16 %v404
      %v488 = vunpack.c.l.b16 %v405
      %v489 = vunpack.c.l.b16 %v406
      %v490 = vunpack.c.l.b16 %v407
      %v491 = vunpack.c.l.b16 %v408
      %v492 = vunpack.c.l.b16 %v409
      %v493 = vunpack.c.l.b16 %v410
      %v494 = vunpack.c.l.b16 %v411
      %v495 = vunpack.c.l.b16 %v412
      %v496 = vunpack.c.l.b16 %v413
      %v497 = vunpack.c.l.b16 %v414
      %v498 = vunpack.c.l.b16 %v415
      %v499 = vunpack.c.l.b16 %v416
      %v500 = vunpack.c.l.b16 %v417
      %v501 = vunpack.c.l.b16 %v418
      %v502 = vunpack.c.l.b16 %v419
      %v503 = vunpack.c.l.b16 %v420
      %v504 = vunpack.c.l.b16 %v421
      %v505 = vunpack.c.l.b16 %v422
      %v506 = vunpack.c.l.b16 %v423
      %v507 = vunpack.c.l.b16 %v424
      %v508 = vunpack.c.l.b16 %v425
      %v509 = vunpack.c.l.b16 %v426
      %v510 = vunpack.c.l.b16 %v427
      %v511 = vunpack.c.l.b16 %v428
      %v512 = vunpack.c.l.b16 %v429
      %v513 = vunpack.c.l.b16 %v430
      %v514 = vunpack.c.l.b16 %v431
      %v515 = vunpack.c.l.b16 %v432
      %v516 = vunpack.c.l.b16 %v437
      %v517 = vpack.c.b16 %v481, %v480
      %v518 = vpack.c.b16 %v483, %v482
      %v519 = vpack.c.b16 %v485, %v484
      %v520 = vpack.c.b16 %v487, %v486
      %v521 = vpack.c.b16 %v489, %v488
      %v522 = vpack.c.b16 %v491, %v490
      %v523 = vpack.c.b16 %v493, %v492
      %v524 = vpack.c.b16 %v495, %v494
      %v525 = vpack.c.b16 %v497, %v496
      %v526 = vpack.c.b16 %v499, %v498
      %v527 = vpack.c.b16 %v501, %v500
      %v528 = vpack.c.b16 %v503, %v502
      %v529 = vpack.c.b16 %v505, %v504
      %v530 = vpack.c.b16 %v507, %v506
      %v531 = vpack.c.b16 %v509, %v508
      %v532 = vpack.c.b16 %v511, %v510
      %v533 = vpack.c.b16 %v513, %v512
      %v534 = vpack.c.b16 %v515, %v514
      %v535 = vpack.c.b16 %v516, %v516
      %vm536 = vsmask.f32 7424
      %v538 = vshrl.u32 %v517, 16
      %v540 = vshll.u32 %v517, 16
      %v542 = vrot.slane %v540, 1
      %v543 = vor.u32 %v538, %v542
      %v545 = vshll.u32 %v518, 16
      %v547 = vrot.slane %v545, 1
      %v548 = vsel %vm536, %v543, %v547
      %v549 = vshrl.u32 %v518, 16
      %v551 = vor.u32 %v549, %v547
      %v553 = vshll.u32 %v519, 16
      %v555 = vrot.slane %v553, 1
      %v556 = vsel %vm536, %v551, %v555
      %v557 = vshrl.u32 %v519, 16
      %v559 = vor.u32 %v557, %v555
      %v561 = vshll.u32 %v520, 16
      %v563 = vrot.slane %v561, 1
      %v564 = vsel %vm536, %v559, %v563
      %v565 = vshrl.u32 %v520, 16
      %v567 = vor.u32 %v565, %v563
      %v569 = vshll.u32 %v521, 16
      %v571 = vrot.slane %v569, 1
      %v572 = vsel %vm536, %v567, %v571
      %v573 = vshrl.u32 %v521, 16
      %v575 = vor.u32 %v573, %v571
      %v577 = vshll.u32 %v522, 16
      %v579 = vrot.slane %v577, 1
      %v580 = vsel %vm536, %v575, %v579
      %v581 = vshrl.u32 %v522, 16
      %v583 = vor.u32 %v581, %v579
      %v585 = vshll.u32 %v523, 16
      %v587 = vrot.slane %v585, 1
      %v588 = vsel %vm536, %v583, %v587
      %v589 = vshrl.u32 %v523, 16
      %v591 = vor.u32 %v589, %v587
      %v593 = vshll.u32 %v524, 16
      %v595 = vrot.slane %v593, 1
      %v596 = vsel %vm536, %v591, %v595
      %v597 = vshrl.u32 %v524, 16
      %v599 = vor.u32 %v597, %v595
      %v601 = vshll.u32 %v525, 16
      %v603 = vrot.slane %v601, 1
      %v604 = vsel %vm536, %v599, %v603
      %v605 = vshrl.u32 %v525, 16
      %v607 = vor.u32 %v605, %v603
      %v609 = vshll.u32 %v526, 16
      %v611 = vrot.slane %v609, 1
      %v612 = vsel %vm536, %v607, %v611
      %v613 = vshrl.u32 %v526, 16
      %v615 = vor.u32 %v613, %v611
      %v617 = vshll.u32 %v527, 16
      %v619 = vrot.slane %v617, 1
      %v620 = vsel %vm536, %v615, %v619
      %v621 = vshrl.u32 %v527, 16
      %v623 = vor.u32 %v621, %v619
      %v625 = vshll.u32 %v528, 16
      %v627 = vrot.slane %v625, 1
      %v628 = vsel %vm536, %v623, %v627
      %v629 = vshrl.u32 %v528, 16
      %v631 = vor.u32 %v629, %v627
      %v633 = vshll.u32 %v529, 16
      %v635 = vrot.slane %v633, 1
      %v636 = vsel %vm536, %v631, %v635
      %v637 = vshrl.u32 %v529, 16
      %v639 = vor.u32 %v637, %v635
      %v641 = vshll.u32 %v530, 16
      %v643 = vrot.slane %v641, 1
      %v644 = vsel %vm536, %v639, %v643
      %v645 = vshrl.u32 %v530, 16
      %v647 = vor.u32 %v645, %v643
      %v649 = vshll.u32 %v531, 16
      %v651 = vrot.slane %v649, 1
      %v652 = vsel %vm536, %v647, %v651
      %v653 = vshrl.u32 %v531, 16
      %v655 = vor.u32 %v653, %v651
      %v657 = vshll.u32 %v532, 16
      %v659 = vrot.slane %v657, 1
      %v660 = vsel %vm536, %v655, %v659
      %v661 = vshrl.u32 %v532, 16
      %v663 = vor.u32 %v661, %v659
      %v665 = vshll.u32 %v533, 16
      %v667 = vrot.slane %v665, 1
      %v668 = vsel %vm536, %v663, %v667
      %v669 = vshrl.u32 %v533, 16
      %v671 = vor.u32 %v669, %v667
      %v673 = vshll.u32 %v534, 16
      %v675 = vrot.slane %v673, 1
      %v676 = vsel %vm536, %v671, %v675
      %v677 = vshrl.u32 %v534, 16
      %v679 = vor.u32 %v677, %v675
      %v681 = vshll.u32 %v535, 16
      %v683 = vrot.slane %v681, 1
      %v684 = vsel %vm536, %v679, %v683
      %v689 = vunpack.c.l.b16 %v439
      %v690 = vunpack.c.l.b16 %v440
      %v691 = vunpack.c.l.b16 %v441
      %v692 = vunpack.c.l.b16 %v442
      %v693 = vpack.c.b16 %v690, %v689
      %v694 = vpack.c.b16 %v692, %v691
      %vm697 = vcmask 261120
      %v699 = vsel %vm697, %v548, 0
      %v702 = vsel %vm697, %v556, 0
      %v705 = vsel %vm697, %v564, 0
      %v708 = vsel %vm697, %v572, 0
      %v711 = vsel %vm697, %v580, 0
      %v714 = vsel %vm697, %v588, 0
      %v717 = vsel %vm697, %v596, 0
      %v720 = vsel %vm697, %v604, 0
      %v723 = vsel %vm697, %v612, 0
      %v726 = vsel %vm697, %v620, 0
      %v729 = vsel %vm697, %v628, 0
      %v732 = vsel %vm697, %v636, 0
      %v735 = vsel %vm697, %v644, 0
      %v738 = vsel %vm697, %v652, 0
      %v741 = vsel %vm697, %v660, 0
      %v744 = vsel %vm697, %v668, 0
      %v747 = vsel %vm697, %v676, 0
      %v750 = vsel %vm697, %v684, 0
      %752 = vmatprep.subr.bf16.mxu0 0
      %753 = vmatpush1.bf16.msra.mxu0 %v693
      %754 = vmatprep.subr.bf16.mxu0 0
      %755 = vmatpush1.bf16.msra.mxu0 %v694
      %756 = vmatprep.subr.bf16.mxu0 0
      %757 = vmatpush1.bf16.msra.mxu0 0
      %758 = vmatprep.subr.bf16.mxu0 0
      %759 = vmatpush1.bf16.msra.mxu0 0
      %760 = vmatprep.subr.bf16.mxu0 0
      %761 = vmatpush1.bf16.msra.mxu0 0
      %762 = vmatprep.subr.bf16.mxu0 0
      %763 = vmatpush1.bf16.msra.mxu0 0
      %764 = vmatprep.subr.bf16.mxu0 0
      %765 = vmatpush1.bf16.msra.mxu0 0
      %766 = vmatprep.subr.bf16.mxu0 0
      %767 = vmatpush1.bf16.msra.mxu0 0
      %768 = vmatprep.subr.bf16.mxu0 0
      %769 = vmatpush1.bf16.msra.mxu0 0
      %770 = vmatprep.subr.bf16.mxu0 0
      %771 = vmatpush1.bf16.msra.mxu0 0
      %772 = vmatprep.subr.bf16.mxu0 0
      %773 = vmatpush1.bf16.msra.mxu0 0
      %774 = vmatprep.subr.bf16.mxu0 0
      %775 = vmatpush1.bf16.msra.mxu0 0
      %776 = vmatprep.subr.bf16.mxu0 0
      %777 = vmatpush1.bf16.msra.mxu0 0
      %778 = vmatprep.subr.bf16.mxu0 0
      %779 = vmatpush1.bf16.msra.mxu0 0
      %780 = vmatprep.subr.bf16.mxu0 0
      %781 = vmatpush1.bf16.msra.mxu0 0
      %782 = vmatprep.subr.bf16.mxu0 0
      %783 = vmatpush1.bf16.msra.mxu0 0
      %784 = vmatprep.mubr.bf16.mxu0 0
      %785 = vmatmul.mubr.bf16.gmra.mrb[0].mxu0 %v699
      %v786 = vpop.f32.mrb[0].mxu0
      %v787 = vadd.f32 0.0, %v786
      %v788 = vpop.f32.mrb[0].mxu0
      %v789 = vpop.f32.mrb[0].mxu0
      %v790 = vadd.f32 0.0, %v789
      %v791 = vpop.f32.mrb[0].mxu0
      %792 = vmatprep.mubr.bf16.mxu0 0
      %793 = vmatmul.mubr.bf16.gmra.mrb[0].mxu0 %v702
      %v794 = vpop.f32.mrb[0].mxu0
      %v795 = vadd.f32 0.0, %v794
      %v796 = vpop.f32.mrb[0].mxu0
      %v797 = vpop.f32.mrb[0].mxu0
      %v798 = vadd.f32 0.0, %v797
      %v799 = vpop.f32.mrb[0].mxu0
      %800 = vmatprep.mubr.bf16.mxu0 0
      %801 = vmatmul.mubr.bf16.gmra.mrb[0].mxu0 %v705
      %v802 = vpop.f32.mrb[0].mxu0
      %v803 = vadd.f32 0.0, %v802
      %v804 = vpop.f32.mrb[0].mxu0
      %v805 = vpop.f32.mrb[0].mxu0
      %v806 = vadd.f32 0.0, %v805
      %v807 = vpop.f32.mrb[0].mxu0
      %808 = vmatprep.mubr.bf16.mxu0 0
      %809 = vmatmul.mubr.bf16.gmra.mrb[0].mxu0 %v708
      %v810 = vpop.f32.mrb[0].mxu0
      %v811 = vadd.f32 0.0, %v810
      %v812 = vpop.f32.mrb[0].mxu0
      %v813 = vpop.f32.mrb[0].mxu0
      %v814 = vadd.f32 0.0, %v813
      %v815 = vpop.f32.mrb[0].mxu0
      %816 = vmatprep.mubr.bf16.mxu0 0
      %817 = vmatmul.mubr.bf16.gmra.mrb[0].mxu0 %v711
      %v818 = vpop.f32.mrb[0].mxu0
      %v819 = vadd.f32 0.0, %v818
      %v820 = vpop.f32.mrb[0].mxu0
      %v821 = vpop.f32.mrb[0].mxu0
      %v822 = vadd.f32 0.0, %v821
      %v823 = vpop.f32.mrb[0].mxu0
      %824 = vmatprep.mubr.bf16.mxu0 0
      %825 = vmatmul.mubr.bf16.gmra.mrb[0].mxu0 %v714
      %v826 = vpop.f32.mrb[0].mxu0
      %v827 = vadd.f32 0.0, %v826
      %v828 = vpop.f32.mrb[0].mxu0
      %v829 = vpop.f32.mrb[0].mxu0
      %v830 = vadd.f32 0.0, %v829
      %v831 = vpop.f32.mrb[0].mxu0
      %832 = vmatprep.mubr.bf16.mxu0 0
      %833 = vmatmul.mubr.bf16.gmra.mrb[0].mxu0 %v717
      %v834 = vpop.f32.mrb[0].mxu0
      %v835 = vadd.f32 0.0, %v834
      %v836 = vpop.f32.mrb[0].mxu0
      %v837 = vpop.f32.mrb[0].mxu0
      %v838 = vadd.f32 0.0, %v837
      %v839 = vpop.f32.mrb[0].mxu0
      %840 = vmatprep.mubr.bf16.mxu0 0
      %841 = vmatmul.mubr.bf16.gmra.mrb[0].mxu0 %v720
      %v842 = vpop.f32.mrb[0].mxu0
      %v843 = vadd.f32 0.0, %v842
      %v844 = vpop.f32.mrb[0].mxu0
      %v845 = vpop.f32.mrb[0].mxu0
      %v846 = vadd.f32 0.0, %v845
      %v847 = vpop.f32.mrb[0].mxu0
      %848 = vmatprep.mubr.bf16.mxu0 0
      %849 = vmatmul.mubr.bf16.gmra.mrb[0].mxu0 %v723
      %v850 = vpop.f32.mrb[0].mxu0
      %v851 = vadd.f32 0.0, %v850
      %v852 = vpop.f32.mrb[0].mxu0
      %v853 = vpop.f32.mrb[0].mxu0
      %v854 = vadd.f32 0.0, %v853
      %v855 = vpop.f32.mrb[0].mxu0
      %856 = vmatprep.mubr.bf16.mxu0 0
      %857 = vmatmul.mubr.bf16.gmra.mrb[0].mxu0 %v726
      %v858 = vpop.f32.mrb[0].mxu0
      %v859 = vadd.f32 0.0, %v858
      %v860 = vpop.f32.mrb[0].mxu0
      %v861 = vpop.f32.mrb[0].mxu0
      %v862 = vadd.f32 0.0, %v861
      %v863 = vpop.f32.mrb[0].mxu0
      %864 = vmatprep.mubr.bf16.mxu0 0
      %865 = vmatmul.mubr.bf16.gmra.mrb[0].mxu0 %v729
      %v866 = vpop.f32.mrb[0].mxu0
      %v867 = vadd.f32 0.0, %v866
      %v868 = vpop.f32.mrb[0].mxu0
      %v869 = vpop.f32.mrb[0].mxu0
      %v870 = vadd.f32 0.0, %v869
      %v871 = vpop.f32.mrb[0].mxu0
      %872 = vmatprep.mubr.bf16.mxu0 0
      %873 = vmatmul.mubr.bf16.gmra.mrb[0].mxu0 %v732
      %v874 = vpop.f32.mrb[0].mxu0
      %v875 = vadd.f32 0.0, %v874
      %v876 = vpop.f32.mrb[0].mxu0
      %v877 = vpop.f32.mrb[0].mxu0
      %v878 = vadd.f32 0.0, %v877
      %v879 = vpop.f32.mrb[0].mxu0
      %880 = vmatprep.mubr.bf16.mxu0 0
      %881 = vmatmul.mubr.bf16.gmra.mrb[0].mxu0 %v735
      %v882 = vpop.f32.mrb[0].mxu0
      %v883 = vadd.f32 0.0, %v882
      %v884 = vpop.f32.mrb[0].mxu0
      %v885 = vpop.f32.mrb[0].mxu0
      %v886 = vadd.f32 0.0, %v885
      %v887 = vpop.f32.mrb[0].mxu0
      %888 = vmatprep.mubr.bf16.mxu0 0
      %889 = vmatmul.mubr.bf16.gmra.mrb[0].mxu0 %v738
      %v890 = vpop.f32.mrb[0].mxu0
      %v891 = vadd.f32 0.0, %v890
      %v892 = vpop.f32.mrb[0].mxu0
      %v893 = vpop.f32.mrb[0].mxu0
      %v894 = vadd.f32 0.0, %v893
      %v895 = vpop.f32.mrb[0].mxu0
      %896 = vmatprep.mubr.bf16.mxu0 0
      %897 = vmatmul.mubr.bf16.gmra.mrb[0].mxu0 %v741
      %v898 = vpop.f32.mrb[0].mxu0
      %v899 = vadd.f32 0.0, %v898
      %v900 = vpop.f32.mrb[0].mxu0
      %v901 = vpop.f32.mrb[0].mxu0
      %v902 = vadd.f32 0.0, %v901
      %v903 = vpop.f32.mrb[0].mxu0
      %904 = vmatprep.mubr.bf16.mxu0 0
      %905 = vmatmul.mubr.bf16.gmra.mrb[0].mxu0 %v744
      %v906 = vpop.f32.mrb[0].mxu0
      %v907 = vadd.f32 0.0, %v906
      %v908 = vpop.f32.mrb[0].mxu0
      %v909 = vpop.f32.mrb[0].mxu0
      %v910 = vadd.f32 0.0, %v909
      %v911 = vpop.f32.mrb[0].mxu0
      %912 = vmatprep.mubr.bf16.mxu0 0
      %913 = vmatmul.mubr.bf16.gmra.mrb[0].mxu0 %v747
      %v914 = vpop.f32.mrb[0].mxu0
      %v915 = vadd.f32 0.0, %v914
      %v916 = vpop.f32.mrb[0].mxu0
      %v917 = vpop.f32.mrb[0].mxu0
      %v918 = vadd.f32 0.0, %v917
      %v919 = vpop.f32.mrb[0].mxu0
      %920 = vmatprep.mubr.bf16.mxu0 0
      %921 = vmatmul.mubr.bf16.gmra.mrb[0].mxu0 %v750
      %v922 = vpop.f32.mrb[0].mxu0
      %v923 = vadd.f32 0.0, %v922
      %v924 = vpop.f32.mrb[0].mxu0
      %v925 = vpop.f32.mrb[0].mxu0
      %v926 = vadd.f32 0.0, %v925
      %v927 = vpop.f32.mrb[0].mxu0
      %928 = vdwg.mxu0
      %v933 = vunpack.c.l.b16 %v433
      %v934 = vunpack.c.l.b16 %v434
      %v935 = vunpack.c.l.b16 %v435
      %v936 = vunpack.c.l.b16 %v436
      %v937 = vpack.c.b16 %v934, %v933
      %v938 = vpack.c.b16 %v936, %v935
      %v941 = vsel %vm697, %v517, 0
      %v943 = vsel %vm697, %v518, 0
      %v945 = vsel %vm697, %v519, 0
      %v947 = vsel %vm697, %v520, 0
      %v949 = vsel %vm697, %v521, 0
      %v951 = vsel %vm697, %v522, 0
      %v953 = vsel %vm697, %v523, 0
      %v955 = vsel %vm697, %v524, 0
      %v957 = vsel %vm697, %v525, 0
      %v959 = vsel %vm697, %v526, 0
      %v961 = vsel %vm697, %v527, 0
      %v963 = vsel %vm697, %v528, 0
      %v965 = vsel %vm697, %v529, 0
      %v967 = vsel %vm697, %v530, 0
      %v969 = vsel %vm697, %v531, 0
      %v971 = vsel %vm697, %v532, 0
      %v973 = vsel %vm697, %v533, 0
      %v975 = vsel %vm697, %v534, 0
      %977 = vmatprep.subr.bf16.mxu0 0
      %978 = vmatpush1.bf16.msra.mxu0 %v937
      %979 = vmatprep.subr.bf16.mxu0 0
      %980 = vmatpush1.bf16.msra.mxu0 %v938
      %981 = vmatprep.subr.bf16.mxu0 0
      %982 = vmatpush1.bf16.msra.mxu0 0
      %983 = vmatprep.subr.bf16.mxu0 0
      %984 = vmatpush1.bf16.msra.mxu0 0
      %985 = vmatprep.subr.bf16.mxu0 0
      %986 = vmatpush1.bf16.msra.mxu0 0
      %987 = vmatprep.subr.bf16.mxu0 0
      %988 = vmatpush1.bf16.msra.mxu0 0
      %989 = vmatprep.subr.bf16.mxu0 0
      %990 = vmatpush1.bf16.msra.mxu0 0
      %991 = vmatprep.subr.bf16.mxu0 0
      %992 = vmatpush1.bf16.msra.mxu0 0
      %993 = vmatprep.subr.bf16.mxu0 0
      %994 = vmatpush1.bf16.msra.mxu0 0
      %995 = vmatprep.subr.bf16.mxu0 0
      %996 = vmatpush1.bf16.msra.mxu0 0
      %997 = vmatprep.subr.bf16.mxu0 0
      %998 = vmatpush1.bf16.msra.mxu0 0
      %999 = vmatprep.subr.bf16.mxu0 0
      %1000 = vmatpush1.bf16.msra.mxu0 0
      %1001 = vmatprep.subr.bf16.mxu0 0
      %1002 = vmatpush1.bf16.msra.mxu0 0
      %1003 = vmatprep.subr.bf16.mxu0 0
      %1004 = vmatpush1.bf16.msra.mxu0 0
      %1005 = vmatprep.subr.bf16.mxu0 0
      %1006 = vmatpush1.bf16.msra.mxu0 0
      %1007 = vmatprep.subr.bf16.mxu0 0
      %1008 = vmatpush1.bf16.msra.mxu0 0
      %1009 = vmatprep.mubr.bf16.mxu0 0
      %1010 = vmatmul.mubr.bf16.gmra.mrb[0].mxu0 %v941
      %v1011 = vpop.f32.mrb[0].mxu0
      %v1012 = vadd.f32 %v787, %v1011
      %v1013 = vpop.f32.mrb[0].mxu0
      %v1014 = vpop.f32.mrb[0].mxu0
      %v1015 = vadd.f32 %v790, %v1014
      %v1016 = vpop.f32.mrb[0].mxu0
      %1017 = vmatprep.mubr.bf16.mxu0 0
      %1018 = vmatmul.mubr.bf16.gmra.mrb[0].mxu0 %v943
      %v1019 = vpop.f32.mrb[0].mxu0
      %v1020 = vadd.f32 %v795, %v1019
      %v1021 = vpop.f32.mrb[0].mxu0
      %v1022 = vpop.f32.mrb[0].mxu0
      %v1023 = vadd.f32 %v798, %v1022
      %v1024 = vpop.f32.mrb[0].mxu0
      %1025 = vmatprep.mubr.bf16.mxu0 0
      %1026 = vmatmul.mubr.bf16.gmra.mrb[0].mxu0 %v945
      %v1027 = vpop.f32.mrb[0].mxu0
      %v1028 = vadd.f32 %v803, %v1027
      %v1029 = vpop.f32.mrb[0].mxu0
      %v1030 = vpop.f32.mrb[0].mxu0
      %v1031 = vadd.f32 %v806, %v1030
      %v1032 = vpop.f32.mrb[0].mxu0
      %1033 = vmatprep.mubr.bf16.mxu0 0
      %1034 = vmatmul.mubr.bf16.gmra.mrb[0].mxu0 %v947
      %v1035 = vpop.f32.mrb[0].mxu0
      %v1036 = vadd.f32 %v811, %v1035
      %v1037 = vpop.f32.mrb[0].mxu0
      %v1038 = vpop.f32.mrb[0].mxu0
      %v1039 = vadd.f32 %v814, %v1038
      %v1040 = vpop.f32.mrb[0].mxu0
      %1041 = vmatprep.mubr.bf16.mxu0 0
      %1042 = vmatmul.mubr.bf16.gmra.mrb[0].mxu0 %v949
      %v1043 = vpop.f32.mrb[0].mxu0
      %v1044 = vadd.f32 %v819, %v1043
      %v1045 = vpop.f32.mrb[0].mxu0
      %v1046 = vpop.f32.mrb[0].mxu0
      %v1047 = vadd.f32 %v822, %v1046
      %v1048 = vpop.f32.mrb[0].mxu0
      %1049 = vmatprep.mubr.bf16.mxu0 0
      %1050 = vmatmul.mubr.bf16.gmra.mrb[0].mxu0 %v951
      %v1051 = vpop.f32.mrb[0].mxu0
      %v1052 = vadd.f32 %v827, %v1051
      %v1053 = vpop.f32.mrb[0].mxu0
      %v1054 = vpop.f32.mrb[0].mxu0
      %v1055 = vadd.f32 %v830, %v1054
      %v1056 = vpop.f32.mrb[0].mxu0
      %1057 = vmatprep.mubr.bf16.mxu0 0
      %1058 = vmatmul.mubr.bf16.gmra.mrb[0].mxu0 %v953
      %v1059 = vpop.f32.mrb[0].mxu0
      %v1060 = vadd.f32 %v835, %v1059
      %v1061 = vpop.f32.mrb[0].mxu0
      %v1062 = vpop.f32.mrb[0].mxu0
      %v1063 = vadd.f32 %v838, %v1062
      %v1064 = vpop.f32.mrb[0].mxu0
      %1065 = vmatprep.mubr.bf16.mxu0 0
      %1066 = vmatmul.mubr.bf16.gmra.mrb[0].mxu0 %v955
      %v1067 = vpop.f32.mrb[0].mxu0
      %v1068 = vadd.f32 %v843, %v1067
      %v1069 = vpop.f32.mrb[0].mxu0
      %v1070 = vpop.f32.mrb[0].mxu0
      %v1071 = vadd.f32 %v846, %v1070
      %v1072 = vpop.f32.mrb[0].mxu0
      %1073 = vmatprep.mubr.bf16.mxu0 0
      %1074 = vmatmul.mubr.bf16.gmra.mrb[0].mxu0 %v957
      %v1075 = vpop.f32.mrb[0].mxu0
      %v1076 = vadd.f32 %v851, %v1075
      %v1077 = vpop.f32.mrb[0].mxu0
      %v1078 = vpop.f32.mrb[0].mxu0
      %v1079 = vadd.f32 %v854, %v1078
      %v1080 = vpop.f32.mrb[0].mxu0
      %1081 = vmatprep.mubr.bf16.mxu0 0
      %1082 = vmatmul.mubr.bf16.gmra.mrb[0].mxu0 %v959
      %v1083 = vpop.f32.mrb[0].mxu0
      %v1084 = vadd.f32 %v859, %v1083
      %v1085 = vpop.f32.mrb[0].mxu0
      %v1086 = vpop.f32.mrb[0].mxu0
      %v1087 = vadd.f32 %v862, %v1086
      %v1088 = vpop.f32.mrb[0].mxu0
      %1089 = vmatprep.mubr.bf16.mxu0 0
      %1090 = vmatmul.mubr.bf16.gmra.mrb[0].mxu0 %v961
      %v1091 = vpop.f32.mrb[0].mxu0
      %v1092 = vadd.f32 %v867, %v1091
      %v1093 = vpop.f32.mrb[0].mxu0
      %v1094 = vpop.f32.mrb[0].mxu0
      %v1095 = vadd.f32 %v870, %v1094
      %v1096 = vpop.f32.mrb[0].mxu0
      %1097 = vmatprep.mubr.bf16.mxu0 0
      %1098 = vmatmul.mubr.bf16.gmra.mrb[0].mxu0 %v963
      %v1099 = vpop.f32.mrb[0].mxu0
      %v1100 = vadd.f32 %v875, %v1099
      %v1101 = vpop.f32.mrb[0].mxu0
      %v1102 = vpop.f32.mrb[0].mxu0
      %v1103 = vadd.f32 %v878, %v1102
      %v1104 = vpop.f32.mrb[0].mxu0
      %1105 = vmatprep.mubr.bf16.mxu0 0
      %1106 = vmatmul.mubr.bf16.gmra.mrb[0].mxu0 %v965
      %v1107 = vpop.f32.mrb[0].mxu0
      %v1108 = vadd.f32 %v883, %v1107
      %v1109 = vpop.f32.mrb[0].mxu0
      %v1110 = vpop.f32.mrb[0].mxu0
      %v1111 = vadd.f32 %v886, %v1110
      %v1112 = vpop.f32.mrb[0].mxu0
      %1113 = vmatprep.mubr.bf16.mxu0 0
      %1114 = vmatmul.mubr.bf16.gmra.mrb[0].mxu0 %v967
      %v1115 = vpop.f32.mrb[0].mxu0
      %v1116 = vadd.f32 %v891, %v1115
      %v1117 = vpop.f32.mrb[0].mxu0
      %v1118 = vpop.f32.mrb[0].mxu0
      %v1119 = vadd.f32 %v894, %v1118
      %v1120 = vpop.f32.mrb[0].mxu0
      %1121 = vmatprep.mubr.bf16.mxu0 0
      %1122 = vmatmul.mubr.bf16.gmra.mrb[0].mxu0 %v969
      %v1123 = vpop.f32.mrb[0].mxu0
      %v1124 = vadd.f32 %v899, %v1123
      %v1125 = vpop.f32.mrb[0].mxu0
      %v1126 = vpop.f32.mrb[0].mxu0
      %v1127 = vadd.f32 %v902, %v1126
      %v1128 = vpop.f32.mrb[0].mxu0
      %1129 = vmatprep.mubr.bf16.mxu0 0
      %1130 = vmatmul.mubr.bf16.gmra.mrb[0].mxu0 %v971
      %v1131 = vpop.f32.mrb[0].mxu0
      %v1132 = vadd.f32 %v907, %v1131
      %v1133 = vpop.f32.mrb[0].mxu0
      %v1134 = vpop.f32.mrb[0].mxu0
      %v1135 = vadd.f32 %v910, %v1134
      %v1136 = vpop.f32.mrb[0].mxu0
      %1137 = vmatprep.mubr.bf16.mxu0 0
      %1138 = vmatmul.mubr.bf16.gmra.mrb[0].mxu0 %v973
      %v1139 = vpop.f32.mrb[0].mxu0
      %v1140 = vadd.f32 %v915, %v1139
      %v1141 = vpop.f32.mrb[0].mxu0
      %v1142 = vpop.f32.mrb[0].mxu0
      %v1143 = vadd.f32 %v918, %v1142
      %v1144 = vpop.f32.mrb[0].mxu0
      %1145 = vmatprep.mubr.bf16.mxu0 0
      %1146 = vmatmul.mubr.bf16.gmra.mrb[0].mxu0 %v975
      %v1147 = vpop.f32.mrb[0].mxu0
      %v1148 = vadd.f32 %v923, %v1147
      %v1149 = vpop.f32.mrb[0].mxu0
      %v1150 = vpop.f32.mrb[0].mxu0
      %v1151 = vadd.f32 %v926, %v1150
      %v1152 = vpop.f32.mrb[0].mxu0
      %1153 = vdwg.mxu0
      %v1154 = vld [vmem:[%s354] sm:$0xe]
      %s1155 = scalar_lea.vmem %s2, 32
      %v1156 = vld [vmem:[%s1155] sm:$0xf]
      %v1157 = vld [vmem:[%s1155 + $0x4] sm:$0xf]
      %v1158 = vld [vmem:[%s1155 + $0x8] sm:$0xf]
      %v1159 = vld [vmem:[%s1155 + $0xc] sm:$0xf]
      %v1161 = vunpack.c.l.b16 %v1154
      %v1162 = vpack.c.b16 %v481, %v1161
      %vm1163 = vcmask 1046528
      %v1164 = vrot.slane %v1162, 1
      %v1165 = vrot.slane %v518, 1
      %v1166 = vsel %vm1163, %v1164, %v1165
      %v1167 = vrot.slane %v519, 1
      %v1168 = vsel %vm1163, %v1165, %v1167
      %v1169 = vrot.slane %v520, 1
      %v1170 = vsel %vm1163, %v1167, %v1169
      %v1171 = vrot.slane %v521, 1
      %v1172 = vsel %vm1163, %v1169, %v1171
      %v1173 = vrot.slane %v522, 1
      %v1174 = vsel %vm1163, %v1171, %v1173
      %v1175 = vrot.slane %v523, 1
      %v1176 = vsel %vm1163, %v1173, %v1175
      %v1177 = vrot.slane %v524, 1
      %v1178 = vsel %vm1163, %v1175, %v1177
      %v1179 = vrot.slane %v525, 1
      %v1180 = vsel %vm1163, %v1177, %v1179
      %v1181 = vrot.slane %v526, 1
      %v1182 = vsel %vm1163, %v1179, %v1181
      %v1183 = vrot.slane %v527, 1
      %v1184 = vsel %vm1163, %v1181, %v1183
      %v1185 = vrot.slane %v528, 1
      %v1186 = vsel %vm1163, %v1183, %v1185
      %v1187 = vrot.slane %v529, 1
      %v1188 = vsel %vm1163, %v1185, %v1187
      %v1189 = vrot.slane %v530, 1
      %v1190 = vsel %vm1163, %v1187, %v1189
      %v1191 = vrot.slane %v531, 1
      %v1192 = vsel %vm1163, %v1189, %v1191
      %v1193 = vrot.slane %v532, 1
      %v1194 = vsel %vm1163, %v1191, %v1193
      %v1195 = vrot.slane %v533, 1
      %v1196 = vsel %vm1163, %v1193, %v1195
      %v1197 = vrot.slane %v534, 1
      %v1198 = vsel %vm1163, %v1195, %v1197
      %v1199 = vrot.slane %v535, 1
      %v1200 = vsel %vm1163, %v1197, %v1199
      %v1205 = vunpack.c.l.b16 %v1156
      %v1206 = vunpack.c.l.b16 %v1157
      %v1207 = vunpack.c.l.b16 %v1158
      %v1208 = vunpack.c.l.b16 %v1159
      %v1209 = vpack.c.b16 %v1206, %v1205
      %v1210 = vpack.c.b16 %v1208, %v1207
      %v1214 = vsel %vm697, %v1166, 0
      %v1217 = vsel %vm697, %v1168, 0
      %v1220 = vsel %vm697, %v1170, 0
      %v1223 = vsel %vm697, %v1172, 0
      %v1226 = vsel %vm697, %v1174, 0
      %v1229 = vsel %vm697, %v1176, 0
      %v1232 = vsel %vm697, %v1178, 0
      %v1235 = vsel %vm697, %v1180, 0
      %v1238 = vsel %vm697, %v1182, 0
      %v1241 = vsel %vm697, %v1184, 0
      %v1244 = vsel %vm697, %v1186, 0
      %v1247 = vsel %vm697, %v1188, 0
      %v1250 = vsel %vm697, %v1190, 0
      %v1253 = vsel %vm697, %v1192, 0
      %v1256 = vsel %vm697, %v1194, 0
      %v1259 = vsel %vm697, %v1196, 0
      %v1262 = vsel %vm697, %v1198, 0
      %v1265 = vsel %vm697, %v1200, 0
      %1267 = vmatprep.subr.bf16.mxu0 0
      %1268 = vmatpush1.bf16.msra.mxu0 %v1209
      %1269 = vmatprep.subr.bf16.mxu0 0
      %1270 = vmatpush1.bf16.msra.mxu0 %v1210
      %1271 = vmatprep.subr.bf16.mxu0 0
      %1272 = vmatpush1.bf16.msra.mxu0 0
      %1273 = vmatprep.subr.bf16.mxu0 0
      %1274 = vmatpush1.bf16.msra.mxu0 0
      %1275 = vmatprep.subr.bf16.mxu0 0
      %1276 = vmatpush1.bf16.msra.mxu0 0
      %1277 = vmatprep.subr.bf16.mxu0 0
      %1278 = vmatpush1.bf16.msra.mxu0 0
      %1279 = vmatprep.subr.bf16.mxu0 0
      %1280 = vmatpush1.bf16.msra.mxu0 0
      %1281 = vmatprep.subr.bf16.mxu0 0
      %1282 = vmatpush1.bf16.msra.mxu0 0
      %1283 = vmatprep.subr.bf16.mxu0 0
      %1284 = vmatpush1.bf16.msra.mxu0 0
      %1285 = vmatprep.subr.bf16.mxu0 0
      %1286 = vmatpush1.bf16.msra.mxu0 0
      %1287 = vmatprep.subr.bf16.mxu0 0
      %1288 = vmatpush1.bf16.msra.mxu0 0
      %1289 = vmatprep.subr.bf16.mxu0 0
      %1290 = vmatpush1.bf16.msra.mxu0 0
      %1291 = vmatprep.subr.bf16.mxu0 0
      %1292 = vmatpush1.bf16.msra.mxu0 0
      %1293 = vmatprep.subr.bf16.mxu0 0
      %1294 = vmatpush1.bf16.msra.mxu0 0
      %1295 = vmatprep.subr.bf16.mxu0 0
      %1296 = vmatpush1.bf16.msra.mxu0 0
      %1297 = vmatprep.subr.bf16.mxu0 0
      %1298 = vmatpush1.bf16.msra.mxu0 0
      %1299 = vmatprep.mubr.bf16.mxu0 0
      %1300 = vmatmul.mubr.bf16.gmra.mrb[0].mxu0 %v1214
      %v1301 = vpop.f32.mrb[0].mxu0
      %v1302 = vadd.f32 0.0, %v1301
      %v1303 = vpop.f32.mrb[0].mxu0
      %v1304 = vpop.f32.mrb[0].mxu0
      %v1305 = vadd.f32 0.0, %v1304
      %v1306 = vpop.f32.mrb[0].mxu0
      %1307 = vmatprep.mubr.bf16.mxu0 0
      %1308 = vmatmul.mubr.bf16.gmra.mrb[0].mxu0 %v1217
      %v1309 = vpop.f32.mrb[0].mxu0
      %v1310 = vadd.f32 0.0, %v1309
      %v1311 = vpop.f32.mrb[0].mxu0
      %v1312 = vpop.f32.mrb[0].mxu0
      %v1313 = vadd.f32 0.0, %v1312
      %v1314 = vpop.f32.mrb[0].mxu0
      %1315 = vmatprep.mubr.bf16.mxu0 0
      %1316 = vmatmul.mubr.bf16.gmra.mrb[0].mxu0 %v1220
      %v1317 = vpop.f32.mrb[0].mxu0
      %v1318 = vadd.f32 0.0, %v1317
      %v1319 = vpop.f32.mrb[0].mxu0
      %v1320 = vpop.f32.mrb[0].mxu0
      %v1321 = vadd.f32 0.0, %v1320
      %v1322 = vpop.f32.mrb[0].mxu0
      %1323 = vmatprep.mubr.bf16.mxu0 0
      %1324 = vmatmul.mubr.bf16.gmra.mrb[0].mxu0 %v1223
      %v1325 = vpop.f32.mrb[0].mxu0
      %v1326 = vadd.f32 0.0, %v1325
      %v1327 = vpop.f32.mrb[0].mxu0
      %v1328 = vpop.f32.mrb[0].mxu0
      %v1329 = vadd.f32 0.0, %v1328
      %v1330 = vpop.f32.mrb[0].mxu0
      %1331 = vmatprep.mubr.bf16.mxu0 0
      %1332 = vmatmul.mubr.bf16.gmra.mrb[0].mxu0 %v1226
      %v1333 = vpop.f32.mrb[0].mxu0
      %v1334 = vadd.f32 0.0, %v1333
      %v1335 = vpop.f32.mrb[0].mxu0
      %v1336 = vpop.f32.mrb[0].mxu0
      %v1337 = vadd.f32 0.0, %v1336
      %v1338 = vpop.f32.mrb[0].mxu0
      %1339 = vmatprep.mubr.bf16.mxu0 0
      %1340 = vmatmul.mubr.bf16.gmra.mrb[0].mxu0 %v1229
      %v1341 = vpop.f32.mrb[0].mxu0
      %v1342 = vadd.f32 0.0, %v1341
      %v1343 = vpop.f32.mrb[0].mxu0
      %v1344 = vpop.f32.mrb[0].mxu0
      %v1345 = vadd.f32 0.0, %v1344
      %v1346 = vpop.f32.mrb[0].mxu0
      %1347 = vmatprep.mubr.bf16.mxu0 0
      %1348 = vmatmul.mubr.bf16.gmra.mrb[0].mxu0 %v1232
      %v1349 = vpop.f32.mrb[0].mxu0
      %v1350 = vadd.f32 0.0, %v1349
      %v1351 = vpop.f32.mrb[0].mxu0
      %v1352 = vpop.f32.mrb[0].mxu0
      %v1353 = vadd.f32 0.0, %v1352
      %v1354 = vpop.f32.mrb[0].mxu0
      %1355 = vmatprep.mubr.bf16.mxu0 0
      %1356 = vmatmul.mubr.bf16.gmra.mrb[0].mxu0 %v1235
      %v1357 = vpop.f32.mrb[0].mxu0
      %v1358 = vadd.f32 0.0, %v1357
      %v1359 = vpop.f32.mrb[0].mxu0
      %v1360 = vpop.f32.mrb[0].mxu0
      %v1361 = vadd.f32 0.0, %v1360
      %v1362 = vpop.f32.mrb[0].mxu0
      %1363 = vmatprep.mubr.bf16.mxu0 0
      %1364 = vmatmul.mubr.bf16.gmra.mrb[0].mxu0 %v1238
      %v1365 = vpop.f32.mrb[0].mxu0
      %v1366 = vadd.f32 0.0, %v1365
      %v1367 = vpop.f32.mrb[0].mxu0
      %v1368 = vpop.f32.mrb[0].mxu0
      %v1369 = vadd.f32 0.0, %v1368
      %v1370 = vpop.f32.mrb[0].mxu0
      %1371 = vmatprep.mubr.bf16.mxu0 0
      %1372 = vmatmul.mubr.bf16.gmra.mrb[0].mxu0 %v1241
      %v1373 = vpop.f32.mrb[0].mxu0
      %v1374 = vadd.f32 0.0, %v1373
      %v1375 = vpop.f32.mrb[0].mxu0
      %v1376 = vpop.f32.mrb[0].mxu0
      %v1377 = vadd.f32 0.0, %v1376
      %v1378 = vpop.f32.mrb[0].mxu0
      %1379 = vmatprep.mubr.bf16.mxu0 0
      %1380 = vmatmul.mubr.bf16.gmra.mrb[0].mxu0 %v1244
      %v1381 = vpop.f32.mrb[0].mxu0
      %v1382 = vadd.f32 0.0, %v1381
      %v1383 = vpop.f32.mrb[0].mxu0
      %v1384 = vpop.f32.mrb[0].mxu0
      %v1385 = vadd.f32 0.0, %v1384
      %v1386 = vpop.f32.mrb[0].mxu0
      %1387 = vmatprep.mubr.bf16.mxu0 0
      %1388 = vmatmul.mubr.bf16.gmra.mrb[0].mxu0 %v1247
      %v1389 = vpop.f32.mrb[0].mxu0
      %v1390 = vadd.f32 0.0, %v1389
      %v1391 = vpop.f32.mrb[0].mxu0
      %v1392 = vpop.f32.mrb[0].mxu0
      %v1393 = vadd.f32 0.0, %v1392
      %v1394 = vpop.f32.mrb[0].mxu0
      %1395 = vmatprep.mubr.bf16.mxu0 0
      %1396 = vmatmul.mubr.bf16.gmra.mrb[0].mxu0 %v1250
      %v1397 = vpop.f32.mrb[0].mxu0
      %v1398 = vadd.f32 0.0, %v1397
      %v1399 = vpop.f32.mrb[0].mxu0
      %v1400 = vpop.f32.mrb[0].mxu0
      %v1401 = vadd.f32 0.0, %v1400
      %v1402 = vpop.f32.mrb[0].mxu0
      %1403 = vmatprep.mubr.bf16.mxu0 0
      %1404 = vmatmul.mubr.bf16.gmra.mrb[0].mxu0 %v1253
      %v1405 = vpop.f32.mrb[0].mxu0
      %v1406 = vadd.f32 0.0, %v1405
      %v1407 = vpop.f32.mrb[0].mxu0
      %v1408 = vpop.f32.mrb[0].mxu0
      %v1409 = vadd.f32 0.0, %v1408
      %v1410 = vpop.f32.mrb[0].mxu0
      %1411 = vmatprep.mubr.bf16.mxu0 0
      %1412 = vmatmul.mubr.bf16.gmra.mrb[0].mxu0 %v1256
      %v1413 = vpop.f32.mrb[0].mxu0
      %v1414 = vadd.f32 0.0, %v1413
      %v1415 = vpop.f32.mrb[0].mxu0
      %v1416 = vpop.f32.mrb[0].mxu0
      %v1417 = vadd.f32 0.0, %v1416
      %v1418 = vpop.f32.mrb[0].mxu0
      %1419 = vmatprep.mubr.bf16.mxu0 0
      %1420 = vmatmul.mubr.bf16.gmra.mrb[0].mxu0 %v1259
      %v1421 = vpop.f32.mrb[0].mxu0
      %v1422 = vadd.f32 0.0, %v1421
      %v1423 = vpop.f32.mrb[0].mxu0
      %v1424 = vpop.f32.mrb[0].mxu0
      %v1425 = vadd.f32 0.0, %v1424
      %v1426 = vpop.f32.mrb[0].mxu0
      %1427 = vmatprep.mubr.bf16.mxu0 0
      %1428 = vmatmul.mubr.bf16.gmra.mrb[0].mxu0 %v1262
      %v1429 = vpop.f32.mrb[0].mxu0
      %v1430 = vadd.f32 0.0, %v1429
      %v1431 = vpop.f32.mrb[0].mxu0
      %v1432 = vpop.f32.mrb[0].mxu0
      %v1433 = vadd.f32 0.0, %v1432
      %v1434 = vpop.f32.mrb[0].mxu0
      %1435 = vmatprep.mubr.bf16.mxu0 0
      %1436 = vmatmul.mubr.bf16.gmra.mrb[0].mxu0 %v1265
      %v1437 = vpop.f32.mrb[0].mxu0
      %v1438 = vadd.f32 0.0, %v1437
      %v1439 = vpop.f32.mrb[0].mxu0
      %v1440 = vpop.f32.mrb[0].mxu0
      %v1441 = vadd.f32 0.0, %v1440
      %v1442 = vpop.f32.mrb[0].mxu0
      %1443 = vdwg.mxu0
      %v1444 = vadd.f32 %v1012, %v1302
      %v1445 = vadd.f32 %v1015, %v1305
      %v1446 = vadd.f32 %v1020, %v1310
      %v1447 = vadd.f32 %v1023, %v1313
      %v1448 = vadd.f32 %v1028, %v1318
      %v1449 = vadd.f32 %v1031, %v1321
      %v1450 = vadd.f32 %v1036, %v1326
      %v1451 = vadd.f32 %v1039, %v1329
      %v1452 = vadd.f32 %v1044, %v1334
      %v1453 = vadd.f32 %v1047, %v1337
      %v1454 = vadd.f32 %v1052, %v1342
      %v1455 = vadd.f32 %v1055, %v1345
      %v1456 = vadd.f32 %v1060, %v1350
      %v1457 = vadd.f32 %v1063, %v1353
      %v1458 = vadd.f32 %v1068, %v1358
      %v1459 = vadd.f32 %v1071, %v1361
      %v1460 = vadd.f32 %v1076, %v1366
      %v1461 = vadd.f32 %v1079, %v1369
      %v1462 = vadd.f32 %v1084, %v1374
      %v1463 = vadd.f32 %v1087, %v1377
      %v1464 = vadd.f32 %v1092, %v1382
      %v1465 = vadd.f32 %v1095, %v1385
      %v1466 = vadd.f32 %v1100, %v1390
      %v1467 = vadd.f32 %v1103, %v1393
      %v1468 = vadd.f32 %v1108, %v1398
      %v1469 = vadd.f32 %v1111, %v1401
      %v1470 = vadd.f32 %v1116, %v1406
      %v1471 = vadd.f32 %v1119, %v1409
      %v1472 = vadd.f32 %v1124, %v1414
      %v1473 = vadd.f32 %v1127, %v1417
      %v1474 = vadd.f32 %v1132, %v1422
      %v1475 = vadd.f32 %v1135, %v1425
      %v1476 = vadd.f32 %v1140, %v1430
      %v1477 = vadd.f32 %v1143, %v1433
      %v1478 = vadd.f32 %v1148, %v1438
      %v1479 = vadd.f32 %v1151, %v1441
      %v1480 = vld [vmem:[%s354 + $0x8] sm:$0xe]
      %v1481 = vld [vmem:[%s354 + $0xc] sm:$0xf]
      %v1482 = vld [vmem:[%s354 + $0x10] sm:$0xf]
      %v1483 = vld [vmem:[%s354 + $0x14] sm:$0xf]
      %v1484 = vld [vmem:[%s354 + $0x18] sm:$0xf]
      %v1485 = vld [vmem:[%s354 + $0x1c] sm:$0xf]
      %v1486 = vld [vmem:[%s354 + $0x20] sm:$0xf]
      %v1487 = vld [vmem:[%s354 + $0x24] sm:$0xf]
      %v1488 = vld [vmem:[%s354 + $0x28] sm:$0xf]
      %v1489 = vld [vmem:[%s354 + $0x2c] sm:$0xf]
      %v1490 = vld [vmem:[%s354 + $0x30] sm:$0xf]
      %v1491 = vld [vmem:[%s354 + $0x34] sm:$0xf]
      %v1492 = vld [vmem:[%s354 + $0x38] sm:$0xf]
      %v1493 = vld [vmem:[%s354 + $0x3c] sm:$0xf]
      %v1494 = vld [vmem:[%s354 + $0x40] sm:$0xf]
      %v1495 = vld [vmem:[%s354 + $0x44] sm:$0xf]
      %v1496 = vld [vmem:[%s354 + $0x48] sm:$0xf]
      %v1497 = vld [vmem:[%s354 + $0x4c] sm:$0xf]
      %v1498 = vld [vmem:[%s354 + $0x50] sm:$0xf]
      %v1499 = vld [vmem:[%s354 + $0x54] sm:$0xf]
      %v1500 = vld [vmem:[%s354 + $0x58] sm:$0xf]
      %v1501 = vld [vmem:[%s354 + $0x5c] sm:$0xf]
      %v1502 = vld [vmem:[%s354 + $0x60] sm:$0xf]
      %v1503 = vld [vmem:[%s354 + $0x64] sm:$0xf]
      %v1504 = vld [vmem:[%s354 + $0x68] sm:$0xf]
      %v1505 = vld [vmem:[%s354 + $0x6c] sm:$0xf]
      %v1506 = vld [vmem:[%s354 + $0x70] sm:$0xf]
      %v1507 = vld [vmem:[%s354 + $0x74] sm:$0xf]
      %v1508 = vld [vmem:[%s354 + $0x78] sm:$0xf]
      %v1509 = vld [vmem:[%s354 + $0x7c] sm:$0xf]
      %v1510 = vld [vmem:[%s354 + $0x80] sm:$0xf]
      %v1511 = vld [vmem:[%s354 + $0x84] sm:$0xf]
      %v1512 = vld [vmem:[%s354 + $0x88] sm:$0xf]
      %v1513 = vld [vmem:[%s354 + $0x8c] sm:$0xf]
      %v1514 = vld [vmem:[%s354 + $0x90] sm:$0xf]
      %v1515 = vld [vmem:[%s354 + $0x94] sm:$0xf]
      %v1516 = vld [vmem:[%s354 + $0x98] sm:$0x1]
      %s1517 = scalar_lea.vmem %s2, 48
      %v1518 = vld [vmem:[%s1517] sm:$0xf]
      %v1519 = vld [vmem:[%s1517 + $0x4] sm:$0xf]
      %v1520 = vld [vmem:[%s1517 + $0x8] sm:$0xf]
      %v1521 = vld [vmem:[%s1517 + $0xc] sm:$0xf]
      %v1559 = vunpack.c.l.b16 %v1480
      %v1560 = vunpack.c.l.b16 %v1481
      %v1561 = vunpack.c.l.b16 %v1482
      %v1562 = vunpack.c.l.b16 %v1483
      %v1563 = vunpack.c.l.b16 %v1484
      %v1564 = vunpack.c.l.b16 %v1485
      %v1565 = vunpack.c.l.b16 %v1486
      %v1566 = vunpack.c.l.b16 %v1487
      %v1567 = vunpack.c.l.b16 %v1488
      %v1568 = vunpack.c.l.b16 %v1489
      %v1569 = vunpack.c.l.b16 %v1490
      %v1570 = vunpack.c.l.b16 %v1491
      %v1571 = vunpack.c.l.b16 %v1492
      %v1572 = vunpack.c.l.b16 %v1493
      %v1573 = vunpack.c.l.b16 %v1494
      %v1574 = vunpack.c.l.b16 %v1495
      %v1575 = vunpack.c.l.b16 %v1496
      %v1576 = vunpack.c.l.b16 %v1497
      %v1577 = vunpack.c.l.b16 %v1498
      %v1578 = vunpack.c.l.b16 %v1499
      %v1579 = vunpack.c.l.b16 %v1500
      %v1580 = vunpack.c.l.b16 %v1501
      %v1581 = vunpack.c.l.b16 %v1502
      %v1582 = vunpack.c.l.b16 %v1503
      %v1583 = vunpack.c.l.b16 %v1504
      %v1584 = vunpack.c.l.b16 %v1505
      %v1585 = vunpack.c.l.b16 %v1506
      %v1586 = vunpack.c.l.b16 %v1507
      %v1587 = vunpack.c.l.b16 %v1508
      %v1588 = vunpack.c.l.b16 %v1509
      %v1589 = vunpack.c.l.b16 %v1510
      %v1590 = vunpack.c.l.b16 %v1511
      %v1591 = vunpack.c.l.b16 %v1512
      %v1592 = vunpack.c.l.b16 %v1513
      %v1593 = vunpack.c.l.b16 %v1514
      %v1594 = vunpack.c.l.b16 %v1515
      %v1595 = vunpack.c.l.b16 %v1516
      %v1596 = vpack.c.b16 %v1560, %v1559
      %v1597 = vpack.c.b16 %v1562, %v1561
      %v1598 = vpack.c.b16 %v1564, %v1563
      %v1599 = vpack.c.b16 %v1566, %v1565
      %v1600 = vpack.c.b16 %v1568, %v1567
      %v1601 = vpack.c.b16 %v1570, %v1569
      %v1602 = vpack.c.b16 %v1572, %v1571
      %v1603 = vpack.c.b16 %v1574, %v1573
      %v1604 = vpack.c.b16 %v1576, %v1575
      %v1605 = vpack.c.b16 %v1578, %v1577
      %v1606 = vpack.c.b16 %v1580, %v1579
      %v1607 = vpack.c.b16 %v1582, %v1581
      %v1608 = vpack.c.b16 %v1584, %v1583
      %v1609 = vpack.c.b16 %v1586, %v1585
      %v1610 = vpack.c.b16 %v1588, %v1587
      %v1611 = vpack.c.b16 %v1590, %v1589
      %v1612 = vpack.c.b16 %v1592, %v1591
      %v1613 = vpack.c.b16 %v1594, %v1593
      %v1614 = vpack.c.b16 %v1595, %v1595
      %v1615 = vrot.slane %v1596, 1
      %v1616 = vrot.slane %v1597, 1
      %v1617 = vsel %vm1163, %v1615, %v1616
      %v1618 = vrot.slane %v1598, 1
      %v1619 = vsel %vm1163, %v1616, %v1618
      %v1620 = vrot.slane %v1599, 1
      %v1621 = vsel %vm1163, %v1618, %v1620
      %v1622 = vrot.slane %v1600, 1
      %v1623 = vsel %vm1163, %v1620, %v1622
      %v1624 = vrot.slane %v1601, 1
      %v1625 = vsel %vm1163, %v1622, %v1624
      %v1626 = vrot.slane %v1602, 1
      %v1627 = vsel %vm1163, %v1624, %v1626
      %v1628 = vrot.slane %v1603, 1
      %v1629 = vsel %vm1163, %v1626, %v1628
      %v1630 = vrot.slane %v1604, 1
      %v1631 = vsel %vm1163, %v1628, %v1630
      %v1632 = vrot.slane %v1605, 1
      %v1633 = vsel %vm1163, %v1630, %v1632
      %v1634 = vrot.slane %v1606, 1
      %v1635 = vsel %vm1163, %v1632, %v1634
      %v1636 = vrot.slane %v1607, 1
      %v1637 = vsel %vm1163, %v1634, %v1636
      %v1638 = vrot.slane %v1608, 1
      %v1639 = vsel %vm1163, %v1636, %v1638
      %v1640 = vrot.slane %v1609, 1
      %v1641 = vsel %vm1163, %v1638, %v1640
      %v1642 = vrot.slane %v1610, 1
      %v1643 = vsel %vm1163, %v1640, %v1642
      %v1644 = vrot.slane %v1611, 1
      %v1645 = vsel %vm1163, %v1642, %v1644
      %v1646 = vrot.slane %v1612, 1
      %v1647 = vsel %vm1163, %v1644, %v1646
      %v1648 = vrot.slane %v1613, 1
      %v1649 = vsel %vm1163, %v1646, %v1648
      %v1650 = vrot.slane %v1614, 1
      %v1651 = vsel %vm1163, %v1648, %v1650
      %v1656 = vunpack.c.l.b16 %v1518
      %v1657 = vunpack.c.l.b16 %v1519
      %v1658 = vunpack.c.l.b16 %v1520
      %v1659 = vunpack.c.l.b16 %v1521
      %v1660 = vpack.c.b16 %v1657, %v1656
      %v1661 = vpack.c.b16 %v1659, %v1658
      %v1665 = vsel %vm697, %v1617, 0
      %v1668 = vsel %vm697, %v1619, 0
      %v1671 = vsel %vm697, %v1621, 0
      %v1674 = vsel %vm697, %v1623, 0
      %v1677 = vsel %vm697, %v1625, 0
      %v1680 = vsel %vm697, %v1627, 0
      %v1683 = vsel %vm697, %v1629, 0
      %v1686 = vsel %vm697, %v1631, 0
      %v1689 = vsel %vm697, %v1633, 0
      %v1692 = vsel %vm697, %v1635, 0
      %v1695 = vsel %vm697, %v1637, 0
      %v1698 = vsel %vm697, %v1639, 0
      %v1701 = vsel %vm697, %v1641, 0
      %v1704 = vsel %vm697, %v1643, 0
      %v1707 = vsel %vm697, %v1645, 0
      %v1710 = vsel %vm697, %v1647, 0
      %v1713 = vsel %vm697, %v1649, 0
      %v1716 = vsel %vm697, %v1651, 0
      %1718 = vmatprep.subr.bf16.mxu0 0
      %1719 = vmatpush1.bf16.msra.mxu0 %v1660
      %1720 = vmatprep.subr.bf16.mxu0 0
      %1721 = vmatpush1.bf16.msra.mxu0 %v1661
      %1722 = vmatprep.subr.bf16.mxu0 0
      %1723 = vmatpush1.bf16.msra.mxu0 0
      %1724 = vmatprep.subr.bf16.mxu0 0
      %1725 = vmatpush1.bf16.msra.mxu0 0
      %1726 = vmatprep.subr.bf16.mxu0 0
      %1727 = vmatpush1.bf16.msra.mxu0 0
      %1728 = vmatprep.subr.bf16.mxu0 0
      %1729 = vmatpush1.bf16.msra.mxu0 0
      %1730 = vmatprep.subr.bf16.mxu0 0
      %1731 = vmatpush1.bf16.msra.mxu0 0
      %1732 = vmatprep.subr.bf16.mxu0 0
      %1733 = vmatpush1.bf16.msra.mxu0 0
      %1734 = vmatprep.subr.bf16.mxu0 0
      %1735 = vmatpush1.bf16.msra.mxu0 0
      %1736 = vmatprep.subr.bf16.mxu0 0
      %1737 = vmatpush1.bf16.msra.mxu0 0
      %1738 = vmatprep.subr.bf16.mxu0 0
      %1739 = vmatpush1.bf16.msra.mxu0 0
      %1740 = vmatprep.subr.bf16.mxu0 0
      %1741 = vmatpush1.bf16.msra.mxu0 0
      %1742 = vmatprep.subr.bf16.mxu0 0
      %1743 = vmatpush1.bf16.msra.mxu0 0
      %1744 = vmatprep.subr.bf16.mxu0 0
      %1745 = vmatpush1.bf16.msra.mxu0 0
      %1746 = vmatprep.subr.bf16.mxu0 0
      %1747 = vmatpush1.bf16.msra.mxu0 0
      %1748 = vmatprep.subr.bf16.mxu0 0
      %1749 = vmatpush1.bf16.msra.mxu0 0
      %1750 = vmatprep.mubr.bf16.mxu0 0
      %1751 = vmatmul.mubr.bf16.gmra.mrb[0].mxu0 %v1665
      %v1752 = vpop.f32.mrb[0].mxu0
      %v1753 = vadd.f32 0.0, %v1752
      %v1754 = vpop.f32.mrb[0].mxu0
      %v1755 = vpop.f32.mrb[0].mxu0
      %v1756 = vadd.f32 0.0, %v1755
      %v1757 = vpop.f32.mrb[0].mxu0
      %1758 = vmatprep.mubr.bf16.mxu0 0
      %1759 = vmatmul.mubr.bf16.gmra.mrb[0].mxu0 %v1668
      %v1760 = vpop.f32.mrb[0].mxu0
      %v1761 = vadd.f32 0.0, %v1760
      %v1762 = vpop.f32.mrb[0].mxu0
      %v1763 = vpop.f32.mrb[0].mxu0
      %v1764 = vadd.f32 0.0, %v1763
      %v1765 = vpop.f32.mrb[0].mxu0
      %1766 = vmatprep.mubr.bf16.mxu0 0
      %1767 = vmatmul.mubr.bf16.gmra.mrb[0].mxu0 %v1671
      %v1768 = vpop.f32.mrb[0].mxu0
      %v1769 = vadd.f32 0.0, %v1768
      %v1770 = vpop.f32.mrb[0].mxu0
      %v1771 = vpop.f32.mrb[0].mxu0
      %v1772 = vadd.f32 0.0, %v1771
      %v1773 = vpop.f32.mrb[0].mxu0
      %1774 = vmatprep.mubr.bf16.mxu0 0
      %1775 = vmatmul.mubr.bf16.gmra.mrb[0].mxu0 %v1674
      %v1776 = vpop.f32.mrb[0].mxu0
      %v1777 = vadd.f32 0.0, %v1776
      %v1778 = vpop.f32.mrb[0].mxu0
      %v1779 = vpop.f32.mrb[0].mxu0
      %v1780 = vadd.f32 0.0, %v1779
      %v1781 = vpop.f32.mrb[0].mxu0
      %1782 = vmatprep.mubr.bf16.mxu0 0
      %1783 = vmatmul.mubr.bf16.gmra.mrb[0].mxu0 %v1677
      %v1784 = vpop.f32.mrb[0].mxu0
      %v1785 = vadd.f32 0.0, %v1784
      %v1786 = vpop.f32.mrb[0].mxu0
      %v1787 = vpop.f32.mrb[0].mxu0
      %v1788 = vadd.f32 0.0, %v1787
      %v1789 = vpop.f32.mrb[0].mxu0
      %1790 = vmatprep.mubr.bf16.mxu0 0
      %1791 = vmatmul.mubr.bf16.gmra.mrb[0].mxu0 %v1680
      %v1792 = vpop.f32.mrb[0].mxu0
      %v1793 = vadd.f32 0.0, %v1792
      %v1794 = vpop.f32.mrb[0].mxu0
      %v1795 = vpop.f32.mrb[0].mxu0
      %v1796 = vadd.f32 0.0, %v1795
      %v1797 = vpop.f32.mrb[0].mxu0
      %1798 = vmatprep.mubr.bf16.mxu0 0
      %1799 = vmatmul.mubr.bf16.gmra.mrb[0].mxu0 %v1683
      %v1800 = vpop.f32.mrb[0].mxu0
      %v1801 = vadd.f32 0.0, %v1800
      %v1802 = vpop.f32.mrb[0].mxu0
      %v1803 = vpop.f32.mrb[0].mxu0
      %v1804 = vadd.f32 0.0, %v1803
      %v1805 = vpop.f32.mrb[0].mxu0
      %1806 = vmatprep.mubr.bf16.mxu0 0
      %1807 = vmatmul.mubr.bf16.gmra.mrb[0].mxu0 %v1686
      %v1808 = vpop.f32.mrb[0].mxu0
      %v1809 = vadd.f32 0.0, %v1808
      %v1810 = vpop.f32.mrb[0].mxu0
      %v1811 = vpop.f32.mrb[0].mxu0
      %v1812 = vadd.f32 0.0, %v1811
      %v1813 = vpop.f32.mrb[0].mxu0
      %1814 = vmatprep.mubr.bf16.mxu0 0
      %1815 = vmatmul.mubr.bf16.gmra.mrb[0].mxu0 %v1689
      %v1816 = vpop.f32.mrb[0].mxu0
      %v1817 = vadd.f32 0.0, %v1816
      %v1818 = vpop.f32.mrb[0].mxu0
      %v1819 = vpop.f32.mrb[0].mxu0
      %v1820 = vadd.f32 0.0, %v1819
      %v1821 = vpop.f32.mrb[0].mxu0
      %1822 = vmatprep.mubr.bf16.mxu0 0
      %1823 = vmatmul.mubr.bf16.gmra.mrb[0].mxu0 %v1692
      %v1824 = vpop.f32.mrb[0].mxu0
      %v1825 = vadd.f32 0.0, %v1824
      %v1826 = vpop.f32.mrb[0].mxu0
      %v1827 = vpop.f32.mrb[0].mxu0
      %v1828 = vadd.f32 0.0, %v1827
      %v1829 = vpop.f32.mrb[0].mxu0
      %1830 = vmatprep.mubr.bf16.mxu0 0
      %1831 = vmatmul.mubr.bf16.gmra.mrb[0].mxu0 %v1695
      %v1832 = vpop.f32.mrb[0].mxu0
      %v1833 = vadd.f32 0.0, %v1832
      %v1834 = vpop.f32.mrb[0].mxu0
      %v1835 = vpop.f32.mrb[0].mxu0
      %v1836 = vadd.f32 0.0, %v1835
      %v1837 = vpop.f32.mrb[0].mxu0
      %1838 = vmatprep.mubr.bf16.mxu0 0
      %1839 = vmatmul.mubr.bf16.gmra.mrb[0].mxu0 %v1698
      %v1840 = vpop.f32.mrb[0].mxu0
      %v1841 = vadd.f32 0.0, %v1840
      %v1842 = vpop.f32.mrb[0].mxu0
      %v1843 = vpop.f32.mrb[0].mxu0
      %v1844 = vadd.f32 0.0, %v1843
      %v1845 = vpop.f32.mrb[0].mxu0
      %1846 = vmatprep.mubr.bf16.mxu0 0
      %1847 = vmatmul.mubr.bf16.gmra.mrb[0].mxu0 %v1701
      %v1848 = vpop.f32.mrb[0].mxu0
      %v1849 = vadd.f32 0.0, %v1848
      %v1850 = vpop.f32.mrb[0].mxu0
      %v1851 = vpop.f32.mrb[0].mxu0
      %v1852 = vadd.f32 0.0, %v1851
      %v1853 = vpop.f32.mrb[0].mxu0
      %1854 = vmatprep.mubr.bf16.mxu0 0
      %1855 = vmatmul.mubr.bf16.gmra.mrb[0].mxu0 %v1704
      %v1856 = vpop.f32.mrb[0].mxu0
      %v1857 = vadd.f32 0.0, %v1856
      %v1858 = vpop.f32.mrb[0].mxu0
      %v1859 = vpop.f32.mrb[0].mxu0
      %v1860 = vadd.f32 0.0, %v1859
      %v1861 = vpop.f32.mrb[0].mxu0
      %1862 = vmatprep.mubr.bf16.mxu0 0
      %1863 = vmatmul.mubr.bf16.gmra.mrb[0].mxu0 %v1707
      %v1864 = vpop.f32.mrb[0].mxu0
      %v1865 = vadd.f32 0.0, %v1864
      %v1866 = vpop.f32.mrb[0].mxu0
      %v1867 = vpop.f32.mrb[0].mxu0
      %v1868 = vadd.f32 0.0, %v1867
      %v1869 = vpop.f32.mrb[0].mxu0
      %1870 = vmatprep.mubr.bf16.mxu0 0
      %1871 = vmatmul.mubr.bf16.gmra.mrb[0].mxu0 %v1710
      %v1872 = vpop.f32.mrb[0].mxu0
      %v1873 = vadd.f32 0.0, %v1872
      %v1874 = vpop.f32.mrb[0].mxu0
      %v1875 = vpop.f32.mrb[0].mxu0
      %v1876 = vadd.f32 0.0, %v1875
      %v1877 = vpop.f32.mrb[0].mxu0
      %1878 = vmatprep.mubr.bf16.mxu0 0
      %1879 = vmatmul.mubr.bf16.gmra.mrb[0].mxu0 %v1713
      %v1880 = vpop.f32.mrb[0].mxu0
      %v1881 = vadd.f32 0.0, %v1880
      %v1882 = vpop.f32.mrb[0].mxu0
      %v1883 = vpop.f32.mrb[0].mxu0
      %v1884 = vadd.f32 0.0, %v1883
      %v1885 = vpop.f32.mrb[0].mxu0
      %1886 = vmatprep.mubr.bf16.mxu0 0
      %1887 = vmatmul.mubr.bf16.gmra.mrb[0].mxu0 %v1716
      %v1888 = vpop.f32.mrb[0].mxu0
      %v1889 = vadd.f32 0.0, %v1888
      %v1890 = vpop.f32.mrb[0].mxu0
      %v1891 = vpop.f32.mrb[0].mxu0
      %v1892 = vadd.f32 0.0, %v1891
      %v1893 = vpop.f32.mrb[0].mxu0
      %1894 = vdwg.mxu0
      %v1895 = vadd.f32 %v1444, %v1753
      %v1896 = vadd.f32 %v1445, %v1756
      %v1897 = vadd.f32 %v1446, %v1761
      %v1898 = vadd.f32 %v1447, %v1764
      %v1899 = vadd.f32 %v1448, %v1769
      %v1900 = vadd.f32 %v1449, %v1772
      %v1901 = vadd.f32 %v1450, %v1777
      %v1902 = vadd.f32 %v1451, %v1780
      %v1903 = vadd.f32 %v1452, %v1785
      %v1904 = vadd.f32 %v1453, %v1788
      %v1905 = vadd.f32 %v1454, %v1793
      %v1906 = vadd.f32 %v1455, %v1796
      %v1907 = vadd.f32 %v1456, %v1801
      %v1908 = vadd.f32 %v1457, %v1804
      %v1909 = vadd.f32 %v1458, %v1809
      %v1910 = vadd.f32 %v1459, %v1812
      %v1911 = vadd.f32 %v1460, %v1817
      %v1912 = vadd.f32 %v1461, %v1820
      %v1913 = vadd.f32 %v1462, %v1825
      %v1914 = vadd.f32 %v1463, %v1828
      %v1915 = vadd.f32 %v1464, %v1833
      %v1916 = vadd.f32 %v1465, %v1836
      %v1917 = vadd.f32 %v1466, %v1841
      %v1918 = vadd.f32 %v1467, %v1844
      %v1919 = vadd.f32 %v1468, %v1849
      %v1920 = vadd.f32 %v1469, %v1852
      %v1921 = vadd.f32 %v1470, %v1857
      %v1922 = vadd.f32 %v1471, %v1860
      %v1923 = vadd.f32 %v1472, %v1865
      %v1924 = vadd.f32 %v1473, %v1868
      %v1925 = vadd.f32 %v1474, %v1873
      %v1926 = vadd.f32 %v1475, %v1876
      %v1927 = vadd.f32 %v1476, %v1881
      %v1928 = vadd.f32 %v1477, %v1884
      %v1929 = vadd.f32 %v1478, %v1889
      %v1930 = vadd.f32 %v1479, %v1892
      %v1931 = vld [vmem:[%s354 + $0x98] sm:$0x3]
      %s1932 = scalar_lea.vmem %s2, 64
      %v1933 = vld [vmem:[%s1932] sm:$0xf]
      %v1934 = vld [vmem:[%s1932 + $0x4] sm:$0xf]
      %v1935 = vld [vmem:[%s1932 + $0x8] sm:$0xf]
      %v1936 = vld [vmem:[%s1932 + $0xc] sm:$0xf]
      %v1938 = vunpack.c.l.b16 %v1931
      %v1939 = vpack.c.b16 %v1938, %v1938
      %vm1940 = vsmask.f32 6400
      %v1942 = vshrl.u32 %v1596, 16
      %v1944 = vrot.slane %v1942, 1
      %v1945 = vshll.u32 %v1596, 16
      %v1947 = vrot.slane %v1945, 2
      %v1948 = vor.u32 %v1944, %v1947
      %v1950 = vshrl.u32 %v1597, 16
      %v1952 = vrot.slane %v1950, 1
      %v1953 = vshll.u32 %v1597, 16
      %v1955 = vrot.slane %v1953, 2
      %v1956 = vor.u32 %v1952, %v1955
      %v1957 = vsel %vm1940, %v1948, %v1956
      %v1959 = vshrl.u32 %v1598, 16
      %v1961 = vrot.slane %v1959, 1
      %v1962 = vshll.u32 %v1598, 16
      %v1964 = vrot.slane %v1962, 2
      %v1965 = vor.u32 %v1961, %v1964
      %v1966 = vsel %vm1940, %v1956, %v1965
      %v1968 = vshrl.u32 %v1599, 16
      %v1970 = vrot.slane %v1968, 1
      %v1971 = vshll.u32 %v1599, 16
      %v1973 = vrot.slane %v1971, 2
      %v1974 = vor.u32 %v1970, %v1973
      %v1975 = vsel %vm1940, %v1965, %v1974
      %v1977 = vshrl.u32 %v1600, 16
      %v1979 = vrot.slane %v1977, 1
      %v1980 = vshll.u32 %v1600, 16
      %v1982 = vrot.slane %v1980, 2
      %v1983 = vor.u32 %v1979, %v1982
      %v1984 = vsel %vm1940, %v1974, %v1983
      %v1986 = vshrl.u32 %v1601, 16
      %v1988 = vrot.slane %v1986, 1
      %v1989 = vshll.u32 %v1601, 16
      %v1991 = vrot.slane %v1989, 2
      %v1992 = vor.u32 %v1988, %v1991
      %v1993 = vsel %vm1940, %v1983, %v1992
      %v1995 = vshrl.u32 %v1602, 16
      %v1997 = vrot.slane %v1995, 1
      %v1998 = vshll.u32 %v1602, 16
      %v2000 = vrot.slane %v1998, 2
      %v2001 = vor.u32 %v1997, %v2000
      %v2002 = vsel %vm1940, %v1992, %v2001
      %v2004 = vshrl.u32 %v1603, 16
      %v2006 = vrot.slane %v2004, 1
      %v2007 = vshll.u32 %v1603, 16
      %v2009 = vrot.slane %v2007, 2
      %v2010 = vor.u32 %v2006, %v2009
      %v2011 = vsel %vm1940, %v2001, %v2010
      %v2013 = vshrl.u32 %v1604, 16
      %v2015 = vrot.slane %v2013, 1
      %v2016 = vshll.u32 %v1604, 16
      %v2018 = vrot.slane %v2016, 2
      %v2019 = vor.u32 %v2015, %v2018
      %v2020 = vsel %vm1940, %v2010, %v2019
      %v2022 = vshrl.u32 %v1605, 16
      %v2024 = vrot.slane %v2022, 1
      %v2025 = vshll.u32 %v1605, 16
      %v2027 = vrot.slane %v2025, 2
      %v2028 = vor.u32 %v2024, %v2027
      %v2029 = vsel %vm1940, %v2019, %v2028
      %v2031 = vshrl.u32 %v1606, 16
      %v2033 = vrot.slane %v2031, 1
      %v2034 = vshll.u32 %v1606, 16
      %v2036 = vrot.slane %v2034, 2
      %v2037 = vor.u32 %v2033, %v2036
      %v2038 = vsel %vm1940, %v2028, %v2037
      %v2040 = vshrl.u32 %v1607, 16
      %v2042 = vrot.slane %v2040, 1
      %v2043 = vshll.u32 %v1607, 16
      %v2045 = vrot.slane %v2043, 2
      %v2046 = vor.u32 %v2042, %v2045
      %v2047 = vsel %vm1940, %v2037, %v2046
      %v2049 = vshrl.u32 %v1608, 16
      %v2051 = vrot.slane %v2049, 1
      %v2052 = vshll.u32 %v1608, 16
      %v2054 = vrot.slane %v2052, 2
      %v2055 = vor.u32 %v2051, %v2054
      %v2056 = vsel %vm1940, %v2046, %v2055
      %v2058 = vshrl.u32 %v1609, 16
      %v2060 = vrot.slane %v2058, 1
      %v2061 = vshll.u32 %v1609, 16
      %v2063 = vrot.slane %v2061, 2
      %v2064 = vor.u32 %v2060, %v2063
      %v2065 = vsel %vm1940, %v2055, %v2064
      %v2067 = vshrl.u32 %v1610, 16
      %v2069 = vrot.slane %v2067, 1
      %v2070 = vshll.u32 %v1610, 16
      %v2072 = vrot.slane %v2070, 2
      %v2073 = vor.u32 %v2069, %v2072
      %v2074 = vsel %vm1940, %v2064, %v2073
      %v2076 = vshrl.u32 %v1611, 16
      %v2078 = vrot.slane %v2076, 1
      %v2079 = vshll.u32 %v1611, 16
      %v2081 = vrot.slane %v2079, 2
      %v2082 = vor.u32 %v2078, %v2081
      %v2083 = vsel %vm1940, %v2073, %v2082
      %v2085 = vshrl.u32 %v1612, 16
      %v2087 = vrot.slane %v2085, 1
      %v2088 = vshll.u32 %v1612, 16
      %v2090 = vrot.slane %v2088, 2
      %v2091 = vor.u32 %v2087, %v2090
      %v2092 = vsel %vm1940, %v2082, %v2091
      %v2094 = vshrl.u32 %v1613, 16
      %v2096 = vrot.slane %v2094, 1
      %v2097 = vshll.u32 %v1613, 16
      %v2099 = vrot.slane %v2097, 2
      %v2100 = vor.u32 %v2096, %v2099
      %v2101 = vsel %vm1940, %v2091, %v2100
      %v2103 = vshrl.u32 %v1939, 16
      %v2105 = vrot.slane %v2103, 1
      %v2106 = vshll.u32 %v1939, 16
      %v2108 = vrot.slane %v2106, 2
      %v2109 = vor.u32 %v2105, %v2108
      %v2110 = vsel %vm1940, %v2100, %v2109
      %v2115 = vunpack.c.l.b16 %v1933
      %v2116 = vunpack.c.l.b16 %v1934
      %v2117 = vunpack.c.l.b16 %v1935
      %v2118 = vunpack.c.l.b16 %v1936
      %v2119 = vpack.c.b16 %v2116, %v2115
      %v2120 = vpack.c.b16 %v2118, %v2117
      %v2124 = vsel %vm697, %v1957, 0
      %v2127 = vsel %vm697, %v1966, 0
      %v2130 = vsel %vm697, %v1975, 0
      %v2133 = vsel %vm697, %v1984, 0
      %v2136 = vsel %vm697, %v1993, 0
      %v2139 = vsel %vm697, %v2002, 0
      %v2142 = vsel %vm697, %v2011, 0
      %v2145 = vsel %vm697, %v2020, 0
      %v2148 = vsel %vm697, %v2029, 0
      %v2151 = vsel %vm697, %v2038, 0
      %v2154 = vsel %vm697, %v2047, 0
      %v2157 = vsel %vm697, %v2056, 0
      %v2160 = vsel %vm697, %v2065, 0
      %v2163 = vsel %vm697, %v2074, 0
      %v2166 = vsel %vm697, %v2083, 0
      %v2169 = vsel %vm697, %v2092, 0
      %v2172 = vsel %vm697, %v2101, 0
      %v2175 = vsel %vm697, %v2110, 0
      %2177 = vmatprep.subr.bf16.mxu0 0
      %2178 = vmatpush1.bf16.msra.mxu0 %v2119
      %2179 = vmatprep.subr.bf16.mxu0 0
      %2180 = vmatpush1.bf16.msra.mxu0 %v2120
      %2181 = vmatprep.subr.bf16.mxu0 0
      %2182 = vmatpush1.bf16.msra.mxu0 0
      %2183 = vmatprep.subr.bf16.mxu0 0
      %2184 = vmatpush1.bf16.msra.mxu0 0
      %2185 = vmatprep.subr.bf16.mxu0 0
      %2186 = vmatpush1.bf16.msra.mxu0 0
      %2187 = vmatprep.subr.bf16.mxu0 0
      %2188 = vmatpush1.bf16.msra.mxu0 0
      %2189 = vmatprep.subr.bf16.mxu0 0
      %2190 = vmatpush1.bf16.msra.mxu0 0
      %2191 = vmatprep.subr.bf16.mxu0 0
      %2192 = vmatpush1.bf16.msra.mxu0 0
      %2193 = vmatprep.subr.bf16.mxu0 0
      %2194 = vmatpush1.bf16.msra.mxu0 0
      %2195 = vmatprep.subr.bf16.mxu0 0
      %2196 = vmatpush1.bf16.msra.mxu0 0
      %2197 = vmatprep.subr.bf16.mxu0 0
      %2198 = vmatpush1.bf16.msra.mxu0 0
      %2199 = vmatprep.subr.bf16.mxu0 0
      %2200 = vmatpush1.bf16.msra.mxu0 0
      %2201 = vmatprep.subr.bf16.mxu0 0
      %2202 = vmatpush1.bf16.msra.mxu0 0
      %2203 = vmatprep.subr.bf16.mxu0 0
      %2204 = vmatpush1.bf16.msra.mxu0 0
      %2205 = vmatprep.subr.bf16.mxu0 0
      %2206 = vmatpush1.bf16.msra.mxu0 0
      %2207 = vmatprep.subr.bf16.mxu0 0
      %2208 = vmatpush1.bf16.msra.mxu0 0
      %2209 = vmatprep.mubr.bf16.mxu0 0
      %2210 = vmatmul.mubr.bf16.gmra.mrb[0].mxu0 %v2124
      %v2211 = vpop.f32.mrb[0].mxu0
      %v2212 = vadd.f32 0.0, %v2211
      %v2213 = vpop.f32.mrb[0].mxu0
      %v2214 = vpop.f32.mrb[0].mxu0
      %v2215 = vadd.f32 0.0, %v2214
      %v2216 = vpop.f32.mrb[0].mxu0
      %2217 = vmatprep.mubr.bf16.mxu0 0
      %2218 = vmatmul.mubr.bf16.gmra.mrb[0].mxu0 %v2127
      %v2219 = vpop.f32.mrb[0].mxu0
      %v2220 = vadd.f32 0.0, %v2219
      %v2221 = vpop.f32.mrb[0].mxu0
      %v2222 = vpop.f32.mrb[0].mxu0
      %v2223 = vadd.f32 0.0, %v2222
      %v2224 = vpop.f32.mrb[0].mxu0
      %2225 = vmatprep.mubr.bf16.mxu0 0
      %2226 = vmatmul.mubr.bf16.gmra.mrb[0].mxu0 %v2130
      %v2227 = vpop.f32.mrb[0].mxu0
      %v2228 = vadd.f32 0.0, %v2227
      %v2229 = vpop.f32.mrb[0].mxu0
      %v2230 = vpop.f32.mrb[0].mxu0
      %v2231 = vadd.f32 0.0, %v2230
      %v2232 = vpop.f32.mrb[0].mxu0
      %2233 = vmatprep.mubr.bf16.mxu0 0
      %2234 = vmatmul.mubr.bf16.gmra.mrb[0].mxu0 %v2133
      %v2235 = vpop.f32.mrb[0].mxu0
      %v2236 = vadd.f32 0.0, %v2235
      %v2237 = vpop.f32.mrb[0].mxu0
      %v2238 = vpop.f32.mrb[0].mxu0
      %v2239 = vadd.f32 0.0, %v2238
      %v2240 = vpop.f32.mrb[0].mxu0
      %2241 = vmatprep.mubr.bf16.mxu0 0
      %2242 = vmatmul.mubr.bf16.gmra.mrb[0].mxu0 %v2136
      %v2243 = vpop.f32.mrb[0].mxu0
      %v2244 = vadd.f32 0.0, %v2243
      %v2245 = vpop.f32.mrb[0].mxu0
      %v2246 = vpop.f32.mrb[0].mxu0
      %v2247 = vadd.f32 0.0, %v2246
      %v2248 = vpop.f32.mrb[0].mxu0
      %2249 = vmatprep.mubr.bf16.mxu0 0
      %2250 = vmatmul.mubr.bf16.gmra.mrb[0].mxu0 %v2139
      %v2251 = vpop.f32.mrb[0].mxu0
      %v2252 = vadd.f32 0.0, %v2251
      %v2253 = vpop.f32.mrb[0].mxu0
      %v2254 = vpop.f32.mrb[0].mxu0
      %v2255 = vadd.f32 0.0, %v2254
      %v2256 = vpop.f32.mrb[0].mxu0
      %2257 = vmatprep.mubr.bf16.mxu0 0
      %2258 = vmatmul.mubr.bf16.gmra.mrb[0].mxu0 %v2142
      %v2259 = vpop.f32.mrb[0].mxu0
      %v2260 = vadd.f32 0.0, %v2259
      %v2261 = vpop.f32.mrb[0].mxu0
      %v2262 = vpop.f32.mrb[0].mxu0
      %v2263 = vadd.f32 0.0, %v2262
      %v2264 = vpop.f32.mrb[0].mxu0
      %2265 = vmatprep.mubr.bf16.mxu0 0
      %2266 = vmatmul.mubr.bf16.gmra.mrb[0].mxu0 %v2145
      %v2267 = vpop.f32.mrb[0].mxu0
      %v2268 = vadd.f32 0.0, %v2267
      %v2269 = vpop.f32.mrb[0].mxu0
      %v2270 = vpop.f32.mrb[0].mxu0
      %v2271 = vadd.f32 0.0, %v2270
      %v2272 = vpop.f32.mrb[0].mxu0
      %2273 = vmatprep.mubr.bf16.mxu0 0
      %2274 = vmatmul.mubr.bf16.gmra.mrb[0].mxu0 %v2148
      %v2275 = vpop.f32.mrb[0].mxu0
      %v2276 = vadd.f32 0.0, %v2275
      %v2277 = vpop.f32.mrb[0].mxu0
      %v2278 = vpop.f32.mrb[0].mxu0
      %v2279 = vadd.f32 0.0, %v2278
      %v2280 = vpop.f32.mrb[0].mxu0
      %2281 = vmatprep.mubr.bf16.mxu0 0
      %2282 = vmatmul.mubr.bf16.gmra.mrb[0].mxu0 %v2151
      %v2283 = vpop.f32.mrb[0].mxu0
      %v2284 = vadd.f32 0.0, %v2283
      %v2285 = vpop.f32.mrb[0].mxu0
      %v2286 = vpop.f32.mrb[0].mxu0
      %v2287 = vadd.f32 0.0, %v2286
      %v2288 = vpop.f32.mrb[0].mxu0
      %2289 = vmatprep.mubr.bf16.mxu0 0
      %2290 = vmatmul.mubr.bf16.gmra.mrb[0].mxu0 %v2154
      %v2291 = vpop.f32.mrb[0].mxu0
      %v2292 = vadd.f32 0.0, %v2291
      %v2293 = vpop.f32.mrb[0].mxu0
      %v2294 = vpop.f32.mrb[0].mxu0
      %v2295 = vadd.f32 0.0, %v2294
      %v2296 = vpop.f32.mrb[0].mxu0
      %2297 = vmatprep.mubr.bf16.mxu0 0
      %2298 = vmatmul.mubr.bf16.gmra.mrb[0].mxu0 %v2157
      %v2299 = vpop.f32.mrb[0].mxu0
      %v2300 = vadd.f32 0.0, %v2299
      %v2301 = vpop.f32.mrb[0].mxu0
      %v2302 = vpop.f32.mrb[0].mxu0
      %v2303 = vadd.f32 0.0, %v2302
      %v2304 = vpop.f32.mrb[0].mxu0
      %2305 = vmatprep.mubr.bf16.mxu0 0
      %2306 = vmatmul.mubr.bf16.gmra.mrb[0].mxu0 %v2160
      %v2307 = vpop.f32.mrb[0].mxu0
      %v2308 = vadd.f32 0.0, %v2307
      %v2309 = vpop.f32.mrb[0].mxu0
      %v2310 = vpop.f32.mrb[0].mxu0
      %v2311 = vadd.f32 0.0, %v2310
      %v2312 = vpop.f32.mrb[0].mxu0
      %2313 = vmatprep.mubr.bf16.mxu0 0
      %2314 = vmatmul.mubr.bf16.gmra.mrb[0].mxu0 %v2163
      %v2315 = vpop.f32.mrb[0].mxu0
      %v2316 = vadd.f32 0.0, %v2315
      %v2317 = vpop.f32.mrb[0].mxu0
      %v2318 = vpop.f32.mrb[0].mxu0
      %v2319 = vadd.f32 0.0, %v2318
      %v2320 = vpop.f32.mrb[0].mxu0
      %2321 = vmatprep.mubr.bf16.mxu0 0
      %2322 = vmatmul.mubr.bf16.gmra.mrb[0].mxu0 %v2166
      %v2323 = vpop.f32.mrb[0].mxu0
      %v2324 = vadd.f32 0.0, %v2323
      %v2325 = vpop.f32.mrb[0].mxu0
      %v2326 = vpop.f32.mrb[0].mxu0
      %v2327 = vadd.f32 0.0, %v2326
      %v2328 = vpop.f32.mrb[0].mxu0
      %2329 = vmatprep.mubr.bf16.mxu0 0
      %2330 = vmatmul.mubr.bf16.gmra.mrb[0].mxu0 %v2169
      %v2331 = vpop.f32.mrb[0].mxu0
      %v2332 = vadd.f32 0.0, %v2331
      %v2333 = vpop.f32.mrb[0].mxu0
      %v2334 = vpop.f32.mrb[0].mxu0
      %v2335 = vadd.f32 0.0, %v2334
      %v2336 = vpop.f32.mrb[0].mxu0
      %2337 = vmatprep.mubr.bf16.mxu0 0
      %2338 = vmatmul.mubr.bf16.gmra.mrb[0].mxu0 %v2172
      %v2339 = vpop.f32.mrb[0].mxu0
      %v2340 = vadd.f32 0.0, %v2339
      %v2341 = vpop.f32.mrb[0].mxu0
      %v2342 = vpop.f32.mrb[0].mxu0
      %v2343 = vadd.f32 0.0, %v2342
      %v2344 = vpop.f32.mrb[0].mxu0
      %2345 = vmatprep.mubr.bf16.mxu0 0
      %2346 = vmatmul.mubr.bf16.gmra.mrb[0].mxu0 %v2175
      %v2347 = vpop.f32.mrb[0].mxu0
      %v2348 = vadd.f32 0.0, %v2347
      %v2349 = vpop.f32.mrb[0].mxu0
      %v2350 = vpop.f32.mrb[0].mxu0
      %v2351 = vadd.f32 0.0, %v2350
      %v2352 = vpop.f32.mrb[0].mxu0
      %2353 = vdwg.mxu0
      %v2354 = vadd.f32 %v1895, %v2212
      %v2355 = vadd.f32 %v1896, %v2215
      %v2356 = vadd.f32 %v1897, %v2220
      %v2357 = vadd.f32 %v1898, %v2223
      %v2358 = vadd.f32 %v1899, %v2228
      %v2359 = vadd.f32 %v1900, %v2231
      %v2360 = vadd.f32 %v1901, %v2236
      %v2361 = vadd.f32 %v1902, %v2239
      %v2362 = vadd.f32 %v1903, %v2244
      %v2363 = vadd.f32 %v1904, %v2247
      %v2364 = vadd.f32 %v1905, %v2252
      %v2365 = vadd.f32 %v1906, %v2255
      %v2366 = vadd.f32 %v1907, %v2260
      %v2367 = vadd.f32 %v1908, %v2263
      %v2368 = vadd.f32 %v1909, %v2268
      %v2369 = vadd.f32 %v1910, %v2271
      %v2370 = vadd.f32 %v1911, %v2276
      %v2371 = vadd.f32 %v1912, %v2279
      %v2372 = vadd.f32 %v1913, %v2284
      %v2373 = vadd.f32 %v1914, %v2287
      %v2374 = vadd.f32 %v1915, %v2292
      %v2375 = vadd.f32 %v1916, %v2295
      %v2376 = vadd.f32 %v1917, %v2300
      %v2377 = vadd.f32 %v1918, %v2303
      %v2378 = vadd.f32 %v1919, %v2308
      %v2379 = vadd.f32 %v1920, %v2311
      %v2380 = vadd.f32 %v1921, %v2316
      %v2381 = vadd.f32 %v1922, %v2319
      %v2382 = vadd.f32 %v1923, %v2324
      %v2383 = vadd.f32 %v1924, %v2327
      %v2384 = vadd.f32 %v1925, %v2332
      %v2385 = vadd.f32 %v1926, %v2335
      %v2386 = vadd.f32 %v1927, %v2340
      %v2387 = vadd.f32 %v1928, %v2343
      %v2388 = vadd.f32 %v1929, %v2348
      %v2389 = vadd.f32 %v1930, %v2351
      %v2390 = vld [vmem:[%s354 + $0x8] sm:$0xc]
      %s2391 = scalar_lea.vmem %s2, 80
      %v2392 = vld [vmem:[%s2391] sm:$0xf]
      %v2393 = vld [vmem:[%s2391 + $0x4] sm:$0xf]
      %v2394 = vld [vmem:[%s2391 + $0x8] sm:$0xf]
      %v2395 = vld [vmem:[%s2391 + $0xc] sm:$0xf]
      %v2397 = vunpack.c.l.b16 %v2390
      %v2398 = vpack.c.b16 %v1560, %v2397
      %vm2399 = vcmask 1045504
      %v2400 = vrot.slane %v2398, 2
      %v2401 = vrot.slane %v1597, 2
      %v2402 = vsel %vm2399, %v2400, %v2401
      %v2403 = vrot.slane %v1598, 2
      %v2404 = vsel %vm2399, %v2401, %v2403
      %v2405 = vrot.slane %v1599, 2
      %v2406 = vsel %vm2399, %v2403, %v2405
      %v2407 = vrot.slane %v1600, 2
      %v2408 = vsel %vm2399, %v2405, %v2407
      %v2409 = vrot.slane %v1601, 2
      %v2410 = vsel %vm2399, %v2407, %v2409
      %v2411 = vrot.slane %v1602, 2
      %v2412 = vsel %vm2399, %v2409, %v2411
      %v2413 = vrot.slane %v1603, 2
      %v2414 = vsel %vm2399, %v2411, %v2413
      %v2415 = vrot.slane %v1604, 2
      %v2416 = vsel %vm2399, %v2413, %v2415
      %v2417 = vrot.slane %v1605, 2
      %v2418 = vsel %vm2399, %v2415, %v2417
      %v2419 = vrot.slane %v1606, 2
      %v2420 = vsel %vm2399, %v2417, %v2419
      %v2421 = vrot.slane %v1607, 2
      %v2422 = vsel %vm2399, %v2419, %v2421
      %v2423 = vrot.slane %v1608, 2
      %v2424 = vsel %vm2399, %v2421, %v2423
      %v2425 = vrot.slane %v1609, 2
      %v2426 = vsel %vm2399, %v2423, %v2425
      %v2427 = vrot.slane %v1610, 2
      %v2428 = vsel %vm2399, %v2425, %v2427
      %v2429 = vrot.slane %v1611, 2
      %v2430 = vsel %vm2399, %v2427, %v2429
      %v2431 = vrot.slane %v1612, 2
      %v2432 = vsel %vm2399, %v2429, %v2431
      %v2433 = vrot.slane %v1613, 2
      %v2434 = vsel %vm2399, %v2431, %v2433
      %v2435 = vrot.slane %v1939, 2
      %v2436 = vsel %vm2399, %v2433, %v2435
      %v2441 = vunpack.c.l.b16 %v2392
      %v2442 = vunpack.c.l.b16 %v2393
      %v2443 = vunpack.c.l.b16 %v2394
      %v2444 = vunpack.c.l.b16 %v2395
      %v2445 = vpack.c.b16 %v2442, %v2441
      %v2446 = vpack.c.b16 %v2444, %v2443
      %v2450 = vsel %vm697, %v2402, 0
      %v2453 = vsel %vm697, %v2404, 0
      %v2456 = vsel %vm697, %v2406, 0
      %v2459 = vsel %vm697, %v2408, 0
      %v2462 = vsel %vm697, %v2410, 0
      %v2465 = vsel %vm697, %v2412, 0
      %v2468 = vsel %vm697, %v2414, 0
      %v2471 = vsel %vm697, %v2416, 0
      %v2474 = vsel %vm697, %v2418, 0
      %v2477 = vsel %vm697, %v2420, 0
      %v2480 = vsel %vm697, %v2422, 0
      %v2483 = vsel %vm697, %v2424, 0
      %v2486 = vsel %vm697, %v2426, 0
      %v2489 = vsel %vm697, %v2428, 0
      %v2492 = vsel %vm697, %v2430, 0
      %v2495 = vsel %vm697, %v2432, 0
      %v2498 = vsel %vm697, %v2434, 0
      %v2501 = vsel %vm697, %v2436, 0
      %2503 = vmatprep.subr.bf16.mxu0 0
      %2504 = vmatpush1.bf16.msra.mxu0 %v2445
      %2505 = vmatprep.subr.bf16.mxu0 0
      %2506 = vmatpush1.bf16.msra.mxu0 %v2446
      %2507 = vmatprep.subr.bf16.mxu0 0
      %2508 = vmatpush1.bf16.msra.mxu0 0
      %2509 = vmatprep.subr.bf16.mxu0 0
      %2510 = vmatpush1.bf16.msra.mxu0 0
      %2511 = vmatprep.subr.bf16.mxu0 0
      %2512 = vmatpush1.bf16.msra.mxu0 0
      %2513 = vmatprep.subr.bf16.mxu0 0
      %2514 = vmatpush1.bf16.msra.mxu0 0
      %2515 = vmatprep.subr.bf16.mxu0 0
      %2516 = vmatpush1.bf16.msra.mxu0 0
      %2517 = vmatprep.subr.bf16.mxu0 0
      %2518 = vmatpush1.bf16.msra.mxu0 0
      %2519 = vmatprep.subr.bf16.mxu0 0
      %2520 = vmatpush1.bf16.msra.mxu0 0
      %2521 = vmatprep.subr.bf16.mxu0 0
      %2522 = vmatpush1.bf16.msra.mxu0 0
      %2523 = vmatprep.subr.bf16.mxu0 0
      %2524 = vmatpush1.bf16.msra.mxu0 0
      %2525 = vmatprep.subr.bf16.mxu0 0
      %2526 = vmatpush1.bf16.msra.mxu0 0
      %2527 = vmatprep.subr.bf16.mxu0 0
      %2528 = vmatpush1.bf16.msra.mxu0 0
      %2529 = vmatprep.subr.bf16.mxu0 0
      %2530 = vmatpush1.bf16.msra.mxu0 0
      %2531 = vmatprep.subr.bf16.mxu0 0
      %2532 = vmatpush1.bf16.msra.mxu0 0
      %2533 = vmatprep.subr.bf16.mxu0 0
      %2534 = vmatpush1.bf16.msra.mxu0 0
      %2535 = vmatprep.mubr.bf16.mxu0 0
      %2536 = vmatmul.mubr.bf16.gmra.mrb[0].mxu0 %v2450
      %v2537 = vpop.f32.mrb[0].mxu0
      %v2538 = vadd.f32 0.0, %v2537
      %v2539 = vpop.f32.mrb[0].mxu0
      %v2540 = vpop.f32.mrb[0].mxu0
      %v2541 = vadd.f32 0.0, %v2540
      %v2542 = vpop.f32.mrb[0].mxu0
      %2543 = vmatprep.mubr.bf16.mxu0 0
      %2544 = vmatmul.mubr.bf16.gmra.mrb[0].mxu0 %v2453
      %v2545 = vpop.f32.mrb[0].mxu0
      %v2546 = vadd.f32 0.0, %v2545
      %v2547 = vpop.f32.mrb[0].mxu0
      %v2548 = vpop.f32.mrb[0].mxu0
      %v2549 = vadd.f32 0.0, %v2548
      %v2550 = vpop.f32.mrb[0].mxu0
      %2551 = vmatprep.mubr.bf16.mxu0 0
      %2552 = vmatmul.mubr.bf16.gmra.mrb[0].mxu0 %v2456
      %v2553 = vpop.f32.mrb[0].mxu0
      %v2554 = vadd.f32 0.0, %v2553
      %v2555 = vpop.f32.mrb[0].mxu0
      %v2556 = vpop.f32.mrb[0].mxu0
      %v2557 = vadd.f32 0.0, %v2556
      %v2558 = vpop.f32.mrb[0].mxu0
      %2559 = vmatprep.mubr.bf16.mxu0 0
      %2560 = vmatmul.mubr.bf16.gmra.mrb[0].mxu0 %v2459
      %v2561 = vpop.f32.mrb[0].mxu0
      %v2562 = vadd.f32 0.0, %v2561
      %v2563 = vpop.f32.mrb[0].mxu0
      %v2564 = vpop.f32.mrb[0].mxu0
      %v2565 = vadd.f32 0.0, %v2564
      %v2566 = vpop.f32.mrb[0].mxu0
      %2567 = vmatprep.mubr.bf16.mxu0 0
      %2568 = vmatmul.mubr.bf16.gmra.mrb[0].mxu0 %v2462
      %v2569 = vpop.f32.mrb[0].mxu0
      %v2570 = vadd.f32 0.0, %v2569
      %v2571 = vpop.f32.mrb[0].mxu0
      %v2572 = vpop.f32.mrb[0].mxu0
      %v2573 = vadd.f32 0.0, %v2572
      %v2574 = vpop.f32.mrb[0].mxu0
      %2575 = vmatprep.mubr.bf16.mxu0 0
      %2576 = vmatmul.mubr.bf16.gmra.mrb[0].mxu0 %v2465
      %v2577 = vpop.f32.mrb[0].mxu0
      %v2578 = vadd.f32 0.0, %v2577
      %v2579 = vpop.f32.mrb[0].mxu0
      %v2580 = vpop.f32.mrb[0].mxu0
      %v2581 = vadd.f32 0.0, %v2580
      %v2582 = vpop.f32.mrb[0].mxu0
      %2583 = vmatprep.mubr.bf16.mxu0 0
      %2584 = vmatmul.mubr.bf16.gmra.mrb[0].mxu0 %v2468
      %v2585 = vpop.f32.mrb[0].mxu0
      %v2586 = vadd.f32 0.0, %v2585
      %v2587 = vpop.f32.mrb[0].mxu0
      %v2588 = vpop.f32.mrb[0].mxu0
      %v2589 = vadd.f32 0.0, %v2588
      %v2590 = vpop.f32.mrb[0].mxu0
      %2591 = vmatprep.mubr.bf16.mxu0 0
      %2592 = vmatmul.mubr.bf16.gmra.mrb[0].mxu0 %v2471
      %v2593 = vpop.f32.mrb[0].mxu0
      %v2594 = vadd.f32 0.0, %v2593
      %v2595 = vpop.f32.mrb[0].mxu0
      %v2596 = vpop.f32.mrb[0].mxu0
      %v2597 = vadd.f32 0.0, %v2596
      %v2598 = vpop.f32.mrb[0].mxu0
      %2599 = vmatprep.mubr.bf16.mxu0 0
      %2600 = vmatmul.mubr.bf16.gmra.mrb[0].mxu0 %v2474
      %v2601 = vpop.f32.mrb[0].mxu0
      %v2602 = vadd.f32 0.0, %v2601
      %v2603 = vpop.f32.mrb[0].mxu0
      %v2604 = vpop.f32.mrb[0].mxu0
      %v2605 = vadd.f32 0.0, %v2604
      %v2606 = vpop.f32.mrb[0].mxu0
      %2607 = vmatprep.mubr.bf16.mxu0 0
      %2608 = vmatmul.mubr.bf16.gmra.mrb[0].mxu0 %v2477
      %v2609 = vpop.f32.mrb[0].mxu0
      %v2610 = vadd.f32 0.0, %v2609
      %v2611 = vpop.f32.mrb[0].mxu0
      %v2612 = vpop.f32.mrb[0].mxu0
      %v2613 = vadd.f32 0.0, %v2612
      %v2614 = vpop.f32.mrb[0].mxu0
      %2615 = vmatprep.mubr.bf16.mxu0 0
      %2616 = vmatmul.mubr.bf16.gmra.mrb[0].mxu0 %v2480
      %v2617 = vpop.f32.mrb[0].mxu0
      %v2618 = vadd.f32 0.0, %v2617
      %v2619 = vpop.f32.mrb[0].mxu0
      %v2620 = vpop.f32.mrb[0].mxu0
      %v2621 = vadd.f32 0.0, %v2620
      %v2622 = vpop.f32.mrb[0].mxu0
      %2623 = vmatprep.mubr.bf16.mxu0 0
      %2624 = vmatmul.mubr.bf16.gmra.mrb[0].mxu0 %v2483
      %v2625 = vpop.f32.mrb[0].mxu0
      %v2626 = vadd.f32 0.0, %v2625
      %v2627 = vpop.f32.mrb[0].mxu0
      %v2628 = vpop.f32.mrb[0].mxu0
      %v2629 = vadd.f32 0.0, %v2628
      %v2630 = vpop.f32.mrb[0].mxu0
      %2631 = vmatprep.mubr.bf16.mxu0 0
      %2632 = vmatmul.mubr.bf16.gmra.mrb[0].mxu0 %v2486
      %v2633 = vpop.f32.mrb[0].mxu0
      %v2634 = vadd.f32 0.0, %v2633
      %v2635 = vpop.f32.mrb[0].mxu0
      %v2636 = vpop.f32.mrb[0].mxu0
      %v2637 = vadd.f32 0.0, %v2636
      %v2638 = vpop.f32.mrb[0].mxu0
      %2639 = vmatprep.mubr.bf16.mxu0 0
      %2640 = vmatmul.mubr.bf16.gmra.mrb[0].mxu0 %v2489
      %v2641 = vpop.f32.mrb[0].mxu0
      %v2642 = vadd.f32 0.0, %v2641
      %v2643 = vpop.f32.mrb[0].mxu0
      %v2644 = vpop.f32.mrb[0].mxu0
      %v2645 = vadd.f32 0.0, %v2644
      %v2646 = vpop.f32.mrb[0].mxu0
      %2647 = vmatprep.mubr.bf16.mxu0 0
      %2648 = vmatmul.mubr.bf16.gmra.mrb[0].mxu0 %v2492
      %v2649 = vpop.f32.mrb[0].mxu0
      %v2650 = vadd.f32 0.0, %v2649
      %v2651 = vpop.f32.mrb[0].mxu0
      %v2652 = vpop.f32.mrb[0].mxu0
      %v2653 = vadd.f32 0.0, %v2652
      %v2654 = vpop.f32.mrb[0].mxu0
      %2655 = vmatprep.mubr.bf16.mxu0 0
      %2656 = vmatmul.mubr.bf16.gmra.mrb[0].mxu0 %v2495
      %v2657 = vpop.f32.mrb[0].mxu0
      %v2658 = vadd.f32 0.0, %v2657
      %v2659 = vpop.f32.mrb[0].mxu0
      %v2660 = vpop.f32.mrb[0].mxu0
      %v2661 = vadd.f32 0.0, %v2660
      %v2662 = vpop.f32.mrb[0].mxu0
      %2663 = vmatprep.mubr.bf16.mxu0 0
      %2664 = vmatmul.mubr.bf16.gmra.mrb[0].mxu0 %v2498
      %v2665 = vpop.f32.mrb[0].mxu0
      %v2666 = vadd.f32 0.0, %v2665
      %v2667 = vpop.f32.mrb[0].mxu0
      %v2668 = vpop.f32.mrb[0].mxu0
      %v2669 = vadd.f32 0.0, %v2668
      %v2670 = vpop.f32.mrb[0].mxu0
      %2671 = vmatprep.mubr.bf16.mxu0 0
      %2672 = vmatmul.mubr.bf16.gmra.mrb[0].mxu0 %v2501
      %v2673 = vpop.f32.mrb[0].mxu0
      %v2674 = vadd.f32 0.0, %v2673
      %v2675 = vpop.f32.mrb[0].mxu0
      %v2676 = vpop.f32.mrb[0].mxu0
      %v2677 = vadd.f32 0.0, %v2676
      %v2678 = vpop.f32.mrb[0].mxu0
      %2679 = vdwg.mxu0
      %v2680 = vadd.f32 %v2354, %v2538
      %v2681 = vadd.f32 %v2355, %v2541
      %v2682 = vadd.f32 %v2356, %v2546
      %v2683 = vadd.f32 %v2357, %v2549
      %v2684 = vadd.f32 %v2358, %v2554
      %v2685 = vadd.f32 %v2359, %v2557
      %v2686 = vadd.f32 %v2360, %v2562
      %v2687 = vadd.f32 %v2361, %v2565
      %v2688 = vadd.f32 %v2362, %v2570
      %v2689 = vadd.f32 %v2363, %v2573
      %v2690 = vadd.f32 %v2364, %v2578
      %v2691 = vadd.f32 %v2365, %v2581
      %v2692 = vadd.f32 %v2366, %v2586
      %v2693 = vadd.f32 %v2367, %v2589
      %v2694 = vadd.f32 %v2368, %v2594
      %v2695 = vadd.f32 %v2369, %v2597
      %v2696 = vadd.f32 %v2370, %v2602
      %v2697 = vadd.f32 %v2371, %v2605
      %v2698 = vadd.f32 %v2372, %v2610
      %v2699 = vadd.f32 %v2373, %v2613
      %v2700 = vadd.f32 %v2374, %v2618
      %v2701 = vadd.f32 %v2375, %v2621
      %v2702 = vadd.f32 %v2376, %v2626
      %v2703 = vadd.f32 %v2377, %v2629
      %v2704 = vadd.f32 %v2378, %v2634
      %v2705 = vadd.f32 %v2379, %v2637
      %v2706 = vadd.f32 %v2380, %v2642
      %v2707 = vadd.f32 %v2381, %v2645
      %v2708 = vadd.f32 %v2382, %v2650
      %v2709 = vadd.f32 %v2383, %v2653
      %v2710 = vadd.f32 %v2384, %v2658
      %v2711 = vadd.f32 %v2385, %v2661
      %v2712 = vadd.f32 %v2386, %v2666
      %v2713 = vadd.f32 %v2387, %v2669
      %v2714 = vadd.f32 %v2388, %v2674
      %v2715 = vadd.f32 %v2389, %v2677
      %v2716 = vld [vmem:[%s354 + $0x10] sm:$0xc]
      %v2717 = vld [vmem:[%s354 + $0x14] sm:$0xf]
      %v2718 = vld [vmem:[%s354 + $0x18] sm:$0xf]
      %v2719 = vld [vmem:[%s354 + $0x1c] sm:$0xf]
      %v2720 = vld [vmem:[%s354 + $0x20] sm:$0xf]
      %v2721 = vld [vmem:[%s354 + $0x24] sm:$0xf]
      %v2722 = vld [vmem:[%s354 + $0x28] sm:$0xf]
      %v2723 = vld [vmem:[%s354 + $0x2c] sm:$0xf]
      %v2724 = vld [vmem:[%s354 + $0x30] sm:$0xf]
      %v2725 = vld [vmem:[%s354 + $0x34] sm:$0xf]
      %v2726 = vld [vmem:[%s354 + $0x38] sm:$0xf]
      %v2727 = vld [vmem:[%s354 + $0x3c] sm:$0xf]
      %v2728 = vld [vmem:[%s354 + $0x40] sm:$0xf]
      %v2729 = vld [vmem:[%s354 + $0x44] sm:$0xf]
      %v2730 = vld [vmem:[%s354 + $0x48] sm:$0xf]
      %v2731 = vld [vmem:[%s354 + $0x4c] sm:$0xf]
      %v2732 = vld [vmem:[%s354 + $0x50] sm:$0xf]
      %v2733 = vld [vmem:[%s354 + $0x54] sm:$0xf]
      %v2734 = vld [vmem:[%s354 + $0x58] sm:$0xf]
      %v2735 = vld [vmem:[%s354 + $0x5c] sm:$0xf]
      %v2736 = vld [vmem:[%s354 + $0x60] sm:$0xf]
      %v2737 = vld [vmem:[%s354 + $0x64] sm:$0xf]
      %v2738 = vld [vmem:[%s354 + $0x68] sm:$0xf]
      %v2739 = vld [vmem:[%s354 + $0x6c] sm:$0xf]
      %v2740 = vld [vmem:[%s354 + $0x70] sm:$0xf]
      %v2741 = vld [vmem:[%s354 + $0x74] sm:$0xf]
      %v2742 = vld [vmem:[%s354 + $0x78] sm:$0xf]
      %v2743 = vld [vmem:[%s354 + $0x7c] sm:$0xf]
      %v2744 = vld [vmem:[%s354 + $0x80] sm:$0xf]
      %v2745 = vld [vmem:[%s354 + $0x84] sm:$0xf]
      %v2746 = vld [vmem:[%s354 + $0x88] sm:$0xf]
      %v2747 = vld [vmem:[%s354 + $0x8c] sm:$0xf]
      %v2748 = vld [vmem:[%s354 + $0x90] sm:$0xf]
      %v2749 = vld [vmem:[%s354 + $0x94] sm:$0xf]
      %v2750 = vld [vmem:[%s354 + $0x98] sm:$0xf]
      %v2751 = vld [vmem:[%s354 + $0x9c] sm:$0xf]
      %v2752 = vld [vmem:[%s354 + $0xa0] sm:$0x3]
      %s2753 = scalar_lea.vmem %s2, 96
      %v2754 = vld [vmem:[%s2753] sm:$0xf]
      %v2755 = vld [vmem:[%s2753 + $0x4] sm:$0xf]
      %v2756 = vld [vmem:[%s2753 + $0x8] sm:$0xf]
      %v2757 = vld [vmem:[%s2753 + $0xc] sm:$0xf]
      %v2795 = vunpack.c.l.b16 %v2716
      %v2796 = vunpack.c.l.b16 %v2717
      %v2797 = vunpack.c.l.b16 %v2718
      %v2798 = vunpack.c.l.b16 %v2719
      %v2799 = vunpack.c.l.b16 %v2720
      %v2800 = vunpack.c.l.b16 %v2721
      %v2801 = vunpack.c.l.b16 %v2722
      %v2802 = vunpack.c.l.b16 %v2723
      %v2803 = vunpack.c.l.b16 %v2724
      %v2804 = vunpack.c.l.b16 %v2725
      %v2805 = vunpack.c.l.b16 %v2726
      %v2806 = vunpack.c.l.b16 %v2727
      %v2807 = vunpack.c.l.b16 %v2728
      %v2808 = vunpack.c.l.b16 %v2729
      %v2809 = vunpack.c.l.b16 %v2730
      %v2810 = vunpack.c.l.b16 %v2731
      %v2811 = vunpack.c.l.b16 %v2732
      %v2812 = vunpack.c.l.b16 %v2733
      %v2813 = vunpack.c.l.b16 %v2734
      %v2814 = vunpack.c.l.b16 %v2735
      %v2815 = vunpack.c.l.b16 %v2736
      %v2816 = vunpack.c.l.b16 %v2737
      %v2817 = vunpack.c.l.b16 %v2738
      %v2818 = vunpack.c.l.b16 %v2739
      %v2819 = vunpack.c.l.b16 %v2740
      %v2820 = vunpack.c.l.b16 %v2741
      %v2821 = vunpack.c.l.b16 %v2742
      %v2822 = vunpack.c.l.b16 %v2743
      %v2823 = vunpack.c.l.b16 %v2744
      %v2824 = vunpack.c.l.b16 %v2745
      %v2825 = vunpack.c.l.b16 %v2746
      %v2826 = vunpack.c.l.b16 %v2747
      %v2827 = vunpack.c.l.b16 %v2748
      %v2828 = vunpack.c.l.b16 %v2749
      %v2829 = vunpack.c.l.b16 %v2750
      %v2830 = vunpack.c.l.b16 %v2751
      %v2831 = vunpack.c.l.b16 %v2752
      %v2832 = vpack.c.b16 %v2796, %v2795
      %v2833 = vpack.c.b16 %v2798, %v2797
      %v2834 = vpack.c.b16 %v2800, %v2799
      %v2835 = vpack.c.b16 %v2802, %v2801
      %v2836 = vpack.c.b16 %v2804, %v2803
      %v2837 = vpack.c.b16 %v2806, %v2805
      %v2838 = vpack.c.b16 %v2808, %v2807
      %v2839 = vpack.c.b16 %v2810, %v2809
      %v2840 = vpack.c.b16 %v2812, %v2811
      %v2841 = vpack.c.b16 %v2814, %v2813
      %v2842 = vpack.c.b16 %v2816, %v2815
      %v2843 = vpack.c.b16 %v2818, %v2817
      %v2844 = vpack.c.b16 %v2820, %v2819
      %v2845 = vpack.c.b16 %v2822, %v2821
      %v2846 = vpack.c.b16 %v2824, %v2823
      %v2847 = vpack.c.b16 %v2826, %v2825
      %v2848 = vpack.c.b16 %v2828, %v2827
      %v2849 = vpack.c.b16 %v2830, %v2829
      %v2850 = vpack.c.b16 %v2831, %v2831
      %v2851 = vrot.slane %v2832, 2
      %v2852 = vrot.slane %v2833, 2
      %v2853 = vsel %vm2399, %v2851, %v2852
      %v2854 = vrot.slane %v2834, 2
      %v2855 = vsel %vm2399, %v2852, %v2854
      %v2856 = vrot.slane %v2835, 2
      %v2857 = vsel %vm2399, %v2854, %v2856
      %v2858 = vrot.slane %v2836, 2
      %v2859 = vsel %vm2399, %v2856, %v2858
      %v2860 = vrot.slane %v2837, 2
      %v2861 = vsel %vm2399, %v2858, %v2860
      %v2862 = vrot.slane %v2838, 2
      %v2863 = vsel %vm2399, %v2860, %v2862
      %v2864 = vrot.slane %v2839, 2
      %v2865 = vsel %vm2399, %v2862, %v2864
      %v2866 = vrot.slane %v2840, 2
      %v2867 = vsel %vm2399, %v2864, %v2866
      %v2868 = vrot.slane %v2841, 2
      %v2869 = vsel %vm2399, %v2866, %v2868
      %v2870 = vrot.slane %v2842, 2
      %v2871 = vsel %vm2399, %v2868, %v2870
      %v2872 = vrot.slane %v2843, 2
      %v2873 = vsel %vm2399, %v2870, %v2872
      %v2874 = vrot.slane %v2844, 2
      %v2875 = vsel %vm2399, %v2872, %v2874
      %v2876 = vrot.slane %v2845, 2
      %v2877 = vsel %vm2399, %v2874, %v2876
      %v2878 = vrot.slane %v2846, 2
      %v2879 = vsel %vm2399, %v2876, %v2878
      %v2880 = vrot.slane %v2847, 2
      %v2881 = vsel %vm2399, %v2878, %v2880
      %v2882 = vrot.slane %v2848, 2
      %v2883 = vsel %vm2399, %v2880, %v2882
      %v2884 = vrot.slane %v2849, 2
      %v2885 = vsel %vm2399, %v2882, %v2884
      %v2886 = vrot.slane %v2850, 2
      %v2887 = vsel %vm2399, %v2884, %v2886
      %v2892 = vunpack.c.l.b16 %v2754
      %v2893 = vunpack.c.l.b16 %v2755
      %v2894 = vunpack.c.l.b16 %v2756
      %v2895 = vunpack.c.l.b16 %v2757
      %v2896 = vpack.c.b16 %v2893, %v2892
      %v2897 = vpack.c.b16 %v2895, %v2894
      %v2901 = vsel %vm697, %v2853, 0
      %v2904 = vsel %vm697, %v2855, 0
      %v2907 = vsel %vm697, %v2857, 0
      %v2910 = vsel %vm697, %v2859, 0
      %v2913 = vsel %vm697, %v2861, 0
      %v2916 = vsel %vm697, %v2863, 0
      %v2919 = vsel %vm697, %v2865, 0
      %v2922 = vsel %vm697, %v2867, 0
      %v2925 = vsel %vm697, %v2869, 0
      %v2928 = vsel %vm697, %v2871, 0
      %v2931 = vsel %vm697, %v2873, 0
      %v2934 = vsel %vm697, %v2875, 0
      %v2937 = vsel %vm697, %v2877, 0
      %v2940 = vsel %vm697, %v2879, 0
      %v2943 = vsel %vm697, %v2881, 0
      %v2946 = vsel %vm697, %v2883, 0
      %v2949 = vsel %vm697, %v2885, 0
      %v2952 = vsel %vm697, %v2887, 0
      %2954 = vmatprep.subr.bf16.mxu0 0
      %2955 = vmatpush1.bf16.msra.mxu0 %v2896
      %2956 = vmatprep.subr.bf16.mxu0 0
      %2957 = vmatpush1.bf16.msra.mxu0 %v2897
      %2958 = vmatprep.subr.bf16.mxu0 0
      %2959 = vmatpush1.bf16.msra.mxu0 0
      %2960 = vmatprep.subr.bf16.mxu0 0
      %2961 = vmatpush1.bf16.msra.mxu0 0
      %2962 = vmatprep.subr.bf16.mxu0 0
      %2963 = vmatpush1.bf16.msra.mxu0 0
      %2964 = vmatprep.subr.bf16.mxu0 0
      %2965 = vmatpush1.bf16.msra.mxu0 0
      %2966 = vmatprep.subr.bf16.mxu0 0
      %2967 = vmatpush1.bf16.msra.mxu0 0
      %2968 = vmatprep.subr.bf16.mxu0 0
      %2969 = vmatpush1.bf16.msra.mxu0 0
      %2970 = vmatprep.subr.bf16.mxu0 0
      %2971 = vmatpush1.bf16.msra.mxu0 0
      %2972 = vmatprep.subr.bf16.mxu0 0
      %2973 = vmatpush1.bf16.msra.mxu0 0
      %2974 = vmatprep.subr.bf16.mxu0 0
      %2975 = vmatpush1.bf16.msra.mxu0 0
      %2976 = vmatprep.subr.bf16.mxu0 0
      %2977 = vmatpush1.bf16.msra.mxu0 0
      %2978 = vmatprep.subr.bf16.mxu0 0
      %2979 = vmatpush1.bf16.msra.mxu0 0
      %2980 = vmatprep.subr.bf16.mxu0 0
      %2981 = vmatpush1.bf16.msra.mxu0 0
      %2982 = vmatprep.subr.bf16.mxu0 0
      %2983 = vmatpush1.bf16.msra.mxu0 0
      %2984 = vmatprep.subr.bf16.mxu0 0
      %2985 = vmatpush1.bf16.msra.mxu0 0
      %2986 = vmatprep.mubr.bf16.mxu0 0
      %2987 = vmatmul.mubr.bf16.gmra.mrb[0].mxu0 %v2901
      %v2988 = vpop.f32.mrb[0].mxu0
      %v2989 = vadd.f32 0.0, %v2988
      %v2990 = vpop.f32.mrb[0].mxu0
      %v2991 = vpop.f32.mrb[0].mxu0
      %v2992 = vadd.f32 0.0, %v2991
      %v2993 = vpop.f32.mrb[0].mxu0
      %2994 = vmatprep.mubr.bf16.mxu0 0
      %2995 = vmatmul.mubr.bf16.gmra.mrb[0].mxu0 %v2904
      %v2996 = vpop.f32.mrb[0].mxu0
      %v2997 = vadd.f32 0.0, %v2996
      %v2998 = vpop.f32.mrb[0].mxu0
      %v2999 = vpop.f32.mrb[0].mxu0
      %v3000 = vadd.f32 0.0, %v2999
      %v3001 = vpop.f32.mrb[0].mxu0
      %3002 = vmatprep.mubr.bf16.mxu0 0
      %3003 = vmatmul.mubr.bf16.gmra.mrb[0].mxu0 %v2907
      %v3004 = vpop.f32.mrb[0].mxu0
      %v3005 = vadd.f32 0.0, %v3004
      %v3006 = vpop.f32.mrb[0].mxu0
      %v3007 = vpop.f32.mrb[0].mxu0
      %v3008 = vadd.f32 0.0, %v3007
      %v3009 = vpop.f32.mrb[0].mxu0
      %3010 = vmatprep.mubr.bf16.mxu0 0
      %3011 = vmatmul.mubr.bf16.gmra.mrb[0].mxu0 %v2910
      %v3012 = vpop.f32.mrb[0].mxu0
      %v3013 = vadd.f32 0.0, %v3012
      %v3014 = vpop.f32.mrb[0].mxu0
      %v3015 = vpop.f32.mrb[0].mxu0
      %v3016 = vadd.f32 0.0, %v3015
      %v3017 = vpop.f32.mrb[0].mxu0
      %3018 = vmatprep.mubr.bf16.mxu0 0
      %3019 = vmatmul.mubr.bf16.gmra.mrb[0].mxu0 %v2913
      %v3020 = vpop.f32.mrb[0].mxu0
      %v3021 = vadd.f32 0.0, %v3020
      %v3022 = vpop.f32.mrb[0].mxu0
      %v3023 = vpop.f32.mrb[0].mxu0
      %v3024 = vadd.f32 0.0, %v3023
      %v3025 = vpop.f32.mrb[0].mxu0
      %3026 = vmatprep.mubr.bf16.mxu0 0
      %3027 = vmatmul.mubr.bf16.gmra.mrb[0].mxu0 %v2916
      %v3028 = vpop.f32.mrb[0].mxu0
      %v3029 = vadd.f32 0.0, %v3028
      %v3030 = vpop.f32.mrb[0].mxu0
      %v3031 = vpop.f32.mrb[0].mxu0
      %v3032 = vadd.f32 0.0, %v3031
      %v3033 = vpop.f32.mrb[0].mxu0
      %3034 = vmatprep.mubr.bf16.mxu0 0
      %3035 = vmatmul.mubr.bf16.gmra.mrb[0].mxu0 %v2919
      %v3036 = vpop.f32.mrb[0].mxu0
      %v3037 = vadd.f32 0.0, %v3036
      %v3038 = vpop.f32.mrb[0].mxu0
      %v3039 = vpop.f32.mrb[0].mxu0
      %v3040 = vadd.f32 0.0, %v3039
      %v3041 = vpop.f32.mrb[0].mxu0
      %3042 = vmatprep.mubr.bf16.mxu0 0
      %3043 = vmatmul.mubr.bf16.gmra.mrb[0].mxu0 %v2922
      %v3044 = vpop.f32.mrb[0].mxu0
      %v3045 = vadd.f32 0.0, %v3044
      %v3046 = vpop.f32.mrb[0].mxu0
      %v3047 = vpop.f32.mrb[0].mxu0
      %v3048 = vadd.f32 0.0, %v3047
      %v3049 = vpop.f32.mrb[0].mxu0
      %3050 = vmatprep.mubr.bf16.mxu0 0
      %3051 = vmatmul.mubr.bf16.gmra.mrb[0].mxu0 %v2925
      %v3052 = vpop.f32.mrb[0].mxu0
      %v3053 = vadd.f32 0.0, %v3052
      %v3054 = vpop.f32.mrb[0].mxu0
      %v3055 = vpop.f32.mrb[0].mxu0
      %v3056 = vadd.f32 0.0, %v3055
      %v3057 = vpop.f32.mrb[0].mxu0
      %3058 = vmatprep.mubr.bf16.mxu0 0
      %3059 = vmatmul.mubr.bf16.gmra.mrb[0].mxu0 %v2928
      %v3060 = vpop.f32.mrb[0].mxu0
      %v3061 = vadd.f32 0.0, %v3060
      %v3062 = vpop.f32.mrb[0].mxu0
      %v3063 = vpop.f32.mrb[0].mxu0
      %v3064 = vadd.f32 0.0, %v3063
      %v3065 = vpop.f32.mrb[0].mxu0
      %3066 = vmatprep.mubr.bf16.mxu0 0
      %3067 = vmatmul.mubr.bf16.gmra.mrb[0].mxu0 %v2931
      %v3068 = vpop.f32.mrb[0].mxu0
      %v3069 = vadd.f32 0.0, %v3068
      %v3070 = vpop.f32.mrb[0].mxu0
      %v3071 = vpop.f32.mrb[0].mxu0
      %v3072 = vadd.f32 0.0, %v3071
      %v3073 = vpop.f32.mrb[0].mxu0
      %3074 = vmatprep.mubr.bf16.mxu0 0
      %3075 = vmatmul.mubr.bf16.gmra.mrb[0].mxu0 %v2934
      %v3076 = vpop.f32.mrb[0].mxu0
      %v3077 = vadd.f32 0.0, %v3076
      %v3078 = vpop.f32.mrb[0].mxu0
      %v3079 = vpop.f32.mrb[0].mxu0
      %v3080 = vadd.f32 0.0, %v3079
      %v3081 = vpop.f32.mrb[0].mxu0
      %3082 = vmatprep.mubr.bf16.mxu0 0
      %3083 = vmatmul.mubr.bf16.gmra.mrb[0].mxu0 %v2937
      %v3084 = vpop.f32.mrb[0].mxu0
      %v3085 = vadd.f32 0.0, %v3084
      %v3086 = vpop.f32.mrb[0].mxu0
      %v3087 = vpop.f32.mrb[0].mxu0
      %v3088 = vadd.f32 0.0, %v3087
      %v3089 = vpop.f32.mrb[0].mxu0
      %3090 = vmatprep.mubr.bf16.mxu0 0
      %3091 = vmatmul.mubr.bf16.gmra.mrb[0].mxu0 %v2940
      %v3092 = vpop.f32.mrb[0].mxu0
      %v3093 = vadd.f32 0.0, %v3092
      %v3094 = vpop.f32.mrb[0].mxu0
      %v3095 = vpop.f32.mrb[0].mxu0
      %v3096 = vadd.f32 0.0, %v3095
      %v3097 = vpop.f32.mrb[0].mxu0
      %3098 = vmatprep.mubr.bf16.mxu0 0
      %3099 = vmatmul.mubr.bf16.gmra.mrb[0].mxu0 %v2943
      %v3100 = vpop.f32.mrb[0].mxu0
      %v3101 = vadd.f32 0.0, %v3100
      %v3102 = vpop.f32.mrb[0].mxu0
      %v3103 = vpop.f32.mrb[0].mxu0
      %v3104 = vadd.f32 0.0, %v3103
      %v3105 = vpop.f32.mrb[0].mxu0
      %3106 = vmatprep.mubr.bf16.mxu0 0
      %3107 = vmatmul.mubr.bf16.gmra.mrb[0].mxu0 %v2946
      %v3108 = vpop.f32.mrb[0].mxu0
      %v3109 = vadd.f32 0.0, %v3108
      %v3110 = vpop.f32.mrb[0].mxu0
      %v3111 = vpop.f32.mrb[0].mxu0
      %v3112 = vadd.f32 0.0, %v3111
      %v3113 = vpop.f32.mrb[0].mxu0
      %3114 = vmatprep.mubr.bf16.mxu0 0
      %3115 = vmatmul.mubr.bf16.gmra.mrb[0].mxu0 %v2949
      %v3116 = vpop.f32.mrb[0].mxu0
      %v3117 = vadd.f32 0.0, %v3116
      %v3118 = vpop.f32.mrb[0].mxu0
      %v3119 = vpop.f32.mrb[0].mxu0
      %v3120 = vadd.f32 0.0, %v3119
      %v3121 = vpop.f32.mrb[0].mxu0
      %3122 = vmatprep.mubr.bf16.mxu0 0
      %3123 = vmatmul.mubr.bf16.gmra.mrb[0].mxu0 %v2952
      %v3124 = vpop.f32.mrb[0].mxu0
      %v3125 = vadd.f32 0.0, %v3124
      %v3126 = vpop.f32.mrb[0].mxu0
      %v3127 = vpop.f32.mrb[0].mxu0
      %v3128 = vadd.f32 0.0, %v3127
      %v3129 = vpop.f32.mrb[0].mxu0
      %3130 = vdwg.mxu0
      %v3131 = vadd.f32 %v2680, %v2989
      %v3132 = vadd.f32 %v2681, %v2992
      %v3133 = vadd.f32 %v2682, %v2997
      %v3134 = vadd.f32 %v2683, %v3000
      %v3135 = vadd.f32 %v2684, %v3005
      %v3136 = vadd.f32 %v2685, %v3008
      %v3137 = vadd.f32 %v2686, %v3013
      %v3138 = vadd.f32 %v2687, %v3016
      %v3139 = vadd.f32 %v2688, %v3021
      %v3140 = vadd.f32 %v2689, %v3024
      %v3141 = vadd.f32 %v2690, %v3029
      %v3142 = vadd.f32 %v2691, %v3032
      %v3143 = vadd.f32 %v2692, %v3037
      %v3144 = vadd.f32 %v2693, %v3040
      %v3145 = vadd.f32 %v2694, %v3045
      %v3146 = vadd.f32 %v2695, %v3048
      %v3147 = vadd.f32 %v2696, %v3053
      %v3148 = vadd.f32 %v2697, %v3056
      %v3149 = vadd.f32 %v2698, %v3061
      %v3150 = vadd.f32 %v2699, %v3064
      %v3151 = vadd.f32 %v2700, %v3069
      %v3152 = vadd.f32 %v2701, %v3072
      %v3153 = vadd.f32 %v2702, %v3077
      %v3154 = vadd.f32 %v2703, %v3080
      %v3155 = vadd.f32 %v2704, %v3085
      %v3156 = vadd.f32 %v2705, %v3088
      %v3157 = vadd.f32 %v2706, %v3093
      %v3158 = vadd.f32 %v2707, %v3096
      %v3159 = vadd.f32 %v2708, %v3101
      %v3160 = vadd.f32 %v2709, %v3104
      %v3161 = vadd.f32 %v2710, %v3109
      %v3162 = vadd.f32 %v2711, %v3112
      %v3163 = vadd.f32 %v2712, %v3117
      %v3164 = vadd.f32 %v2713, %v3120
      %v3165 = vadd.f32 %v2714, %v3125
      %v3166 = vadd.f32 %v2715, %v3128
      %v3167 = vld [vmem:[%s354 + $0xa0] sm:$0x7]
      %s3168 = scalar_lea.vmem %s2, 112
      %v3169 = vld [vmem:[%s3168] sm:$0xf]
      %v3170 = vld [vmem:[%s3168 + $0x4] sm:$0xf]
      %v3171 = vld [vmem:[%s3168 + $0x8] sm:$0xf]
      %v3172 = vld [vmem:[%s3168 + $0xc] sm:$0xf]
      %v3174 = vunpack.c.l.b16 %v3167
      %v3175 = vpack.c.b16 %v3174, %v3174
      %vm3176 = vsmask.f32 5376
      %v3178 = vshrl.u32 %v2832, 16
      %v3180 = vrot.slane %v3178, 2
      %v3181 = vshll.u32 %v2832, 16
      %v3183 = vrot.slane %v3181, 3
      %v3184 = vor.u32 %v3180, %v3183
      %v3186 = vshrl.u32 %v2833, 16
      %v3188 = vrot.slane %v3186, 2
      %v3189 = vshll.u32 %v2833, 16
      %v3191 = vrot.slane %v3189, 3
      %v3192 = vor.u32 %v3188, %v3191
      %v3193 = vsel %vm3176, %v3184, %v3192
      %v3195 = vshrl.u32 %v2834, 16
      %v3197 = vrot.slane %v3195, 2
      %v3198 = vshll.u32 %v2834, 16
      %v3200 = vrot.slane %v3198, 3
      %v3201 = vor.u32 %v3197, %v3200
      %v3202 = vsel %vm3176, %v3192, %v3201
      %v3204 = vshrl.u32 %v2835, 16
      %v3206 = vrot.slane %v3204, 2
      %v3207 = vshll.u32 %v2835, 16
      %v3209 = vrot.slane %v3207, 3
      %v3210 = vor.u32 %v3206, %v3209
      %v3211 = vsel %vm3176, %v3201, %v3210
      %v3213 = vshrl.u32 %v2836, 16
      %v3215 = vrot.slane %v3213, 2
      %v3216 = vshll.u32 %v2836, 16
      %v3218 = vrot.slane %v3216, 3
      %v3219 = vor.u32 %v3215, %v3218
      %v3220 = vsel %vm3176, %v3210, %v3219
      %v3222 = vshrl.u32 %v2837, 16
      %v3224 = vrot.slane %v3222, 2
      %v3225 = vshll.u32 %v2837, 16
      %v3227 = vrot.slane %v3225, 3
      %v3228 = vor.u32 %v3224, %v3227
      %v3229 = vsel %vm3176, %v3219, %v3228
      %v3231 = vshrl.u32 %v2838, 16
      %v3233 = vrot.slane %v3231, 2
      %v3234 = vshll.u32 %v2838, 16
      %v3236 = vrot.slane %v3234, 3
      %v3237 = vor.u32 %v3233, %v3236
      %v3238 = vsel %vm3176, %v3228, %v3237
      %v3240 = vshrl.u32 %v2839, 16
      %v3242 = vrot.slane %v3240, 2
      %v3243 = vshll.u32 %v2839, 16
      %v3245 = vrot.slane %v3243, 3
      %v3246 = vor.u32 %v3242, %v3245
      %v3247 = vsel %vm3176, %v3237, %v3246
      %v3249 = vshrl.u32 %v2840, 16
      %v3251 = vrot.slane %v3249, 2
      %v3252 = vshll.u32 %v2840, 16
      %v3254 = vrot.slane %v3252, 3
      %v3255 = vor.u32 %v3251, %v3254
      %v3256 = vsel %vm3176, %v3246, %v3255
      %v3258 = vshrl.u32 %v2841, 16
      %v3260 = vrot.slane %v3258, 2
      %v3261 = vshll.u32 %v2841, 16
      %v3263 = vrot.slane %v3261, 3
      %v3264 = vor.u32 %v3260, %v3263
      %v3265 = vsel %vm3176, %v3255, %v3264
      %v3267 = vshrl.u32 %v2842, 16
      %v3269 = vrot.slane %v3267, 2
      %v3270 = vshll.u32 %v2842, 16
      %v3272 = vrot.slane %v3270, 3
      %v3273 = vor.u32 %v3269, %v3272
      %v3274 = vsel %vm3176, %v3264, %v3273
      %v3276 = vshrl.u32 %v2843, 16
      %v3278 = vrot.slane %v3276, 2
      %v3279 = vshll.u32 %v2843, 16
      %v3281 = vrot.slane %v3279, 3
      %v3282 = vor.u32 %v3278, %v3281
      %v3283 = vsel %vm3176, %v3273, %v3282
      %v3285 = vshrl.u32 %v2844, 16
      %v3287 = vrot.slane %v3285, 2
      %v3288 = vshll.u32 %v2844, 16
      %v3290 = vrot.slane %v3288, 3
      %v3291 = vor.u32 %v3287, %v3290
      %v3292 = vsel %vm3176, %v3282, %v3291
      %v3294 = vshrl.u32 %v2845, 16
      %v3296 = vrot.slane %v3294, 2
      %v3297 = vshll.u32 %v2845, 16
      %v3299 = vrot.slane %v3297, 3
      %v3300 = vor.u32 %v3296, %v3299
      %v3301 = vsel %vm3176, %v3291, %v3300
      %v3303 = vshrl.u32 %v2846, 16
      %v3305 = vrot.slane %v3303, 2
      %v3306 = vshll.u32 %v2846, 16
      %v3308 = vrot.slane %v3306, 3
      %v3309 = vor.u32 %v3305, %v3308
      %v3310 = vsel %vm3176, %v3300, %v3309
      %v3312 = vshrl.u32 %v2847, 16
      %v3314 = vrot.slane %v3312, 2
      %v3315 = vshll.u32 %v2847, 16
      %v3317 = vrot.slane %v3315, 3
      %v3318 = vor.u32 %v3314, %v3317
      %v3319 = vsel %vm3176, %v3309, %v3318
      %v3321 = vshrl.u32 %v2848, 16
      %v3323 = vrot.slane %v3321, 2
      %v3324 = vshll.u32 %v2848, 16
      %v3326 = vrot.slane %v3324, 3
      %v3327 = vor.u32 %v3323, %v3326
      %v3328 = vsel %vm3176, %v3318, %v3327
      %v3330 = vshrl.u32 %v2849, 16
      %v3332 = vrot.slane %v3330, 2
      %v3333 = vshll.u32 %v2849, 16
      %v3335 = vrot.slane %v3333, 3
      %v3336 = vor.u32 %v3332, %v3335
      %v3337 = vsel %vm3176, %v3327, %v3336
      %v3339 = vshrl.u32 %v3175, 16
      %v3341 = vrot.slane %v3339, 2
      %v3342 = vshll.u32 %v3175, 16
      %v3344 = vrot.slane %v3342, 3
      %v3345 = vor.u32 %v3341, %v3344
      %v3346 = vsel %vm3176, %v3336, %v3345
      %v3351 = vunpack.c.l.b16 %v3169
      %v3352 = vunpack.c.l.b16 %v3170
      %v3353 = vunpack.c.l.b16 %v3171
      %v3354 = vunpack.c.l.b16 %v3172
      %v3355 = vpack.c.b16 %v3352, %v3351
      %v3356 = vpack.c.b16 %v3354, %v3353
      %v3360 = vsel %vm697, %v3193, 0
      %v3363 = vsel %vm697, %v3202, 0
      %v3366 = vsel %vm697, %v3211, 0
      %v3369 = vsel %vm697, %v3220, 0
      %v3372 = vsel %vm697, %v3229, 0
      %v3375 = vsel %vm697, %v3238, 0
      %v3378 = vsel %vm697, %v3247, 0
      %v3381 = vsel %vm697, %v3256, 0
      %v3384 = vsel %vm697, %v3265, 0
      %v3387 = vsel %vm697, %v3274, 0
      %v3390 = vsel %vm697, %v3283, 0
      %v3393 = vsel %vm697, %v3292, 0
      %v3396 = vsel %vm697, %v3301, 0
      %v3399 = vsel %vm697, %v3310, 0
      %v3402 = vsel %vm697, %v3319, 0
      %v3405 = vsel %vm697, %v3328, 0
      %v3408 = vsel %vm697, %v3337, 0
      %v3411 = vsel %vm697, %v3346, 0
      %3413 = vmatprep.subr.bf16.mxu0 0
      %3414 = vmatpush1.bf16.msra.mxu0 %v3355
      %3415 = vmatprep.subr.bf16.mxu0 0
      %3416 = vmatpush1.bf16.msra.mxu0 %v3356
      %3417 = vmatprep.subr.bf16.mxu0 0
      %3418 = vmatpush1.bf16.msra.mxu0 0
      %3419 = vmatprep.subr.bf16.mxu0 0
      %3420 = vmatpush1.bf16.msra.mxu0 0
      %3421 = vmatprep.subr.bf16.mxu0 0
      %3422 = vmatpush1.bf16.msra.mxu0 0
      %3423 = vmatprep.subr.bf16.mxu0 0
      %3424 = vmatpush1.bf16.msra.mxu0 0
      %3425 = vmatprep.subr.bf16.mxu0 0
      %3426 = vmatpush1.bf16.msra.mxu0 0
      %3427 = vmatprep.subr.bf16.mxu0 0
      %3428 = vmatpush1.bf16.msra.mxu0 0
      %3429 = vmatprep.subr.bf16.mxu0 0
      %3430 = vmatpush1.bf16.msra.mxu0 0
      %3431 = vmatprep.subr.bf16.mxu0 0
      %3432 = vmatpush1.bf16.msra.mxu0 0
      %3433 = vmatprep.subr.bf16.mxu0 0
      %3434 = vmatpush1.bf16.msra.mxu0 0
      %3435 = vmatprep.subr.bf16.mxu0 0
      %3436 = vmatpush1.bf16.msra.mxu0 0
      %3437 = vmatprep.subr.bf16.mxu0 0
      %3438 = vmatpush1.bf16.msra.mxu0 0
      %3439 = vmatprep.subr.bf16.mxu0 0
      %3440 = vmatpush1.bf16.msra.mxu0 0
      %3441 = vmatprep.subr.bf16.mxu0 0
      %3442 = vmatpush1.bf16.msra.mxu0 0
      %3443 = vmatprep.subr.bf16.mxu0 0
      %3444 = vmatpush1.bf16.msra.mxu0 0
      %3445 = vmatprep.mubr.bf16.mxu0 0
      %3446 = vmatmul.mubr.bf16.gmra.mrb[0].mxu0 %v3360
      %v3447 = vpop.f32.mrb[0].mxu0
      %v3448 = vadd.f32 0.0, %v3447
      %v3449 = vpop.f32.mrb[0].mxu0
      %v3450 = vpop.f32.mrb[0].mxu0
      %v3451 = vadd.f32 0.0, %v3450
      %v3452 = vpop.f32.mrb[0].mxu0
      %3453 = vmatprep.mubr.bf16.mxu0 0
      %3454 = vmatmul.mubr.bf16.gmra.mrb[0].mxu0 %v3363
      %v3455 = vpop.f32.mrb[0].mxu0
      %v3456 = vadd.f32 0.0, %v3455
      %v3457 = vpop.f32.mrb[0].mxu0
      %v3458 = vpop.f32.mrb[0].mxu0
      %v3459 = vadd.f32 0.0, %v3458
      %v3460 = vpop.f32.mrb[0].mxu0
      %3461 = vmatprep.mubr.bf16.mxu0 0
      %3462 = vmatmul.mubr.bf16.gmra.mrb[0].mxu0 %v3366
      %v3463 = vpop.f32.mrb[0].mxu0
      %v3464 = vadd.f32 0.0, %v3463
      %v3465 = vpop.f32.mrb[0].mxu0
      %v3466 = vpop.f32.mrb[0].mxu0
      %v3467 = vadd.f32 0.0, %v3466
      %v3468 = vpop.f32.mrb[0].mxu0
      %3469 = vmatprep.mubr.bf16.mxu0 0
      %3470 = vmatmul.mubr.bf16.gmra.mrb[0].mxu0 %v3369
      %v3471 = vpop.f32.mrb[0].mxu0
      %v3472 = vadd.f32 0.0, %v3471
      %v3473 = vpop.f32.mrb[0].mxu0
      %v3474 = vpop.f32.mrb[0].mxu0
      %v3475 = vadd.f32 0.0, %v3474
      %v3476 = vpop.f32.mrb[0].mxu0
      %3477 = vmatprep.mubr.bf16.mxu0 0
      %3478 = vmatmul.mubr.bf16.gmra.mrb[0].mxu0 %v3372
      %v3479 = vpop.f32.mrb[0].mxu0
      %v3480 = vadd.f32 0.0, %v3479
      %v3481 = vpop.f32.mrb[0].mxu0
      %v3482 = vpop.f32.mrb[0].mxu0
      %v3483 = vadd.f32 0.0, %v3482
      %v3484 = vpop.f32.mrb[0].mxu0
      %3485 = vmatprep.mubr.bf16.mxu0 0
      %3486 = vmatmul.mubr.bf16.gmra.mrb[0].mxu0 %v3375
      %v3487 = vpop.f32.mrb[0].mxu0
      %v3488 = vadd.f32 0.0, %v3487
      %v3489 = vpop.f32.mrb[0].mxu0
      %v3490 = vpop.f32.mrb[0].mxu0
      %v3491 = vadd.f32 0.0, %v3490
      %v3492 = vpop.f32.mrb[0].mxu0
      %3493 = vmatprep.mubr.bf16.mxu0 0
      %3494 = vmatmul.mubr.bf16.gmra.mrb[0].mxu0 %v3378
      %v3495 = vpop.f32.mrb[0].mxu0
      %v3496 = vadd.f32 0.0, %v3495
      %v3497 = vpop.f32.mrb[0].mxu0
      %v3498 = vpop.f32.mrb[0].mxu0
      %v3499 = vadd.f32 0.0, %v3498
      %v3500 = vpop.f32.mrb[0].mxu0
      %3501 = vmatprep.mubr.bf16.mxu0 0
      %3502 = vmatmul.mubr.bf16.gmra.mrb[0].mxu0 %v3381
      %v3503 = vpop.f32.mrb[0].mxu0
      %v3504 = vadd.f32 0.0, %v3503
      %v3505 = vpop.f32.mrb[0].mxu0
      %v3506 = vpop.f32.mrb[0].mxu0
      %v3507 = vadd.f32 0.0, %v3506
      %v3508 = vpop.f32.mrb[0].mxu0
      %3509 = vmatprep.mubr.bf16.mxu0 0
      %3510 = vmatmul.mubr.bf16.gmra.mrb[0].mxu0 %v3384
      %v3511 = vpop.f32.mrb[0].mxu0
      %v3512 = vadd.f32 0.0, %v3511
      %v3513 = vpop.f32.mrb[0].mxu0
      %v3514 = vpop.f32.mrb[0].mxu0
      %v3515 = vadd.f32 0.0, %v3514
      %v3516 = vpop.f32.mrb[0].mxu0
      %3517 = vmatprep.mubr.bf16.mxu0 0
      %3518 = vmatmul.mubr.bf16.gmra.mrb[0].mxu0 %v3387
      %v3519 = vpop.f32.mrb[0].mxu0
      %v3520 = vadd.f32 0.0, %v3519
      %v3521 = vpop.f32.mrb[0].mxu0
      %v3522 = vpop.f32.mrb[0].mxu0
      %v3523 = vadd.f32 0.0, %v3522
      %v3524 = vpop.f32.mrb[0].mxu0
      %3525 = vmatprep.mubr.bf16.mxu0 0
      %3526 = vmatmul.mubr.bf16.gmra.mrb[0].mxu0 %v3390
      %v3527 = vpop.f32.mrb[0].mxu0
      %v3528 = vadd.f32 0.0, %v3527
      %v3529 = vpop.f32.mrb[0].mxu0
      %v3530 = vpop.f32.mrb[0].mxu0
      %v3531 = vadd.f32 0.0, %v3530
      %v3532 = vpop.f32.mrb[0].mxu0
      %3533 = vmatprep.mubr.bf16.mxu0 0
      %3534 = vmatmul.mubr.bf16.gmra.mrb[0].mxu0 %v3393
      %v3535 = vpop.f32.mrb[0].mxu0
      %v3536 = vadd.f32 0.0, %v3535
      %v3537 = vpop.f32.mrb[0].mxu0
      %v3538 = vpop.f32.mrb[0].mxu0
      %v3539 = vadd.f32 0.0, %v3538
      %v3540 = vpop.f32.mrb[0].mxu0
      %3541 = vmatprep.mubr.bf16.mxu0 0
      %3542 = vmatmul.mubr.bf16.gmra.mrb[0].mxu0 %v3396
      %v3543 = vpop.f32.mrb[0].mxu0
      %v3544 = vadd.f32 0.0, %v3543
      %v3545 = vpop.f32.mrb[0].mxu0
      %v3546 = vpop.f32.mrb[0].mxu0
      %v3547 = vadd.f32 0.0, %v3546
      %v3548 = vpop.f32.mrb[0].mxu0
      %3549 = vmatprep.mubr.bf16.mxu0 0
      %3550 = vmatmul.mubr.bf16.gmra.mrb[0].mxu0 %v3399
      %v3551 = vpop.f32.mrb[0].mxu0
      %v3552 = vadd.f32 0.0, %v3551
      %v3553 = vpop.f32.mrb[0].mxu0
      %v3554 = vpop.f32.mrb[0].mxu0
      %v3555 = vadd.f32 0.0, %v3554
      %v3556 = vpop.f32.mrb[0].mxu0
      %3557 = vmatprep.mubr.bf16.mxu0 0
      %3558 = vmatmul.mubr.bf16.gmra.mrb[0].mxu0 %v3402
      %v3559 = vpop.f32.mrb[0].mxu0
      %v3560 = vadd.f32 0.0, %v3559
      %v3561 = vpop.f32.mrb[0].mxu0
      %v3562 = vpop.f32.mrb[0].mxu0
      %v3563 = vadd.f32 0.0, %v3562
      %v3564 = vpop.f32.mrb[0].mxu0
      %3565 = vmatprep.mubr.bf16.mxu0 0
      %3566 = vmatmul.mubr.bf16.gmra.mrb[0].mxu0 %v3405
      %v3567 = vpop.f32.mrb[0].mxu0
      %v3568 = vadd.f32 0.0, %v3567
      %v3569 = vpop.f32.mrb[0].mxu0
      %v3570 = vpop.f32.mrb[0].mxu0
      %v3571 = vadd.f32 0.0, %v3570
      %v3572 = vpop.f32.mrb[0].mxu0
      %3573 = vmatprep.mubr.bf16.mxu0 0
      %3574 = vmatmul.mubr.bf16.gmra.mrb[0].mxu0 %v3408
      %v3575 = vpop.f32.mrb[0].mxu0
      %v3576 = vadd.f32 0.0, %v3575
      %v3577 = vpop.f32.mrb[0].mxu0
      %v3578 = vpop.f32.mrb[0].mxu0
      %v3579 = vadd.f32 0.0, %v3578
      %v3580 = vpop.f32.mrb[0].mxu0
      %3581 = vmatprep.mubr.bf16.mxu0 0
      %3582 = vmatmul.mubr.bf16.gmra.mrb[0].mxu0 %v3411
      %v3583 = vpop.f32.mrb[0].mxu0
      %v3584 = vadd.f32 0.0, %v3583
      %v3585 = vpop.f32.mrb[0].mxu0
      %v3586 = vpop.f32.mrb[0].mxu0
      %v3587 = vadd.f32 0.0, %v3586
      %v3588 = vpop.f32.mrb[0].mxu0
      %3589 = vdwg.mxu0
      %v3590 = vadd.f32 %v3131, %v3448
      %v3591 = vadd.f32 %v3132, %v3451
      %v3592 = vadd.f32 %v3133, %v3456
      %v3593 = vadd.f32 %v3134, %v3459
      %v3594 = vadd.f32 %v3135, %v3464
      %v3595 = vadd.f32 %v3136, %v3467
      %v3596 = vadd.f32 %v3137, %v3472
      %v3597 = vadd.f32 %v3138, %v3475
      %v3598 = vadd.f32 %v3139, %v3480
      %v3599 = vadd.f32 %v3140, %v3483
      %v3600 = vadd.f32 %v3141, %v3488
      %v3601 = vadd.f32 %v3142, %v3491
      %v3602 = vadd.f32 %v3143, %v3496
      %v3603 = vadd.f32 %v3144, %v3499
      %v3604 = vadd.f32 %v3145, %v3504
      %v3605 = vadd.f32 %v3146, %v3507
      %v3606 = vadd.f32 %v3147, %v3512
      %v3607 = vadd.f32 %v3148, %v3515
      %v3608 = vadd.f32 %v3149, %v3520
      %v3609 = vadd.f32 %v3150, %v3523
      %v3610 = vadd.f32 %v3151, %v3528
      %v3611 = vadd.f32 %v3152, %v3531
      %v3612 = vadd.f32 %v3153, %v3536
      %v3613 = vadd.f32 %v3154, %v3539
      %v3614 = vadd.f32 %v3155, %v3544
      %v3615 = vadd.f32 %v3156, %v3547
      %v3616 = vadd.f32 %v3157, %v3552
      %v3617 = vadd.f32 %v3158, %v3555
      %v3618 = vadd.f32 %v3159, %v3560
      %v3619 = vadd.f32 %v3160, %v3563
      %v3620 = vadd.f32 %v3161, %v3568
      %v3621 = vadd.f32 %v3162, %v3571
      %v3622 = vadd.f32 %v3163, %v3576
      %v3623 = vadd.f32 %v3164, %v3579
      %v3624 = vadd.f32 %v3165, %v3584
      %v3625 = vadd.f32 %v3166, %v3587
      %v3626 = vld [vmem:[%s354 + $0x10] sm:$0x8]
      %s3627 = scalar_lea.vmem %s2, 128
      %v3628 = vld [vmem:[%s3627] sm:$0xf]
      %v3629 = vld [vmem:[%s3627 + $0x4] sm:$0xf]
      %v3630 = vld [vmem:[%s3627 + $0x8] sm:$0xf]
      %v3631 = vld [vmem:[%s3627 + $0xc] sm:$0xf]
      %v3633 = vunpack.c.l.b16 %v3626
      %v3634 = vpack.c.b16 %v2796, %v3633
      %vm3635 = vcmask 1044480
      %v3636 = vrot.slane %v3634, 3
      %v3637 = vrot.slane %v2833, 3
      %v3638 = vsel %vm3635, %v3636, %v3637
      %v3639 = vrot.slane %v2834, 3
      %v3640 = vsel %vm3635, %v3637, %v3639
      %v3641 = vrot.slane %v2835, 3
      %v3642 = vsel %vm3635, %v3639, %v3641
      %v3643 = vrot.slane %v2836, 3
      %v3644 = vsel %vm3635, %v3641, %v3643
      %v3645 = vrot.slane %v2837, 3
      %v3646 = vsel %vm3635, %v3643, %v3645
      %v3647 = vrot.slane %v2838, 3
      %v3648 = vsel %vm3635, %v3645, %v3647
      %v3649 = vrot.slane %v2839, 3
      %v3650 = vsel %vm3635, %v3647, %v3649
      %v3651 = vrot.slane %v2840, 3
      %v3652 = vsel %vm3635, %v3649, %v3651
      %v3653 = vrot.slane %v2841, 3
      %v3654 = vsel %vm3635, %v3651, %v3653
      %v3655 = vrot.slane %v2842, 3
      %v3656 = vsel %vm3635, %v3653, %v3655
      %v3657 = vrot.slane %v2843, 3
      %v3658 = vsel %vm3635, %v3655, %v3657
      %v3659 = vrot.slane %v2844, 3
      %v3660 = vsel %vm3635, %v3657, %v3659
      %v3661 = vrot.slane %v2845, 3
      %v3662 = vsel %vm3635, %v3659, %v3661
      %v3663 = vrot.slane %v2846, 3
      %v3664 = vsel %vm3635, %v3661, %v3663
      %v3665 = vrot.slane %v2847, 3
      %v3666 = vsel %vm3635, %v3663, %v3665
      %v3667 = vrot.slane %v2848, 3
      %v3668 = vsel %vm3635, %v3665, %v3667
      %v3669 = vrot.slane %v2849, 3
      %v3670 = vsel %vm3635, %v3667, %v3669
      %v3671 = vrot.slane %v3175, 3
      %v3672 = vsel %vm3635, %v3669, %v3671
      %v3677 = vunpack.c.l.b16 %v3628
      %v3678 = vunpack.c.l.b16 %v3629
      %v3679 = vunpack.c.l.b16 %v3630
      %v3680 = vunpack.c.l.b16 %v3631
      %v3681 = vpack.c.b16 %v3678, %v3677
      %v3682 = vpack.c.b16 %v3680, %v3679
      %v3686 = vsel %vm697, %v3638, 0
      %v3689 = vsel %vm697, %v3640, 0
      %v3692 = vsel %vm697, %v3642, 0
      %v3695 = vsel %vm697, %v3644, 0
      %v3698 = vsel %vm697, %v3646, 0
      %v3701 = vsel %vm697, %v3648, 0
      %v3704 = vsel %vm697, %v3650, 0
      %v3707 = vsel %vm697, %v3652, 0
      %v3710 = vsel %vm697, %v3654, 0
      %v3713 = vsel %vm697, %v3656, 0
      %v3716 = vsel %vm697, %v3658, 0
      %v3719 = vsel %vm697, %v3660, 0
      %v3722 = vsel %vm697, %v3662, 0
      %v3725 = vsel %vm697, %v3664, 0
      %v3728 = vsel %vm697, %v3666, 0
      %v3731 = vsel %vm697, %v3668, 0
      %v3734 = vsel %vm697, %v3670, 0
      %v3737 = vsel %vm697, %v3672, 0
      %3739 = vmatprep.subr.bf16.mxu0 0
      %3740 = vmatpush1.bf16.msra.mxu0 %v3681
      %3741 = vmatprep.subr.bf16.mxu0 0
      %3742 = vmatpush1.bf16.msra.mxu0 %v3682
      %3743 = vmatprep.subr.bf16.mxu0 0
      %3744 = vmatpush1.bf16.msra.mxu0 0
      %3745 = vmatprep.subr.bf16.mxu0 0
      %3746 = vmatpush1.bf16.msra.mxu0 0
      %3747 = vmatprep.subr.bf16.mxu0 0
      %3748 = vmatpush1.bf16.msra.mxu0 0
      %3749 = vmatprep.subr.bf16.mxu0 0
      %3750 = vmatpush1.bf16.msra.mxu0 0
      %3751 = vmatprep.subr.bf16.mxu0 0
      %3752 = vmatpush1.bf16.msra.mxu0 0
      %3753 = vmatprep.subr.bf16.mxu0 0
      %3754 = vmatpush1.bf16.msra.mxu0 0
      %3755 = vmatprep.subr.bf16.mxu0 0
      %3756 = vmatpush1.bf16.msra.mxu0 0
      %3757 = vmatprep.subr.bf16.mxu0 0
      %3758 = vmatpush1.bf16.msra.mxu0 0
      %3759 = vmatprep.subr.bf16.mxu0 0
      %3760 = vmatpush1.bf16.msra.mxu0 0
      %3761 = vmatprep.subr.bf16.mxu0 0
      %3762 = vmatpush1.bf16.msra.mxu0 0
      %3763 = vmatprep.subr.bf16.mxu0 0
      %3764 = vmatpush1.bf16.msra.mxu0 0
      %3765 = vmatprep.subr.bf16.mxu0 0
      %3766 = vmatpush1.bf16.msra.mxu0 0
      %3767 = vmatprep.subr.bf16.mxu0 0
      %3768 = vmatpush1.bf16.msra.mxu0 0
      %3769 = vmatprep.subr.bf16.mxu0 0
      %3770 = vmatpush1.bf16.msra.mxu0 0
      %3771 = vmatprep.mubr.bf16.mxu0 0
      %3772 = vmatmul.mubr.bf16.gmra.mrb[0].mxu0 %v3686
      %v3773 = vpop.f32.mrb[0].mxu0
      %v3774 = vadd.f32 0.0, %v3773
      %v3775 = vpop.f32.mrb[0].mxu0
      %v3776 = vpop.f32.mrb[0].mxu0
      %v3777 = vadd.f32 0.0, %v3776
      %v3778 = vpop.f32.mrb[0].mxu0
      %3779 = vmatprep.mubr.bf16.mxu0 0
      %3780 = vmatmul.mubr.bf16.gmra.mrb[0].mxu0 %v3689
      %v3781 = vpop.f32.mrb[0].mxu0
      %v3782 = vadd.f32 0.0, %v3781
      %v3783 = vpop.f32.mrb[0].mxu0
      %v3784 = vpop.f32.mrb[0].mxu0
      %v3785 = vadd.f32 0.0, %v3784
      %v3786 = vpop.f32.mrb[0].mxu0
      %3787 = vmatprep.mubr.bf16.mxu0 0
      %3788 = vmatmul.mubr.bf16.gmra.mrb[0].mxu0 %v3692
      %v3789 = vpop.f32.mrb[0].mxu0
      %v3790 = vadd.f32 0.0, %v3789
      %v3791 = vpop.f32.mrb[0].mxu0
      %v3792 = vpop.f32.mrb[0].mxu0
      %v3793 = vadd.f32 0.0, %v3792
      %v3794 = vpop.f32.mrb[0].mxu0
      %3795 = vmatprep.mubr.bf16.mxu0 0
      %3796 = vmatmul.mubr.bf16.gmra.mrb[0].mxu0 %v3695
      %v3797 = vpop.f32.mrb[0].mxu0
      %v3798 = vadd.f32 0.0, %v3797
      %v3799 = vpop.f32.mrb[0].mxu0
      %v3800 = vpop.f32.mrb[0].mxu0
      %v3801 = vadd.f32 0.0, %v3800
      %v3802 = vpop.f32.mrb[0].mxu0
      %3803 = vmatprep.mubr.bf16.mxu0 0
      %3804 = vmatmul.mubr.bf16.gmra.mrb[0].mxu0 %v3698
      %v3805 = vpop.f32.mrb[0].mxu0
      %v3806 = vadd.f32 0.0, %v3805
      %v3807 = vpop.f32.mrb[0].mxu0
      %v3808 = vpop.f32.mrb[0].mxu0
      %v3809 = vadd.f32 0.0, %v3808
      %v3810 = vpop.f32.mrb[0].mxu0
      %3811 = vmatprep.mubr.bf16.mxu0 0
      %3812 = vmatmul.mubr.bf16.gmra.mrb[0].mxu0 %v3701
      %v3813 = vpop.f32.mrb[0].mxu0
      %v3814 = vadd.f32 0.0, %v3813
      %v3815 = vpop.f32.mrb[0].mxu0
      %v3816 = vpop.f32.mrb[0].mxu0
      %v3817 = vadd.f32 0.0, %v3816
      %v3818 = vpop.f32.mrb[0].mxu0
      %3819 = vmatprep.mubr.bf16.mxu0 0
      %3820 = vmatmul.mubr.bf16.gmra.mrb[0].mxu0 %v3704
      %v3821 = vpop.f32.mrb[0].mxu0
      %v3822 = vadd.f32 0.0, %v3821
      %v3823 = vpop.f32.mrb[0].mxu0
      %v3824 = vpop.f32.mrb[0].mxu0
      %v3825 = vadd.f32 0.0, %v3824
      %v3826 = vpop.f32.mrb[0].mxu0
      %3827 = vmatprep.mubr.bf16.mxu0 0
      %3828 = vmatmul.mubr.bf16.gmra.mrb[0].mxu0 %v3707
      %v3829 = vpop.f32.mrb[0].mxu0
      %v3830 = vadd.f32 0.0, %v3829
      %v3831 = vpop.f32.mrb[0].mxu0
      %v3832 = vpop.f32.mrb[0].mxu0
      %v3833 = vadd.f32 0.0, %v3832
      %v3834 = vpop.f32.mrb[0].mxu0
      %3835 = vmatprep.mubr.bf16.mxu0 0
      %3836 = vmatmul.mubr.bf16.gmra.mrb[0].mxu0 %v3710
      %v3837 = vpop.f32.mrb[0].mxu0
      %v3838 = vadd.f32 0.0, %v3837
      %v3839 = vpop.f32.mrb[0].mxu0
      %v3840 = vpop.f32.mrb[0].mxu0
      %v3841 = vadd.f32 0.0, %v3840
      %v3842 = vpop.f32.mrb[0].mxu0
      %3843 = vmatprep.mubr.bf16.mxu0 0
      %3844 = vmatmul.mubr.bf16.gmra.mrb[0].mxu0 %v3713
      %v3845 = vpop.f32.mrb[0].mxu0
      %v3846 = vadd.f32 0.0, %v3845
      %v3847 = vpop.f32.mrb[0].mxu0
      %v3848 = vpop.f32.mrb[0].mxu0
      %v3849 = vadd.f32 0.0, %v3848
      %v3850 = vpop.f32.mrb[0].mxu0
      %3851 = vmatprep.mubr.bf16.mxu0 0
      %3852 = vmatmul.mubr.bf16.gmra.mrb[0].mxu0 %v3716
      %v3853 = vpop.f32.mrb[0].mxu0
      %v3854 = vadd.f32 0.0, %v3853
      %v3855 = vpop.f32.mrb[0].mxu0
      %v3856 = vpop.f32.mrb[0].mxu0
      %v3857 = vadd.f32 0.0, %v3856
      %v3858 = vpop.f32.mrb[0].mxu0
      %3859 = vmatprep.mubr.bf16.mxu0 0
      %3860 = vmatmul.mubr.bf16.gmra.mrb[0].mxu0 %v3719
      %v3861 = vpop.f32.mrb[0].mxu0
      %v3862 = vadd.f32 0.0, %v3861
      %v3863 = vpop.f32.mrb[0].mxu0
      %v3864 = vpop.f32.mrb[0].mxu0
      %v3865 = vadd.f32 0.0, %v3864
      %v3866 = vpop.f32.mrb[0].mxu0
      %3867 = vmatprep.mubr.bf16.mxu0 0
      %3868 = vmatmul.mubr.bf16.gmra.mrb[0].mxu0 %v3722
      %v3869 = vpop.f32.mrb[0].mxu0
      %v3870 = vadd.f32 0.0, %v3869
      %v3871 = vpop.f32.mrb[0].mxu0
      %v3872 = vpop.f32.mrb[0].mxu0
      %v3873 = vadd.f32 0.0, %v3872
      %v3874 = vpop.f32.mrb[0].mxu0
      %3875 = vmatprep.mubr.bf16.mxu0 0
      %3876 = vmatmul.mubr.bf16.gmra.mrb[0].mxu0 %v3725
      %v3877 = vpop.f32.mrb[0].mxu0
      %v3878 = vadd.f32 0.0, %v3877
      %v3879 = vpop.f32.mrb[0].mxu0
      %v3880 = vpop.f32.mrb[0].mxu0
      %v3881 = vadd.f32 0.0, %v3880
      %v3882 = vpop.f32.mrb[0].mxu0
      %3883 = vmatprep.mubr.bf16.mxu0 0
      %3884 = vmatmul.mubr.bf16.gmra.mrb[0].mxu0 %v3728
      %v3885 = vpop.f32.mrb[0].mxu0
      %v3886 = vadd.f32 0.0, %v3885
      %v3887 = vpop.f32.mrb[0].mxu0
      %v3888 = vpop.f32.mrb[0].mxu0
      %v3889 = vadd.f32 0.0, %v3888
      %v3890 = vpop.f32.mrb[0].mxu0
      %3891 = vmatprep.mubr.bf16.mxu0 0
      %3892 = vmatmul.mubr.bf16.gmra.mrb[0].mxu0 %v3731
      %v3893 = vpop.f32.mrb[0].mxu0
      %v3894 = vadd.f32 0.0, %v3893
      %v3895 = vpop.f32.mrb[0].mxu0
      %v3896 = vpop.f32.mrb[0].mxu0
      %v3897 = vadd.f32 0.0, %v3896
      %v3898 = vpop.f32.mrb[0].mxu0
      %3899 = vmatprep.mubr.bf16.mxu0 0
      %3900 = vmatmul.mubr.bf16.gmra.mrb[0].mxu0 %v3734
      %v3901 = vpop.f32.mrb[0].mxu0
      %v3902 = vadd.f32 0.0, %v3901
      %v3903 = vpop.f32.mrb[0].mxu0
      %v3904 = vpop.f32.mrb[0].mxu0
      %v3905 = vadd.f32 0.0, %v3904
      %v3906 = vpop.f32.mrb[0].mxu0
      %3907 = vmatprep.mubr.bf16.mxu0 0
      %3908 = vmatmul.mubr.bf16.gmra.mrb[0].mxu0 %v3737
      %v3909 = vpop.f32.mrb[0].mxu0
      %v3910 = vadd.f32 0.0, %v3909
      %v3911 = vpop.f32.mrb[0].mxu0
      %v3912 = vpop.f32.mrb[0].mxu0
      %v3913 = vadd.f32 0.0, %v3912
      %v3914 = vpop.f32.mrb[0].mxu0
      %3915 = vdwg.mxu0
      %v3916 = vadd.f32 %v3590, %v3774
      %v3917 = vadd.f32 %v3591, %v3777
      %v3918 = vadd.f32 %v3592, %v3782
      %v3919 = vadd.f32 %v3593, %v3785
      %v3920 = vadd.f32 %v3594, %v3790
      %v3921 = vadd.f32 %v3595, %v3793
      %v3922 = vadd.f32 %v3596, %v3798
      %v3923 = vadd.f32 %v3597, %v3801
      %v3924 = vadd.f32 %v3598, %v3806
      %v3925 = vadd.f32 %v3599, %v3809
      %v3926 = vadd.f32 %v3600, %v3814
      %v3927 = vadd.f32 %v3601, %v3817
      %v3928 = vadd.f32 %v3602, %v3822
      %v3929 = vadd.f32 %v3603, %v3825
      %v3930 = vadd.f32 %v3604, %v3830
      %v3931 = vadd.f32 %v3605, %v3833
      %v3932 = vadd.f32 %v3606, %v3838
      %v3933 = vadd.f32 %v3607, %v3841
      %v3934 = vadd.f32 %v3608, %v3846
      %v3935 = vadd.f32 %v3609, %v3849
      %v3936 = vadd.f32 %v3610, %v3854
      %v3937 = vadd.f32 %v3611, %v3857
      %v3938 = vadd.f32 %v3612, %v3862
      %v3939 = vadd.f32 %v3613, %v3865
      %v3940 = vadd.f32 %v3614, %v3870
      %v3941 = vadd.f32 %v3615, %v3873
      %v3942 = vadd.f32 %v3616, %v3878
      %v3943 = vadd.f32 %v3617, %v3881
      %v3944 = vadd.f32 %v3618, %v3886
      %v3945 = vadd.f32 %v3619, %v3889
      %v3946 = vadd.f32 %v3620, %v3894
      %v3947 = vadd.f32 %v3621, %v3897
      %v3948 = vadd.f32 %v3622, %v3902
      %v3949 = vadd.f32 %v3623, %v3905
      %v3950 = vadd.f32 %v3624, %v3910
      %v3951 = vadd.f32 %v3625, %v3913
      %v3952 = vld [vmem:[%s3] sm:$0x1]
      %v3954 = vlaneseq
      %v3955 = vshrl.u32 %v3954, 7
      %v3956 = vsub.s32 0, %v3955
      %v3957 = vrot.slane %v3952, %v3956
      %v3959 = vmul.f32 %v3916, %v3957
      %v3960 = vmul.f32 %v3917, %v3957
      %v3961 = vmul.f32 %v3918, %v3957
      %v3962 = vmul.f32 %v3919, %v3957
      %v3963 = vmul.f32 %v3920, %v3957
      %v3964 = vmul.f32 %v3921, %v3957
      %v3965 = vmul.f32 %v3922, %v3957
      %v3966 = vmul.f32 %v3923, %v3957
      %v3967 = vmul.f32 %v3924, %v3957
      %v3968 = vmul.f32 %v3925, %v3957
      %v3969 = vmul.f32 %v3926, %v3957
      %v3970 = vmul.f32 %v3927, %v3957
      %v3971 = vmul.f32 %v3928, %v3957
      %v3972 = vmul.f32 %v3929, %v3957
      %v3973 = vmul.f32 %v3930, %v3957
      %v3974 = vmul.f32 %v3931, %v3957
      %v3975 = vmul.f32 %v3932, %v3957
      %v3976 = vmul.f32 %v3933, %v3957
      %v3977 = vmul.f32 %v3934, %v3957
      %v3978 = vmul.f32 %v3935, %v3957
      %v3979 = vmul.f32 %v3936, %v3957
      %v3980 = vmul.f32 %v3937, %v3957
      %v3981 = vmul.f32 %v3938, %v3957
      %v3982 = vmul.f32 %v3939, %v3957
      %v3983 = vmul.f32 %v3940, %v3957
      %v3984 = vmul.f32 %v3941, %v3957
      %v3985 = vmul.f32 %v3942, %v3957
      %v3986 = vmul.f32 %v3943, %v3957
      %v3987 = vmul.f32 %v3944, %v3957
      %v3988 = vmul.f32 %v3945, %v3957
      %v3989 = vmul.f32 %v3946, %v3957
      %v3990 = vmul.f32 %v3947, %v3957
      %v3991 = vmul.f32 %v3948, %v3957
      %v3992 = vmul.f32 %v3949, %v3957
      %v3993 = vmul.f32 %v3950, %v3957
      %v3994 = vmul.f32 %v3951, %v3957
      %v3995 = vld [vmem:[%s4] sm:$0x1]
      %v3997 = vlaneseq
      %v3998 = vshrl.u32 %v3997, 7
      %v3999 = vsub.s32 0, %v3998
      %v4000 = vrot.slane %v3995, %v3999
      %v4002 = vadd.f32 %v3959, %v4000
      %v4003 = vadd.f32 %v3960, %v4000
      %v4004 = vadd.f32 %v3961, %v4000
      %v4005 = vadd.f32 %v3962, %v4000
      %v4006 = vadd.f32 %v3963, %v4000
      %v4007 = vadd.f32 %v3964, %v4000
      %v4008 = vadd.f32 %v3965, %v4000
      %v4009 = vadd.f32 %v3966, %v4000
      %v4010 = vadd.f32 %v3967, %v4000
      %v4011 = vadd.f32 %v3968, %v4000
      %v4012 = vadd.f32 %v3969, %v4000
      %v4013 = vadd.f32 %v3970, %v4000
      %v4014 = vadd.f32 %v3971, %v4000
      %v4015 = vadd.f32 %v3972, %v4000
      %v4016 = vadd.f32 %v3973, %v4000
      %v4017 = vadd.f32 %v3974, %v4000
      %v4018 = vadd.f32 %v3975, %v4000
      %v4019 = vadd.f32 %v3976, %v4000
      %v4020 = vadd.f32 %v3977, %v4000
      %v4021 = vadd.f32 %v3978, %v4000
      %v4022 = vadd.f32 %v3979, %v4000
      %v4023 = vadd.f32 %v3980, %v4000
      %v4024 = vadd.f32 %v3981, %v4000
      %v4025 = vadd.f32 %v3982, %v4000
      %v4026 = vadd.f32 %v3983, %v4000
      %v4027 = vadd.f32 %v3984, %v4000
      %v4028 = vadd.f32 %v3985, %v4000
      %v4029 = vadd.f32 %v3986, %v4000
      %v4030 = vadd.f32 %v3987, %v4000
      %v4031 = vadd.f32 %v3988, %v4000
      %v4032 = vadd.f32 %v3989, %v4000
      %v4033 = vadd.f32 %v3990, %v4000
      %v4034 = vadd.f32 %v3991, %v4000
      %v4035 = vadd.f32 %v3992, %v4000
      %v4036 = vadd.f32 %v3993, %v4000
      %v4037 = vadd.f32 %v3994, %v4000
      %v4038 = vxor.u32 %v4002, 2147483648
      %v4039 = vxor.u32 %v4003, 2147483648
      %v4040 = vxor.u32 %v4004, 2147483648
      %v4041 = vxor.u32 %v4005, 2147483648
      %v4042 = vxor.u32 %v4006, 2147483648
      %v4043 = vxor.u32 %v4007, 2147483648
      %v4044 = vxor.u32 %v4008, 2147483648
      %v4045 = vxor.u32 %v4009, 2147483648
      %v4046 = vxor.u32 %v4010, 2147483648
      %v4047 = vxor.u32 %v4011, 2147483648
      %v4048 = vxor.u32 %v4012, 2147483648
      %v4049 = vxor.u32 %v4013, 2147483648
      %v4050 = vxor.u32 %v4014, 2147483648
      %v4051 = vxor.u32 %v4015, 2147483648
      %v4052 = vxor.u32 %v4016, 2147483648
      %v4053 = vxor.u32 %v4017, 2147483648
      %v4054 = vxor.u32 %v4018, 2147483648
      %v4055 = vxor.u32 %v4019, 2147483648
      %v4056 = vxor.u32 %v4020, 2147483648
      %v4057 = vxor.u32 %v4021, 2147483648
      %v4058 = vxor.u32 %v4022, 2147483648
      %v4059 = vxor.u32 %v4023, 2147483648
      %v4060 = vxor.u32 %v4024, 2147483648
      %v4061 = vxor.u32 %v4025, 2147483648
      %v4062 = vxor.u32 %v4026, 2147483648
      %v4063 = vxor.u32 %v4027, 2147483648
      %v4064 = vxor.u32 %v4028, 2147483648
      %v4065 = vxor.u32 %v4029, 2147483648
      %v4066 = vxor.u32 %v4030, 2147483648
      %v4067 = vxor.u32 %v4031, 2147483648
      %v4068 = vxor.u32 %v4032, 2147483648
      %v4069 = vxor.u32 %v4033, 2147483648
      %v4070 = vxor.u32 %v4034, 2147483648
      %v4071 = vxor.u32 %v4035, 2147483648
      %v4072 = vxor.u32 %v4036, 2147483648
      %v4073 = vxor.u32 %v4037, 2147483648
      %v4074 = vmul.f32 %v4038, 1.442695
      %v4075 = vpow.pop %v4074
      %v4076 = vmul.f32 %v4039, 1.442695
      %v4077 = vpow.pop %v4076
      %v4078 = vmul.f32 %v4040, 1.442695
      %v4079 = vpow.pop %v4078
      %v4080 = vmul.f32 %v4041, 1.442695
      %v4081 = vpow.pop %v4080
      %v4082 = vmul.f32 %v4042, 1.442695
      %v4083 = vpow.pop %v4082
      %v4084 = vmul.f32 %v4043, 1.442695
      %v4085 = vpow.pop %v4084
      %v4086 = vmul.f32 %v4044, 1.442695
      %v4087 = vpow.pop %v4086
      %v4088 = vmul.f32 %v4045, 1.442695
      %v4089 = vpow.pop %v4088
      %v4090 = vmul.f32 %v4046, 1.442695
      %v4091 = vpow.pop %v4090
      %v4092 = vmul.f32 %v4047, 1.442695
      %v4093 = vpow.pop %v4092
      %v4094 = vmul.f32 %v4048, 1.442695
      %v4095 = vpow.pop %v4094
      %v4096 = vmul.f32 %v4049, 1.442695
      %v4097 = vpow.pop %v4096
      %v4098 = vmul.f32 %v4050, 1.442695
      %v4099 = vpow.pop %v4098
      %v4100 = vmul.f32 %v4051, 1.442695
      %v4101 = vpow.pop %v4100
      %v4102 = vmul.f32 %v4052, 1.442695
      %v4103 = vpow.pop %v4102
      %v4104 = vmul.f32 %v4053, 1.442695
      %v4105 = vpow.pop %v4104
      %v4106 = vmul.f32 %v4054, 1.442695
      %v4107 = vpow.pop %v4106
      %v4108 = vmul.f32 %v4055, 1.442695
      %v4109 = vpow.pop %v4108
      %v4110 = vmul.f32 %v4056, 1.442695
      %v4111 = vpow.pop %v4110
      %v4112 = vmul.f32 %v4057, 1.442695
      %v4113 = vpow.pop %v4112
      %v4114 = vmul.f32 %v4058, 1.442695
      %v4115 = vpow.pop %v4114
      %v4116 = vmul.f32 %v4059, 1.442695
      %v4117 = vpow.pop %v4116
      %v4118 = vmul.f32 %v4060, 1.442695
      %v4119 = vpow.pop %v4118
      %v4120 = vmul.f32 %v4061, 1.442695
      %v4121 = vpow.pop %v4120
      %v4122 = vmul.f32 %v4062, 1.442695
      %v4123 = vpow.pop %v4122
      %v4124 = vmul.f32 %v4063, 1.442695
      %v4125 = vpow.pop %v4124
      %v4126 = vmul.f32 %v4064, 1.442695
      %v4127 = vpow.pop %v4126
      %v4128 = vmul.f32 %v4065, 1.442695
      %v4129 = vpow.pop %v4128
      %v4130 = vmul.f32 %v4066, 1.442695
      %v4131 = vpow.pop %v4130
      %v4132 = vmul.f32 %v4067, 1.442695
      %v4133 = vpow.pop %v4132
      %v4134 = vmul.f32 %v4068, 1.442695
      %v4135 = vpow.pop %v4134
      %v4136 = vmul.f32 %v4069, 1.442695
      %v4137 = vpow.pop %v4136
      %v4138 = vmul.f32 %v4070, 1.442695
      %v4139 = vpow.pop %v4138
      %v4140 = vmul.f32 %v4071, 1.442695
      %v4141 = vpow.pop %v4140
      %v4142 = vmul.f32 %v4072, 1.442695
      %v4143 = vpow.pop %v4142
      %v4144 = vmul.f32 %v4073, 1.442695
      %v4145 = vpow.pop %v4144
      %v4146 = vadd.f32 %v4075, 1.0
      %v4147 = vadd.f32 %v4077, 1.0
      %v4148 = vadd.f32 %v4079, 1.0
      %v4149 = vadd.f32 %v4081, 1.0
      %v4150 = vadd.f32 %v4083, 1.0
      %v4151 = vadd.f32 %v4085, 1.0
      %v4152 = vadd.f32 %v4087, 1.0
      %v4153 = vadd.f32 %v4089, 1.0
      %v4154 = vadd.f32 %v4091, 1.0
      %v4155 = vadd.f32 %v4093, 1.0
      %v4156 = vadd.f32 %v4095, 1.0
      %v4157 = vadd.f32 %v4097, 1.0
      %v4158 = vadd.f32 %v4099, 1.0
      %v4159 = vadd.f32 %v4101, 1.0
      %v4160 = vadd.f32 %v4103, 1.0
      %v4161 = vadd.f32 %v4105, 1.0
      %v4162 = vadd.f32 %v4107, 1.0
      %v4163 = vadd.f32 %v4109, 1.0
      %v4164 = vadd.f32 %v4111, 1.0
      %v4165 = vadd.f32 %v4113, 1.0
      %v4166 = vadd.f32 %v4115, 1.0
      %v4167 = vadd.f32 %v4117, 1.0
      %v4168 = vadd.f32 %v4119, 1.0
      %v4169 = vadd.f32 %v4121, 1.0
      %v4170 = vadd.f32 %v4123, 1.0
      %v4171 = vadd.f32 %v4125, 1.0
      %v4172 = vadd.f32 %v4127, 1.0
      %v4173 = vadd.f32 %v4129, 1.0
      %v4174 = vadd.f32 %v4131, 1.0
      %v4175 = vadd.f32 %v4133, 1.0
      %v4176 = vadd.f32 %v4135, 1.0
      %v4177 = vadd.f32 %v4137, 1.0
      %v4178 = vadd.f32 %v4139, 1.0
      %v4179 = vadd.f32 %v4141, 1.0
      %v4180 = vadd.f32 %v4143, 1.0
      %v4181 = vadd.f32 %v4145, 1.0
      %v4182 = vrcp.pop %v4146
      %v4183 = vmul.f32 1.0, %v4182
      %v4184 = vrcp.pop %v4147
      %v4185 = vmul.f32 1.0, %v4184
      %v4186 = vrcp.pop %v4148
      %v4187 = vmul.f32 1.0, %v4186
      %v4188 = vrcp.pop %v4149
      %v4189 = vmul.f32 1.0, %v4188
      %v4190 = vrcp.pop %v4150
      %v4191 = vmul.f32 1.0, %v4190
      %v4192 = vrcp.pop %v4151
      %v4193 = vmul.f32 1.0, %v4192
      %v4194 = vrcp.pop %v4152
      %v4195 = vmul.f32 1.0, %v4194
      %v4196 = vrcp.pop %v4153
      %v4197 = vmul.f32 1.0, %v4196
      %v4198 = vrcp.pop %v4154
      %v4199 = vmul.f32 1.0, %v4198
      %v4200 = vrcp.pop %v4155
      %v4201 = vmul.f32 1.0, %v4200
      %v4202 = vrcp.pop %v4156
      %v4203 = vmul.f32 1.0, %v4202
      %v4204 = vrcp.pop %v4157
      %v4205 = vmul.f32 1.0, %v4204
      %v4206 = vrcp.pop %v4158
      %v4207 = vmul.f32 1.0, %v4206
      %v4208 = vrcp.pop %v4159
      %v4209 = vmul.f32 1.0, %v4208
      %v4210 = vrcp.pop %v4160
      %v4211 = vmul.f32 1.0, %v4210
      %v4212 = vrcp.pop %v4161
      %v4213 = vmul.f32 1.0, %v4212
      %v4214 = vrcp.pop %v4162
      %v4215 = vmul.f32 1.0, %v4214
      %v4216 = vrcp.pop %v4163
      %v4217 = vmul.f32 1.0, %v4216
      %v4218 = vrcp.pop %v4164
      %v4219 = vmul.f32 1.0, %v4218
      %v4220 = vrcp.pop %v4165
      %v4221 = vmul.f32 1.0, %v4220
      %v4222 = vrcp.pop %v4166
      %v4223 = vmul.f32 1.0, %v4222
      %v4224 = vrcp.pop %v4167
      %v4225 = vmul.f32 1.0, %v4224
      %v4226 = vrcp.pop %v4168
      %v4227 = vmul.f32 1.0, %v4226
      %v4228 = vrcp.pop %v4169
      %v4229 = vmul.f32 1.0, %v4228
      %v4230 = vrcp.pop %v4170
      %v4231 = vmul.f32 1.0, %v4230
      %v4232 = vrcp.pop %v4171
      %v4233 = vmul.f32 1.0, %v4232
      %v4234 = vrcp.pop %v4172
      %v4235 = vmul.f32 1.0, %v4234
      %v4236 = vrcp.pop %v4173
      %v4237 = vmul.f32 1.0, %v4236
      %v4238 = vrcp.pop %v4174
      %v4239 = vmul.f32 1.0, %v4238
      %v4240 = vrcp.pop %v4175
      %v4241 = vmul.f32 1.0, %v4240
      %v4242 = vrcp.pop %v4176
      %v4243 = vmul.f32 1.0, %v4242
      %v4244 = vrcp.pop %v4177
      %v4245 = vmul.f32 1.0, %v4244
      %v4246 = vrcp.pop %v4178
      %v4247 = vmul.f32 1.0, %v4246
      %v4248 = vrcp.pop %v4179
      %v4249 = vmul.f32 1.0, %v4248
      %v4250 = vrcp.pop %v4180
      %v4251 = vmul.f32 1.0, %v4250
      %v4252 = vrcp.pop %v4181
      %v4253 = vmul.f32 1.0, %v4252
      %v4254 = vmul.f32 %v4002, %v4183
      %v4255 = vmul.f32 %v4003, %v4185
      %v4256 = vmul.f32 %v4004, %v4187
      %v4257 = vmul.f32 %v4005, %v4189
      %v4258 = vmul.f32 %v4006, %v4191
      %v4259 = vmul.f32 %v4007, %v4193
      %v4260 = vmul.f32 %v4008, %v4195
      %v4261 = vmul.f32 %v4009, %v4197
      %v4262 = vmul.f32 %v4010, %v4199
      %v4263 = vmul.f32 %v4011, %v4201
      %v4264 = vmul.f32 %v4012, %v4203
      %v4265 = vmul.f32 %v4013, %v4205
      %v4266 = vmul.f32 %v4014, %v4207
      %v4267 = vmul.f32 %v4015, %v4209
      %v4268 = vmul.f32 %v4016, %v4211
      %v4269 = vmul.f32 %v4017, %v4213
      %v4270 = vmul.f32 %v4018, %v4215
      %v4271 = vmul.f32 %v4019, %v4217
      %v4272 = vmul.f32 %v4020, %v4219
      %v4273 = vmul.f32 %v4021, %v4221
      %v4274 = vmul.f32 %v4022, %v4223
      %v4275 = vmul.f32 %v4023, %v4225
      %v4276 = vmul.f32 %v4024, %v4227
      %v4277 = vmul.f32 %v4025, %v4229
      %v4278 = vmul.f32 %v4026, %v4231
      %v4279 = vmul.f32 %v4027, %v4233
      %v4280 = vmul.f32 %v4028, %v4235
      %v4281 = vmul.f32 %v4029, %v4237
      %v4282 = vmul.f32 %v4030, %v4239
      %v4283 = vmul.f32 %v4031, %v4241
      %v4284 = vmul.f32 %v4032, %v4243
      %v4285 = vmul.f32 %v4033, %v4245
      %v4286 = vmul.f32 %v4034, %v4247
      %v4287 = vmul.f32 %v4035, %v4249
      %v4288 = vmul.f32 %v4036, %v4251
      %v4289 = vmul.f32 %v4037, %v4253
      %4291 = vset.pattern.permute.xlu0 0
      %4292 = vperm.xlu0 %4291, %v361
      %v4293 = vpop.permute.xlu0 %4292
      %4296 = vset.pattern.permute.xlu0 0
      %4297 = vperm.xlu0 %4296, %v362
      %v4298 = vpop.permute.xlu0 %4297
      %4301 = vset.pattern.permute.xlu0 0
      %4302 = vperm.xlu0 %4301, %v363
      %v4303 = vpop.permute.xlu0 %4302
      %4306 = vset.pattern.permute.xlu0 0
      %4307 = vperm.xlu0 %4306, %v364
      %v4308 = vpop.permute.xlu0 %4307
      %4311 = vset.pattern.permute.xlu0 0
      %4312 = vperm.xlu0 %4311, %v365
      %v4313 = vpop.permute.xlu0 %4312
      %4316 = vset.pattern.permute.xlu0 0
      %4317 = vperm.xlu0 %4316, %v366
      %v4318 = vpop.permute.xlu0 %4317
      %4321 = vset.pattern.permute.xlu0 0
      %4322 = vperm.xlu0 %4321, %v367
      %v4323 = vpop.permute.xlu0 %4322
      %4326 = vset.pattern.permute.xlu0 0
      %4327 = vperm.xlu0 %4326, %v368
      %v4328 = vpop.permute.xlu0 %4327
      %4331 = vset.pattern.permute.xlu0 0
      %4332 = vperm.xlu0 %4331, %v369
      %v4333 = vpop.permute.xlu0 %4332
      %4336 = vset.pattern.permute.xlu0 0
      %4337 = vperm.xlu0 %4336, %v370
      %v4338 = vpop.permute.xlu0 %4337
      %4341 = vset.pattern.permute.xlu0 0
      %4342 = vperm.xlu0 %4341, %v371
      %v4343 = vpop.permute.xlu0 %4342
      %4346 = vset.pattern.permute.xlu0 0
      %4347 = vperm.xlu0 %4346, %v372
      %v4348 = vpop.permute.xlu0 %4347
      %4351 = vset.pattern.permute.xlu0 0
      %4352 = vperm.xlu0 %4351, %v373
      %v4353 = vpop.permute.xlu0 %4352
      %4356 = vset.pattern.permute.xlu0 0
      %4357 = vperm.xlu0 %4356, %v374
      %v4358 = vpop.permute.xlu0 %4357
      %4361 = vset.pattern.permute.xlu0 0
      %4362 = vperm.xlu0 %4361, %v375
      %v4363 = vpop.permute.xlu0 %4362
      %4366 = vset.pattern.permute.xlu0 0
      %4367 = vperm.xlu0 %4366, %v376
      %v4368 = vpop.permute.xlu0 %4367
      %4371 = vset.pattern.permute.xlu0 0
      %4372 = vperm.xlu0 %4371, %v377
      %v4373 = vpop.permute.xlu0 %4372
      %4376 = vset.pattern.permute.xlu0 0
      %4377 = vperm.xlu0 %4376, %v378
      %v4378 = vpop.permute.xlu0 %4377
      %4381 = vset.pattern.permute.xlu0 0
      %4382 = vperm.xlu0 %4381, %v379
      %v4383 = vpop.permute.xlu0 %4382
      %4386 = vset.pattern.permute.xlu0 0
      %4387 = vperm.xlu0 %4386, %v380
      %v4388 = vpop.permute.xlu0 %4387
      %4391 = vset.pattern.permute.xlu0 0
      %4392 = vperm.xlu0 %4391, %v381
      %v4393 = vpop.permute.xlu0 %4392
      %4396 = vset.pattern.permute.xlu0 0
      %4397 = vperm.xlu0 %4396, %v382
      %v4398 = vpop.permute.xlu0 %4397
      %4401 = vset.pattern.permute.xlu0 0
      %4402 = vperm.xlu0 %4401, %v383
      %v4403 = vpop.permute.xlu0 %4402
      %4406 = vset.pattern.permute.xlu0 0
      %4407 = vperm.xlu0 %4406, %v384
      %v4408 = vpop.permute.xlu0 %4407
      %4411 = vset.pattern.permute.xlu0 0
      %4412 = vperm.xlu0 %4411, %v385
      %v4413 = vpop.permute.xlu0 %4412
      %4416 = vset.pattern.permute.xlu0 0
      %4417 = vperm.xlu0 %4416, %v386
      %v4418 = vpop.permute.xlu0 %4417
      %4421 = vset.pattern.permute.xlu0 0
      %4422 = vperm.xlu0 %4421, %v387
      %v4423 = vpop.permute.xlu0 %4422
      %4426 = vset.pattern.permute.xlu0 0
      %4427 = vperm.xlu0 %4426, %v388
      %v4428 = vpop.permute.xlu0 %4427
      %4431 = vset.pattern.permute.xlu0 0
      %4432 = vperm.xlu0 %4431, %v389
      %v4433 = vpop.permute.xlu0 %4432
      %4436 = vset.pattern.permute.xlu0 0
      %4437 = vperm.xlu0 %4436, %v390
      %v4438 = vpop.permute.xlu0 %4437
      %4441 = vset.pattern.permute.xlu0 0
      %4442 = vperm.xlu0 %4441, %v391
      %v4443 = vpop.permute.xlu0 %4442
      %4446 = vset.pattern.permute.xlu0 0
      %4447 = vperm.xlu0 %4446, %v392
      %v4448 = vpop.permute.xlu0 %4447
      %4451 = vset.pattern.permute.xlu0 0
      %4452 = vperm.xlu0 %4451, %v393
      %v4453 = vpop.permute.xlu0 %4452
      %4456 = vset.pattern.permute.xlu0 0
      %4457 = vperm.xlu0 %4456, %v394
      %v4458 = vpop.permute.xlu0 %4457
      %4461 = vset.pattern.permute.xlu0 0
      %4462 = vperm.xlu0 %4461, %v395
      %v4463 = vpop.permute.xlu0 %4462
      %4466 = vset.pattern.permute.xlu0 0
      %4467 = vperm.xlu0 %4466, %v396
      %v4468 = vpop.permute.xlu0 %4467
      %v4470 = vmul.f32 %v4254, %v4293
      %v4471 = vmul.f32 %v4255, %v4298
      %v4472 = vmul.f32 %v4256, %v4303
      %v4473 = vmul.f32 %v4257, %v4308
      %v4474 = vmul.f32 %v4258, %v4313
      %v4475 = vmul.f32 %v4259, %v4318
      %v4476 = vmul.f32 %v4260, %v4323
      %v4477 = vmul.f32 %v4261, %v4328
      %v4478 = vmul.f32 %v4262, %v4333
      %v4479 = vmul.f32 %v4263, %v4338
      %v4480 = vmul.f32 %v4264, %v4343
      %v4481 = vmul.f32 %v4265, %v4348
      %v4482 = vmul.f32 %v4266, %v4353
      %v4483 = vmul.f32 %v4267, %v4358
      %v4484 = vmul.f32 %v4268, %v4363
      %v4485 = vmul.f32 %v4269, %v4368
      %v4486 = vmul.f32 %v4270, %v4373
      %v4487 = vmul.f32 %v4271, %v4378
      %v4488 = vmul.f32 %v4272, %v4383
      %v4489 = vmul.f32 %v4273, %v4388
      %v4490 = vmul.f32 %v4274, %v4393
      %v4491 = vmul.f32 %v4275, %v4398
      %v4492 = vmul.f32 %v4276, %v4403
      %v4493 = vmul.f32 %v4277, %v4408
      %v4494 = vmul.f32 %v4278, %v4413
      %v4495 = vmul.f32 %v4279, %v4418
      %v4496 = vmul.f32 %v4280, %v4423
      %v4497 = vmul.f32 %v4281, %v4428
      %v4498 = vmul.f32 %v4282, %v4433
      %v4499 = vmul.f32 %v4283, %v4438
      %v4500 = vmul.f32 %v4284, %v4443
      %v4501 = vmul.f32 %v4285, %v4448
      %v4502 = vmul.f32 %v4286, %v4453
      %v4503 = vmul.f32 %v4287, %v4458
      %v4504 = vmul.f32 %v4288, %v4463
      %v4505 = vmul.f32 %v4289, %v4468
      %vm4506 = vcmask 785408
      %4507 = vst.msk [vmem:[#allocation2] sm:$0xff] %vm4506, 0.0
      %4508 = vst.msk [vmem:[#allocation2 + $0x8] sm:$0xff] %vm4506, 0.0
      %4509 = vst.msk [vmem:[#allocation2 + $0x10] sm:$0xff] %vm4506, 0.0
      %4510 = vst.msk [vmem:[#allocation2 + $0x18] sm:$0xff] %vm4506, 0.0
      %4511 = vst.msk [vmem:[#allocation2 + $0x20] sm:$0xff] %vm4506, 0.0
      %4512 = vst.msk [vmem:[#allocation2 + $0x28] sm:$0xff] %vm4506, 0.0
      %4513 = vst.msk [vmem:[#allocation2 + $0x30] sm:$0xff] %vm4506, 0.0
      %4514 = vst.msk [vmem:[#allocation2 + $0x38] sm:$0xff] %vm4506, 0.0
      %4515 = vst.msk [vmem:[#allocation2 + $0x40] sm:$0xff] %vm4506, 0.0
      %4516 = vst.msk [vmem:[#allocation2 + $0x48] sm:$0xff] %vm4506, 0.0
      %4517 = vst.msk [vmem:[#allocation2 + $0x50] sm:$0xff] %vm4506, 0.0
      %4518 = vst.msk [vmem:[#allocation2 + $0x58] sm:$0xff] %vm4506, 0.0
      %4519 = vst.msk [vmem:[#allocation2 + $0x60] sm:$0xff] %vm4506, 0.0
      %4520 = vst.msk [vmem:[#allocation2 + $0x68] sm:$0xff] %vm4506, 0.0
      %4521 = vst.msk [vmem:[#allocation2 + $0x70] sm:$0xff] %vm4506, 0.0
      %4522 = vst.msk [vmem:[#allocation2 + $0x78] sm:$0xff] %vm4506, 0.0
      %4523 = vst.msk [vmem:[#allocation2 + $0x80] sm:$0xff] %vm4506, 0.0
      %4524 = vst.msk [vmem:[#allocation2 + $0x88] sm:$0xff] %vm4506, 0.0
      %4525 = vst.msk [vmem:[#allocation2 + $0x90] sm:$0xff] %vm4506, 0.0
      %4526 = vst.msk [vmem:[#allocation2 + $0x98] sm:$0xff] %vm4506, 0.0
      %4527 = vst.msk [vmem:[#allocation2 + $0xa0] sm:$0xff] %vm4506, 0.0
      %4528 = vst.msk [vmem:[#allocation2 + $0xa8] sm:$0xff] %vm4506, 0.0
      %4529 = vst.msk [vmem:[#allocation2 + $0xb0] sm:$0xff] %vm4506, 0.0
      %4530 = vst.msk [vmem:[#allocation2 + $0xb8] sm:$0xff] %vm4506, 0.0
      %4531 = vst.msk [vmem:[#allocation2 + $0xc0] sm:$0xff] %vm4506, 0.0
      %4532 = vst.msk [vmem:[#allocation2 + $0xc8] sm:$0xff] %vm4506, 0.0
      %4533 = vst.msk [vmem:[#allocation2 + $0xd0] sm:$0xff] %vm4506, 0.0
      %4534 = vst.msk [vmem:[#allocation2 + $0xd8] sm:$0xff] %vm4506, 0.0
      %4535 = vst.msk [vmem:[#allocation2 + $0xe0] sm:$0xff] %vm4506, 0.0
      %4536 = vst.msk [vmem:[#allocation2 + $0xe8] sm:$0xff] %vm4506, 0.0
      %4537 = vst.msk [vmem:[#allocation2 + $0xf0] sm:$0xff] %vm4506, 0.0
      %4538 = vst.msk [vmem:[#allocation2 + $0xf8] sm:$0xff] %vm4506, 0.0
      %4539 = vst.msk [vmem:[#allocation2 + $0x100] sm:$0xff] %vm4506, 0.0
      %4540 = vst.msk [vmem:[#allocation2 + $0x108] sm:$0xff] %vm4506, 0.0
      %4541 = vst.msk [vmem:[#allocation2 + $0x110] sm:$0xff] %vm4506, 0.0
      %4542 = vst.msk [vmem:[#allocation2 + $0x118] sm:$0xff] %vm4506, 0.0
      %4543 = vst.msk [vmem:[#allocation2 + $0x120] sm:$0xff] %vm4506, 0.0
      %4544 = vst.msk [vmem:[#allocation2 + $0x128] sm:$0xff] %vm4506, 0.0
      %4545 = vst.msk [vmem:[#allocation2 + $0x130] sm:$0xff] %vm4506, 0.0
      %4546 = vst.msk [vmem:[#allocation2 + $0x138] sm:$0xff] %vm4506, 0.0
      %4547 = vst.msk [vmem:[#allocation2 + $0x140] sm:$0xff] %vm4506, 0.0
      %4548 = vst.msk [vmem:[#allocation2 + $0x13] sm:$0xff] %vm4506, %v4470
      %4549 = vst.msk [vmem:[#allocation2 + $0x1b] sm:$0xff] %vm4506, %v4471
      %4550 = vst.msk [vmem:[#allocation2 + $0x23] sm:$0xff] %vm4506, %v4472
      %4551 = vst.msk [vmem:[#allocation2 + $0x2b] sm:$0xff] %vm4506, %v4473
      %4552 = vst.msk [vmem:[#allocation2 + $0x33] sm:$0xff] %vm4506, %v4474
      %4553 = vst.msk [vmem:[#allocation2 + $0x3b] sm:$0xff] %vm4506, %v4475
      %4554 = vst.msk [vmem:[#allocation2 + $0x43] sm:$0xff] %vm4506, %v4476
      %4555 = vst.msk [vmem:[#allocation2 + $0x4b] sm:$0xff] %vm4506, %v4477
      %4556 = vst.msk [vmem:[#allocation2 + $0x53] sm:$0xff] %vm4506, %v4478
      %4557 = vst.msk [vmem:[#allocation2 + $0x5b] sm:$0xff] %vm4506, %v4479
      %4558 = vst.msk [vmem:[#allocation2 + $0x63] sm:$0xff] %vm4506, %v4480
      %4559 = vst.msk [vmem:[#allocation2 + $0x6b] sm:$0xff] %vm4506, %v4481
      %4560 = vst.msk [vmem:[#allocation2 + $0x73] sm:$0xff] %vm4506, %v4482
      %4561 = vst.msk [vmem:[#allocation2 + $0x7b] sm:$0xff] %vm4506, %v4483
      %4562 = vst.msk [vmem:[#allocation2 + $0x83] sm:$0xff] %vm4506, %v4484
      %4563 = vst.msk [vmem:[#allocation2 + $0x8b] sm:$0xff] %vm4506, %v4485
      %4564 = vst.msk [vmem:[#allocation2 + $0x93] sm:$0xff] %vm4506, %v4486
      %4565 = vst.msk [vmem:[#allocation2 + $0x9b] sm:$0xff] %vm4506, %v4487
      %4566 = vst.msk [vmem:[#allocation2 + $0xa3] sm:$0xff] %vm4506, %v4488
      %4567 = vst.msk [vmem:[#allocation2 + $0xab] sm:$0xff] %vm4506, %v4489
      %4568 = vst.msk [vmem:[#allocation2 + $0xb3] sm:$0xff] %vm4506, %v4490
      %4569 = vst.msk [vmem:[#allocation2 + $0xbb] sm:$0xff] %vm4506, %v4491
      %4570 = vst.msk [vmem:[#allocation2 + $0xc3] sm:$0xff] %vm4506, %v4492
      %4571 = vst.msk [vmem:[#allocation2 + $0xcb] sm:$0xff] %vm4506, %v4493
      %4572 = vst.msk [vmem:[#allocation2 + $0xd3] sm:$0xff] %vm4506, %v4494
      %4573 = vst.msk [vmem:[#allocation2 + $0xdb] sm:$0xff] %vm4506, %v4495
      %4574 = vst.msk [vmem:[#allocation2 + $0xe3] sm:$0xff] %vm4506, %v4496
      %4575 = vst.msk [vmem:[#allocation2 + $0xeb] sm:$0xff] %vm4506, %v4497
      %4576 = vst.msk [vmem:[#allocation2 + $0xf3] sm:$0xff] %vm4506, %v4498
      %4577 = vst.msk [vmem:[#allocation2 + $0xfb] sm:$0xff] %vm4506, %v4499
      %4578 = vst.msk [vmem:[#allocation2 + $0x103] sm:$0xff] %vm4506, %v4500
      %4579 = vst.msk [vmem:[#allocation2 + $0x10b] sm:$0xff] %vm4506, %v4501
      %4580 = vst.msk [vmem:[#allocation2 + $0x113] sm:$0xff] %vm4506, %v4502
      %4581 = vst.msk [vmem:[#allocation2 + $0x11b] sm:$0xff] %vm4506, %v4503
      %4582 = vst.msk [vmem:[#allocation2 + $0x123] sm:$0xff] %vm4506, %v4504
      %4583 = vst.msk [vmem:[#allocation2 + $0x12b] sm:$0xff] %vm4506, %v4505
      %v4584 = vld [vmem:[#allocation2] sm:$0xff]
      %v4585 = vld [vmem:[#allocation2 + $0x8] sm:$0xff]
      %v4586 = vld [vmem:[#allocation2 + $0x10] sm:$0xff]
      %v4587 = vld [vmem:[#allocation2 + $0x18] sm:$0xff]
      %v4588 = vld [vmem:[#allocation2 + $0x20] sm:$0xff]
      %v4589 = vld [vmem:[#allocation2 + $0x28] sm:$0xff]
      %v4590 = vld [vmem:[#allocation2 + $0x30] sm:$0xff]
      %v4591 = vld [vmem:[#allocation2 + $0x38] sm:$0xff]
      %v4592 = vld [vmem:[#allocation2 + $0x40] sm:$0xff]
      %v4593 = vld [vmem:[#allocation2 + $0x48] sm:$0xff]
      %v4594 = vld [vmem:[#allocation2 + $0x50] sm:$0xff]
      %v4595 = vld [vmem:[#allocation2 + $0x58] sm:$0xff]
      %v4596 = vld [vmem:[#allocation2 + $0x60] sm:$0xff]
      %v4597 = vld [vmem:[#allocation2 + $0x68] sm:$0xff]
      %v4598 = vld [vmem:[#allocation2 + $0x70] sm:$0xff]
      %v4599 = vld [vmem:[#allocation2 + $0x78] sm:$0xff]
      %v4600 = vld [vmem:[#allocation2 + $0x80] sm:$0xff]
      %v4601 = vld [vmem:[#allocation2 + $0x88] sm:$0xff]
      %v4602 = vld [vmem:[#allocation2 + $0x90] sm:$0xff]
      %v4603 = vld [vmem:[#allocation2 + $0x98] sm:$0xff]
      %v4604 = vld [vmem:[#allocation2 + $0xa0] sm:$0xff]
      %v4605 = vld [vmem:[#allocation2 + $0xa8] sm:$0xff]
      %v4606 = vld [vmem:[#allocation2 + $0xb0] sm:$0xff]
      %v4607 = vld [vmem:[#allocation2 + $0xb8] sm:$0xff]
      %v4608 = vld [vmem:[#allocation2 + $0xc0] sm:$0xff]
      %v4609 = vld [vmem:[#allocation2 + $0xc8] sm:$0xff]
      %v4610 = vld [vmem:[#allocation2 + $0xd0] sm:$0xff]
      %v4611 = vld [vmem:[#allocation2 + $0xd8] sm:$0xff]
      %v4612 = vld [vmem:[#allocation2 + $0xe0] sm:$0xff]
      %v4613 = vld [vmem:[#allocation2 + $0xe8] sm:$0xff]
      %v4614 = vld [vmem:[#allocation2 + $0xf0] sm:$0xff]
      %v4615 = vld [vmem:[#allocation2 + $0xf8] sm:$0xff]
      %v4616 = vld [vmem:[#allocation2 + $0x100] sm:$0xff]
      %v4617 = vld [vmem:[#allocation2 + $0x108] sm:$0xff]
      %v4618 = vld [vmem:[#allocation2 + $0x110] sm:$0xff]
      %v4619 = vld [vmem:[#allocation2 + $0x118] sm:$0xff]
      %v4620 = vpack.c.bf16 %v4585, %v4584
      %v4621 = vpack.c.bf16 %v4587, %v4586
      %v4622 = vpack.c.bf16 %v4589, %v4588
      %v4623 = vpack.c.bf16 %v4591, %v4590
      %v4624 = vpack.c.bf16 %v4593, %v4592
      %v4625 = vpack.c.bf16 %v4595, %v4594
      %v4626 = vpack.c.bf16 %v4597, %v4596
      %v4627 = vpack.c.bf16 %v4599, %v4598
      %v4628 = vpack.c.bf16 %v4601, %v4600
      %v4629 = vpack.c.bf16 %v4603, %v4602
      %v4630 = vpack.c.bf16 %v4605, %v4604
      %v4631 = vpack.c.bf16 %v4607, %v4606
      %v4632 = vpack.c.bf16 %v4609, %v4608
      %v4633 = vpack.c.bf16 %v4611, %v4610
      %v4634 = vpack.c.bf16 %v4613, %v4612
      %v4635 = vpack.c.bf16 %v4615, %v4614
      %v4636 = vpack.c.bf16 %v4617, %v4616
      %v4637 = vpack.c.bf16 %v4619, %v4618
      %v4638 = vld [vmem:[%s5] sm:$0xf]
      %v4639 = vld [vmem:[%s5 + $0x4] sm:$0xf]
      %v4640 = vld [vmem:[%s5 + $0x8] sm:$0xf]
      %v4641 = vld [vmem:[%s5 + $0xc] sm:$0xf]
      %v4642 = vld [vmem:[%s5 + $0x10] sm:$0xf]
      %v4643 = vld [vmem:[%s5 + $0x14] sm:$0xf]
      %v4644 = vld [vmem:[%s5 + $0x18] sm:$0xf]
      %v4645 = vld [vmem:[%s5 + $0x1c] sm:$0xf]
      %v4646 = vld [vmem:[%s5 + $0x20] sm:$0xf]
      %v4647 = vld [vmem:[%s5 + $0x24] sm:$0xf]
      %v4648 = vld [vmem:[%s5 + $0x28] sm:$0xf]
      %v4649 = vld [vmem:[%s5 + $0x2c] sm:$0xf]
      %v4650 = vld [vmem:[#allocation2 + $0x1] sm:$0xff]
      %v4651 = vld [vmem:[#allocation2 + $0x9] sm:$0xff]
      %v4652 = vld [vmem:[#allocation2 + $0x11] sm:$0xff]
      %v4653 = vld [vmem:[#allocation2 + $0x19] sm:$0xff]
      %v4654 = vld [vmem:[#allocation2 + $0x21] sm:$0xff]
      %v4655 = vld [vmem:[#allocation2 + $0x29] sm:$0xff]
      %v4656 = vld [vmem:[#allocation2 + $0x31] sm:$0xff]
      %v4657 = vld [vmem:[#allocation2 + $0x39] sm:$0xff]
      %v4658 = vld [vmem:[#allocation2 + $0x41] sm:$0xff]
      %v4659 = vld [vmem:[#allocation2 + $0x49] sm:$0xff]
      %v4660 = vld [vmem:[#allocation2 + $0x51] sm:$0xff]
      %v4661 = vld [vmem:[#allocation2 + $0x59] sm:$0xff]
      %v4662 = vld [vmem:[#allocation2 + $0x61] sm:$0xff]
      %v4663 = vld [vmem:[#allocation2 + $0x69] sm:$0xff]
      %v4664 = vld [vmem:[#allocation2 + $0x71] sm:$0xff]
      %v4665 = vld [vmem:[#allocation2 + $0x79] sm:$0xff]
      %v4666 = vld [vmem:[#allocation2 + $0x81] sm:$0xff]
      %v4667 = vld [vmem:[#allocation2 + $0x89] sm:$0xff]
      %v4668 = vld [vmem:[#allocation2 + $0x91] sm:$0xff]
      %v4669 = vld [vmem:[#allocation2 + $0x99] sm:$0xff]
      %v4670 = vld [vmem:[#allocation2 + $0xa1] sm:$0xff]
      %v4671 = vld [vmem:[#allocation2 + $0xa9] sm:$0xff]
      %v4672 = vld [vmem:[#allocation2 + $0xb1] sm:$0xff]
      %v4673 = vld [vmem:[#allocation2 + $0xb9] sm:$0xff]
      %v4674 = vld [vmem:[#allocation2 + $0xc1] sm:$0xff]
      %v4675 = vld [vmem:[#allocation2 + $0xc9] sm:$0xff]
      %v4676 = vld [vmem:[#allocation2 + $0xd1] sm:$0xff]
      %v4677 = vld [vmem:[#allocation2 + $0xd9] sm:$0xff]
      %v4678 = vld [vmem:[#allocation2 + $0xe1] sm:$0xff]
      %v4679 = vld [vmem:[#allocation2 + $0xe9] sm:$0xff]
      %v4680 = vld [vmem:[#allocation2 + $0xf1] sm:$0xff]
      %v4681 = vld [vmem:[#allocation2 + $0xf9] sm:$0xff]
      %v4682 = vld [vmem:[#allocation2 + $0x101] sm:$0xff]
      %v4683 = vld [vmem:[#allocation2 + $0x109] sm:$0xff]
      %v4684 = vld [vmem:[#allocation2 + $0x111] sm:$0xff]
      %v4685 = vld [vmem:[#allocation2 + $0x119] sm:$0xff]
      %v4686 = vpack.c.bf16 %v4651, %v4650
      %v4687 = vpack.c.bf16 %v4653, %v4652
      %v4688 = vpack.c.bf16 %v4655, %v4654
      %v4689 = vpack.c.bf16 %v4657, %v4656
      %v4690 = vpack.c.bf16 %v4659, %v4658
      %v4691 = vpack.c.bf16 %v4661, %v4660
      %v4692 = vpack.c.bf16 %v4663, %v4662
      %v4693 = vpack.c.bf16 %v4665, %v4664
      %v4694 = vpack.c.bf16 %v4667, %v4666
      %v4695 = vpack.c.bf16 %v4669, %v4668
      %v4696 = vpack.c.bf16 %v4671, %v4670
      %v4697 = vpack.c.bf16 %v4673, %v4672
      %v4698 = vpack.c.bf16 %v4675, %v4674
      %v4699 = vpack.c.bf16 %v4677, %v4676
      %v4700 = vpack.c.bf16 %v4679, %v4678
      %v4701 = vpack.c.bf16 %v4681, %v4680
      %v4702 = vpack.c.bf16 %v4683, %v4682
      %v4703 = vpack.c.bf16 %v4685, %v4684
      %s4704 = scalar_lea.vmem %s5, 48
      %v4705 = vld [vmem:[%s4704] sm:$0xf]
      %v4706 = vld [vmem:[%s4704 + $0x4] sm:$0xf]
      %v4707 = vld [vmem:[%s4704 + $0x8] sm:$0xf]
      %v4708 = vld [vmem:[%s4704 + $0xc] sm:$0xf]
      %v4709 = vld [vmem:[%s4704 + $0x10] sm:$0xf]
      %v4710 = vld [vmem:[%s4704 + $0x14] sm:$0xf]
      %v4711 = vld [vmem:[%s4704 + $0x18] sm:$0xf]
      %v4712 = vld [vmem:[%s4704 + $0x1c] sm:$0xf]
      %v4713 = vld [vmem:[%s4704 + $0x20] sm:$0xf]
      %v4714 = vld [vmem:[%s4704 + $0x24] sm:$0xf]
      %v4715 = vld [vmem:[%s4704 + $0x28] sm:$0xf]
      %v4716 = vld [vmem:[%s4704 + $0x2c] sm:$0xf]
      %v4729 = vunpack.c.l.b16 %v4705
      %v4730 = vunpack.c.l.b16 %v4706
      %v4731 = vunpack.c.l.b16 %v4707
      %v4732 = vunpack.c.l.b16 %v4708
      %v4733 = vunpack.c.l.b16 %v4709
      %v4734 = vunpack.c.l.b16 %v4710
      %v4735 = vunpack.c.l.b16 %v4711
      %v4736 = vunpack.c.l.b16 %v4712
      %v4737 = vunpack.c.l.b16 %v4713
      %v4738 = vunpack.c.l.b16 %v4714
      %v4739 = vunpack.c.l.b16 %v4715
      %v4740 = vunpack.c.l.b16 %v4716
      %v4741 = vpack.c.b16 %v4730, %v4729
      %v4742 = vpack.c.b16 %v4732, %v4731
      %v4743 = vpack.c.b16 %v4734, %v4733
      %v4744 = vpack.c.b16 %v4736, %v4735
      %v4745 = vpack.c.b16 %v4738, %v4737
      %v4746 = vpack.c.b16 %v4740, %v4739
      %v4754 = vsel %vm4506, %v4686, 0
      %v4757 = vsel %vm4506, %v4687, 0
      %v4760 = vsel %vm4506, %v4688, 0
      %v4763 = vsel %vm4506, %v4689, 0
      %v4766 = vsel %vm4506, %v4690, 0
      %v4769 = vsel %vm4506, %v4691, 0
      %v4772 = vsel %vm4506, %v4692, 0
      %v4775 = vsel %vm4506, %v4693, 0
      %v4778 = vsel %vm4506, %v4694, 0
      %v4781 = vsel %vm4506, %v4695, 0
      %v4784 = vsel %vm4506, %v4696, 0
      %v4787 = vsel %vm4506, %v4697, 0
      %v4790 = vsel %vm4506, %v4698, 0
      %v4793 = vsel %vm4506, %v4699, 0
      %v4796 = vsel %vm4506, %v4700, 0
      %v4799 = vsel %vm4506, %v4701, 0
      %v4802 = vsel %vm4506, %v4702, 0
      %v4805 = vsel %vm4506, %v4703, 0
      %4807 = vmatprep.subr.bf16.mxu0 0
      %4808 = vmatpush1.bf16.msra.mxu0 %v4741
      %4809 = vmatprep.subr.bf16.mxu0 0
      %4810 = vmatpush1.bf16.msra.mxu0 %v4742
      %4811 = vmatprep.subr.bf16.mxu0 0
      %4812 = vmatpush1.bf16.msra.mxu0 %v4743
      %4813 = vmatprep.subr.bf16.mxu0 0
      %4814 = vmatpush1.bf16.msra.mxu0 %v4744
      %4815 = vmatprep.subr.bf16.mxu0 0
      %4816 = vmatpush1.bf16.msra.mxu0 %v4745
      %4817 = vmatprep.subr.bf16.mxu0 0
      %4818 = vmatpush1.bf16.msra.mxu0 %v4746
      %4819 = vmatprep.subr.bf16.mxu0 0
      %4820 = vmatpush1.bf16.msra.mxu0 0
      %4821 = vmatprep.subr.bf16.mxu0 0
      %4822 = vmatpush1.bf16.msra.mxu0 0
      %4823 = vmatprep.subr.bf16.mxu0 0
      %4824 = vmatpush1.bf16.msra.mxu0 0
      %4825 = vmatprep.subr.bf16.mxu0 0
      %4826 = vmatpush1.bf16.msra.mxu0 0
      %4827 = vmatprep.subr.bf16.mxu0 0
      %4828 = vmatpush1.bf16.msra.mxu0 0
      %4829 = vmatprep.subr.bf16.mxu0 0
      %4830 = vmatpush1.bf16.msra.mxu0 0
      %4831 = vmatprep.subr.bf16.mxu0 0
      %4832 = vmatpush1.bf16.msra.mxu0 0
      %4833 = vmatprep.subr.bf16.mxu0 0
      %4834 = vmatpush1.bf16.msra.mxu0 0
      %4835 = vmatprep.subr.bf16.mxu0 0
      %4836 = vmatpush1.bf16.msra.mxu0 0
      %4837 = vmatprep.subr.bf16.mxu0 0
      %4838 = vmatpush1.bf16.msra.mxu0 0
      %4839 = vmatprep.mubr.bf16.mxu0 0
      %4840 = vmatmul.mubr.bf16.gmra.mrb[0].mxu0 %v4754
      %v4841 = vpop.f32.mrb[0].mxu0
      %v4842 = vadd.f32 0.0, %v4841
      %v4843 = vpop.f32.mrb[0].mxu0
      %v4844 = vpop.f32.mrb[0].mxu0
      %v4845 = vadd.f32 0.0, %v4844
      %v4846 = vpop.f32.mrb[0].mxu0
      %4847 = vmatprep.mubr.bf16.mxu0 0
      %4848 = vmatmul.mubr.bf16.gmra.mrb[0].mxu0 %v4757
      %v4849 = vpop.f32.mrb[0].mxu0
      %v4850 = vadd.f32 0.0, %v4849
      %v4851 = vpop.f32.mrb[0].mxu0
      %v4852 = vpop.f32.mrb[0].mxu0
      %v4853 = vadd.f32 0.0, %v4852
      %v4854 = vpop.f32.mrb[0].mxu0
      %4855 = vmatprep.mubr.bf16.mxu0 0
      %4856 = vmatmul.mubr.bf16.gmra.mrb[0].mxu0 %v4760
      %v4857 = vpop.f32.mrb[0].mxu0
      %v4858 = vadd.f32 0.0, %v4857
      %v4859 = vpop.f32.mrb[0].mxu0
      %v4860 = vpop.f32.mrb[0].mxu0
      %v4861 = vadd.f32 0.0, %v4860
      %v4862 = vpop.f32.mrb[0].mxu0
      %4863 = vmatprep.mubr.bf16.mxu0 0
      %4864 = vmatmul.mubr.bf16.gmra.mrb[0].mxu0 %v4763
      %v4865 = vpop.f32.mrb[0].mxu0
      %v4866 = vadd.f32 0.0, %v4865
      %v4867 = vpop.f32.mrb[0].mxu0
      %v4868 = vpop.f32.mrb[0].mxu0
      %v4869 = vadd.f32 0.0, %v4868
      %v4870 = vpop.f32.mrb[0].mxu0
      %4871 = vmatprep.mubr.bf16.mxu0 0
      %4872 = vmatmul.mubr.bf16.gmra.mrb[0].mxu0 %v4766
      %v4873 = vpop.f32.mrb[0].mxu0
      %v4874 = vadd.f32 0.0, %v4873
      %v4875 = vpop.f32.mrb[0].mxu0
      %v4876 = vpop.f32.mrb[0].mxu0
      %v4877 = vadd.f32 0.0, %v4876
      %v4878 = vpop.f32.mrb[0].mxu0
      %4879 = vmatprep.mubr.bf16.mxu0 0
      %4880 = vmatmul.mubr.bf16.gmra.mrb[0].mxu0 %v4769
      %v4881 = vpop.f32.mrb[0].mxu0
      %v4882 = vadd.f32 0.0, %v4881
      %v4883 = vpop.f32.mrb[0].mxu0
      %v4884 = vpop.f32.mrb[0].mxu0
      %v4885 = vadd.f32 0.0, %v4884
      %v4886 = vpop.f32.mrb[0].mxu0
      %4887 = vmatprep.mubr.bf16.mxu0 0
      %4888 = vmatmul.mubr.bf16.gmra.mrb[0].mxu0 %v4772
      %v4889 = vpop.f32.mrb[0].mxu0
      %v4890 = vadd.f32 0.0, %v4889
      %v4891 = vpop.f32.mrb[0].mxu0
      %v4892 = vpop.f32.mrb[0].mxu0
      %v4893 = vadd.f32 0.0, %v4892
      %v4894 = vpop.f32.mrb[0].mxu0
      %4895 = vmatprep.mubr.bf16.mxu0 0
      %4896 = vmatmul.mubr.bf16.gmra.mrb[0].mxu0 %v4775
      %v4897 = vpop.f32.mrb[0].mxu0
      %v4898 = vadd.f32 0.0, %v4897
      %v4899 = vpop.f32.mrb[0].mxu0
      %v4900 = vpop.f32.mrb[0].mxu0
      %v4901 = vadd.f32 0.0, %v4900
      %v4902 = vpop.f32.mrb[0].mxu0
      %4903 = vmatprep.mubr.bf16.mxu0 0
      %4904 = vmatmul.mubr.bf16.gmra.mrb[0].mxu0 %v4778
      %v4905 = vpop.f32.mrb[0].mxu0
      %v4906 = vadd.f32 0.0, %v4905
      %v4907 = vpop.f32.mrb[0].mxu0
      %v4908 = vpop.f32.mrb[0].mxu0
      %v4909 = vadd.f32 0.0, %v4908
      %v4910 = vpop.f32.mrb[0].mxu0
      %4911 = vmatprep.mubr.bf16.mxu0 0
      %4912 = vmatmul.mubr.bf16.gmra.mrb[0].mxu0 %v4781
      %v4913 = vpop.f32.mrb[0].mxu0
      %v4914 = vadd.f32 0.0, %v4913
      %v4915 = vpop.f32.mrb[0].mxu0
      %v4916 = vpop.f32.mrb[0].mxu0
      %v4917 = vadd.f32 0.0, %v4916
      %v4918 = vpop.f32.mrb[0].mxu0
      %4919 = vmatprep.mubr.bf16.mxu0 0
      %4920 = vmatmul.mubr.bf16.gmra.mrb[0].mxu0 %v4784
      %v4921 = vpop.f32.mrb[0].mxu0
      %v4922 = vadd.f32 0.0, %v4921
      %v4923 = vpop.f32.mrb[0].mxu0
      %v4924 = vpop.f32.mrb[0].mxu0
      %v4925 = vadd.f32 0.0, %v4924
      %v4926 = vpop.f32.mrb[0].mxu0
      %4927 = vmatprep.mubr.bf16.mxu0 0
      %4928 = vmatmul.mubr.bf16.gmra.mrb[0].mxu0 %v4787
      %v4929 = vpop.f32.mrb[0].mxu0
      %v4930 = vadd.f32 0.0, %v4929
      %v4931 = vpop.f32.mrb[0].mxu0
      %v4932 = vpop.f32.mrb[0].mxu0
      %v4933 = vadd.f32 0.0, %v4932
      %v4934 = vpop.f32.mrb[0].mxu0
      %4935 = vmatprep.mubr.bf16.mxu0 0
      %4936 = vmatmul.mubr.bf16.gmra.mrb[0].mxu0 %v4790
      %v4937 = vpop.f32.mrb[0].mxu0
      %v4938 = vadd.f32 0.0, %v4937
      %v4939 = vpop.f32.mrb[0].mxu0
      %v4940 = vpop.f32.mrb[0].mxu0
      %v4941 = vadd.f32 0.0, %v4940
      %v4942 = vpop.f32.mrb[0].mxu0
      %4943 = vmatprep.mubr.bf16.mxu0 0
      %4944 = vmatmul.mubr.bf16.gmra.mrb[0].mxu0 %v4793
      %v4945 = vpop.f32.mrb[0].mxu0
      %v4946 = vadd.f32 0.0, %v4945
      %v4947 = vpop.f32.mrb[0].mxu0
      %v4948 = vpop.f32.mrb[0].mxu0
      %v4949 = vadd.f32 0.0, %v4948
      %v4950 = vpop.f32.mrb[0].mxu0
      %4951 = vmatprep.mubr.bf16.mxu0 0
      %4952 = vmatmul.mubr.bf16.gmra.mrb[0].mxu0 %v4796
      %v4953 = vpop.f32.mrb[0].mxu0
      %v4954 = vadd.f32 0.0, %v4953
      %v4955 = vpop.f32.mrb[0].mxu0
      %v4956 = vpop.f32.mrb[0].mxu0
      %v4957 = vadd.f32 0.0, %v4956
      %v4958 = vpop.f32.mrb[0].mxu0
      %4959 = vmatprep.mubr.bf16.mxu0 0
      %4960 = vmatmul.mubr.bf16.gmra.mrb[0].mxu0 %v4799
      %v4961 = vpop.f32.mrb[0].mxu0
      %v4962 = vadd.f32 0.0, %v4961
      %v4963 = vpop.f32.mrb[0].mxu0
      %v4964 = vpop.f32.mrb[0].mxu0
      %v4965 = vadd.f32 0.0, %v4964
      %v4966 = vpop.f32.mrb[0].mxu0
      %4967 = vmatprep.mubr.bf16.mxu0 0
      %4968 = vmatmul.mubr.bf16.gmra.mrb[0].mxu0 %v4802
      %v4969 = vpop.f32.mrb[0].mxu0
      %v4970 = vadd.f32 0.0, %v4969
      %v4971 = vpop.f32.mrb[0].mxu0
      %v4972 = vpop.f32.mrb[0].mxu0
      %v4973 = vadd.f32 0.0, %v4972
      %v4974 = vpop.f32.mrb[0].mxu0
      %4975 = vmatprep.mubr.bf16.mxu0 0
      %4976 = vmatmul.mubr.bf16.gmra.mrb[0].mxu0 %v4805
      %v4977 = vpop.f32.mrb[0].mxu0
      %v4978 = vadd.f32 0.0, %v4977
      %v4979 = vpop.f32.mrb[0].mxu0
      %v4980 = vpop.f32.mrb[0].mxu0
      %v4981 = vadd.f32 0.0, %v4980
      %v4982 = vpop.f32.mrb[0].mxu0
      %4983 = vdwg.mxu0
      %v4996 = vunpack.c.l.b16 %v4638
      %v4997 = vunpack.c.l.b16 %v4639
      %v4998 = vunpack.c.l.b16 %v4640
      %v4999 = vunpack.c.l.b16 %v4641
      %v5000 = vunpack.c.l.b16 %v4642
      %v5001 = vunpack.c.l.b16 %v4643
      %v5002 = vunpack.c.l.b16 %v4644
      %v5003 = vunpack.c.l.b16 %v4645
      %v5004 = vunpack.c.l.b16 %v4646
      %v5005 = vunpack.c.l.b16 %v4647
      %v5006 = vunpack.c.l.b16 %v4648
      %v5007 = vunpack.c.l.b16 %v4649
      %v5008 = vpack.c.b16 %v4997, %v4996
      %v5009 = vpack.c.b16 %v4999, %v4998
      %v5010 = vpack.c.b16 %v5001, %v5000
      %v5011 = vpack.c.b16 %v5003, %v5002
      %v5012 = vpack.c.b16 %v5005, %v5004
      %v5013 = vpack.c.b16 %v5007, %v5006
      %v5021 = vsel %vm4506, %v4620, 0
      %v5024 = vsel %vm4506, %v4621, 0
      %v5027 = vsel %vm4506, %v4622, 0
      %v5030 = vsel %vm4506, %v4623, 0
      %v5033 = vsel %vm4506, %v4624, 0
      %v5036 = vsel %vm4506, %v4625, 0
      %v5039 = vsel %vm4506, %v4626, 0
      %v5042 = vsel %vm4506, %v4627, 0
      %v5045 = vsel %vm4506, %v4628, 0
      %v5048 = vsel %vm4506, %v4629, 0
      %v5051 = vsel %vm4506, %v4630, 0
      %v5054 = vsel %vm4506, %v4631, 0
      %v5057 = vsel %vm4506, %v4632, 0
      %v5060 = vsel %vm4506, %v4633, 0
      %v5063 = vsel %vm4506, %v4634, 0
      %v5066 = vsel %vm4506, %v4635, 0
      %v5069 = vsel %vm4506, %v4636, 0
      %v5072 = vsel %vm4506, %v4637, 0
      %5074 = vmatprep.subr.bf16.mxu0 0
      %5075 = vmatpush1.bf16.msra.mxu0 %v5008
      %5076 = vmatprep.subr.bf16.mxu0 0
      %5077 = vmatpush1.bf16.msra.mxu0 %v5009
      %5078 = vmatprep.subr.bf16.mxu0 0
      %5079 = vmatpush1.bf16.msra.mxu0 %v5010
      %5080 = vmatprep.subr.bf16.mxu0 0
      %5081 = vmatpush1.bf16.msra.mxu0 %v5011
      %5082 = vmatprep.subr.bf16.mxu0 0
      %5083 = vmatpush1.bf16.msra.mxu0 %v5012
      %5084 = vmatprep.subr.bf16.mxu0 0
      %5085 = vmatpush1.bf16.msra.mxu0 %v5013
      %5086 = vmatprep.subr.bf16.mxu0 0
      %5087 = vmatpush1.bf16.msra.mxu0 0
      %5088 = vmatprep.subr.bf16.mxu0 0
      %5089 = vmatpush1.bf16.msra.mxu0 0
      %5090 = vmatprep.subr.bf16.mxu0 0
      %5091 = vmatpush1.bf16.msra.mxu0 0
      %5092 = vmatprep.subr.bf16.mxu0 0
      %5093 = vmatpush1.bf16.msra.mxu0 0
      %5094 = vmatprep.subr.bf16.mxu0 0
      %5095 = vmatpush1.bf16.msra.mxu0 0
      %5096 = vmatprep.subr.bf16.mxu0 0
      %5097 = vmatpush1.bf16.msra.mxu0 0
      %5098 = vmatprep.subr.bf16.mxu0 0
      %5099 = vmatpush1.bf16.msra.mxu0 0
      %5100 = vmatprep.subr.bf16.mxu0 0
      %5101 = vmatpush1.bf16.msra.mxu0 0
      %5102 = vmatprep.subr.bf16.mxu0 0
      %5103 = vmatpush1.bf16.msra.mxu0 0
      %5104 = vmatprep.subr.bf16.mxu0 0
      %5105 = vmatpush1.bf16.msra.mxu0 0
      %5106 = vmatprep.mubr.bf16.mxu0 0
      %5107 = vmatmul.mubr.bf16.gmra.mrb[0].mxu0 %v5021
      %v5108 = vpop.f32.mrb[0].mxu0
      %v5109 = vadd.f32 %v4842, %v5108
      %v5110 = vpop.f32.mrb[0].mxu0
      %v5111 = vpop.f32.mrb[0].mxu0
      %v5112 = vadd.f32 %v4845, %v5111
      %v5113 = vpop.f32.mrb[0].mxu0
      %5114 = vmatprep.mubr.bf16.mxu0 0
      %5115 = vmatmul.mubr.bf16.gmra.mrb[0].mxu0 %v5024
      %v5116 = vpop.f32.mrb[0].mxu0
      %v5117 = vadd.f32 %v4850, %v5116
      %v5118 = vpop.f32.mrb[0].mxu0
      %v5119 = vpop.f32.mrb[0].mxu0
      %v5120 = vadd.f32 %v4853, %v5119
      %v5121 = vpop.f32.mrb[0].mxu0
      %5122 = vmatprep.mubr.bf16.mxu0 0
      %5123 = vmatmul.mubr.bf16.gmra.mrb[0].mxu0 %v5027
      %v5124 = vpop.f32.mrb[0].mxu0
      %v5125 = vadd.f32 %v4858, %v5124
      %v5126 = vpop.f32.mrb[0].mxu0
      %v5127 = vpop.f32.mrb[0].mxu0
      %v5128 = vadd.f32 %v4861, %v5127
      %v5129 = vpop.f32.mrb[0].mxu0
      %5130 = vmatprep.mubr.bf16.mxu0 0
      %5131 = vmatmul.mubr.bf16.gmra.mrb[0].mxu0 %v5030
      %v5132 = vpop.f32.mrb[0].mxu0
      %v5133 = vadd.f32 %v4866, %v5132
      %v5134 = vpop.f32.mrb[0].mxu0
      %v5135 = vpop.f32.mrb[0].mxu0
      %v5136 = vadd.f32 %v4869, %v5135
      %v5137 = vpop.f32.mrb[0].mxu0
      %5138 = vmatprep.mubr.bf16.mxu0 0
      %5139 = vmatmul.mubr.bf16.gmra.mrb[0].mxu0 %v5033
      %v5140 = vpop.f32.mrb[0].mxu0
      %v5141 = vadd.f32 %v4874, %v5140
      %v5142 = vpop.f32.mrb[0].mxu0
      %v5143 = vpop.f32.mrb[0].mxu0
      %v5144 = vadd.f32 %v4877, %v5143
      %v5145 = vpop.f32.mrb[0].mxu0
      %5146 = vmatprep.mubr.bf16.mxu0 0
      %5147 = vmatmul.mubr.bf16.gmra.mrb[0].mxu0 %v5036
      %v5148 = vpop.f32.mrb[0].mxu0
      %v5149 = vadd.f32 %v4882, %v5148
      %v5150 = vpop.f32.mrb[0].mxu0
      %v5151 = vpop.f32.mrb[0].mxu0
      %v5152 = vadd.f32 %v4885, %v5151
      %v5153 = vpop.f32.mrb[0].mxu0
      %5154 = vmatprep.mubr.bf16.mxu0 0
      %5155 = vmatmul.mubr.bf16.gmra.mrb[0].mxu0 %v5039
      %v5156 = vpop.f32.mrb[0].mxu0
      %v5157 = vadd.f32 %v4890, %v5156
      %v5158 = vpop.f32.mrb[0].mxu0
      %v5159 = vpop.f32.mrb[0].mxu0
      %v5160 = vadd.f32 %v4893, %v5159
      %v5161 = vpop.f32.mrb[0].mxu0
      %5162 = vmatprep.mubr.bf16.mxu0 0
      %5163 = vmatmul.mubr.bf16.gmra.mrb[0].mxu0 %v5042
      %v5164 = vpop.f32.mrb[0].mxu0
      %v5165 = vadd.f32 %v4898, %v5164
      %v5166 = vpop.f32.mrb[0].mxu0
      %v5167 = vpop.f32.mrb[0].mxu0
      %v5168 = vadd.f32 %v4901, %v5167
      %v5169 = vpop.f32.mrb[0].mxu0
      %5170 = vmatprep.mubr.bf16.mxu0 0
      %5171 = vmatmul.mubr.bf16.gmra.mrb[0].mxu0 %v5045
      %v5172 = vpop.f32.mrb[0].mxu0
      %v5173 = vadd.f32 %v4906, %v5172
      %v5174 = vpop.f32.mrb[0].mxu0
      %v5175 = vpop.f32.mrb[0].mxu0
      %v5176 = vadd.f32 %v4909, %v5175
      %v5177 = vpop.f32.mrb[0].mxu0
      %5178 = vmatprep.mubr.bf16.mxu0 0
      %5179 = vmatmul.mubr.bf16.gmra.mrb[0].mxu0 %v5048
      %v5180 = vpop.f32.mrb[0].mxu0
      %v5181 = vadd.f32 %v4914, %v5180
      %v5182 = vpop.f32.mrb[0].mxu0
      %v5183 = vpop.f32.mrb[0].mxu0
      %v5184 = vadd.f32 %v4917, %v5183
      %v5185 = vpop.f32.mrb[0].mxu0
      %5186 = vmatprep.mubr.bf16.mxu0 0
      %5187 = vmatmul.mubr.bf16.gmra.mrb[0].mxu0 %v5051
      %v5188 = vpop.f32.mrb[0].mxu0
      %v5189 = vadd.f32 %v4922, %v5188
      %v5190 = vpop.f32.mrb[0].mxu0
      %v5191 = vpop.f32.mrb[0].mxu0
      %v5192 = vadd.f32 %v4925, %v5191
      %v5193 = vpop.f32.mrb[0].mxu0
      %5194 = vmatprep.mubr.bf16.mxu0 0
      %5195 = vmatmul.mubr.bf16.gmra.mrb[0].mxu0 %v5054
      %v5196 = vpop.f32.mrb[0].mxu0
      %v5197 = vadd.f32 %v4930, %v5196
      %v5198 = vpop.f32.mrb[0].mxu0
      %v5199 = vpop.f32.mrb[0].mxu0
      %v5200 = vadd.f32 %v4933, %v5199
      %v5201 = vpop.f32.mrb[0].mxu0
      %5202 = vmatprep.mubr.bf16.mxu0 0
      %5203 = vmatmul.mubr.bf16.gmra.mrb[0].mxu0 %v5057
      %v5204 = vpop.f32.mrb[0].mxu0
      %v5205 = vadd.f32 %v4938, %v5204
      %v5206 = vpop.f32.mrb[0].mxu0
      %v5207 = vpop.f32.mrb[0].mxu0
      %v5208 = vadd.f32 %v4941, %v5207
      %v5209 = vpop.f32.mrb[0].mxu0
      %5210 = vmatprep.mubr.bf16.mxu0 0
      %5211 = vmatmul.mubr.bf16.gmra.mrb[0].mxu0 %v5060
      %v5212 = vpop.f32.mrb[0].mxu0
      %v5213 = vadd.f32 %v4946, %v5212
      %v5214 = vpop.f32.mrb[0].mxu0
      %v5215 = vpop.f32.mrb[0].mxu0
      %v5216 = vadd.f32 %v4949, %v5215
      %v5217 = vpop.f32.mrb[0].mxu0
      %5218 = vmatprep.mubr.bf16.mxu0 0
      %5219 = vmatmul.mubr.bf16.gmra.mrb[0].mxu0 %v5063
      %v5220 = vpop.f32.mrb[0].mxu0
      %v5221 = vadd.f32 %v4954, %v5220
      %v5222 = vpop.f32.mrb[0].mxu0
      %v5223 = vpop.f32.mrb[0].mxu0
      %v5224 = vadd.f32 %v4957, %v5223
      %v5225 = vpop.f32.mrb[0].mxu0
      %5226 = vmatprep.mubr.bf16.mxu0 0
      %5227 = vmatmul.mubr.bf16.gmra.mrb[0].mxu0 %v5066
      %v5228 = vpop.f32.mrb[0].mxu0
      %v5229 = vadd.f32 %v4962, %v5228
      %v5230 = vpop.f32.mrb[0].mxu0
      %v5231 = vpop.f32.mrb[0].mxu0
      %v5232 = vadd.f32 %v4965, %v5231
      %v5233 = vpop.f32.mrb[0].mxu0
      %5234 = vmatprep.mubr.bf16.mxu0 0
      %5235 = vmatmul.mubr.bf16.gmra.mrb[0].mxu0 %v5069
      %v5236 = vpop.f32.mrb[0].mxu0
      %v5237 = vadd.f32 %v4970, %v5236
      %v5238 = vpop.f32.mrb[0].mxu0
      %v5239 = vpop.f32.mrb[0].mxu0
      %v5240 = vadd.f32 %v4973, %v5239
      %v5241 = vpop.f32.mrb[0].mxu0
      %5242 = vmatprep.mubr.bf16.mxu0 0
      %5243 = vmatmul.mubr.bf16.gmra.mrb[0].mxu0 %v5072
      %v5244 = vpop.f32.mrb[0].mxu0
      %v5245 = vadd.f32 %v4978, %v5244
      %v5246 = vpop.f32.mrb[0].mxu0
      %v5247 = vpop.f32.mrb[0].mxu0
      %v5248 = vadd.f32 %v4981, %v5247
      %v5249 = vpop.f32.mrb[0].mxu0
      %5250 = vdwg.mxu0
      %v5251 = vld [vmem:[#allocation2 + $0x2] sm:$0xff]
      %v5252 = vld [vmem:[#allocation2 + $0xa] sm:$0xff]
      %v5253 = vld [vmem:[#allocation2 + $0x12] sm:$0xff]
      %v5254 = vld [vmem:[#allocation2 + $0x1a] sm:$0xff]
      %v5255 = vld [vmem:[#allocation2 + $0x22] sm:$0xff]
      %v5256 = vld [vmem:[#allocation2 + $0x2a] sm:$0xff]
      %v5257 = vld [vmem:[#allocation2 + $0x32] sm:$0xff]
      %v5258 = vld [vmem:[#allocation2 + $0x3a] sm:$0xff]
      %v5259 = vld [vmem:[#allocation2 + $0x42] sm:$0xff]
      %v5260 = vld [vmem:[#allocation2 + $0x4a] sm:$0xff]
      %v5261 = vld [vmem:[#allocation2 + $0x52] sm:$0xff]
      %v5262 = vld [vmem:[#allocation2 + $0x5a] sm:$0xff]
      %v5263 = vld [vmem:[#allocation2 + $0x62] sm:$0xff]
      %v5264 = vld [vmem:[#allocation2 + $0x6a] sm:$0xff]
      %v5265 = vld [vmem:[#allocation2 + $0x72] sm:$0xff]
      %v5266 = vld [vmem:[#allocation2 + $0x7a] sm:$0xff]
      %v5267 = vld [vmem:[#allocation2 + $0x82] sm:$0xff]
      %v5268 = vld [vmem:[#allocation2 + $0x8a] sm:$0xff]
      %v5269 = vld [vmem:[#allocation2 + $0x92] sm:$0xff]
      %v5270 = vld [vmem:[#allocation2 + $0x9a] sm:$0xff]
      %v5271 = vld [vmem:[#allocation2 + $0xa2] sm:$0xff]
      %v5272 = vld [vmem:[#allocation2 + $0xaa] sm:$0xff]
      %v5273 = vld [vmem:[#allocation2 + $0xb2] sm:$0xff]
      %v5274 = vld [vmem:[#allocation2 + $0xba] sm:$0xff]
      %v5275 = vld [vmem:[#allocation2 + $0xc2] sm:$0xff]
      %v5276 = vld [vmem:[#allocation2 + $0xca] sm:$0xff]
      %v5277 = vld [vmem:[#allocation2 + $0xd2] sm:$0xff]
      %v5278 = vld [vmem:[#allocation2 + $0xda] sm:$0xff]
      %v5279 = vld [vmem:[#allocation2 + $0xe2] sm:$0xff]
      %v5280 = vld [vmem:[#allocation2 + $0xea] sm:$0xff]
      %v5281 = vld [vmem:[#allocation2 + $0xf2] sm:$0xff]
      %v5282 = vld [vmem:[#allocation2 + $0xfa] sm:$0xff]
      %v5283 = vld [vmem:[#allocation2 + $0x102] sm:$0xff]
      %v5284 = vld [vmem:[#allocation2 + $0x10a] sm:$0xff]
      %v5285 = vld [vmem:[#allocation2 + $0x112] sm:$0xff]
      %v5286 = vld [vmem:[#allocation2 + $0x11a] sm:$0xff]
      %v5287 = vpack.c.bf16 %v5252, %v5251
      %v5288 = vpack.c.bf16 %v5254, %v5253
      %v5289 = vpack.c.bf16 %v5256, %v5255
      %v5290 = vpack.c.bf16 %v5258, %v5257
      %v5291 = vpack.c.bf16 %v5260, %v5259
      %v5292 = vpack.c.bf16 %v5262, %v5261
      %v5293 = vpack.c.bf16 %v5264, %v5263
      %v5294 = vpack.c.bf16 %v5266, %v5265
      %v5295 = vpack.c.bf16 %v5268, %v5267
      %v5296 = vpack.c.bf16 %v5270, %v5269
      %v5297 = vpack.c.bf16 %v5272, %v5271
      %v5298 = vpack.c.bf16 %v5274, %v5273
      %v5299 = vpack.c.bf16 %v5276, %v5275
      %v5300 = vpack.c.bf16 %v5278, %v5277
      %v5301 = vpack.c.bf16 %v5280, %v5279
      %v5302 = vpack.c.bf16 %v5282, %v5281
      %v5303 = vpack.c.bf16 %v5284, %v5283
      %v5304 = vpack.c.bf16 %v5286, %v5285
      %s5305 = scalar_lea.vmem %s5, 96
      %v5306 = vld [vmem:[%s5305] sm:$0xf]
      %v5307 = vld [vmem:[%s5305 + $0x4] sm:$0xf]
      %v5308 = vld [vmem:[%s5305 + $0x8] sm:$0xf]
      %v5309 = vld [vmem:[%s5305 + $0xc] sm:$0xf]
      %v5310 = vld [vmem:[%s5305 + $0x10] sm:$0xf]
      %v5311 = vld [vmem:[%s5305 + $0x14] sm:$0xf]
      %v5312 = vld [vmem:[%s5305 + $0x18] sm:$0xf]
      %v5313 = vld [vmem:[%s5305 + $0x1c] sm:$0xf]
      %v5314 = vld [vmem:[%s5305 + $0x20] sm:$0xf]
      %v5315 = vld [vmem:[%s5305 + $0x24] sm:$0xf]
      %v5316 = vld [vmem:[%s5305 + $0x28] sm:$0xf]
      %v5317 = vld [vmem:[%s5305 + $0x2c] sm:$0xf]
      %v5330 = vunpack.c.l.b16 %v5306
      %v5331 = vunpack.c.l.b16 %v5307
      %v5332 = vunpack.c.l.b16 %v5308
      %v5333 = vunpack.c.l.b16 %v5309
      %v5334 = vunpack.c.l.b16 %v5310
      %v5335 = vunpack.c.l.b16 %v5311
      %v5336 = vunpack.c.l.b16 %v5312
      %v5337 = vunpack.c.l.b16 %v5313
      %v5338 = vunpack.c.l.b16 %v5314
      %v5339 = vunpack.c.l.b16 %v5315
      %v5340 = vunpack.c.l.b16 %v5316
      %v5341 = vunpack.c.l.b16 %v5317
      %v5342 = vpack.c.b16 %v5331, %v5330
      %v5343 = vpack.c.b16 %v5333, %v5332
      %v5344 = vpack.c.b16 %v5335, %v5334
      %v5345 = vpack.c.b16 %v5337, %v5336
      %v5346 = vpack.c.b16 %v5339, %v5338
      %v5347 = vpack.c.b16 %v5341, %v5340
      %v5355 = vsel %vm4506, %v5287, 0
      %v5358 = vsel %vm4506, %v5288, 0
      %v5361 = vsel %vm4506, %v5289, 0
      %v5364 = vsel %vm4506, %v5290, 0
      %v5367 = vsel %vm4506, %v5291, 0
      %v5370 = vsel %vm4506, %v5292, 0
      %v5373 = vsel %vm4506, %v5293, 0
      %v5376 = vsel %vm4506, %v5294, 0
      %v5379 = vsel %vm4506, %v5295, 0
      %v5382 = vsel %vm4506, %v5296, 0
      %v5385 = vsel %vm4506, %v5297, 0
      %v5388 = vsel %vm4506, %v5298, 0
      %v5391 = vsel %vm4506, %v5299, 0
      %v5394 = vsel %vm4506, %v5300, 0
      %v5397 = vsel %vm4506, %v5301, 0
      %v5400 = vsel %vm4506, %v5302, 0
      %v5403 = vsel %vm4506, %v5303, 0
      %v5406 = vsel %vm4506, %v5304, 0
      %5408 = vmatprep.subr.bf16.mxu0 0
      %5409 = vmatpush1.bf16.msra.mxu0 %v5342
      %5410 = vmatprep.subr.bf16.mxu0 0
      %5411 = vmatpush1.bf16.msra.mxu0 %v5343
      %5412 = vmatprep.subr.bf16.mxu0 0
      %5413 = vmatpush1.bf16.msra.mxu0 %v5344
      %5414 = vmatprep.subr.bf16.mxu0 0
      %5415 = vmatpush1.bf16.msra.mxu0 %v5345
      %5416 = vmatprep.subr.bf16.mxu0 0
      %5417 = vmatpush1.bf16.msra.mxu0 %v5346
      %5418 = vmatprep.subr.bf16.mxu0 0
      %5419 = vmatpush1.bf16.msra.mxu0 %v5347
      %5420 = vmatprep.subr.bf16.mxu0 0
      %5421 = vmatpush1.bf16.msra.mxu0 0
      %5422 = vmatprep.subr.bf16.mxu0 0
      %5423 = vmatpush1.bf16.msra.mxu0 0
      %5424 = vmatprep.subr.bf16.mxu0 0
      %5425 = vmatpush1.bf16.msra.mxu0 0
      %5426 = vmatprep.subr.bf16.mxu0 0
      %5427 = vmatpush1.bf16.msra.mxu0 0
      %5428 = vmatprep.subr.bf16.mxu0 0
      %5429 = vmatpush1.bf16.msra.mxu0 0
      %5430 = vmatprep.subr.bf16.mxu0 0
      %5431 = vmatpush1.bf16.msra.mxu0 0
      %5432 = vmatprep.subr.bf16.mxu0 0
      %5433 = vmatpush1.bf16.msra.mxu0 0
      %5434 = vmatprep.subr.bf16.mxu0 0
      %5435 = vmatpush1.bf16.msra.mxu0 0
      %5436 = vmatprep.subr.bf16.mxu0 0
      %5437 = vmatpush1.bf16.msra.mxu0 0
      %5438 = vmatprep.subr.bf16.mxu0 0
      %5439 = vmatpush1.bf16.msra.mxu0 0
      %5440 = vmatprep.mubr.bf16.mxu0 0
      %5441 = vmatmul.mubr.bf16.gmra.mrb[0].mxu0 %v5355
      %v5442 = vpop.f32.mrb[0].mxu0
      %v5443 = vadd.f32 0.0, %v5442
      %v5444 = vpop.f32.mrb[0].mxu0
      %v5445 = vpop.f32.mrb[0].mxu0
      %v5446 = vadd.f32 0.0, %v5445
      %v5447 = vpop.f32.mrb[0].mxu0
      %5448 = vmatprep.mubr.bf16.mxu0 0
      %5449 = vmatmul.mubr.bf16.gmra.mrb[0].mxu0 %v5358
      %v5450 = vpop.f32.mrb[0].mxu0
      %v5451 = vadd.f32 0.0, %v5450
      %v5452 = vpop.f32.mrb[0].mxu0
      %v5453 = vpop.f32.mrb[0].mxu0
      %v5454 = vadd.f32 0.0, %v5453
      %v5455 = vpop.f32.mrb[0].mxu0
      %5456 = vmatprep.mubr.bf16.mxu0 0
      %5457 = vmatmul.mubr.bf16.gmra.mrb[0].mxu0 %v5361
      %v5458 = vpop.f32.mrb[0].mxu0
      %v5459 = vadd.f32 0.0, %v5458
      %v5460 = vpop.f32.mrb[0].mxu0
      %v5461 = vpop.f32.mrb[0].mxu0
      %v5462 = vadd.f32 0.0, %v5461
      %v5463 = vpop.f32.mrb[0].mxu0
      %5464 = vmatprep.mubr.bf16.mxu0 0
      %5465 = vmatmul.mubr.bf16.gmra.mrb[0].mxu0 %v5364
      %v5466 = vpop.f32.mrb[0].mxu0
      %v5467 = vadd.f32 0.0, %v5466
      %v5468 = vpop.f32.mrb[0].mxu0
      %v5469 = vpop.f32.mrb[0].mxu0
      %v5470 = vadd.f32 0.0, %v5469
      %v5471 = vpop.f32.mrb[0].mxu0
      %5472 = vmatprep.mubr.bf16.mxu0 0
      %5473 = vmatmul.mubr.bf16.gmra.mrb[0].mxu0 %v5367
      %v5474 = vpop.f32.mrb[0].mxu0
      %v5475 = vadd.f32 0.0, %v5474
      %v5476 = vpop.f32.mrb[0].mxu0
      %v5477 = vpop.f32.mrb[0].mxu0
      %v5478 = vadd.f32 0.0, %v5477
      %v5479 = vpop.f32.mrb[0].mxu0
      %5480 = vmatprep.mubr.bf16.mxu0 0
      %5481 = vmatmul.mubr.bf16.gmra.mrb[0].mxu0 %v5370
      %v5482 = vpop.f32.mrb[0].mxu0
      %v5483 = vadd.f32 0.0, %v5482
      %v5484 = vpop.f32.mrb[0].mxu0
      %v5485 = vpop.f32.mrb[0].mxu0
      %v5486 = vadd.f32 0.0, %v5485
      %v5487 = vpop.f32.mrb[0].mxu0
      %5488 = vmatprep.mubr.bf16.mxu0 0
      %5489 = vmatmul.mubr.bf16.gmra.mrb[0].mxu0 %v5373
      %v5490 = vpop.f32.mrb[0].mxu0
      %v5491 = vadd.f32 0.0, %v5490
      %v5492 = vpop.f32.mrb[0].mxu0
      %v5493 = vpop.f32.mrb[0].mxu0
      %v5494 = vadd.f32 0.0, %v5493
      %v5495 = vpop.f32.mrb[0].mxu0
      %5496 = vmatprep.mubr.bf16.mxu0 0
      %5497 = vmatmul.mubr.bf16.gmra.mrb[0].mxu0 %v5376
      %v5498 = vpop.f32.mrb[0].mxu0
      %v5499 = vadd.f32 0.0, %v5498
      %v5500 = vpop.f32.mrb[0].mxu0
      %v5501 = vpop.f32.mrb[0].mxu0
      %v5502 = vadd.f32 0.0, %v5501
      %v5503 = vpop.f32.mrb[0].mxu0
      %5504 = vmatprep.mubr.bf16.mxu0 0
      %5505 = vmatmul.mubr.bf16.gmra.mrb[0].mxu0 %v5379
      %v5506 = vpop.f32.mrb[0].mxu0
      %v5507 = vadd.f32 0.0, %v5506
      %v5508 = vpop.f32.mrb[0].mxu0
      %v5509 = vpop.f32.mrb[0].mxu0
      %v5510 = vadd.f32 0.0, %v5509
      %v5511 = vpop.f32.mrb[0].mxu0
      %5512 = vmatprep.mubr.bf16.mxu0 0
      %5513 = vmatmul.mubr.bf16.gmra.mrb[0].mxu0 %v5382
      %v5514 = vpop.f32.mrb[0].mxu0
      %v5515 = vadd.f32 0.0, %v5514
      %v5516 = vpop.f32.mrb[0].mxu0
      %v5517 = vpop.f32.mrb[0].mxu0
      %v5518 = vadd.f32 0.0, %v5517
      %v5519 = vpop.f32.mrb[0].mxu0
      %5520 = vmatprep.mubr.bf16.mxu0 0
      %5521 = vmatmul.mubr.bf16.gmra.mrb[0].mxu0 %v5385
      %v5522 = vpop.f32.mrb[0].mxu0
      %v5523 = vadd.f32 0.0, %v5522
      %v5524 = vpop.f32.mrb[0].mxu0
      %v5525 = vpop.f32.mrb[0].mxu0
      %v5526 = vadd.f32 0.0, %v5525
      %v5527 = vpop.f32.mrb[0].mxu0
      %5528 = vmatprep.mubr.bf16.mxu0 0
      %5529 = vmatmul.mubr.bf16.gmra.mrb[0].mxu0 %v5388
      %v5530 = vpop.f32.mrb[0].mxu0
      %v5531 = vadd.f32 0.0, %v5530
      %v5532 = vpop.f32.mrb[0].mxu0
      %v5533 = vpop.f32.mrb[0].mxu0
      %v5534 = vadd.f32 0.0, %v5533
      %v5535 = vpop.f32.mrb[0].mxu0
      %5536 = vmatprep.mubr.bf16.mxu0 0
      %5537 = vmatmul.mubr.bf16.gmra.mrb[0].mxu0 %v5391
      %v5538 = vpop.f32.mrb[0].mxu0
      %v5539 = vadd.f32 0.0, %v5538
      %v5540 = vpop.f32.mrb[0].mxu0
      %v5541 = vpop.f32.mrb[0].mxu0
      %v5542 = vadd.f32 0.0, %v5541
      %v5543 = vpop.f32.mrb[0].mxu0
      %5544 = vmatprep.mubr.bf16.mxu0 0
      %5545 = vmatmul.mubr.bf16.gmra.mrb[0].mxu0 %v5394
      %v5546 = vpop.f32.mrb[0].mxu0
      %v5547 = vadd.f32 0.0, %v5546
      %v5548 = vpop.f32.mrb[0].mxu0
      %v5549 = vpop.f32.mrb[0].mxu0
      %v5550 = vadd.f32 0.0, %v5549
      %v5551 = vpop.f32.mrb[0].mxu0
      %5552 = vmatprep.mubr.bf16.mxu0 0
      %5553 = vmatmul.mubr.bf16.gmra.mrb[0].mxu0 %v5397
      %v5554 = vpop.f32.mrb[0].mxu0
      %v5555 = vadd.f32 0.0, %v5554
      %v5556 = vpop.f32.mrb[0].mxu0
      %v5557 = vpop.f32.mrb[0].mxu0
      %v5558 = vadd.f32 0.0, %v5557
      %v5559 = vpop.f32.mrb[0].mxu0
      %5560 = vmatprep.mubr.bf16.mxu0 0
      %5561 = vmatmul.mubr.bf16.gmra.mrb[0].mxu0 %v5400
      %v5562 = vpop.f32.mrb[0].mxu0
      %v5563 = vadd.f32 0.0, %v5562
      %v5564 = vpop.f32.mrb[0].mxu0
      %v5565 = vpop.f32.mrb[0].mxu0
      %v5566 = vadd.f32 0.0, %v5565
      %v5567 = vpop.f32.mrb[0].mxu0
      %5568 = vmatprep.mubr.bf16.mxu0 0
      %5569 = vmatmul.mubr.bf16.gmra.mrb[0].mxu0 %v5403
      %v5570 = vpop.f32.mrb[0].mxu0
      %v5571 = vadd.f32 0.0, %v5570
      %v5572 = vpop.f32.mrb[0].mxu0
      %v5573 = vpop.f32.mrb[0].mxu0
      %v5574 = vadd.f32 0.0, %v5573
      %v5575 = vpop.f32.mrb[0].mxu0
      %5576 = vmatprep.mubr.bf16.mxu0 0
      %5577 = vmatmul.mubr.bf16.gmra.mrb[0].mxu0 %v5406
      %v5578 = vpop.f32.mrb[0].mxu0
      %v5579 = vadd.f32 0.0, %v5578
      %v5580 = vpop.f32.mrb[0].mxu0
      %v5581 = vpop.f32.mrb[0].mxu0
      %v5582 = vadd.f32 0.0, %v5581
      %v5583 = vpop.f32.mrb[0].mxu0
      %5584 = vdwg.mxu0
      %v5585 = vadd.f32 %v5109, %v5443
      %v5586 = vadd.f32 %v5112, %v5446
      %v5587 = vadd.f32 %v5117, %v5451
      %v5588 = vadd.f32 %v5120, %v5454
      %v5589 = vadd.f32 %v5125, %v5459
      %v5590 = vadd.f32 %v5128, %v5462
      %v5591 = vadd.f32 %v5133, %v5467
      %v5592 = vadd.f32 %v5136, %v5470
      %v5593 = vadd.f32 %v5141, %v5475
      %v5594 = vadd.f32 %v5144, %v5478
      %v5595 = vadd.f32 %v5149, %v5483
      %v5596 = vadd.f32 %v5152, %v5486
      %v5597 = vadd.f32 %v5157, %v5491
      %v5598 = vadd.f32 %v5160, %v5494
      %v5599 = vadd.f32 %v5165, %v5499
      %v5600 = vadd.f32 %v5168, %v5502
      %v5601 = vadd.f32 %v5173, %v5507
      %v5602 = vadd.f32 %v5176, %v5510
      %v5603 = vadd.f32 %v5181, %v5515
      %v5604 = vadd.f32 %v5184, %v5518
      %v5605 = vadd.f32 %v5189, %v5523
      %v5606 = vadd.f32 %v5192, %v5526
      %v5607 = vadd.f32 %v5197, %v5531
      %v5608 = vadd.f32 %v5200, %v5534
      %v5609 = vadd.f32 %v5205, %v5539
      %v5610 = vadd.f32 %v5208, %v5542
      %v5611 = vadd.f32 %v5213, %v5547
      %v5612 = vadd.f32 %v5216, %v5550
      %v5613 = vadd.f32 %v5221, %v5555
      %v5614 = vadd.f32 %v5224, %v5558
      %v5615 = vadd.f32 %v5229, %v5563
      %v5616 = vadd.f32 %v5232, %v5566
      %v5617 = vadd.f32 %v5237, %v5571
      %v5618 = vadd.f32 %v5240, %v5574
      %v5619 = vadd.f32 %v5245, %v5579
      %v5620 = vadd.f32 %v5248, %v5582
      %v5621 = vld [vmem:[#allocation2 + $0x12] sm:$0xff]
      %v5622 = vld [vmem:[#allocation2 + $0x1a] sm:$0xff]
      %v5623 = vld [vmem:[#allocation2 + $0x22] sm:$0xff]
      %v5624 = vld [vmem:[#allocation2 + $0x2a] sm:$0xff]
      %v5625 = vld [vmem:[#allocation2 + $0x32] sm:$0xff]
      %v5626 = vld [vmem:[#allocation2 + $0x3a] sm:$0xff]
      %v5627 = vld [vmem:[#allocation2 + $0x42] sm:$0xff]
      %v5628 = vld [vmem:[#allocation2 + $0x4a] sm:$0xff]
      %v5629 = vld [vmem:[#allocation2 + $0x52] sm:$0xff]
      %v5630 = vld [vmem:[#allocation2 + $0x5a] sm:$0xff]
      %v5631 = vld [vmem:[#allocation2 + $0x62] sm:$0xff]
      %v5632 = vld [vmem:[#allocation2 + $0x6a] sm:$0xff]
      %v5633 = vld [vmem:[#allocation2 + $0x72] sm:$0xff]
      %v5634 = vld [vmem:[#allocation2 + $0x7a] sm:$0xff]
      %v5635 = vld [vmem:[#allocation2 + $0x82] sm:$0xff]
      %v5636 = vld [vmem:[#allocation2 + $0x8a] sm:$0xff]
      %v5637 = vld [vmem:[#allocation2 + $0x92] sm:$0xff]
      %v5638 = vld [vmem:[#allocation2 + $0x9a] sm:$0xff]
      %v5639 = vld [vmem:[#allocation2 + $0xa2] sm:$0xff]
      %v5640 = vld [vmem:[#allocation2 + $0xaa] sm:$0xff]
      %v5641 = vld [vmem:[#allocation2 + $0xb2] sm:$0xff]
      %v5642 = vld [vmem:[#allocation2 + $0xba] sm:$0xff]
      %v5643 = vld [vmem:[#allocation2 + $0xc2] sm:$0xff]
      %v5644 = vld [vmem:[#allocation2 + $0xca] sm:$0xff]
      %v5645 = vld [vmem:[#allocation2 + $0xd2] sm:$0xff]
      %v5646 = vld [vmem:[#allocation2 + $0xda] sm:$0xff]
      %v5647 = vld [vmem:[#allocation2 + $0xe2] sm:$0xff]
      %v5648 = vld [vmem:[#allocation2 + $0xea] sm:$0xff]
      %v5649 = vld [vmem:[#allocation2 + $0xf2] sm:$0xff]
      %v5650 = vld [vmem:[#allocation2 + $0xfa] sm:$0xff]
      %v5651 = vld [vmem:[#allocation2 + $0x102] sm:$0xff]
      %v5652 = vld [vmem:[#allocation2 + $0x10a] sm:$0xff]
      %v5653 = vld [vmem:[#allocation2 + $0x112] sm:$0xff]
      %v5654 = vld [vmem:[#allocation2 + $0x11a] sm:$0xff]
      %v5655 = vld [vmem:[#allocation2 + $0x122] sm:$0xff]
      %v5656 = vld [vmem:[#allocation2 + $0x12a] sm:$0xff]
      %v5657 = vpack.c.bf16 %v5622, %v5621
      %v5658 = vpack.c.bf16 %v5624, %v5623
      %v5659 = vpack.c.bf16 %v5626, %v5625
      %v5660 = vpack.c.bf16 %v5628, %v5627
      %v5661 = vpack.c.bf16 %v5630, %v5629
      %v5662 = vpack.c.bf16 %v5632, %v5631
      %v5663 = vpack.c.bf16 %v5634, %v5633
      %v5664 = vpack.c.bf16 %v5636, %v5635
      %v5665 = vpack.c.bf16 %v5638, %v5637
      %v5666 = vpack.c.bf16 %v5640, %v5639
      %v5667 = vpack.c.bf16 %v5642, %v5641
      %v5668 = vpack.c.bf16 %v5644, %v5643
      %v5669 = vpack.c.bf16 %v5646, %v5645
      %v5670 = vpack.c.bf16 %v5648, %v5647
      %v5671 = vpack.c.bf16 %v5650, %v5649
      %v5672 = vpack.c.bf16 %v5652, %v5651
      %v5673 = vpack.c.bf16 %v5654, %v5653
      %v5674 = vpack.c.bf16 %v5656, %v5655
      %s5675 = scalar_lea.vmem %s5, 144
      %v5676 = vld [vmem:[%s5675] sm:$0xf]
      %v5677 = vld [vmem:[%s5675 + $0x4] sm:$0xf]
      %v5678 = vld [vmem:[%s5675 + $0x8] sm:$0xf]
      %v5679 = vld [vmem:[%s5675 + $0xc] sm:$0xf]
      %v5680 = vld [vmem:[%s5675 + $0x10] sm:$0xf]
      %v5681 = vld [vmem:[%s5675 + $0x14] sm:$0xf]
      %v5682 = vld [vmem:[%s5675 + $0x18] sm:$0xf]
      %v5683 = vld [vmem:[%s5675 + $0x1c] sm:$0xf]
      %v5684 = vld [vmem:[%s5675 + $0x20] sm:$0xf]
      %v5685 = vld [vmem:[%s5675 + $0x24] sm:$0xf]
      %v5686 = vld [vmem:[%s5675 + $0x28] sm:$0xf]
      %v5687 = vld [vmem:[%s5675 + $0x2c] sm:$0xf]
      %v5700 = vunpack.c.l.b16 %v5676
      %v5701 = vunpack.c.l.b16 %v5677
      %v5702 = vunpack.c.l.b16 %v5678
      %v5703 = vunpack.c.l.b16 %v5679
      %v5704 = vunpack.c.l.b16 %v5680
      %v5705 = vunpack.c.l.b16 %v5681
      %v5706 = vunpack.c.l.b16 %v5682
      %v5707 = vunpack.c.l.b16 %v5683
      %v5708 = vunpack.c.l.b16 %v5684
      %v5709 = vunpack.c.l.b16 %v5685
      %v5710 = vunpack.c.l.b16 %v5686
      %v5711 = vunpack.c.l.b16 %v5687
      %v5712 = vpack.c.b16 %v5701, %v5700
      %v5713 = vpack.c.b16 %v5703, %v5702
      %v5714 = vpack.c.b16 %v5705, %v5704
      %v5715 = vpack.c.b16 %v5707, %v5706
      %v5716 = vpack.c.b16 %v5709, %v5708
      %v5717 = vpack.c.b16 %v5711, %v5710
      %v5725 = vsel %vm4506, %v5657, 0
      %v5728 = vsel %vm4506, %v5658, 0
      %v5731 = vsel %vm4506, %v5659, 0
      %v5734 = vsel %vm4506, %v5660, 0
      %v5737 = vsel %vm4506, %v5661, 0
      %v5740 = vsel %vm4506, %v5662, 0
      %v5743 = vsel %vm4506, %v5663, 0
      %v5746 = vsel %vm4506, %v5664, 0
      %v5749 = vsel %vm4506, %v5665, 0
      %v5752 = vsel %vm4506, %v5666, 0
      %v5755 = vsel %vm4506, %v5667, 0
      %v5758 = vsel %vm4506, %v5668, 0
      %v5761 = vsel %vm4506, %v5669, 0
      %v5764 = vsel %vm4506, %v5670, 0
      %v5767 = vsel %vm4506, %v5671, 0
      %v5770 = vsel %vm4506, %v5672, 0
      %v5773 = vsel %vm4506, %v5673, 0
      %v5776 = vsel %vm4506, %v5674, 0
      %5778 = vmatprep.subr.bf16.mxu0 0
      %5779 = vmatpush1.bf16.msra.mxu0 %v5712
      %5780 = vmatprep.subr.bf16.mxu0 0
      %5781 = vmatpush1.bf16.msra.mxu0 %v5713
      %5782 = vmatprep.subr.bf16.mxu0 0
      %5783 = vmatpush1.bf16.msra.mxu0 %v5714
      %5784 = vmatprep.subr.bf16.mxu0 0
      %5785 = vmatpush1.bf16.msra.mxu0 %v5715
      %5786 = vmatprep.subr.bf16.mxu0 0
      %5787 = vmatpush1.bf16.msra.mxu0 %v5716
      %5788 = vmatprep.subr.bf16.mxu0 0
      %5789 = vmatpush1.bf16.msra.mxu0 %v5717
      %5790 = vmatprep.subr.bf16.mxu0 0
      %5791 = vmatpush1.bf16.msra.mxu0 0
      %5792 = vmatprep.subr.bf16.mxu0 0
      %5793 = vmatpush1.bf16.msra.mxu0 0
      %5794 = vmatprep.subr.bf16.mxu0 0
      %5795 = vmatpush1.bf16.msra.mxu0 0
      %5796 = vmatprep.subr.bf16.mxu0 0
      %5797 = vmatpush1.bf16.msra.mxu0 0
      %5798 = vmatprep.subr.bf16.mxu0 0
      %5799 = vmatpush1.bf16.msra.mxu0 0
      %5800 = vmatprep.subr.bf16.mxu0 0
      %5801 = vmatpush1.bf16.msra.mxu0 0
      %5802 = vmatprep.subr.bf16.mxu0 0
      %5803 = vmatpush1.bf16.msra.mxu0 0
      %5804 = vmatprep.subr.bf16.mxu0 0
      %5805 = vmatpush1.bf16.msra.mxu0 0
      %5806 = vmatprep.subr.bf16.mxu0 0
      %5807 = vmatpush1.bf16.msra.mxu0 0
      %5808 = vmatprep.subr.bf16.mxu0 0
      %5809 = vmatpush1.bf16.msra.mxu0 0
      %5810 = vmatprep.mubr.bf16.mxu0 0
      %5811 = vmatmul.mubr.bf16.gmra.mrb[0].mxu0 %v5725
      %v5812 = vpop.f32.mrb[0].mxu0
      %v5813 = vadd.f32 0.0, %v5812
      %v5814 = vpop.f32.mrb[0].mxu0
      %v5815 = vpop.f32.mrb[0].mxu0
      %v5816 = vadd.f32 0.0, %v5815
      %v5817 = vpop.f32.mrb[0].mxu0
      %5818 = vmatprep.mubr.bf16.mxu0 0
      %5819 = vmatmul.mubr.bf16.gmra.mrb[0].mxu0 %v5728
      %v5820 = vpop.f32.mrb[0].mxu0
      %v5821 = vadd.f32 0.0, %v5820
      %v5822 = vpop.f32.mrb[0].mxu0
      %v5823 = vpop.f32.mrb[0].mxu0
      %v5824 = vadd.f32 0.0, %v5823
      %v5825 = vpop.f32.mrb[0].mxu0
      %5826 = vmatprep.mubr.bf16.mxu0 0
      %5827 = vmatmul.mubr.bf16.gmra.mrb[0].mxu0 %v5731
      %v5828 = vpop.f32.mrb[0].mxu0
      %v5829 = vadd.f32 0.0, %v5828
      %v5830 = vpop.f32.mrb[0].mxu0
      %v5831 = vpop.f32.mrb[0].mxu0
      %v5832 = vadd.f32 0.0, %v5831
      %v5833 = vpop.f32.mrb[0].mxu0
      %5834 = vmatprep.mubr.bf16.mxu0 0
      %5835 = vmatmul.mubr.bf16.gmra.mrb[0].mxu0 %v5734
      %v5836 = vpop.f32.mrb[0].mxu0
      %v5837 = vadd.f32 0.0, %v5836
      %v5838 = vpop.f32.mrb[0].mxu0
      %v5839 = vpop.f32.mrb[0].mxu0
      %v5840 = vadd.f32 0.0, %v5839
      %v5841 = vpop.f32.mrb[0].mxu0
      %5842 = vmatprep.mubr.bf16.mxu0 0
      %5843 = vmatmul.mubr.bf16.gmra.mrb[0].mxu0 %v5737
      %v5844 = vpop.f32.mrb[0].mxu0
      %v5845 = vadd.f32 0.0, %v5844
      %v5846 = vpop.f32.mrb[0].mxu0
      %v5847 = vpop.f32.mrb[0].mxu0
      %v5848 = vadd.f32 0.0, %v5847
      %v5849 = vpop.f32.mrb[0].mxu0
      %5850 = vmatprep.mubr.bf16.mxu0 0
      %5851 = vmatmul.mubr.bf16.gmra.mrb[0].mxu0 %v5740
      %v5852 = vpop.f32.mrb[0].mxu0
      %v5853 = vadd.f32 0.0, %v5852
      %v5854 = vpop.f32.mrb[0].mxu0
      %v5855 = vpop.f32.mrb[0].mxu0
      %v5856 = vadd.f32 0.0, %v5855
      %v5857 = vpop.f32.mrb[0].mxu0
      %5858 = vmatprep.mubr.bf16.mxu0 0
      %5859 = vmatmul.mubr.bf16.gmra.mrb[0].mxu0 %v5743
      %v5860 = vpop.f32.mrb[0].mxu0
      %v5861 = vadd.f32 0.0, %v5860
      %v5862 = vpop.f32.mrb[0].mxu0
      %v5863 = vpop.f32.mrb[0].mxu0
      %v5864 = vadd.f32 0.0, %v5863
      %v5865 = vpop.f32.mrb[0].mxu0
      %5866 = vmatprep.mubr.bf16.mxu0 0
      %5867 = vmatmul.mubr.bf16.gmra.mrb[0].mxu0 %v5746
      %v5868 = vpop.f32.mrb[0].mxu0
      %v5869 = vadd.f32 0.0, %v5868
      %v5870 = vpop.f32.mrb[0].mxu0
      %v5871 = vpop.f32.mrb[0].mxu0
      %v5872 = vadd.f32 0.0, %v5871
      %v5873 = vpop.f32.mrb[0].mxu0
      %5874 = vmatprep.mubr.bf16.mxu0 0
      %5875 = vmatmul.mubr.bf16.gmra.mrb[0].mxu0 %v5749
      %v5876 = vpop.f32.mrb[0].mxu0
      %v5877 = vadd.f32 0.0, %v5876
      %v5878 = vpop.f32.mrb[0].mxu0
      %v5879 = vpop.f32.mrb[0].mxu0
      %v5880 = vadd.f32 0.0, %v5879
      %v5881 = vpop.f32.mrb[0].mxu0
      %5882 = vmatprep.mubr.bf16.mxu0 0
      %5883 = vmatmul.mubr.bf16.gmra.mrb[0].mxu0 %v5752
      %v5884 = vpop.f32.mrb[0].mxu0
      %v5885 = vadd.f32 0.0, %v5884
      %v5886 = vpop.f32.mrb[0].mxu0
      %v5887 = vpop.f32.mrb[0].mxu0
      %v5888 = vadd.f32 0.0, %v5887
      %v5889 = vpop.f32.mrb[0].mxu0
      %5890 = vmatprep.mubr.bf16.mxu0 0
      %5891 = vmatmul.mubr.bf16.gmra.mrb[0].mxu0 %v5755
      %v5892 = vpop.f32.mrb[0].mxu0
      %v5893 = vadd.f32 0.0, %v5892
      %v5894 = vpop.f32.mrb[0].mxu0
      %v5895 = vpop.f32.mrb[0].mxu0
      %v5896 = vadd.f32 0.0, %v5895
      %v5897 = vpop.f32.mrb[0].mxu0
      %5898 = vmatprep.mubr.bf16.mxu0 0
      %5899 = vmatmul.mubr.bf16.gmra.mrb[0].mxu0 %v5758
      %v5900 = vpop.f32.mrb[0].mxu0
      %v5901 = vadd.f32 0.0, %v5900
      %v5902 = vpop.f32.mrb[0].mxu0
      %v5903 = vpop.f32.mrb[0].mxu0
      %v5904 = vadd.f32 0.0, %v5903
      %v5905 = vpop.f32.mrb[0].mxu0
      %5906 = vmatprep.mubr.bf16.mxu0 0
      %5907 = vmatmul.mubr.bf16.gmra.mrb[0].mxu0 %v5761
      %v5908 = vpop.f32.mrb[0].mxu0
      %v5909 = vadd.f32 0.0, %v5908
      %v5910 = vpop.f32.mrb[0].mxu0
      %v5911 = vpop.f32.mrb[0].mxu0
      %v5912 = vadd.f32 0.0, %v5911
      %v5913 = vpop.f32.mrb[0].mxu0
      %5914 = vmatprep.mubr.bf16.mxu0 0
      %5915 = vmatmul.mubr.bf16.gmra.mrb[0].mxu0 %v5764
      %v5916 = vpop.f32.mrb[0].mxu0
      %v5917 = vadd.f32 0.0, %v5916
      %v5918 = vpop.f32.mrb[0].mxu0
      %v5919 = vpop.f32.mrb[0].mxu0
      %v5920 = vadd.f32 0.0, %v5919
      %v5921 = vpop.f32.mrb[0].mxu0
      %5922 = vmatprep.mubr.bf16.mxu0 0
      %5923 = vmatmul.mubr.bf16.gmra.mrb[0].mxu0 %v5767
      %v5924 = vpop.f32.mrb[0].mxu0
      %v5925 = vadd.f32 0.0, %v5924
      %v5926 = vpop.f32.mrb[0].mxu0
      %v5927 = vpop.f32.mrb[0].mxu0
      %v5928 = vadd.f32 0.0, %v5927
      %v5929 = vpop.f32.mrb[0].mxu0
      %5930 = vmatprep.mubr.bf16.mxu0 0
      %5931 = vmatmul.mubr.bf16.gmra.mrb[0].mxu0 %v5770
      %v5932 = vpop.f32.mrb[0].mxu0
      %v5933 = vadd.f32 0.0, %v5932
      %v5934 = vpop.f32.mrb[0].mxu0
      %v5935 = vpop.f32.mrb[0].mxu0
      %v5936 = vadd.f32 0.0, %v5935
      %v5937 = vpop.f32.mrb[0].mxu0
      %5938 = vmatprep.mubr.bf16.mxu0 0
      %5939 = vmatmul.mubr.bf16.gmra.mrb[0].mxu0 %v5773
      %v5940 = vpop.f32.mrb[0].mxu0
      %v5941 = vadd.f32 0.0, %v5940
      %v5942 = vpop.f32.mrb[0].mxu0
      %v5943 = vpop.f32.mrb[0].mxu0
      %v5944 = vadd.f32 0.0, %v5943
      %v5945 = vpop.f32.mrb[0].mxu0
      %5946 = vmatprep.mubr.bf16.mxu0 0
      %5947 = vmatmul.mubr.bf16.gmra.mrb[0].mxu0 %v5776
      %v5948 = vpop.f32.mrb[0].mxu0
      %v5949 = vadd.f32 0.0, %v5948
      %v5950 = vpop.f32.mrb[0].mxu0
      %v5951 = vpop.f32.mrb[0].mxu0
      %v5952 = vadd.f32 0.0, %v5951
      %v5953 = vpop.f32.mrb[0].mxu0
      %5954 = vdwg.mxu0
      %v5955 = vadd.f32 %v5585, %v5813
      %v5956 = vadd.f32 %v5586, %v5816
      %v5957 = vadd.f32 %v5587, %v5821
      %v5958 = vadd.f32 %v5588, %v5824
      %v5959 = vadd.f32 %v5589, %v5829
      %v5960 = vadd.f32 %v5590, %v5832
      %v5961 = vadd.f32 %v5591, %v5837
      %v5962 = vadd.f32 %v5592, %v5840
      %v5963 = vadd.f32 %v5593, %v5845
      %v5964 = vadd.f32 %v5594, %v5848
      %v5965 = vadd.f32 %v5595, %v5853
      %v5966 = vadd.f32 %v5596, %v5856
      %v5967 = vadd.f32 %v5597, %v5861
      %v5968 = vadd.f32 %v5598, %v5864
      %v5969 = vadd.f32 %v5599, %v5869
      %v5970 = vadd.f32 %v5600, %v5872
      %v5971 = vadd.f32 %v5601, %v5877
      %v5972 = vadd.f32 %v5602, %v5880
      %v5973 = vadd.f32 %v5603, %v5885
      %v5974 = vadd.f32 %v5604, %v5888
      %v5975 = vadd.f32 %v5605, %v5893
      %v5976 = vadd.f32 %v5606, %v5896
      %v5977 = vadd.f32 %v5607, %v5901
      %v5978 = vadd.f32 %v5608, %v5904
      %v5979 = vadd.f32 %v5609, %v5909
      %v5980 = vadd.f32 %v5610, %v5912
      %v5981 = vadd.f32 %v5611, %v5917
      %v5982 = vadd.f32 %v5612, %v5920
      %v5983 = vadd.f32 %v5613, %v5925
      %v5984 = vadd.f32 %v5614, %v5928
      %v5985 = vadd.f32 %v5615, %v5933
      %v5986 = vadd.f32 %v5616, %v5936
      %v5987 = vadd.f32 %v5617, %v5941
      %v5988 = vadd.f32 %v5618, %v5944
      %v5989 = vadd.f32 %v5619, %v5949
      %v5990 = vadd.f32 %v5620, %v5952
      %v5991 = vld [vmem:[#allocation2 + $0x13] sm:$0xff]
      %v5992 = vld [vmem:[#allocation2 + $0x1b] sm:$0xff]
      %v5993 = vld [vmem:[#allocation2 + $0x23] sm:$0xff]
      %v5994 = vld [vmem:[#allocation2 + $0x2b] sm:$0xff]
      %v5995 = vld [vmem:[#allocation2 + $0x33] sm:$0xff]
      %v5996 = vld [vmem:[#allocation2 + $0x3b] sm:$0xff]
      %v5997 = vld [vmem:[#allocation2 + $0x43] sm:$0xff]
      %v5998 = vld [vmem:[#allocation2 + $0x4b] sm:$0xff]
      %v5999 = vld [vmem:[#allocation2 + $0x53] sm:$0xff]
      %v6000 = vld [vmem:[#allocation2 + $0x5b] sm:$0xff]
      %v6001 = vld [vmem:[#allocation2 + $0x63] sm:$0xff]
      %v6002 = vld [vmem:[#allocation2 + $0x6b] sm:$0xff]
      %v6003 = vld [vmem:[#allocation2 + $0x73] sm:$0xff]
      %v6004 = vld [vmem:[#allocation2 + $0x7b] sm:$0xff]
      %v6005 = vld [vmem:[#allocation2 + $0x83] sm:$0xff]
      %v6006 = vld [vmem:[#allocation2 + $0x8b] sm:$0xff]
      %v6007 = vld [vmem:[#allocation2 + $0x93] sm:$0xff]
      %v6008 = vld [vmem:[#allocation2 + $0x9b] sm:$0xff]
      %v6009 = vld [vmem:[#allocation2 + $0xa3] sm:$0xff]
      %v6010 = vld [vmem:[#allocation2 + $0xab] sm:$0xff]
      %v6011 = vld [vmem:[#allocation2 + $0xb3] sm:$0xff]
      %v6012 = vld [vmem:[#allocation2 + $0xbb] sm:$0xff]
      %v6013 = vld [vmem:[#allocation2 + $0xc3] sm:$0xff]
      %v6014 = vld [vmem:[#allocation2 + $0xcb] sm:$0xff]
      %v6015 = vld [vmem:[#allocation2 + $0xd3] sm:$0xff]
      %v6016 = vld [vmem:[#allocation2 + $0xdb] sm:$0xff]
      %v6017 = vld [vmem:[#allocation2 + $0xe3] sm:$0xff]
      %v6018 = vld [vmem:[#allocation2 + $0xeb] sm:$0xff]
      %v6019 = vld [vmem:[#allocation2 + $0xf3] sm:$0xff]
      %v6020 = vld [vmem:[#allocation2 + $0xfb] sm:$0xff]
      %v6021 = vld [vmem:[#allocation2 + $0x103] sm:$0xff]
      %v6022 = vld [vmem:[#allocation2 + $0x10b] sm:$0xff]
      %v6023 = vld [vmem:[#allocation2 + $0x113] sm:$0xff]
      %v6024 = vld [vmem:[#allocation2 + $0x11b] sm:$0xff]
      %v6025 = vld [vmem:[#allocation2 + $0x123] sm:$0xff]
      %v6026 = vld [vmem:[#allocation2 + $0x12b] sm:$0xff]
      %v6027 = vpack.c.bf16 %v5992, %v5991
      %v6028 = vpack.c.bf16 %v5994, %v5993
      %v6029 = vpack.c.bf16 %v5996, %v5995
      %v6030 = vpack.c.bf16 %v5998, %v5997
      %v6031 = vpack.c.bf16 %v6000, %v5999
      %v6032 = vpack.c.bf16 %v6002, %v6001
      %v6033 = vpack.c.bf16 %v6004, %v6003
      %v6034 = vpack.c.bf16 %v6006, %v6005
      %v6035 = vpack.c.bf16 %v6008, %v6007
      %v6036 = vpack.c.bf16 %v6010, %v6009
      %v6037 = vpack.c.bf16 %v6012, %v6011
      %v6038 = vpack.c.bf16 %v6014, %v6013
      %v6039 = vpack.c.bf16 %v6016, %v6015
      %v6040 = vpack.c.bf16 %v6018, %v6017
      %v6041 = vpack.c.bf16 %v6020, %v6019
      %v6042 = vpack.c.bf16 %v6022, %v6021
      %v6043 = vpack.c.bf16 %v6024, %v6023
      %v6044 = vpack.c.bf16 %v6026, %v6025
      %s6045 = scalar_lea.vmem %s5, 192
      %v6046 = vld [vmem:[%s6045] sm:$0xf]
      %v6047 = vld [vmem:[%s6045 + $0x4] sm:$0xf]
      %v6048 = vld [vmem:[%s6045 + $0x8] sm:$0xf]
      %v6049 = vld [vmem:[%s6045 + $0xc] sm:$0xf]
      %v6050 = vld [vmem:[%s6045 + $0x10] sm:$0xf]
      %v6051 = vld [vmem:[%s6045 + $0x14] sm:$0xf]
      %v6052 = vld [vmem:[%s6045 + $0x18] sm:$0xf]
      %v6053 = vld [vmem:[%s6045 + $0x1c] sm:$0xf]
      %v6054 = vld [vmem:[%s6045 + $0x20] sm:$0xf]
      %v6055 = vld [vmem:[%s6045 + $0x24] sm:$0xf]
      %v6056 = vld [vmem:[%s6045 + $0x28] sm:$0xf]
      %v6057 = vld [vmem:[%s6045 + $0x2c] sm:$0xf]
      %v6070 = vunpack.c.l.b16 %v6046
      %v6071 = vunpack.c.l.b16 %v6047
      %v6072 = vunpack.c.l.b16 %v6048
      %v6073 = vunpack.c.l.b16 %v6049
      %v6074 = vunpack.c.l.b16 %v6050
      %v6075 = vunpack.c.l.b16 %v6051
      %v6076 = vunpack.c.l.b16 %v6052
      %v6077 = vunpack.c.l.b16 %v6053
      %v6078 = vunpack.c.l.b16 %v6054
      %v6079 = vunpack.c.l.b16 %v6055
      %v6080 = vunpack.c.l.b16 %v6056
      %v6081 = vunpack.c.l.b16 %v6057
      %v6082 = vpack.c.b16 %v6071, %v6070
      %v6083 = vpack.c.b16 %v6073, %v6072
      %v6084 = vpack.c.b16 %v6075, %v6074
      %v6085 = vpack.c.b16 %v6077, %v6076
      %v6086 = vpack.c.b16 %v6079, %v6078
      %v6087 = vpack.c.b16 %v6081, %v6080
      %v6095 = vsel %vm4506, %v6027, 0
      %v6098 = vsel %vm4506, %v6028, 0
      %v6101 = vsel %vm4506, %v6029, 0
      %v6104 = vsel %vm4506, %v6030, 0
      %v6107 = vsel %vm4506, %v6031, 0
      %v6110 = vsel %vm4506, %v6032, 0
      %v6113 = vsel %vm4506, %v6033, 0
      %v6116 = vsel %vm4506, %v6034, 0
      %v6119 = vsel %vm4506, %v6035, 0
      %v6122 = vsel %vm4506, %v6036, 0
      %v6125 = vsel %vm4506, %v6037, 0
      %v6128 = vsel %vm4506, %v6038, 0
      %v6131 = vsel %vm4506, %v6039, 0
      %v6134 = vsel %vm4506, %v6040, 0
      %v6137 = vsel %vm4506, %v6041, 0
      %v6140 = vsel %vm4506, %v6042, 0
      %v6143 = vsel %vm4506, %v6043, 0
      %v6146 = vsel %vm4506, %v6044, 0
      %6148 = vmatprep.subr.bf16.mxu0 0
      %6149 = vmatpush1.bf16.msra.mxu0 %v6082
      %6150 = vmatprep.subr.bf16.mxu0 0
      %6151 = vmatpush1.bf16.msra.mxu0 %v6083
      %6152 = vmatprep.subr.bf16.mxu0 0
      %6153 = vmatpush1.bf16.msra.mxu0 %v6084
      %6154 = vmatprep.subr.bf16.mxu0 0
      %6155 = vmatpush1.bf16.msra.mxu0 %v6085
      %6156 = vmatprep.subr.bf16.mxu0 0
      %6157 = vmatpush1.bf16.msra.mxu0 %v6086
      %6158 = vmatprep.subr.bf16.mxu0 0
      %6159 = vmatpush1.bf16.msra.mxu0 %v6087
      %6160 = vmatprep.subr.bf16.mxu0 0
      %6161 = vmatpush1.bf16.msra.mxu0 0
      %6162 = vmatprep.subr.bf16.mxu0 0
      %6163 = vmatpush1.bf16.msra.mxu0 0
      %6164 = vmatprep.subr.bf16.mxu0 0
      %6165 = vmatpush1.bf16.msra.mxu0 0
      %6166 = vmatprep.subr.bf16.mxu0 0
      %6167 = vmatpush1.bf16.msra.mxu0 0
      %6168 = vmatprep.subr.bf16.mxu0 0
      %6169 = vmatpush1.bf16.msra.mxu0 0
      %6170 = vmatprep.subr.bf16.mxu0 0
      %6171 = vmatpush1.bf16.msra.mxu0 0
      %6172 = vmatprep.subr.bf16.mxu0 0
      %6173 = vmatpush1.bf16.msra.mxu0 0
      %6174 = vmatprep.subr.bf16.mxu0 0
      %6175 = vmatpush1.bf16.msra.mxu0 0
      %6176 = vmatprep.subr.bf16.mxu0 0
      %6177 = vmatpush1.bf16.msra.mxu0 0
      %6178 = vmatprep.subr.bf16.mxu0 0
      %6179 = vmatpush1.bf16.msra.mxu0 0
      %6180 = vmatprep.mubr.bf16.mxu0 0
      %6181 = vmatmul.mubr.bf16.gmra.mrb[0].mxu0 %v6095
      %v6182 = vpop.f32.mrb[0].mxu0
      %v6183 = vadd.f32 0.0, %v6182
      %v6184 = vpop.f32.mrb[0].mxu0
      %v6185 = vpop.f32.mrb[0].mxu0
      %v6186 = vadd.f32 0.0, %v6185
      %v6187 = vpop.f32.mrb[0].mxu0
      %6188 = vmatprep.mubr.bf16.mxu0 0
      %6189 = vmatmul.mubr.bf16.gmra.mrb[0].mxu0 %v6098
      %v6190 = vpop.f32.mrb[0].mxu0
      %v6191 = vadd.f32 0.0, %v6190
      %v6192 = vpop.f32.mrb[0].mxu0
      %v6193 = vpop.f32.mrb[0].mxu0
      %v6194 = vadd.f32 0.0, %v6193
      %v6195 = vpop.f32.mrb[0].mxu0
      %6196 = vmatprep.mubr.bf16.mxu0 0
      %6197 = vmatmul.mubr.bf16.gmra.mrb[0].mxu0 %v6101
      %v6198 = vpop.f32.mrb[0].mxu0
      %v6199 = vadd.f32 0.0, %v6198
      %v6200 = vpop.f32.mrb[0].mxu0
      %v6201 = vpop.f32.mrb[0].mxu0
      %v6202 = vadd.f32 0.0, %v6201
      %v6203 = vpop.f32.mrb[0].mxu0
      %6204 = vmatprep.mubr.bf16.mxu0 0
      %6205 = vmatmul.mubr.bf16.gmra.mrb[0].mxu0 %v6104
      %v6206 = vpop.f32.mrb[0].mxu0
      %v6207 = vadd.f32 0.0, %v6206
      %v6208 = vpop.f32.mrb[0].mxu0
      %v6209 = vpop.f32.mrb[0].mxu0
      %v6210 = vadd.f32 0.0, %v6209
      %v6211 = vpop.f32.mrb[0].mxu0
      %6212 = vmatprep.mubr.bf16.mxu0 0
      %6213 = vmatmul.mubr.bf16.gmra.mrb[0].mxu0 %v6107
      %v6214 = vpop.f32.mrb[0].mxu0
      %v6215 = vadd.f32 0.0, %v6214
      %v6216 = vpop.f32.mrb[0].mxu0
      %v6217 = vpop.f32.mrb[0].mxu0
      %v6218 = vadd.f32 0.0, %v6217
      %v6219 = vpop.f32.mrb[0].mxu0
      %6220 = vmatprep.mubr.bf16.mxu0 0
      %6221 = vmatmul.mubr.bf16.gmra.mrb[0].mxu0 %v6110
      %v6222 = vpop.f32.mrb[0].mxu0
      %v6223 = vadd.f32 0.0, %v6222
      %v6224 = vpop.f32.mrb[0].mxu0
      %v6225 = vpop.f32.mrb[0].mxu0
      %v6226 = vadd.f32 0.0, %v6225
      %v6227 = vpop.f32.mrb[0].mxu0
      %6228 = vmatprep.mubr.bf16.mxu0 0
      %6229 = vmatmul.mubr.bf16.gmra.mrb[0].mxu0 %v6113
      %v6230 = vpop.f32.mrb[0].mxu0
      %v6231 = vadd.f32 0.0, %v6230
      %v6232 = vpop.f32.mrb[0].mxu0
      %v6233 = vpop.f32.mrb[0].mxu0
      %v6234 = vadd.f32 0.0, %v6233
      %v6235 = vpop.f32.mrb[0].mxu0
      %6236 = vmatprep.mubr.bf16.mxu0 0
      %6237 = vmatmul.mubr.bf16.gmra.mrb[0].mxu0 %v6116
      %v6238 = vpop.f32.mrb[0].mxu0
      %v6239 = vadd.f32 0.0, %v6238
      %v6240 = vpop.f32.mrb[0].mxu0
      %v6241 = vpop.f32.mrb[0].mxu0
      %v6242 = vadd.f32 0.0, %v6241
      %v6243 = vpop.f32.mrb[0].mxu0
      %6244 = vmatprep.mubr.bf16.mxu0 0
      %6245 = vmatmul.mubr.bf16.gmra.mrb[0].mxu0 %v6119
      %v6246 = vpop.f32.mrb[0].mxu0
      %v6247 = vadd.f32 0.0, %v6246
      %v6248 = vpop.f32.mrb[0].mxu0
      %v6249 = vpop.f32.mrb[0].mxu0
      %v6250 = vadd.f32 0.0, %v6249
      %v6251 = vpop.f32.mrb[0].mxu0
      %6252 = vmatprep.mubr.bf16.mxu0 0
      %6253 = vmatmul.mubr.bf16.gmra.mrb[0].mxu0 %v6122
      %v6254 = vpop.f32.mrb[0].mxu0
      %v6255 = vadd.f32 0.0, %v6254
      %v6256 = vpop.f32.mrb[0].mxu0
      %v6257 = vpop.f32.mrb[0].mxu0
      %v6258 = vadd.f32 0.0, %v6257
      %v6259 = vpop.f32.mrb[0].mxu0
      %6260 = vmatprep.mubr.bf16.mxu0 0
      %6261 = vmatmul.mubr.bf16.gmra.mrb[0].mxu0 %v6125
      %v6262 = vpop.f32.mrb[0].mxu0
      %v6263 = vadd.f32 0.0, %v6262
      %v6264 = vpop.f32.mrb[0].mxu0
      %v6265 = vpop.f32.mrb[0].mxu0
      %v6266 = vadd.f32 0.0, %v6265
      %v6267 = vpop.f32.mrb[0].mxu0
      %6268 = vmatprep.mubr.bf16.mxu0 0
      %6269 = vmatmul.mubr.bf16.gmra.mrb[0].mxu0 %v6128
      %v6270 = vpop.f32.mrb[0].mxu0
      %v6271 = vadd.f32 0.0, %v6270
      %v6272 = vpop.f32.mrb[0].mxu0
      %v6273 = vpop.f32.mrb[0].mxu0
      %v6274 = vadd.f32 0.0, %v6273
      %v6275 = vpop.f32.mrb[0].mxu0
      %6276 = vmatprep.mubr.bf16.mxu0 0
      %6277 = vmatmul.mubr.bf16.gmra.mrb[0].mxu0 %v6131
      %v6278 = vpop.f32.mrb[0].mxu0
      %v6279 = vadd.f32 0.0, %v6278
      %v6280 = vpop.f32.mrb[0].mxu0
      %v6281 = vpop.f32.mrb[0].mxu0
      %v6282 = vadd.f32 0.0, %v6281
      %v6283 = vpop.f32.mrb[0].mxu0
      %6284 = vmatprep.mubr.bf16.mxu0 0
      %6285 = vmatmul.mubr.bf16.gmra.mrb[0].mxu0 %v6134
      %v6286 = vpop.f32.mrb[0].mxu0
      %v6287 = vadd.f32 0.0, %v6286
      %v6288 = vpop.f32.mrb[0].mxu0
      %v6289 = vpop.f32.mrb[0].mxu0
      %v6290 = vadd.f32 0.0, %v6289
      %v6291 = vpop.f32.mrb[0].mxu0
      %6292 = vmatprep.mubr.bf16.mxu0 0
      %6293 = vmatmul.mubr.bf16.gmra.mrb[0].mxu0 %v6137
      %v6294 = vpop.f32.mrb[0].mxu0
      %v6295 = vadd.f32 0.0, %v6294
      %v6296 = vpop.f32.mrb[0].mxu0
      %v6297 = vpop.f32.mrb[0].mxu0
      %v6298 = vadd.f32 0.0, %v6297
      %v6299 = vpop.f32.mrb[0].mxu0
      %6300 = vmatprep.mubr.bf16.mxu0 0
      %6301 = vmatmul.mubr.bf16.gmra.mrb[0].mxu0 %v6140
      %v6302 = vpop.f32.mrb[0].mxu0
      %v6303 = vadd.f32 0.0, %v6302
      %v6304 = vpop.f32.mrb[0].mxu0
      %v6305 = vpop.f32.mrb[0].mxu0
      %v6306 = vadd.f32 0.0, %v6305
      %v6307 = vpop.f32.mrb[0].mxu0
      %6308 = vmatprep.mubr.bf16.mxu0 0
      %6309 = vmatmul.mubr.bf16.gmra.mrb[0].mxu0 %v6143
      %v6310 = vpop.f32.mrb[0].mxu0
      %v6311 = vadd.f32 0.0, %v6310
      %v6312 = vpop.f32.mrb[0].mxu0
      %v6313 = vpop.f32.mrb[0].mxu0
      %v6314 = vadd.f32 0.0, %v6313
      %v6315 = vpop.f32.mrb[0].mxu0
      %6316 = vmatprep.mubr.bf16.mxu0 0
      %6317 = vmatmul.mubr.bf16.gmra.mrb[0].mxu0 %v6146
      %v6318 = vpop.f32.mrb[0].mxu0
      %v6319 = vadd.f32 0.0, %v6318
      %v6320 = vpop.f32.mrb[0].mxu0
      %v6321 = vpop.f32.mrb[0].mxu0
      %v6322 = vadd.f32 0.0, %v6321
      %v6323 = vpop.f32.mrb[0].mxu0
      %6324 = vdwg.mxu0
      %v6325 = vadd.f32 %v5955, %v6183
      %v6326 = vadd.f32 %v5956, %v6186
      %v6327 = vadd.f32 %v5957, %v6191
      %v6328 = vadd.f32 %v5958, %v6194
      %v6329 = vadd.f32 %v5959, %v6199
      %v6330 = vadd.f32 %v5960, %v6202
      %v6331 = vadd.f32 %v5961, %v6207
      %v6332 = vadd.f32 %v5962, %v6210
      %v6333 = vadd.f32 %v5963, %v6215
      %v6334 = vadd.f32 %v5964, %v6218
      %v6335 = vadd.f32 %v5965, %v6223
      %v6336 = vadd.f32 %v5966, %v6226
      %v6337 = vadd.f32 %v5967, %v6231
      %v6338 = vadd.f32 %v5968, %v6234
      %v6339 = vadd.f32 %v5969, %v6239
      %v6340 = vadd.f32 %v5970, %v6242
      %v6341 = vadd.f32 %v5971, %v6247
      %v6342 = vadd.f32 %v5972, %v6250
      %v6343 = vadd.f32 %v5973, %v6255
      %v6344 = vadd.f32 %v5974, %v6258
      %v6345 = vadd.f32 %v5975, %v6263
      %v6346 = vadd.f32 %v5976, %v6266
      %v6347 = vadd.f32 %v5977, %v6271
      %v6348 = vadd.f32 %v5978, %v6274
      %v6349 = vadd.f32 %v5979, %v6279
      %v6350 = vadd.f32 %v5980, %v6282
      %v6351 = vadd.f32 %v5981, %v6287
      %v6352 = vadd.f32 %v5982, %v6290
      %v6353 = vadd.f32 %v5983, %v6295
      %v6354 = vadd.f32 %v5984, %v6298
      %v6355 = vadd.f32 %v5985, %v6303
      %v6356 = vadd.f32 %v5986, %v6306
      %v6357 = vadd.f32 %v5987, %v6311
      %v6358 = vadd.f32 %v5988, %v6314
      %v6359 = vadd.f32 %v5989, %v6319
      %v6360 = vadd.f32 %v5990, %v6322
      %v6361 = vld [vmem:[#allocation2 + $0x14] sm:$0xff]
      %v6362 = vld [vmem:[#allocation2 + $0x1c] sm:$0xff]
      %v6363 = vld [vmem:[#allocation2 + $0x24] sm:$0xff]
      %v6364 = vld [vmem:[#allocation2 + $0x2c] sm:$0xff]
      %v6365 = vld [vmem:[#allocation2 + $0x34] sm:$0xff]
      %v6366 = vld [vmem:[#allocation2 + $0x3c] sm:$0xff]
      %v6367 = vld [vmem:[#allocation2 + $0x44] sm:$0xff]
      %v6368 = vld [vmem:[#allocation2 + $0x4c] sm:$0xff]
      %v6369 = vld [vmem:[#allocation2 + $0x54] sm:$0xff]
      %v6370 = vld [vmem:[#allocation2 + $0x5c] sm:$0xff]
      %v6371 = vld [vmem:[#allocation2 + $0x64] sm:$0xff]
      %v6372 = vld [vmem:[#allocation2 + $0x6c] sm:$0xff]
      %v6373 = vld [vmem:[#allocation2 + $0x74] sm:$0xff]
      %v6374 = vld [vmem:[#allocation2 + $0x7c] sm:$0xff]
      %v6375 = vld [vmem:[#allocation2 + $0x84] sm:$0xff]
      %v6376 = vld [vmem:[#allocation2 + $0x8c] sm:$0xff]
      %v6377 = vld [vmem:[#allocation2 + $0x94] sm:$0xff]
      %v6378 = vld [vmem:[#allocation2 + $0x9c] sm:$0xff]
      %v6379 = vld [vmem:[#allocation2 + $0xa4] sm:$0xff]
      %v6380 = vld [vmem:[#allocation2 + $0xac] sm:$0xff]
      %v6381 = vld [vmem:[#allocation2 + $0xb4] sm:$0xff]
      %v6382 = vld [vmem:[#allocation2 + $0xbc] sm:$0xff]
      %v6383 = vld [vmem:[#allocation2 + $0xc4] sm:$0xff]
      %v6384 = vld [vmem:[#allocation2 + $0xcc] sm:$0xff]
      %v6385 = vld [vmem:[#allocation2 + $0xd4] sm:$0xff]
      %v6386 = vld [vmem:[#allocation2 + $0xdc] sm:$0xff]
      %v6387 = vld [vmem:[#allocation2 + $0xe4] sm:$0xff]
      %v6388 = vld [vmem:[#allocation2 + $0xec] sm:$0xff]
      %v6389 = vld [vmem:[#allocation2 + $0xf4] sm:$0xff]
      %v6390 = vld [vmem:[#allocation2 + $0xfc] sm:$0xff]
      %v6391 = vld [vmem:[#allocation2 + $0x104] sm:$0xff]
      %v6392 = vld [vmem:[#allocation2 + $0x10c] sm:$0xff]
      %v6393 = vld [vmem:[#allocation2 + $0x114] sm:$0xff]
      %v6394 = vld [vmem:[#allocation2 + $0x11c] sm:$0xff]
      %v6395 = vld [vmem:[#allocation2 + $0x124] sm:$0xff]
      %v6396 = vld [vmem:[#allocation2 + $0x12c] sm:$0xff]
      %v6397 = vpack.c.bf16 %v6362, %v6361
      %v6398 = vpack.c.bf16 %v6364, %v6363
      %v6399 = vpack.c.bf16 %v6366, %v6365
      %v6400 = vpack.c.bf16 %v6368, %v6367
      %v6401 = vpack.c.bf16 %v6370, %v6369
      %v6402 = vpack.c.bf16 %v6372, %v6371
      %v6403 = vpack.c.bf16 %v6374, %v6373
      %v6404 = vpack.c.bf16 %v6376, %v6375
      %v6405 = vpack.c.bf16 %v6378, %v6377
      %v6406 = vpack.c.bf16 %v6380, %v6379
      %v6407 = vpack.c.bf16 %v6382, %v6381
      %v6408 = vpack.c.bf16 %v6384, %v6383
      %v6409 = vpack.c.bf16 %v6386, %v6385
      %v6410 = vpack.c.bf16 %v6388, %v6387
      %v6411 = vpack.c.bf16 %v6390, %v6389
      %v6412 = vpack.c.bf16 %v6392, %v6391
      %v6413 = vpack.c.bf16 %v6394, %v6393
      %v6414 = vpack.c.bf16 %v6396, %v6395
      %s6415 = scalar_lea.vmem %s5, 240
      %v6416 = vld [vmem:[%s6415] sm:$0xf]
      %v6417 = vld [vmem:[%s6415 + $0x4] sm:$0xf]
      %v6418 = vld [vmem:[%s6415 + $0x8] sm:$0xf]
      %v6419 = vld [vmem:[%s6415 + $0xc] sm:$0xf]
      %v6420 = vld [vmem:[%s6415 + $0x10] sm:$0xf]
      %v6421 = vld [vmem:[%s6415 + $0x14] sm:$0xf]
      %v6422 = vld [vmem:[%s6415 + $0x18] sm:$0xf]
      %v6423 = vld [vmem:[%s6415 + $0x1c] sm:$0xf]
      %v6424 = vld [vmem:[%s6415 + $0x20] sm:$0xf]
      %v6425 = vld [vmem:[%s6415 + $0x24] sm:$0xf]
      %v6426 = vld [vmem:[%s6415 + $0x28] sm:$0xf]
      %v6427 = vld [vmem:[%s6415 + $0x2c] sm:$0xf]
      %v6440 = vunpack.c.l.b16 %v6416
      %v6441 = vunpack.c.l.b16 %v6417
      %v6442 = vunpack.c.l.b16 %v6418
      %v6443 = vunpack.c.l.b16 %v6419
      %v6444 = vunpack.c.l.b16 %v6420
      %v6445 = vunpack.c.l.b16 %v6421
      %v6446 = vunpack.c.l.b16 %v6422
      %v6447 = vunpack.c.l.b16 %v6423
      %v6448 = vunpack.c.l.b16 %v6424
      %v6449 = vunpack.c.l.b16 %v6425
      %v6450 = vunpack.c.l.b16 %v6426
      %v6451 = vunpack.c.l.b16 %v6427
      %v6452 = vpack.c.b16 %v6441, %v6440
      %v6453 = vpack.c.b16 %v6443, %v6442
      %v6454 = vpack.c.b16 %v6445, %v6444
      %v6455 = vpack.c.b16 %v6447, %v6446
      %v6456 = vpack.c.b16 %v6449, %v6448
      %v6457 = vpack.c.b16 %v6451, %v6450
      %v6465 = vsel %vm4506, %v6397, 0
      %v6468 = vsel %vm4506, %v6398, 0
      %v6471 = vsel %vm4506, %v6399, 0
      %v6474 = vsel %vm4506, %v6400, 0
      %v6477 = vsel %vm4506, %v6401, 0
      %v6480 = vsel %vm4506, %v6402, 0
      %v6483 = vsel %vm4506, %v6403, 0
      %v6486 = vsel %vm4506, %v6404, 0
      %v6489 = vsel %vm4506, %v6405, 0
      %v6492 = vsel %vm4506, %v6406, 0
      %v6495 = vsel %vm4506, %v6407, 0
      %v6498 = vsel %vm4506, %v6408, 0
      %v6501 = vsel %vm4506, %v6409, 0
      %v6504 = vsel %vm4506, %v6410, 0
      %v6507 = vsel %vm4506, %v6411, 0
      %v6510 = vsel %vm4506, %v6412, 0
      %v6513 = vsel %vm4506, %v6413, 0
      %v6516 = vsel %vm4506, %v6414, 0
      %6518 = vmatprep.subr.bf16.mxu0 0
      %6519 = vmatpush1.bf16.msra.mxu0 %v6452
      %6520 = vmatprep.subr.bf16.mxu0 0
      %6521 = vmatpush1.bf16.msra.mxu0 %v6453
      %6522 = vmatprep.subr.bf16.mxu0 0
      %6523 = vmatpush1.bf16.msra.mxu0 %v6454
      %6524 = vmatprep.subr.bf16.mxu0 0
      %6525 = vmatpush1.bf16.msra.mxu0 %v6455
      %6526 = vmatprep.subr.bf16.mxu0 0
      %6527 = vmatpush1.bf16.msra.mxu0 %v6456
      %6528 = vmatprep.subr.bf16.mxu0 0
      %6529 = vmatpush1.bf16.msra.mxu0 %v6457
      %6530 = vmatprep.subr.bf16.mxu0 0
      %6531 = vmatpush1.bf16.msra.mxu0 0
      %6532 = vmatprep.subr.bf16.mxu0 0
      %6533 = vmatpush1.bf16.msra.mxu0 0
      %6534 = vmatprep.subr.bf16.mxu0 0
      %6535 = vmatpush1.bf16.msra.mxu0 0
      %6536 = vmatprep.subr.bf16.mxu0 0
      %6537 = vmatpush1.bf16.msra.mxu0 0
      %6538 = vmatprep.subr.bf16.mxu0 0
      %6539 = vmatpush1.bf16.msra.mxu0 0
      %6540 = vmatprep.subr.bf16.mxu0 0
      %6541 = vmatpush1.bf16.msra.mxu0 0
      %6542 = vmatprep.subr.bf16.mxu0 0
      %6543 = vmatpush1.bf16.msra.mxu0 0
      %6544 = vmatprep.subr.bf16.mxu0 0
      %6545 = vmatpush1.bf16.msra.mxu0 0
      %6546 = vmatprep.subr.bf16.mxu0 0
      %6547 = vmatpush1.bf16.msra.mxu0 0
      %6548 = vmatprep.subr.bf16.mxu0 0
      %6549 = vmatpush1.bf16.msra.mxu0 0
      %6550 = vmatprep.mubr.bf16.mxu0 0
      %6551 = vmatmul.mubr.bf16.gmra.mrb[0].mxu0 %v6465
      %v6552 = vpop.f32.mrb[0].mxu0
      %v6553 = vadd.f32 0.0, %v6552
      %v6554 = vpop.f32.mrb[0].mxu0
      %v6555 = vpop.f32.mrb[0].mxu0
      %v6556 = vadd.f32 0.0, %v6555
      %v6557 = vpop.f32.mrb[0].mxu0
      %6558 = vmatprep.mubr.bf16.mxu0 0
      %6559 = vmatmul.mubr.bf16.gmra.mrb[0].mxu0 %v6468
      %v6560 = vpop.f32.mrb[0].mxu0
      %v6561 = vadd.f32 0.0, %v6560
      %v6562 = vpop.f32.mrb[0].mxu0
      %v6563 = vpop.f32.mrb[0].mxu0
      %v6564 = vadd.f32 0.0, %v6563
      %v6565 = vpop.f32.mrb[0].mxu0
      %6566 = vmatprep.mubr.bf16.mxu0 0
      %6567 = vmatmul.mubr.bf16.gmra.mrb[0].mxu0 %v6471
      %v6568 = vpop.f32.mrb[0].mxu0
      %v6569 = vadd.f32 0.0, %v6568
      %v6570 = vpop.f32.mrb[0].mxu0
      %v6571 = vpop.f32.mrb[0].mxu0
      %v6572 = vadd.f32 0.0, %v6571
      %v6573 = vpop.f32.mrb[0].mxu0
      %6574 = vmatprep.mubr.bf16.mxu0 0
      %6575 = vmatmul.mubr.bf16.gmra.mrb[0].mxu0 %v6474
      %v6576 = vpop.f32.mrb[0].mxu0
      %v6577 = vadd.f32 0.0, %v6576
      %v6578 = vpop.f32.mrb[0].mxu0
      %v6579 = vpop.f32.mrb[0].mxu0
      %v6580 = vadd.f32 0.0, %v6579
      %v6581 = vpop.f32.mrb[0].mxu0
      %6582 = vmatprep.mubr.bf16.mxu0 0
      %6583 = vmatmul.mubr.bf16.gmra.mrb[0].mxu0 %v6477
      %v6584 = vpop.f32.mrb[0].mxu0
      %v6585 = vadd.f32 0.0, %v6584
      %v6586 = vpop.f32.mrb[0].mxu0
      %v6587 = vpop.f32.mrb[0].mxu0
      %v6588 = vadd.f32 0.0, %v6587
      %v6589 = vpop.f32.mrb[0].mxu0
      %6590 = vmatprep.mubr.bf16.mxu0 0
      %6591 = vmatmul.mubr.bf16.gmra.mrb[0].mxu0 %v6480
      %v6592 = vpop.f32.mrb[0].mxu0
      %v6593 = vadd.f32 0.0, %v6592
      %v6594 = vpop.f32.mrb[0].mxu0
      %v6595 = vpop.f32.mrb[0].mxu0
      %v6596 = vadd.f32 0.0, %v6595
      %v6597 = vpop.f32.mrb[0].mxu0
      %6598 = vmatprep.mubr.bf16.mxu0 0
      %6599 = vmatmul.mubr.bf16.gmra.mrb[0].mxu0 %v6483
      %v6600 = vpop.f32.mrb[0].mxu0
      %v6601 = vadd.f32 0.0, %v6600
      %v6602 = vpop.f32.mrb[0].mxu0
      %v6603 = vpop.f32.mrb[0].mxu0
      %v6604 = vadd.f32 0.0, %v6603
      %v6605 = vpop.f32.mrb[0].mxu0
      %6606 = vmatprep.mubr.bf16.mxu0 0
      %6607 = vmatmul.mubr.bf16.gmra.mrb[0].mxu0 %v6486
      %v6608 = vpop.f32.mrb[0].mxu0
      %v6609 = vadd.f32 0.0, %v6608
      %v6610 = vpop.f32.mrb[0].mxu0
      %v6611 = vpop.f32.mrb[0].mxu0
      %v6612 = vadd.f32 0.0, %v6611
      %v6613 = vpop.f32.mrb[0].mxu0
      %6614 = vmatprep.mubr.bf16.mxu0 0
      %6615 = vmatmul.mubr.bf16.gmra.mrb[0].mxu0 %v6489
      %v6616 = vpop.f32.mrb[0].mxu0
      %v6617 = vadd.f32 0.0, %v6616
      %v6618 = vpop.f32.mrb[0].mxu0
      %v6619 = vpop.f32.mrb[0].mxu0
      %v6620 = vadd.f32 0.0, %v6619
      %v6621 = vpop.f32.mrb[0].mxu0
      %6622 = vmatprep.mubr.bf16.mxu0 0
      %6623 = vmatmul.mubr.bf16.gmra.mrb[0].mxu0 %v6492
      %v6624 = vpop.f32.mrb[0].mxu0
      %v6625 = vadd.f32 0.0, %v6624
      %v6626 = vpop.f32.mrb[0].mxu0
      %v6627 = vpop.f32.mrb[0].mxu0
      %v6628 = vadd.f32 0.0, %v6627
      %v6629 = vpop.f32.mrb[0].mxu0
      %6630 = vmatprep.mubr.bf16.mxu0 0
      %6631 = vmatmul.mubr.bf16.gmra.mrb[0].mxu0 %v6495
      %v6632 = vpop.f32.mrb[0].mxu0
      %v6633 = vadd.f32 0.0, %v6632
      %v6634 = vpop.f32.mrb[0].mxu0
      %v6635 = vpop.f32.mrb[0].mxu0
      %v6636 = vadd.f32 0.0, %v6635
      %v6637 = vpop.f32.mrb[0].mxu0
      %6638 = vmatprep.mubr.bf16.mxu0 0
      %6639 = vmatmul.mubr.bf16.gmra.mrb[0].mxu0 %v6498
      %v6640 = vpop.f32.mrb[0].mxu0
      %v6641 = vadd.f32 0.0, %v6640
      %v6642 = vpop.f32.mrb[0].mxu0
      %v6643 = vpop.f32.mrb[0].mxu0
      %v6644 = vadd.f32 0.0, %v6643
      %v6645 = vpop.f32.mrb[0].mxu0
      %6646 = vmatprep.mubr.bf16.mxu0 0
      %6647 = vmatmul.mubr.bf16.gmra.mrb[0].mxu0 %v6501
      %v6648 = vpop.f32.mrb[0].mxu0
      %v6649 = vadd.f32 0.0, %v6648
      %v6650 = vpop.f32.mrb[0].mxu0
      %v6651 = vpop.f32.mrb[0].mxu0
      %v6652 = vadd.f32 0.0, %v6651
      %v6653 = vpop.f32.mrb[0].mxu0
      %6654 = vmatprep.mubr.bf16.mxu0 0
      %6655 = vmatmul.mubr.bf16.gmra.mrb[0].mxu0 %v6504
      %v6656 = vpop.f32.mrb[0].mxu0
      %v6657 = vadd.f32 0.0, %v6656
      %v6658 = vpop.f32.mrb[0].mxu0
      %v6659 = vpop.f32.mrb[0].mxu0
      %v6660 = vadd.f32 0.0, %v6659
      %v6661 = vpop.f32.mrb[0].mxu0
      %6662 = vmatprep.mubr.bf16.mxu0 0
      %6663 = vmatmul.mubr.bf16.gmra.mrb[0].mxu0 %v6507
      %v6664 = vpop.f32.mrb[0].mxu0
      %v6665 = vadd.f32 0.0, %v6664
      %v6666 = vpop.f32.mrb[0].mxu0
      %v6667 = vpop.f32.mrb[0].mxu0
      %v6668 = vadd.f32 0.0, %v6667
      %v6669 = vpop.f32.mrb[0].mxu0
      %6670 = vmatprep.mubr.bf16.mxu0 0
      %6671 = vmatmul.mubr.bf16.gmra.mrb[0].mxu0 %v6510
      %v6672 = vpop.f32.mrb[0].mxu0
      %v6673 = vadd.f32 0.0, %v6672
      %v6674 = vpop.f32.mrb[0].mxu0
      %v6675 = vpop.f32.mrb[0].mxu0
      %v6676 = vadd.f32 0.0, %v6675
      %v6677 = vpop.f32.mrb[0].mxu0
      %6678 = vmatprep.mubr.bf16.mxu0 0
      %6679 = vmatmul.mubr.bf16.gmra.mrb[0].mxu0 %v6513
      %v6680 = vpop.f32.mrb[0].mxu0
      %v6681 = vadd.f32 0.0, %v6680
      %v6682 = vpop.f32.mrb[0].mxu0
      %v6683 = vpop.f32.mrb[0].mxu0
      %v6684 = vadd.f32 0.0, %v6683
      %v6685 = vpop.f32.mrb[0].mxu0
      %6686 = vmatprep.mubr.bf16.mxu0 0
      %6687 = vmatmul.mubr.bf16.gmra.mrb[0].mxu0 %v6516
      %v6688 = vpop.f32.mrb[0].mxu0
      %v6689 = vadd.f32 0.0, %v6688
      %v6690 = vpop.f32.mrb[0].mxu0
      %v6691 = vpop.f32.mrb[0].mxu0
      %v6692 = vadd.f32 0.0, %v6691
      %v6693 = vpop.f32.mrb[0].mxu0
      %6694 = vdwg.mxu0
      %v6695 = vadd.f32 %v6325, %v6553
      %v6696 = vadd.f32 %v6326, %v6556
      %v6697 = vadd.f32 %v6327, %v6561
      %v6698 = vadd.f32 %v6328, %v6564
      %v6699 = vadd.f32 %v6329, %v6569
      %v6700 = vadd.f32 %v6330, %v6572
      %v6701 = vadd.f32 %v6331, %v6577
      %v6702 = vadd.f32 %v6332, %v6580
      %v6703 = vadd.f32 %v6333, %v6585
      %v6704 = vadd.f32 %v6334, %v6588
      %v6705 = vadd.f32 %v6335, %v6593
      %v6706 = vadd.f32 %v6336, %v6596
      %v6707 = vadd.f32 %v6337, %v6601
      %v6708 = vadd.f32 %v6338, %v6604
      %v6709 = vadd.f32 %v6339, %v6609
      %v6710 = vadd.f32 %v6340, %v6612
      %v6711 = vadd.f32 %v6341, %v6617
      %v6712 = vadd.f32 %v6342, %v6620
      %v6713 = vadd.f32 %v6343, %v6625
      %v6714 = vadd.f32 %v6344, %v6628
      %v6715 = vadd.f32 %v6345, %v6633
      %v6716 = vadd.f32 %v6346, %v6636
      %v6717 = vadd.f32 %v6347, %v6641
      %v6718 = vadd.f32 %v6348, %v6644
      %v6719 = vadd.f32 %v6349, %v6649
      %v6720 = vadd.f32 %v6350, %v6652
      %v6721 = vadd.f32 %v6351, %v6657
      %v6722 = vadd.f32 %v6352, %v6660
      %v6723 = vadd.f32 %v6353, %v6665
      %v6724 = vadd.f32 %v6354, %v6668
      %v6725 = vadd.f32 %v6355, %v6673
      %v6726 = vadd.f32 %v6356, %v6676
      %v6727 = vadd.f32 %v6357, %v6681
      %v6728 = vadd.f32 %v6358, %v6684
      %v6729 = vadd.f32 %v6359, %v6689
      %v6730 = vadd.f32 %v6360, %v6692
      %v6731 = vld [vmem:[#allocation2 + $0x24] sm:$0xff]
      %v6732 = vld [vmem:[#allocation2 + $0x2c] sm:$0xff]
      %v6733 = vld [vmem:[#allocation2 + $0x34] sm:$0xff]
      %v6734 = vld [vmem:[#allocation2 + $0x3c] sm:$0xff]
      %v6735 = vld [vmem:[#allocation2 + $0x44] sm:$0xff]
      %v6736 = vld [vmem:[#allocation2 + $0x4c] sm:$0xff]
      %v6737 = vld [vmem:[#allocation2 + $0x54] sm:$0xff]
      %v6738 = vld [vmem:[#allocation2 + $0x5c] sm:$0xff]
      %v6739 = vld [vmem:[#allocation2 + $0x64] sm:$0xff]
      %v6740 = vld [vmem:[#allocation2 + $0x6c] sm:$0xff]
      %v6741 = vld [vmem:[#allocation2 + $0x74] sm:$0xff]
      %v6742 = vld [vmem:[#allocation2 + $0x7c] sm:$0xff]
      %v6743 = vld [vmem:[#allocation2 + $0x84] sm:$0xff]
      %v6744 = vld [vmem:[#allocation2 + $0x8c] sm:$0xff]
      %v6745 = vld [vmem:[#allocation2 + $0x94] sm:$0xff]
      %v6746 = vld [vmem:[#allocation2 + $0x9c] sm:$0xff]
      %v6747 = vld [vmem:[#allocation2 + $0xa4] sm:$0xff]
      %v6748 = vld [vmem:[#allocation2 + $0xac] sm:$0xff]
      %v6749 = vld [vmem:[#allocation2 + $0xb4] sm:$0xff]
      %v6750 = vld [vmem:[#allocation2 + $0xbc] sm:$0xff]
      %v6751 = vld [vmem:[#allocation2 + $0xc4] sm:$0xff]
      %v6752 = vld [vmem:[#allocation2 + $0xcc] sm:$0xff]
      %v6753 = vld [vmem:[#allocation2 + $0xd4] sm:$0xff]
      %v6754 = vld [vmem:[#allocation2 + $0xdc] sm:$0xff]
      %v6755 = vld [vmem:[#allocation2 + $0xe4] sm:$0xff]
      %v6756 = vld [vmem:[#allocation2 + $0xec] sm:$0xff]
      %v6757 = vld [vmem:[#allocation2 + $0xf4] sm:$0xff]
      %v6758 = vld [vmem:[#allocation2 + $0xfc] sm:$0xff]
      %v6759 = vld [vmem:[#allocation2 + $0x104] sm:$0xff]
      %v6760 = vld [vmem:[#allocation2 + $0x10c] sm:$0xff]
      %v6761 = vld [vmem:[#allocation2 + $0x114] sm:$0xff]
      %v6762 = vld [vmem:[#allocation2 + $0x11c] sm:$0xff]
      %v6763 = vld [vmem:[#allocation2 + $0x124] sm:$0xff]
      %v6764 = vld [vmem:[#allocation2 + $0x12c] sm:$0xff]
      %v6765 = vld [vmem:[#allocation2 + $0x134] sm:$0xff]
      %v6766 = vld [vmem:[#allocation2 + $0x13c] sm:$0xff]
      %v6767 = vpack.c.bf16 %v6732, %v6731
      %v6768 = vpack.c.bf16 %v6734, %v6733
      %v6769 = vpack.c.bf16 %v6736, %v6735
      %v6770 = vpack.c.bf16 %v6738, %v6737
      %v6771 = vpack.c.bf16 %v6740, %v6739
      %v6772 = vpack.c.bf16 %v6742, %v6741
      %v6773 = vpack.c.bf16 %v6744, %v6743
      %v6774 = vpack.c.bf16 %v6746, %v6745
      %v6775 = vpack.c.bf16 %v6748, %v6747
      %v6776 = vpack.c.bf16 %v6750, %v6749
      %v6777 = vpack.c.bf16 %v6752, %v6751
      %v6778 = vpack.c.bf16 %v6754, %v6753
      %v6779 = vpack.c.bf16 %v6756, %v6755
      %v6780 = vpack.c.bf16 %v6758, %v6757
      %v6781 = vpack.c.bf16 %v6760, %v6759
      %v6782 = vpack.c.bf16 %v6762, %v6761
      %v6783 = vpack.c.bf16 %v6764, %v6763
      %v6784 = vpack.c.bf16 %v6766, %v6765
      %s6785 = scalar_lea.vmem %s5, 288
      %v6786 = vld [vmem:[%s6785] sm:$0xf]
      %v6787 = vld [vmem:[%s6785 + $0x4] sm:$0xf]
      %v6788 = vld [vmem:[%s6785 + $0x8] sm:$0xf]
      %v6789 = vld [vmem:[%s6785 + $0xc] sm:$0xf]
      %v6790 = vld [vmem:[%s6785 + $0x10] sm:$0xf]
      %v6791 = vld [vmem:[%s6785 + $0x14] sm:$0xf]
      %v6792 = vld [vmem:[%s6785 + $0x18] sm:$0xf]
      %v6793 = vld [vmem:[%s6785 + $0x1c] sm:$0xf]
      %v6794 = vld [vmem:[%s6785 + $0x20] sm:$0xf]
      %v6795 = vld [vmem:[%s6785 + $0x24] sm:$0xf]
      %v6796 = vld [vmem:[%s6785 + $0x28] sm:$0xf]
      %v6797 = vld [vmem:[%s6785 + $0x2c] sm:$0xf]
      %v6810 = vunpack.c.l.b16 %v6786
      %v6811 = vunpack.c.l.b16 %v6787
      %v6812 = vunpack.c.l.b16 %v6788
      %v6813 = vunpack.c.l.b16 %v6789
      %v6814 = vunpack.c.l.b16 %v6790
      %v6815 = vunpack.c.l.b16 %v6791
      %v6816 = vunpack.c.l.b16 %v6792
      %v6817 = vunpack.c.l.b16 %v6793
      %v6818 = vunpack.c.l.b16 %v6794
      %v6819 = vunpack.c.l.b16 %v6795
      %v6820 = vunpack.c.l.b16 %v6796
      %v6821 = vunpack.c.l.b16 %v6797
      %v6822 = vpack.c.b16 %v6811, %v6810
      %v6823 = vpack.c.b16 %v6813, %v6812
      %v6824 = vpack.c.b16 %v6815, %v6814
      %v6825 = vpack.c.b16 %v6817, %v6816
      %v6826 = vpack.c.b16 %v6819, %v6818
      %v6827 = vpack.c.b16 %v6821, %v6820
      %v6835 = vsel %vm4506, %v6767, 0
      %v6838 = vsel %vm4506, %v6768, 0
      %v6841 = vsel %vm4506, %v6769, 0
      %v6844 = vsel %vm4506, %v6770, 0
      %v6847 = vsel %vm4506, %v6771, 0
      %v6850 = vsel %vm4506, %v6772, 0
      %v6853 = vsel %vm4506, %v6773, 0
      %v6856 = vsel %vm4506, %v6774, 0
      %v6859 = vsel %vm4506, %v6775, 0
      %v6862 = vsel %vm4506, %v6776, 0
      %v6865 = vsel %vm4506, %v6777, 0
      %v6868 = vsel %vm4506, %v6778, 0
      %v6871 = vsel %vm4506, %v6779, 0
      %v6874 = vsel %vm4506, %v6780, 0
      %v6877 = vsel %vm4506, %v6781, 0
      %v6880 = vsel %vm4506, %v6782, 0
      %v6883 = vsel %vm4506, %v6783, 0
      %v6886 = vsel %vm4506, %v6784, 0
      %6888 = vmatprep.subr.bf16.mxu0 0
      %6889 = vmatpush1.bf16.msra.mxu0 %v6822
      %6890 = vmatprep.subr.bf16.mxu0 0
      %6891 = vmatpush1.bf16.msra.mxu0 %v6823
      %6892 = vmatprep.subr.bf16.mxu0 0
      %6893 = vmatpush1.bf16.msra.mxu0 %v6824
      %6894 = vmatprep.subr.bf16.mxu0 0
      %6895 = vmatpush1.bf16.msra.mxu0 %v6825
      %6896 = vmatprep.subr.bf16.mxu0 0
      %6897 = vmatpush1.bf16.msra.mxu0 %v6826
      %6898 = vmatprep.subr.bf16.mxu0 0
      %6899 = vmatpush1.bf16.msra.mxu0 %v6827
      %6900 = vmatprep.subr.bf16.mxu0 0
      %6901 = vmatpush1.bf16.msra.mxu0 0
      %6902 = vmatprep.subr.bf16.mxu0 0
      %6903 = vmatpush1.bf16.msra.mxu0 0
      %6904 = vmatprep.subr.bf16.mxu0 0
      %6905 = vmatpush1.bf16.msra.mxu0 0
      %6906 = vmatprep.subr.bf16.mxu0 0
      %6907 = vmatpush1.bf16.msra.mxu0 0
      %6908 = vmatprep.subr.bf16.mxu0 0
      %6909 = vmatpush1.bf16.msra.mxu0 0
      %6910 = vmatprep.subr.bf16.mxu0 0
      %6911 = vmatpush1.bf16.msra.mxu0 0
      %6912 = vmatprep.subr.bf16.mxu0 0
      %6913 = vmatpush1.bf16.msra.mxu0 0
      %6914 = vmatprep.subr.bf16.mxu0 0
      %6915 = vmatpush1.bf16.msra.mxu0 0
      %6916 = vmatprep.subr.bf16.mxu0 0
      %6917 = vmatpush1.bf16.msra.mxu0 0
      %6918 = vmatprep.subr.bf16.mxu0 0
      %6919 = vmatpush1.bf16.msra.mxu0 0
      %6920 = vmatprep.mubr.bf16.mxu0 0
      %6921 = vmatmul.mubr.bf16.gmra.mrb[0].mxu0 %v6835
      %v6922 = vpop.f32.mrb[0].mxu0
      %v6923 = vadd.f32 0.0, %v6922
      %v6924 = vpop.f32.mrb[0].mxu0
      %v6925 = vpop.f32.mrb[0].mxu0
      %v6926 = vadd.f32 0.0, %v6925
      %v6927 = vpop.f32.mrb[0].mxu0
      %6928 = vmatprep.mubr.bf16.mxu0 0
      %6929 = vmatmul.mubr.bf16.gmra.mrb[0].mxu0 %v6838
      %v6930 = vpop.f32.mrb[0].mxu0
      %v6931 = vadd.f32 0.0, %v6930
      %v6932 = vpop.f32.mrb[0].mxu0
      %v6933 = vpop.f32.mrb[0].mxu0
      %v6934 = vadd.f32 0.0, %v6933
      %v6935 = vpop.f32.mrb[0].mxu0
      %6936 = vmatprep.mubr.bf16.mxu0 0
      %6937 = vmatmul.mubr.bf16.gmra.mrb[0].mxu0 %v6841
      %v6938 = vpop.f32.mrb[0].mxu0
      %v6939 = vadd.f32 0.0, %v6938
      %v6940 = vpop.f32.mrb[0].mxu0
      %v6941 = vpop.f32.mrb[0].mxu0
      %v6942 = vadd.f32 0.0, %v6941
      %v6943 = vpop.f32.mrb[0].mxu0
      %6944 = vmatprep.mubr.bf16.mxu0 0
      %6945 = vmatmul.mubr.bf16.gmra.mrb[0].mxu0 %v6844
      %v6946 = vpop.f32.mrb[0].mxu0
      %v6947 = vadd.f32 0.0, %v6946
      %v6948 = vpop.f32.mrb[0].mxu0
      %v6949 = vpop.f32.mrb[0].mxu0
      %v6950 = vadd.f32 0.0, %v6949
      %v6951 = vpop.f32.mrb[0].mxu0
      %6952 = vmatprep.mubr.bf16.mxu0 0
      %6953 = vmatmul.mubr.bf16.gmra.mrb[0].mxu0 %v6847
      %v6954 = vpop.f32.mrb[0].mxu0
      %v6955 = vadd.f32 0.0, %v6954
      %v6956 = vpop.f32.mrb[0].mxu0
      %v6957 = vpop.f32.mrb[0].mxu0
      %v6958 = vadd.f32 0.0, %v6957
      %v6959 = vpop.f32.mrb[0].mxu0
      %6960 = vmatprep.mubr.bf16.mxu0 0
      %6961 = vmatmul.mubr.bf16.gmra.mrb[0].mxu0 %v6850
      %v6962 = vpop.f32.mrb[0].mxu0
      %v6963 = vadd.f32 0.0, %v6962
      %v6964 = vpop.f32.mrb[0].mxu0
      %v6965 = vpop.f32.mrb[0].mxu0
      %v6966 = vadd.f32 0.0, %v6965
      %v6967 = vpop.f32.mrb[0].mxu0
      %6968 = vmatprep.mubr.bf16.mxu0 0
      %6969 = vmatmul.mubr.bf16.gmra.mrb[0].mxu0 %v6853
      %v6970 = vpop.f32.mrb[0].mxu0
      %v6971 = vadd.f32 0.0, %v6970
      %v6972 = vpop.f32.mrb[0].mxu0
      %v6973 = vpop.f32.mrb[0].mxu0
      %v6974 = vadd.f32 0.0, %v6973
      %v6975 = vpop.f32.mrb[0].mxu0
      %6976 = vmatprep.mubr.bf16.mxu0 0
      %6977 = vmatmul.mubr.bf16.gmra.mrb[0].mxu0 %v6856
      %v6978 = vpop.f32.mrb[0].mxu0
      %v6979 = vadd.f32 0.0, %v6978
      %v6980 = vpop.f32.mrb[0].mxu0
      %v6981 = vpop.f32.mrb[0].mxu0
      %v6982 = vadd.f32 0.0, %v6981
      %v6983 = vpop.f32.mrb[0].mxu0
      %6984 = vmatprep.mubr.bf16.mxu0 0
      %6985 = vmatmul.mubr.bf16.gmra.mrb[0].mxu0 %v6859
      %v6986 = vpop.f32.mrb[0].mxu0
      %v6987 = vadd.f32 0.0, %v6986
      %v6988 = vpop.f32.mrb[0].mxu0
      %v6989 = vpop.f32.mrb[0].mxu0
      %v6990 = vadd.f32 0.0, %v6989
      %v6991 = vpop.f32.mrb[0].mxu0
      %6992 = vmatprep.mubr.bf16.mxu0 0
      %6993 = vmatmul.mubr.bf16.gmra.mrb[0].mxu0 %v6862
      %v6994 = vpop.f32.mrb[0].mxu0
      %v6995 = vadd.f32 0.0, %v6994
      %v6996 = vpop.f32.mrb[0].mxu0
      %v6997 = vpop.f32.mrb[0].mxu0
      %v6998 = vadd.f32 0.0, %v6997
      %v6999 = vpop.f32.mrb[0].mxu0
      %7000 = vmatprep.mubr.bf16.mxu0 0
      %7001 = vmatmul.mubr.bf16.gmra.mrb[0].mxu0 %v6865
      %v7002 = vpop.f32.mrb[0].mxu0
      %v7003 = vadd.f32 0.0, %v7002
      %v7004 = vpop.f32.mrb[0].mxu0
      %v7005 = vpop.f32.mrb[0].mxu0
      %v7006 = vadd.f32 0.0, %v7005
      %v7007 = vpop.f32.mrb[0].mxu0
      %7008 = vmatprep.mubr.bf16.mxu0 0
      %7009 = vmatmul.mubr.bf16.gmra.mrb[0].mxu0 %v6868
      %v7010 = vpop.f32.mrb[0].mxu0
      %v7011 = vadd.f32 0.0, %v7010
      %v7012 = vpop.f32.mrb[0].mxu0
      %v7013 = vpop.f32.mrb[0].mxu0
      %v7014 = vadd.f32 0.0, %v7013
      %v7015 = vpop.f32.mrb[0].mxu0
      %7016 = vmatprep.mubr.bf16.mxu0 0
      %7017 = vmatmul.mubr.bf16.gmra.mrb[0].mxu0 %v6871
      %v7018 = vpop.f32.mrb[0].mxu0
      %v7019 = vadd.f32 0.0, %v7018
      %v7020 = vpop.f32.mrb[0].mxu0
      %v7021 = vpop.f32.mrb[0].mxu0
      %v7022 = vadd.f32 0.0, %v7021
      %v7023 = vpop.f32.mrb[0].mxu0
      %7024 = vmatprep.mubr.bf16.mxu0 0
      %7025 = vmatmul.mubr.bf16.gmra.mrb[0].mxu0 %v6874
      %v7026 = vpop.f32.mrb[0].mxu0
      %v7027 = vadd.f32 0.0, %v7026
      %v7028 = vpop.f32.mrb[0].mxu0
      %v7029 = vpop.f32.mrb[0].mxu0
      %v7030 = vadd.f32 0.0, %v7029
      %v7031 = vpop.f32.mrb[0].mxu0
      %7032 = vmatprep.mubr.bf16.mxu0 0
      %7033 = vmatmul.mubr.bf16.gmra.mrb[0].mxu0 %v6877
      %v7034 = vpop.f32.mrb[0].mxu0
      %v7035 = vadd.f32 0.0, %v7034
      %v7036 = vpop.f32.mrb[0].mxu0
      %v7037 = vpop.f32.mrb[0].mxu0
      %v7038 = vadd.f32 0.0, %v7037
      %v7039 = vpop.f32.mrb[0].mxu0
      %7040 = vmatprep.mubr.bf16.mxu0 0
      %7041 = vmatmul.mubr.bf16.gmra.mrb[0].mxu0 %v6880
      %v7042 = vpop.f32.mrb[0].mxu0
      %v7043 = vadd.f32 0.0, %v7042
      %v7044 = vpop.f32.mrb[0].mxu0
      %v7045 = vpop.f32.mrb[0].mxu0
      %v7046 = vadd.f32 0.0, %v7045
      %v7047 = vpop.f32.mrb[0].mxu0
      %7048 = vmatprep.mubr.bf16.mxu0 0
      %7049 = vmatmul.mubr.bf16.gmra.mrb[0].mxu0 %v6883
      %v7050 = vpop.f32.mrb[0].mxu0
      %v7051 = vadd.f32 0.0, %v7050
      %v7052 = vpop.f32.mrb[0].mxu0
      %v7053 = vpop.f32.mrb[0].mxu0
      %v7054 = vadd.f32 0.0, %v7053
      %v7055 = vpop.f32.mrb[0].mxu0
      %7056 = vmatprep.mubr.bf16.mxu0 0
      %7057 = vmatmul.mubr.bf16.gmra.mrb[0].mxu0 %v6886
      %v7058 = vpop.f32.mrb[0].mxu0
      %v7059 = vadd.f32 0.0, %v7058
      %v7060 = vpop.f32.mrb[0].mxu0
      %v7061 = vpop.f32.mrb[0].mxu0
      %v7062 = vadd.f32 0.0, %v7061
      %v7063 = vpop.f32.mrb[0].mxu0
      %7064 = vdwg.mxu0
      %v7065 = vadd.f32 %v6695, %v6923
      %v7066 = vadd.f32 %v6696, %v6926
      %v7067 = vadd.f32 %v6697, %v6931
      %v7068 = vadd.f32 %v6698, %v6934
      %v7069 = vadd.f32 %v6699, %v6939
      %v7070 = vadd.f32 %v6700, %v6942
      %v7071 = vadd.f32 %v6701, %v6947
      %v7072 = vadd.f32 %v6702, %v6950
      %v7073 = vadd.f32 %v6703, %v6955
      %v7074 = vadd.f32 %v6704, %v6958
      %v7075 = vadd.f32 %v6705, %v6963
      %v7076 = vadd.f32 %v6706, %v6966
      %v7077 = vadd.f32 %v6707, %v6971
      %v7078 = vadd.f32 %v6708, %v6974
      %v7079 = vadd.f32 %v6709, %v6979
      %v7080 = vadd.f32 %v6710, %v6982
      %v7081 = vadd.f32 %v6711, %v6987
      %v7082 = vadd.f32 %v6712, %v6990
      %v7083 = vadd.f32 %v6713, %v6995
      %v7084 = vadd.f32 %v6714, %v6998
      %v7085 = vadd.f32 %v6715, %v7003
      %v7086 = vadd.f32 %v6716, %v7006
      %v7087 = vadd.f32 %v6717, %v7011
      %v7088 = vadd.f32 %v6718, %v7014
      %v7089 = vadd.f32 %v6719, %v7019
      %v7090 = vadd.f32 %v6720, %v7022
      %v7091 = vadd.f32 %v6721, %v7027
      %v7092 = vadd.f32 %v6722, %v7030
      %v7093 = vadd.f32 %v6723, %v7035
      %v7094 = vadd.f32 %v6724, %v7038
      %v7095 = vadd.f32 %v6725, %v7043
      %v7096 = vadd.f32 %v6726, %v7046
      %v7097 = vadd.f32 %v6727, %v7051
      %v7098 = vadd.f32 %v6728, %v7054
      %v7099 = vadd.f32 %v6729, %v7059
      %v7100 = vadd.f32 %v6730, %v7062
      %v7101 = vld [vmem:[#allocation2 + $0x25] sm:$0xff]
      %v7102 = vld [vmem:[#allocation2 + $0x2d] sm:$0xff]
      %v7103 = vld [vmem:[#allocation2 + $0x35] sm:$0xff]
      %v7104 = vld [vmem:[#allocation2 + $0x3d] sm:$0xff]
      %v7105 = vld [vmem:[#allocation2 + $0x45] sm:$0xff]
      %v7106 = vld [vmem:[#allocation2 + $0x4d] sm:$0xff]
      %v7107 = vld [vmem:[#allocation2 + $0x55] sm:$0xff]
      %v7108 = vld [vmem:[#allocation2 + $0x5d] sm:$0xff]
      %v7109 = vld [vmem:[#allocation2 + $0x65] sm:$0xff]
      %v7110 = vld [vmem:[#allocation2 + $0x6d] sm:$0xff]
      %v7111 = vld [vmem:[#allocation2 + $0x75] sm:$0xff]
      %v7112 = vld [vmem:[#allocation2 + $0x7d] sm:$0xff]
      %v7113 = vld [vmem:[#allocation2 + $0x85] sm:$0xff]
      %v7114 = vld [vmem:[#allocation2 + $0x8d] sm:$0xff]
      %v7115 = vld [vmem:[#allocation2 + $0x95] sm:$0xff]
      %v7116 = vld [vmem:[#allocation2 + $0x9d] sm:$0xff]
      %v7117 = vld [vmem:[#allocation2 + $0xa5] sm:$0xff]
      %v7118 = vld [vmem:[#allocation2 + $0xad] sm:$0xff]
      %v7119 = vld [vmem:[#allocation2 + $0xb5] sm:$0xff]
      %v7120 = vld [vmem:[#allocation2 + $0xbd] sm:$0xff]
      %v7121 = vld [vmem:[#allocation2 + $0xc5] sm:$0xff]
      %v7122 = vld [vmem:[#allocation2 + $0xcd] sm:$0xff]
      %v7123 = vld [vmem:[#allocation2 + $0xd5] sm:$0xff]
      %v7124 = vld [vmem:[#allocation2 + $0xdd] sm:$0xff]
      %v7125 = vld [vmem:[#allocation2 + $0xe5] sm:$0xff]
      %v7126 = vld [vmem:[#allocation2 + $0xed] sm:$0xff]
      %v7127 = vld [vmem:[#allocation2 + $0xf5] sm:$0xff]
      %v7128 = vld [vmem:[#allocation2 + $0xfd] sm:$0xff]
      %v7129 = vld [vmem:[#allocation2 + $0x105] sm:$0xff]
      %v7130 = vld [vmem:[#allocation2 + $0x10d] sm:$0xff]
      %v7131 = vld [vmem:[#allocation2 + $0x115] sm:$0xff]
      %v7132 = vld [vmem:[#allocation2 + $0x11d] sm:$0xff]
      %v7133 = vld [vmem:[#allocation2 + $0x125] sm:$0xff]
      %v7134 = vld [vmem:[#allocation2 + $0x12d] sm:$0xff]
      %v7135 = vld [vmem:[#allocation2 + $0x135] sm:$0xff]
      %v7136 = vld [vmem:[#allocation2 + $0x13d] sm:$0xff]
      %v7137 = vpack.c.bf16 %v7102, %v7101
      %v7138 = vpack.c.bf16 %v7104, %v7103
      %v7139 = vpack.c.bf16 %v7106, %v7105
      %v7140 = vpack.c.bf16 %v7108, %v7107
      %v7141 = vpack.c.bf16 %v7110, %v7109
      %v7142 = vpack.c.bf16 %v7112, %v7111
      %v7143 = vpack.c.bf16 %v7114, %v7113
      %v7144 = vpack.c.bf16 %v7116, %v7115
      %v7145 = vpack.c.bf16 %v7118, %v7117
      %v7146 = vpack.c.bf16 %v7120, %v7119
      %v7147 = vpack.c.bf16 %v7122, %v7121
      %v7148 = vpack.c.bf16 %v7124, %v7123
      %v7149 = vpack.c.bf16 %v7126, %v7125
      %v7150 = vpack.c.bf16 %v7128, %v7127
      %v7151 = vpack.c.bf16 %v7130, %v7129
      %v7152 = vpack.c.bf16 %v7132, %v7131
      %v7153 = vpack.c.bf16 %v7134, %v7133
      %v7154 = vpack.c.bf16 %v7136, %v7135
      %s7155 = scalar_lea.vmem %s5, 336
      %v7156 = vld [vmem:[%s7155] sm:$0xf]
      %v7157 = vld [vmem:[%s7155 + $0x4] sm:$0xf]
      %v7158 = vld [vmem:[%s7155 + $0x8] sm:$0xf]
      %v7159 = vld [vmem:[%s7155 + $0xc] sm:$0xf]
      %v7160 = vld [vmem:[%s7155 + $0x10] sm:$0xf]
      %v7161 = vld [vmem:[%s7155 + $0x14] sm:$0xf]
      %v7162 = vld [vmem:[%s7155 + $0x18] sm:$0xf]
      %v7163 = vld [vmem:[%s7155 + $0x1c] sm:$0xf]
      %v7164 = vld [vmem:[%s7155 + $0x20] sm:$0xf]
      %v7165 = vld [vmem:[%s7155 + $0x24] sm:$0xf]
      %v7166 = vld [vmem:[%s7155 + $0x28] sm:$0xf]
      %v7167 = vld [vmem:[%s7155 + $0x2c] sm:$0xf]
      %v7180 = vunpack.c.l.b16 %v7156
      %v7181 = vunpack.c.l.b16 %v7157
      %v7182 = vunpack.c.l.b16 %v7158
      %v7183 = vunpack.c.l.b16 %v7159
      %v7184 = vunpack.c.l.b16 %v7160
      %v7185 = vunpack.c.l.b16 %v7161
      %v7186 = vunpack.c.l.b16 %v7162
      %v7187 = vunpack.c.l.b16 %v7163
      %v7188 = vunpack.c.l.b16 %v7164
      %v7189 = vunpack.c.l.b16 %v7165
      %v7190 = vunpack.c.l.b16 %v7166
      %v7191 = vunpack.c.l.b16 %v7167
      %v7192 = vpack.c.b16 %v7181, %v7180
      %v7193 = vpack.c.b16 %v7183, %v7182
      %v7194 = vpack.c.b16 %v7185, %v7184
      %v7195 = vpack.c.b16 %v7187, %v7186
      %v7196 = vpack.c.b16 %v7189, %v7188
      %v7197 = vpack.c.b16 %v7191, %v7190
      %v7205 = vsel %vm4506, %v7137, 0
      %v7208 = vsel %vm4506, %v7138, 0
      %v7211 = vsel %vm4506, %v7139, 0
      %v7214 = vsel %vm4506, %v7140, 0
      %v7217 = vsel %vm4506, %v7141, 0
      %v7220 = vsel %vm4506, %v7142, 0
      %v7223 = vsel %vm4506, %v7143, 0
      %v7226 = vsel %vm4506, %v7144, 0
      %v7229 = vsel %vm4506, %v7145, 0
      %v7232 = vsel %vm4506, %v7146, 0
      %v7235 = vsel %vm4506, %v7147, 0
      %v7238 = vsel %vm4506, %v7148, 0
      %v7241 = vsel %vm4506, %v7149, 0
      %v7244 = vsel %vm4506, %v7150, 0
      %v7247 = vsel %vm4506, %v7151, 0
      %v7250 = vsel %vm4506, %v7152, 0
      %v7253 = vsel %vm4506, %v7153, 0
      %v7256 = vsel %vm4506, %v7154, 0
      %7258 = vmatprep.subr.bf16.mxu0 0
      %7259 = vmatpush1.bf16.msra.mxu0 %v7192
      %7260 = vmatprep.subr.bf16.mxu0 0
      %7261 = vmatpush1.bf16.msra.mxu0 %v7193
      %7262 = vmatprep.subr.bf16.mxu0 0
      %7263 = vmatpush1.bf16.msra.mxu0 %v7194
      %7264 = vmatprep.subr.bf16.mxu0 0
      %7265 = vmatpush1.bf16.msra.mxu0 %v7195
      %7266 = vmatprep.subr.bf16.mxu0 0
      %7267 = vmatpush1.bf16.msra.mxu0 %v7196
      %7268 = vmatprep.subr.bf16.mxu0 0
      %7269 = vmatpush1.bf16.msra.mxu0 %v7197
      %7270 = vmatprep.subr.bf16.mxu0 0
      %7271 = vmatpush1.bf16.msra.mxu0 0
      %7272 = vmatprep.subr.bf16.mxu0 0
      %7273 = vmatpush1.bf16.msra.mxu0 0
      %7274 = vmatprep.subr.bf16.mxu0 0
      %7275 = vmatpush1.bf16.msra.mxu0 0
      %7276 = vmatprep.subr.bf16.mxu0 0
      %7277 = vmatpush1.bf16.msra.mxu0 0
      %7278 = vmatprep.subr.bf16.mxu0 0
      %7279 = vmatpush1.bf16.msra.mxu0 0
      %7280 = vmatprep.subr.bf16.mxu0 0
      %7281 = vmatpush1.bf16.msra.mxu0 0
      %7282 = vmatprep.subr.bf16.mxu0 0
      %7283 = vmatpush1.bf16.msra.mxu0 0
      %7284 = vmatprep.subr.bf16.mxu0 0
      %7285 = vmatpush1.bf16.msra.mxu0 0
      %7286 = vmatprep.subr.bf16.mxu0 0
      %7287 = vmatpush1.bf16.msra.mxu0 0
      %7288 = vmatprep.subr.bf16.mxu0 0
      %7289 = vmatpush1.bf16.msra.mxu0 0
      %7290 = vmatprep.mubr.bf16.mxu0 0
      %7291 = vmatmul.mubr.bf16.gmra.mrb[0].mxu0 %v7205
      %v7292 = vpop.f32.mrb[0].mxu0
      %v7293 = vadd.f32 0.0, %v7292
      %v7294 = vpop.f32.mrb[0].mxu0
      %v7295 = vpop.f32.mrb[0].mxu0
      %v7296 = vadd.f32 0.0, %v7295
      %v7297 = vpop.f32.mrb[0].mxu0
      %7298 = vmatprep.mubr.bf16.mxu0 0
      %7299 = vmatmul.mubr.bf16.gmra.mrb[0].mxu0 %v7208
      %v7300 = vpop.f32.mrb[0].mxu0
      %v7301 = vadd.f32 0.0, %v7300
      %v7302 = vpop.f32.mrb[0].mxu0
      %v7303 = vpop.f32.mrb[0].mxu0
      %v7304 = vadd.f32 0.0, %v7303
      %v7305 = vpop.f32.mrb[0].mxu0
      %7306 = vmatprep.mubr.bf16.mxu0 0
      %7307 = vmatmul.mubr.bf16.gmra.mrb[0].mxu0 %v7211
      %v7308 = vpop.f32.mrb[0].mxu0
      %v7309 = vadd.f32 0.0, %v7308
      %v7310 = vpop.f32.mrb[0].mxu0
      %v7311 = vpop.f32.mrb[0].mxu0
      %v7312 = vadd.f32 0.0, %v7311
      %v7313 = vpop.f32.mrb[0].mxu0
      %7314 = vmatprep.mubr.bf16.mxu0 0
      %7315 = vmatmul.mubr.bf16.gmra.mrb[0].mxu0 %v7214
      %v7316 = vpop.f32.mrb[0].mxu0
      %v7317 = vadd.f32 0.0, %v7316
      %v7318 = vpop.f32.mrb[0].mxu0
      %v7319 = vpop.f32.mrb[0].mxu0
      %v7320 = vadd.f32 0.0, %v7319
      %v7321 = vpop.f32.mrb[0].mxu0
      %7322 = vmatprep.mubr.bf16.mxu0 0
      %7323 = vmatmul.mubr.bf16.gmra.mrb[0].mxu0 %v7217
      %v7324 = vpop.f32.mrb[0].mxu0
      %v7325 = vadd.f32 0.0, %v7324
      %v7326 = vpop.f32.mrb[0].mxu0
      %v7327 = vpop.f32.mrb[0].mxu0
      %v7328 = vadd.f32 0.0, %v7327
      %v7329 = vpop.f32.mrb[0].mxu0
      %7330 = vmatprep.mubr.bf16.mxu0 0
      %7331 = vmatmul.mubr.bf16.gmra.mrb[0].mxu0 %v7220
      %v7332 = vpop.f32.mrb[0].mxu0
      %v7333 = vadd.f32 0.0, %v7332
      %v7334 = vpop.f32.mrb[0].mxu0
      %v7335 = vpop.f32.mrb[0].mxu0
      %v7336 = vadd.f32 0.0, %v7335
      %v7337 = vpop.f32.mrb[0].mxu0
      %7338 = vmatprep.mubr.bf16.mxu0 0
      %7339 = vmatmul.mubr.bf16.gmra.mrb[0].mxu0 %v7223
      %v7340 = vpop.f32.mrb[0].mxu0
      %v7341 = vadd.f32 0.0, %v7340
      %v7342 = vpop.f32.mrb[0].mxu0
      %v7343 = vpop.f32.mrb[0].mxu0
      %v7344 = vadd.f32 0.0, %v7343
      %v7345 = vpop.f32.mrb[0].mxu0
      %7346 = vmatprep.mubr.bf16.mxu0 0
      %7347 = vmatmul.mubr.bf16.gmra.mrb[0].mxu0 %v7226
      %v7348 = vpop.f32.mrb[0].mxu0
      %v7349 = vadd.f32 0.0, %v7348
      %v7350 = vpop.f32.mrb[0].mxu0
      %v7351 = vpop.f32.mrb[0].mxu0
      %v7352 = vadd.f32 0.0, %v7351
      %v7353 = vpop.f32.mrb[0].mxu0
      %7354 = vmatprep.mubr.bf16.mxu0 0
      %7355 = vmatmul.mubr.bf16.gmra.mrb[0].mxu0 %v7229
      %v7356 = vpop.f32.mrb[0].mxu0
      %v7357 = vadd.f32 0.0, %v7356
      %v7358 = vpop.f32.mrb[0].mxu0
      %v7359 = vpop.f32.mrb[0].mxu0
      %v7360 = vadd.f32 0.0, %v7359
      %v7361 = vpop.f32.mrb[0].mxu0
      %7362 = vmatprep.mubr.bf16.mxu0 0
      %7363 = vmatmul.mubr.bf16.gmra.mrb[0].mxu0 %v7232
      %v7364 = vpop.f32.mrb[0].mxu0
      %v7365 = vadd.f32 0.0, %v7364
      %v7366 = vpop.f32.mrb[0].mxu0
      %v7367 = vpop.f32.mrb[0].mxu0
      %v7368 = vadd.f32 0.0, %v7367
      %v7369 = vpop.f32.mrb[0].mxu0
      %7370 = vmatprep.mubr.bf16.mxu0 0
      %7371 = vmatmul.mubr.bf16.gmra.mrb[0].mxu0 %v7235
      %v7372 = vpop.f32.mrb[0].mxu0
      %v7373 = vadd.f32 0.0, %v7372
      %v7374 = vpop.f32.mrb[0].mxu0
      %v7375 = vpop.f32.mrb[0].mxu0
      %v7376 = vadd.f32 0.0, %v7375
      %v7377 = vpop.f32.mrb[0].mxu0
      %7378 = vmatprep.mubr.bf16.mxu0 0
      %7379 = vmatmul.mubr.bf16.gmra.mrb[0].mxu0 %v7238
      %v7380 = vpop.f32.mrb[0].mxu0
      %v7381 = vadd.f32 0.0, %v7380
      %v7382 = vpop.f32.mrb[0].mxu0
      %v7383 = vpop.f32.mrb[0].mxu0
      %v7384 = vadd.f32 0.0, %v7383
      %v7385 = vpop.f32.mrb[0].mxu0
      %7386 = vmatprep.mubr.bf16.mxu0 0
      %7387 = vmatmul.mubr.bf16.gmra.mrb[0].mxu0 %v7241
      %v7388 = vpop.f32.mrb[0].mxu0
      %v7389 = vadd.f32 0.0, %v7388
      %v7390 = vpop.f32.mrb[0].mxu0
      %v7391 = vpop.f32.mrb[0].mxu0
      %v7392 = vadd.f32 0.0, %v7391
      %v7393 = vpop.f32.mrb[0].mxu0
      %7394 = vmatprep.mubr.bf16.mxu0 0
      %7395 = vmatmul.mubr.bf16.gmra.mrb[0].mxu0 %v7244
      %v7396 = vpop.f32.mrb[0].mxu0
      %v7397 = vadd.f32 0.0, %v7396
      %v7398 = vpop.f32.mrb[0].mxu0
      %v7399 = vpop.f32.mrb[0].mxu0
      %v7400 = vadd.f32 0.0, %v7399
      %v7401 = vpop.f32.mrb[0].mxu0
      %7402 = vmatprep.mubr.bf16.mxu0 0
      %7403 = vmatmul.mubr.bf16.gmra.mrb[0].mxu0 %v7247
      %v7404 = vpop.f32.mrb[0].mxu0
      %v7405 = vadd.f32 0.0, %v7404
      %v7406 = vpop.f32.mrb[0].mxu0
      %v7407 = vpop.f32.mrb[0].mxu0
      %v7408 = vadd.f32 0.0, %v7407
      %v7409 = vpop.f32.mrb[0].mxu0
      %7410 = vmatprep.mubr.bf16.mxu0 0
      %7411 = vmatmul.mubr.bf16.gmra.mrb[0].mxu0 %v7250
      %v7412 = vpop.f32.mrb[0].mxu0
      %v7413 = vadd.f32 0.0, %v7412
      %v7414 = vpop.f32.mrb[0].mxu0
      %v7415 = vpop.f32.mrb[0].mxu0
      %v7416 = vadd.f32 0.0, %v7415
      %v7417 = vpop.f32.mrb[0].mxu0
      %7418 = vmatprep.mubr.bf16.mxu0 0
      %7419 = vmatmul.mubr.bf16.gmra.mrb[0].mxu0 %v7253
      %v7420 = vpop.f32.mrb[0].mxu0
      %v7421 = vadd.f32 0.0, %v7420
      %v7422 = vpop.f32.mrb[0].mxu0
      %v7423 = vpop.f32.mrb[0].mxu0
      %v7424 = vadd.f32 0.0, %v7423
      %v7425 = vpop.f32.mrb[0].mxu0
      %7426 = vmatprep.mubr.bf16.mxu0 0
      %7427 = vmatmul.mubr.bf16.gmra.mrb[0].mxu0 %v7256
      %v7428 = vpop.f32.mrb[0].mxu0
      %v7429 = vadd.f32 0.0, %v7428
      %v7430 = vpop.f32.mrb[0].mxu0
      %v7431 = vpop.f32.mrb[0].mxu0
      %v7432 = vadd.f32 0.0, %v7431
      %v7433 = vpop.f32.mrb[0].mxu0
      %7434 = vdwg.mxu0
      %v7435 = vadd.f32 %v7065, %v7293
      %v7436 = vadd.f32 %v7066, %v7296
      %v7437 = vadd.f32 %v7067, %v7301
      %v7438 = vadd.f32 %v7068, %v7304
      %v7439 = vadd.f32 %v7069, %v7309
      %v7440 = vadd.f32 %v7070, %v7312
      %v7441 = vadd.f32 %v7071, %v7317
      %v7442 = vadd.f32 %v7072, %v7320
      %v7443 = vadd.f32 %v7073, %v7325
      %v7444 = vadd.f32 %v7074, %v7328
      %v7445 = vadd.f32 %v7075, %v7333
      %v7446 = vadd.f32 %v7076, %v7336
      %v7447 = vadd.f32 %v7077, %v7341
      %v7448 = vadd.f32 %v7078, %v7344
      %v7449 = vadd.f32 %v7079, %v7349
      %v7450 = vadd.f32 %v7080, %v7352
      %v7451 = vadd.f32 %v7081, %v7357
      %v7452 = vadd.f32 %v7082, %v7360
      %v7453 = vadd.f32 %v7083, %v7365
      %v7454 = vadd.f32 %v7084, %v7368
      %v7455 = vadd.f32 %v7085, %v7373
      %v7456 = vadd.f32 %v7086, %v7376
      %v7457 = vadd.f32 %v7087, %v7381
      %v7458 = vadd.f32 %v7088, %v7384
      %v7459 = vadd.f32 %v7089, %v7389
      %v7460 = vadd.f32 %v7090, %v7392
      %v7461 = vadd.f32 %v7091, %v7397
      %v7462 = vadd.f32 %v7092, %v7400
      %v7463 = vadd.f32 %v7093, %v7405
      %v7464 = vadd.f32 %v7094, %v7408
      %v7465 = vadd.f32 %v7095, %v7413
      %v7466 = vadd.f32 %v7096, %v7416
      %v7467 = vadd.f32 %v7097, %v7421
      %v7468 = vadd.f32 %v7098, %v7424
      %v7469 = vadd.f32 %v7099, %v7429
      %v7470 = vadd.f32 %v7100, %v7432
      %v7471 = vld [vmem:[#allocation2 + $0x26] sm:$0xff]
      %v7472 = vld [vmem:[#allocation2 + $0x2e] sm:$0xff]
      %v7473 = vld [vmem:[#allocation2 + $0x36] sm:$0xff]
      %v7474 = vld [vmem:[#allocation2 + $0x3e] sm:$0xff]
      %v7475 = vld [vmem:[#allocation2 + $0x46] sm:$0xff]
      %v7476 = vld [vmem:[#allocation2 + $0x4e] sm:$0xff]
      %v7477 = vld [vmem:[#allocation2 + $0x56] sm:$0xff]
      %v7478 = vld [vmem:[#allocation2 + $0x5e] sm:$0xff]
      %v7479 = vld [vmem:[#allocation2 + $0x66] sm:$0xff]
      %v7480 = vld [vmem:[#allocation2 + $0x6e] sm:$0xff]
      %v7481 = vld [vmem:[#allocation2 + $0x76] sm:$0xff]
      %v7482 = vld [vmem:[#allocation2 + $0x7e] sm:$0xff]
      %v7483 = vld [vmem:[#allocation2 + $0x86] sm:$0xff]
      %v7484 = vld [vmem:[#allocation2 + $0x8e] sm:$0xff]
      %v7485 = vld [vmem:[#allocation2 + $0x96] sm:$0xff]
      %v7486 = vld [vmem:[#allocation2 + $0x9e] sm:$0xff]
      %v7487 = vld [vmem:[#allocation2 + $0xa6] sm:$0xff]
      %v7488 = vld [vmem:[#allocation2 + $0xae] sm:$0xff]
      %v7489 = vld [vmem:[#allocation2 + $0xb6] sm:$0xff]
      %v7490 = vld [vmem:[#allocation2 + $0xbe] sm:$0xff]
      %v7491 = vld [vmem:[#allocation2 + $0xc6] sm:$0xff]
      %v7492 = vld [vmem:[#allocation2 + $0xce] sm:$0xff]
      %v7493 = vld [vmem:[#allocation2 + $0xd6] sm:$0xff]
      %v7494 = vld [vmem:[#allocation2 + $0xde] sm:$0xff]
      %v7495 = vld [vmem:[#allocation2 + $0xe6] sm:$0xff]
      %v7496 = vld [vmem:[#allocation2 + $0xee] sm:$0xff]
      %v7497 = vld [vmem:[#allocation2 + $0xf6] sm:$0xff]
      %v7498 = vld [vmem:[#allocation2 + $0xfe] sm:$0xff]
      %v7499 = vld [vmem:[#allocation2 + $0x106] sm:$0xff]
      %v7500 = vld [vmem:[#allocation2 + $0x10e] sm:$0xff]
      %v7501 = vld [vmem:[#allocation2 + $0x116] sm:$0xff]
      %v7502 = vld [vmem:[#allocation2 + $0x11e] sm:$0xff]
      %v7503 = vld [vmem:[#allocation2 + $0x126] sm:$0xff]
      %v7504 = vld [vmem:[#allocation2 + $0x12e] sm:$0xff]
      %v7505 = vld [vmem:[#allocation2 + $0x136] sm:$0xff]
      %v7506 = vld [vmem:[#allocation2 + $0x13e] sm:$0xff]
      %v7507 = vpack.c.bf16 %v7472, %v7471
      %v7508 = vpack.c.bf16 %v7474, %v7473
      %v7509 = vpack.c.bf16 %v7476, %v7475
      %v7510 = vpack.c.bf16 %v7478, %v7477
      %v7511 = vpack.c.bf16 %v7480, %v7479
      %v7512 = vpack.c.bf16 %v7482, %v7481
      %v7513 = vpack.c.bf16 %v7484, %v7483
      %v7514 = vpack.c.bf16 %v7486, %v7485
      %v7515 = vpack.c.bf16 %v7488, %v7487
      %v7516 = vpack.c.bf16 %v7490, %v7489
      %v7517 = vpack.c.bf16 %v7492, %v7491
      %v7518 = vpack.c.bf16 %v7494, %v7493
      %v7519 = vpack.c.bf16 %v7496, %v7495
      %v7520 = vpack.c.bf16 %v7498, %v7497
      %v7521 = vpack.c.bf16 %v7500, %v7499
      %v7522 = vpack.c.bf16 %v7502, %v7501
      %v7523 = vpack.c.bf16 %v7504, %v7503
      %v7524 = vpack.c.bf16 %v7506, %v7505
      %s7525 = scalar_lea.vmem %s5, 384
      %v7526 = vld [vmem:[%s7525] sm:$0xf]
      %v7527 = vld [vmem:[%s7525 + $0x4] sm:$0xf]
      %v7528 = vld [vmem:[%s7525 + $0x8] sm:$0xf]
      %v7529 = vld [vmem:[%s7525 + $0xc] sm:$0xf]
      %v7530 = vld [vmem:[%s7525 + $0x10] sm:$0xf]
      %v7531 = vld [vmem:[%s7525 + $0x14] sm:$0xf]
      %v7532 = vld [vmem:[%s7525 + $0x18] sm:$0xf]
      %v7533 = vld [vmem:[%s7525 + $0x1c] sm:$0xf]
      %v7534 = vld [vmem:[%s7525 + $0x20] sm:$0xf]
      %v7535 = vld [vmem:[%s7525 + $0x24] sm:$0xf]
      %v7536 = vld [vmem:[%s7525 + $0x28] sm:$0xf]
      %v7537 = vld [vmem:[%s7525 + $0x2c] sm:$0xf]
      %v7550 = vunpack.c.l.b16 %v7526
      %v7551 = vunpack.c.l.b16 %v7527
      %v7552 = vunpack.c.l.b16 %v7528
      %v7553 = vunpack.c.l.b16 %v7529
      %v7554 = vunpack.c.l.b16 %v7530
      %v7555 = vunpack.c.l.b16 %v7531
      %v7556 = vunpack.c.l.b16 %v7532
      %v7557 = vunpack.c.l.b16 %v7533
      %v7558 = vunpack.c.l.b16 %v7534
      %v7559 = vunpack.c.l.b16 %v7535
      %v7560 = vunpack.c.l.b16 %v7536
      %v7561 = vunpack.c.l.b16 %v7537
      %v7562 = vpack.c.b16 %v7551, %v7550
      %v7563 = vpack.c.b16 %v7553, %v7552
      %v7564 = vpack.c.b16 %v7555, %v7554
      %v7565 = vpack.c.b16 %v7557, %v7556
      %v7566 = vpack.c.b16 %v7559, %v7558
      %v7567 = vpack.c.b16 %v7561, %v7560
      %v7575 = vsel %vm4506, %v7507, 0
      %v7578 = vsel %vm4506, %v7508, 0
      %v7581 = vsel %vm4506, %v7509, 0
      %v7584 = vsel %vm4506, %v7510, 0
      %v7587 = vsel %vm4506, %v7511, 0
      %v7590 = vsel %vm4506, %v7512, 0
      %v7593 = vsel %vm4506, %v7513, 0
      %v7596 = vsel %vm4506, %v7514, 0
      %v7599 = vsel %vm4506, %v7515, 0
      %v7602 = vsel %vm4506, %v7516, 0
      %v7605 = vsel %vm4506, %v7517, 0
      %v7608 = vsel %vm4506, %v7518, 0
      %v7611 = vsel %vm4506, %v7519, 0
      %v7614 = vsel %vm4506, %v7520, 0
      %v7617 = vsel %vm4506, %v7521, 0
      %v7620 = vsel %vm4506, %v7522, 0
      %v7623 = vsel %vm4506, %v7523, 0
      %v7626 = vsel %vm4506, %v7524, 0
      %7628 = vmatprep.subr.bf16.mxu0 0
      %7629 = vmatpush1.bf16.msra.mxu0 %v7562
      %7630 = vmatprep.subr.bf16.mxu0 0
      %7631 = vmatpush1.bf16.msra.mxu0 %v7563
      %7632 = vmatprep.subr.bf16.mxu0 0
      %7633 = vmatpush1.bf16.msra.mxu0 %v7564
      %7634 = vmatprep.subr.bf16.mxu0 0
      %7635 = vmatpush1.bf16.msra.mxu0 %v7565
      %7636 = vmatprep.subr.bf16.mxu0 0
      %7637 = vmatpush1.bf16.msra.mxu0 %v7566
      %7638 = vmatprep.subr.bf16.mxu0 0
      %7639 = vmatpush1.bf16.msra.mxu0 %v7567
      %7640 = vmatprep.subr.bf16.mxu0 0
      %7641 = vmatpush1.bf16.msra.mxu0 0
      %7642 = vmatprep.subr.bf16.mxu0 0
      %7643 = vmatpush1.bf16.msra.mxu0 0
      %7644 = vmatprep.subr.bf16.mxu0 0
      %7645 = vmatpush1.bf16.msra.mxu0 0
      %7646 = vmatprep.subr.bf16.mxu0 0
      %7647 = vmatpush1.bf16.msra.mxu0 0
      %7648 = vmatprep.subr.bf16.mxu0 0
      %7649 = vmatpush1.bf16.msra.mxu0 0
      %7650 = vmatprep.subr.bf16.mxu0 0
      %7651 = vmatpush1.bf16.msra.mxu0 0
      %7652 = vmatprep.subr.bf16.mxu0 0
      %7653 = vmatpush1.bf16.msra.mxu0 0
      %7654 = vmatprep.subr.bf16.mxu0 0
      %7655 = vmatpush1.bf16.msra.mxu0 0
      %7656 = vmatprep.subr.bf16.mxu0 0
      %7657 = vmatpush1.bf16.msra.mxu0 0
      %7658 = vmatprep.subr.bf16.mxu0 0
      %7659 = vmatpush1.bf16.msra.mxu0 0
      %7660 = vmatprep.mubr.bf16.mxu0 0
      %7661 = vmatmul.mubr.bf16.gmra.mrb[0].mxu0 %v7575
      %v7662 = vpop.f32.mrb[0].mxu0
      %v7663 = vadd.f32 0.0, %v7662
      %v7664 = vpop.f32.mrb[0].mxu0
      %v7665 = vpop.f32.mrb[0].mxu0
      %v7666 = vadd.f32 0.0, %v7665
      %v7667 = vpop.f32.mrb[0].mxu0
      %7668 = vmatprep.mubr.bf16.mxu0 0
      %7669 = vmatmul.mubr.bf16.gmra.mrb[0].mxu0 %v7578
      %v7670 = vpop.f32.mrb[0].mxu0
      %v7671 = vadd.f32 0.0, %v7670
      %v7672 = vpop.f32.mrb[0].mxu0
      %v7673 = vpop.f32.mrb[0].mxu0
      %v7674 = vadd.f32 0.0, %v7673
      %v7675 = vpop.f32.mrb[0].mxu0
      %7676 = vmatprep.mubr.bf16.mxu0 0
      %7677 = vmatmul.mubr.bf16.gmra.mrb[0].mxu0 %v7581
      %v7678 = vpop.f32.mrb[0].mxu0
      %v7679 = vadd.f32 0.0, %v7678
      %v7680 = vpop.f32.mrb[0].mxu0
      %v7681 = vpop.f32.mrb[0].mxu0
      %v7682 = vadd.f32 0.0, %v7681
      %v7683 = vpop.f32.mrb[0].mxu0
      %7684 = vmatprep.mubr.bf16.mxu0 0
      %7685 = vmatmul.mubr.bf16.gmra.mrb[0].mxu0 %v7584
      %v7686 = vpop.f32.mrb[0].mxu0
      %v7687 = vadd.f32 0.0, %v7686
      %v7688 = vpop.f32.mrb[0].mxu0
      %v7689 = vpop.f32.mrb[0].mxu0
      %v7690 = vadd.f32 0.0, %v7689
      %v7691 = vpop.f32.mrb[0].mxu0
      %7692 = vmatprep.mubr.bf16.mxu0 0
      %7693 = vmatmul.mubr.bf16.gmra.mrb[0].mxu0 %v7587
      %v7694 = vpop.f32.mrb[0].mxu0
      %v7695 = vadd.f32 0.0, %v7694
      %v7696 = vpop.f32.mrb[0].mxu0
      %v7697 = vpop.f32.mrb[0].mxu0
      %v7698 = vadd.f32 0.0, %v7697
      %v7699 = vpop.f32.mrb[0].mxu0
      %7700 = vmatprep.mubr.bf16.mxu0 0
      %7701 = vmatmul.mubr.bf16.gmra.mrb[0].mxu0 %v7590
      %v7702 = vpop.f32.mrb[0].mxu0
      %v7703 = vadd.f32 0.0, %v7702
      %v7704 = vpop.f32.mrb[0].mxu0
      %v7705 = vpop.f32.mrb[0].mxu0
      %v7706 = vadd.f32 0.0, %v7705
      %v7707 = vpop.f32.mrb[0].mxu0
      %7708 = vmatprep.mubr.bf16.mxu0 0
      %7709 = vmatmul.mubr.bf16.gmra.mrb[0].mxu0 %v7593
      %v7710 = vpop.f32.mrb[0].mxu0
      %v7711 = vadd.f32 0.0, %v7710
      %v7712 = vpop.f32.mrb[0].mxu0
      %v7713 = vpop.f32.mrb[0].mxu0
      %v7714 = vadd.f32 0.0, %v7713
      %v7715 = vpop.f32.mrb[0].mxu0
      %7716 = vmatprep.mubr.bf16.mxu0 0
      %7717 = vmatmul.mubr.bf16.gmra.mrb[0].mxu0 %v7596
      %v7718 = vpop.f32.mrb[0].mxu0
      %v7719 = vadd.f32 0.0, %v7718
      %v7720 = vpop.f32.mrb[0].mxu0
      %v7721 = vpop.f32.mrb[0].mxu0
      %v7722 = vadd.f32 0.0, %v7721
      %v7723 = vpop.f32.mrb[0].mxu0
      %7724 = vmatprep.mubr.bf16.mxu0 0
      %7725 = vmatmul.mubr.bf16.gmra.mrb[0].mxu0 %v7599
      %v7726 = vpop.f32.mrb[0].mxu0
      %v7727 = vadd.f32 0.0, %v7726
      %v7728 = vpop.f32.mrb[0].mxu0
      %v7729 = vpop.f32.mrb[0].mxu0
      %v7730 = vadd.f32 0.0, %v7729
      %v7731 = vpop.f32.mrb[0].mxu0
      %7732 = vmatprep.mubr.bf16.mxu0 0
      %7733 = vmatmul.mubr.bf16.gmra.mrb[0].mxu0 %v7602
      %v7734 = vpop.f32.mrb[0].mxu0
      %v7735 = vadd.f32 0.0, %v7734
      %v7736 = vpop.f32.mrb[0].mxu0
      %v7737 = vpop.f32.mrb[0].mxu0
      %v7738 = vadd.f32 0.0, %v7737
      %v7739 = vpop.f32.mrb[0].mxu0
      %7740 = vmatprep.mubr.bf16.mxu0 0
      %7741 = vmatmul.mubr.bf16.gmra.mrb[0].mxu0 %v7605
      %v7742 = vpop.f32.mrb[0].mxu0
      %v7743 = vadd.f32 0.0, %v7742
      %v7744 = vpop.f32.mrb[0].mxu0
      %v7745 = vpop.f32.mrb[0].mxu0
      %v7746 = vadd.f32 0.0, %v7745
      %v7747 = vpop.f32.mrb[0].mxu0
      %7748 = vmatprep.mubr.bf16.mxu0 0
      %7749 = vmatmul.mubr.bf16.gmra.mrb[0].mxu0 %v7608
      %v7750 = vpop.f32.mrb[0].mxu0
      %v7751 = vadd.f32 0.0, %v7750
      %v7752 = vpop.f32.mrb[0].mxu0
      %v7753 = vpop.f32.mrb[0].mxu0
      %v7754 = vadd.f32 0.0, %v7753
      %v7755 = vpop.f32.mrb[0].mxu0
      %7756 = vmatprep.mubr.bf16.mxu0 0
      %7757 = vmatmul.mubr.bf16.gmra.mrb[0].mxu0 %v7611
      %v7758 = vpop.f32.mrb[0].mxu0
      %v7759 = vadd.f32 0.0, %v7758
      %v7760 = vpop.f32.mrb[0].mxu0
      %v7761 = vpop.f32.mrb[0].mxu0
      %v7762 = vadd.f32 0.0, %v7761
      %v7763 = vpop.f32.mrb[0].mxu0
      %7764 = vmatprep.mubr.bf16.mxu0 0
      %7765 = vmatmul.mubr.bf16.gmra.mrb[0].mxu0 %v7614
      %v7766 = vpop.f32.mrb[0].mxu0
      %v7767 = vadd.f32 0.0, %v7766
      %v7768 = vpop.f32.mrb[0].mxu0
      %v7769 = vpop.f32.mrb[0].mxu0
      %v7770 = vadd.f32 0.0, %v7769
      %v7771 = vpop.f32.mrb[0].mxu0
      %7772 = vmatprep.mubr.bf16.mxu0 0
      %7773 = vmatmul.mubr.bf16.gmra.mrb[0].mxu0 %v7617
      %v7774 = vpop.f32.mrb[0].mxu0
      %v7775 = vadd.f32 0.0, %v7774
      %v7776 = vpop.f32.mrb[0].mxu0
      %v7777 = vpop.f32.mrb[0].mxu0
      %v7778 = vadd.f32 0.0, %v7777
      %v7779 = vpop.f32.mrb[0].mxu0
      %7780 = vmatprep.mubr.bf16.mxu0 0
      %7781 = vmatmul.mubr.bf16.gmra.mrb[0].mxu0 %v7620
      %v7782 = vpop.f32.mrb[0].mxu0
      %v7783 = vadd.f32 0.0, %v7782
      %v7784 = vpop.f32.mrb[0].mxu0
      %v7785 = vpop.f32.mrb[0].mxu0
      %v7786 = vadd.f32 0.0, %v7785
      %v7787 = vpop.f32.mrb[0].mxu0
      %7788 = vmatprep.mubr.bf16.mxu0 0
      %7789 = vmatmul.mubr.bf16.gmra.mrb[0].mxu0 %v7623
      %v7790 = vpop.f32.mrb[0].mxu0
      %v7791 = vadd.f32 0.0, %v7790
      %v7792 = vpop.f32.mrb[0].mxu0
      %v7793 = vpop.f32.mrb[0].mxu0
      %v7794 = vadd.f32 0.0, %v7793
      %v7795 = vpop.f32.mrb[0].mxu0
      %7796 = vmatprep.mubr.bf16.mxu0 0
      %7797 = vmatmul.mubr.bf16.gmra.mrb[0].mxu0 %v7626
      %v7798 = vpop.f32.mrb[0].mxu0
      %v7799 = vadd.f32 0.0, %v7798
      %v7800 = vpop.f32.mrb[0].mxu0
      %v7801 = vpop.f32.mrb[0].mxu0
      %v7802 = vadd.f32 0.0, %v7801
      %v7803 = vpop.f32.mrb[0].mxu0
      %7804 = vdwg.mxu0
      %v7805 = vadd.f32 %v7435, %v7663
      %v7806 = vadd.f32 %v7436, %v7666
      %v7807 = vadd.f32 %v7437, %v7671
      %v7808 = vadd.f32 %v7438, %v7674
      %v7809 = vadd.f32 %v7439, %v7679
      %v7810 = vadd.f32 %v7440, %v7682
      %v7811 = vadd.f32 %v7441, %v7687
      %v7812 = vadd.f32 %v7442, %v7690
      %v7813 = vadd.f32 %v7443, %v7695
      %v7814 = vadd.f32 %v7444, %v7698
      %v7815 = vadd.f32 %v7445, %v7703
      %v7816 = vadd.f32 %v7446, %v7706
      %v7817 = vadd.f32 %v7447, %v7711
      %v7818 = vadd.f32 %v7448, %v7714
      %v7819 = vadd.f32 %v7449, %v7719
      %v7820 = vadd.f32 %v7450, %v7722
      %v7821 = vadd.f32 %v7451, %v7727
      %v7822 = vadd.f32 %v7452, %v7730
      %v7823 = vadd.f32 %v7453, %v7735
      %v7824 = vadd.f32 %v7454, %v7738
      %v7825 = vadd.f32 %v7455, %v7743
      %v7826 = vadd.f32 %v7456, %v7746
      %v7827 = vadd.f32 %v7457, %v7751
      %v7828 = vadd.f32 %v7458, %v7754
      %v7829 = vadd.f32 %v7459, %v7759
      %v7830 = vadd.f32 %v7460, %v7762
      %v7831 = vadd.f32 %v7461, %v7767
      %v7832 = vadd.f32 %v7462, %v7770
      %v7833 = vadd.f32 %v7463, %v7775
      %v7834 = vadd.f32 %v7464, %v7778
      %v7835 = vadd.f32 %v7465, %v7783
      %v7836 = vadd.f32 %v7466, %v7786
      %v7837 = vadd.f32 %v7467, %v7791
      %v7838 = vadd.f32 %v7468, %v7794
      %v7839 = vadd.f32 %v7469, %v7799
      %v7840 = vadd.f32 %v7470, %v7802
      %v7841 = vld [vmem:[%s6] sm:$0x1]
      %v7843 = vlaneseq
      %v7844 = vshrl.u32 %v7843, 7
      %v7845 = vsub.s32 0, %v7844
      %v7846 = vrot.slane %v7841, %v7845
      %v7848 = vmul.f32 %v7805, %v7846
      %v7849 = vmul.f32 %v7806, %v7846
      %v7850 = vmul.f32 %v7807, %v7846
      %v7851 = vmul.f32 %v7808, %v7846
      %v7852 = vmul.f32 %v7809, %v7846
      %v7853 = vmul.f32 %v7810, %v7846
      %v7854 = vmul.f32 %v7811, %v7846
      %v7855 = vmul.f32 %v7812, %v7846
      %v7856 = vmul.f32 %v7813, %v7846
      %v7857 = vmul.f32 %v7814, %v7846
      %v7858 = vmul.f32 %v7815, %v7846
      %v7859 = vmul.f32 %v7816, %v7846
      %v7860 = vmul.f32 %v7817, %v7846
      %v7861 = vmul.f32 %v7818, %v7846
      %v7862 = vmul.f32 %v7819, %v7846
      %v7863 = vmul.f32 %v7820, %v7846
      %v7864 = vmul.f32 %v7821, %v7846
      %v7865 = vmul.f32 %v7822, %v7846
      %v7866 = vmul.f32 %v7823, %v7846
      %v7867 = vmul.f32 %v7824, %v7846
      %v7868 = vmul.f32 %v7825, %v7846
      %v7869 = vmul.f32 %v7826, %v7846
      %v7870 = vmul.f32 %v7827, %v7846
      %v7871 = vmul.f32 %v7828, %v7846
      %v7872 = vmul.f32 %v7829, %v7846
      %v7873 = vmul.f32 %v7830, %v7846
      %v7874 = vmul.f32 %v7831, %v7846
      %v7875 = vmul.f32 %v7832, %v7846
      %v7876 = vmul.f32 %v7833, %v7846
      %v7877 = vmul.f32 %v7834, %v7846
      %v7878 = vmul.f32 %v7835, %v7846
      %v7879 = vmul.f32 %v7836, %v7846
      %v7880 = vmul.f32 %v7837, %v7846
      %v7881 = vmul.f32 %v7838, %v7846
      %v7882 = vmul.f32 %v7839, %v7846
      %v7883 = vmul.f32 %v7840, %v7846
      %v7884 = vld [vmem:[%s7] sm:$0x1]
      %v7886 = vlaneseq
      %v7887 = vshrl.u32 %v7886, 7
      %v7888 = vsub.s32 0, %v7887
      %v7889 = vrot.slane %v7884, %v7888
      %v7891 = vadd.f32 %v7848, %v7889
      %v7892 = vadd.f32 %v7849, %v7889
      %v7893 = vadd.f32 %v7850, %v7889
      %v7894 = vadd.f32 %v7851, %v7889
      %v7895 = vadd.f32 %v7852, %v7889
      %v7896 = vadd.f32 %v7853, %v7889
      %v7897 = vadd.f32 %v7854, %v7889
      %v7898 = vadd.f32 %v7855, %v7889
      %v7899 = vadd.f32 %v7856, %v7889
      %v7900 = vadd.f32 %v7857, %v7889
      %v7901 = vadd.f32 %v7858, %v7889
      %v7902 = vadd.f32 %v7859, %v7889
      %v7903 = vadd.f32 %v7860, %v7889
      %v7904 = vadd.f32 %v7861, %v7889
      %v7905 = vadd.f32 %v7862, %v7889
      %v7906 = vadd.f32 %v7863, %v7889
      %v7907 = vadd.f32 %v7864, %v7889
      %v7908 = vadd.f32 %v7865, %v7889
      %v7909 = vadd.f32 %v7866, %v7889
      %v7910 = vadd.f32 %v7867, %v7889
      %v7911 = vadd.f32 %v7868, %v7889
      %v7912 = vadd.f32 %v7869, %v7889
      %v7913 = vadd.f32 %v7870, %v7889
      %v7914 = vadd.f32 %v7871, %v7889
      %v7915 = vadd.f32 %v7872, %v7889
      %v7916 = vadd.f32 %v7873, %v7889
      %v7917 = vadd.f32 %v7874, %v7889
      %v7918 = vadd.f32 %v7875, %v7889
      %v7919 = vadd.f32 %v7876, %v7889
      %v7920 = vadd.f32 %v7877, %v7889
      %v7921 = vadd.f32 %v7878, %v7889
      %v7922 = vadd.f32 %v7879, %v7889
      %v7923 = vadd.f32 %v7880, %v7889
      %v7924 = vadd.f32 %v7881, %v7889
      %v7925 = vadd.f32 %v7882, %v7889
      %v7926 = vadd.f32 %v7883, %v7889
      %v7927 = vxor.u32 %v7891, 2147483648
      %v7928 = vxor.u32 %v7892, 2147483648
      %v7929 = vxor.u32 %v7893, 2147483648
      %v7930 = vxor.u32 %v7894, 2147483648
      %v7931 = vxor.u32 %v7895, 2147483648
      %v7932 = vxor.u32 %v7896, 2147483648
      %v7933 = vxor.u32 %v7897, 2147483648
      %v7934 = vxor.u32 %v7898, 2147483648
      %v7935 = vxor.u32 %v7899, 2147483648
      %v7936 = vxor.u32 %v7900, 2147483648
      %v7937 = vxor.u32 %v7901, 2147483648
      %v7938 = vxor.u32 %v7902, 2147483648
      %v7939 = vxor.u32 %v7903, 2147483648
      %v7940 = vxor.u32 %v7904, 2147483648
      %v7941 = vxor.u32 %v7905, 2147483648
      %v7942 = vxor.u32 %v7906, 2147483648
      %v7943 = vxor.u32 %v7907, 2147483648
      %v7944 = vxor.u32 %v7908, 2147483648
      %v7945 = vxor.u32 %v7909, 2147483648
      %v7946 = vxor.u32 %v7910, 2147483648
      %v7947 = vxor.u32 %v7911, 2147483648
      %v7948 = vxor.u32 %v7912, 2147483648
      %v7949 = vxor.u32 %v7913, 2147483648
      %v7950 = vxor.u32 %v7914, 2147483648
      %v7951 = vxor.u32 %v7915, 2147483648
      %v7952 = vxor.u32 %v7916, 2147483648
      %v7953 = vxor.u32 %v7917, 2147483648
      %v7954 = vxor.u32 %v7918, 2147483648
      %v7955 = vxor.u32 %v7919, 2147483648
      %v7956 = vxor.u32 %v7920, 2147483648
      %v7957 = vxor.u32 %v7921, 2147483648
      %v7958 = vxor.u32 %v7922, 2147483648
      %v7959 = vxor.u32 %v7923, 2147483648
      %v7960 = vxor.u32 %v7924, 2147483648
      %v7961 = vxor.u32 %v7925, 2147483648
      %v7962 = vxor.u32 %v7926, 2147483648
      %v7963 = vmul.f32 %v7927, 1.442695
      %v7964 = vpow.pop %v7963
      %v7965 = vmul.f32 %v7928, 1.442695
      %v7966 = vpow.pop %v7965
      %v7967 = vmul.f32 %v7929, 1.442695
      %v7968 = vpow.pop %v7967
      %v7969 = vmul.f32 %v7930, 1.442695
      %v7970 = vpow.pop %v7969
      %v7971 = vmul.f32 %v7931, 1.442695
      %v7972 = vpow.pop %v7971
      %v7973 = vmul.f32 %v7932, 1.442695
      %v7974 = vpow.pop %v7973
      %v7975 = vmul.f32 %v7933, 1.442695
      %v7976 = vpow.pop %v7975
      %v7977 = vmul.f32 %v7934, 1.442695
      %v7978 = vpow.pop %v7977
      %v7979 = vmul.f32 %v7935, 1.442695
      %v7980 = vpow.pop %v7979
      %v7981 = vmul.f32 %v7936, 1.442695
      %v7982 = vpow.pop %v7981
      %v7983 = vmul.f32 %v7937, 1.442695
      %v7984 = vpow.pop %v7983
      %v7985 = vmul.f32 %v7938, 1.442695
      %v7986 = vpow.pop %v7985
      %v7987 = vmul.f32 %v7939, 1.442695
      %v7988 = vpow.pop %v7987
      %v7989 = vmul.f32 %v7940, 1.442695
      %v7990 = vpow.pop %v7989
      %v7991 = vmul.f32 %v7941, 1.442695
      %v7992 = vpow.pop %v7991
      %v7993 = vmul.f32 %v7942, 1.442695
      %v7994 = vpow.pop %v7993
      %v7995 = vmul.f32 %v7943, 1.442695
      %v7996 = vpow.pop %v7995
      %v7997 = vmul.f32 %v7944, 1.442695
      %v7998 = vpow.pop %v7997
      %v7999 = vmul.f32 %v7945, 1.442695
      %v8000 = vpow.pop %v7999
      %v8001 = vmul.f32 %v7946, 1.442695
      %v8002 = vpow.pop %v8001
      %v8003 = vmul.f32 %v7947, 1.442695
      %v8004 = vpow.pop %v8003
      %v8005 = vmul.f32 %v7948, 1.442695
      %v8006 = vpow.pop %v8005
      %v8007 = vmul.f32 %v7949, 1.442695
      %v8008 = vpow.pop %v8007
      %v8009 = vmul.f32 %v7950, 1.442695
      %v8010 = vpow.pop %v8009
      %v8011 = vmul.f32 %v7951, 1.442695
      %v8012 = vpow.pop %v8011
      %v8013 = vmul.f32 %v7952, 1.442695
      %v8014 = vpow.pop %v8013
      %v8015 = vmul.f32 %v7953, 1.442695
      %v8016 = vpow.pop %v8015
      %v8017 = vmul.f32 %v7954, 1.442695
      %v8018 = vpow.pop %v8017
      %v8019 = vmul.f32 %v7955, 1.442695
      %v8020 = vpow.pop %v8019
      %v8021 = vmul.f32 %v7956, 1.442695
      %v8022 = vpow.pop %v8021
      %v8023 = vmul.f32 %v7957, 1.442695
      %v8024 = vpow.pop %v8023
      %v8025 = vmul.f32 %v7958, 1.442695
      %v8026 = vpow.pop %v8025
      %v8027 = vmul.f32 %v7959, 1.442695
      %v8028 = vpow.pop %v8027
      %v8029 = vmul.f32 %v7960, 1.442695
      %v8030 = vpow.pop %v8029
      %v8031 = vmul.f32 %v7961, 1.442695
      %v8032 = vpow.pop %v8031
      %v8033 = vmul.f32 %v7962, 1.442695
      %v8034 = vpow.pop %v8033
      %v8035 = vadd.f32 %v7964, 1.0
      %v8036 = vadd.f32 %v7966, 1.0
      %v8037 = vadd.f32 %v7968, 1.0
      %v8038 = vadd.f32 %v7970, 1.0
      %v8039 = vadd.f32 %v7972, 1.0
      %v8040 = vadd.f32 %v7974, 1.0
      %v8041 = vadd.f32 %v7976, 1.0
      %v8042 = vadd.f32 %v7978, 1.0
      %v8043 = vadd.f32 %v7980, 1.0
      %v8044 = vadd.f32 %v7982, 1.0
      %v8045 = vadd.f32 %v7984, 1.0
      %v8046 = vadd.f32 %v7986, 1.0
      %v8047 = vadd.f32 %v7988, 1.0
      %v8048 = vadd.f32 %v7990, 1.0
      %v8049 = vadd.f32 %v7992, 1.0
      %v8050 = vadd.f32 %v7994, 1.0
      %v8051 = vadd.f32 %v7996, 1.0
      %v8052 = vadd.f32 %v7998, 1.0
      %v8053 = vadd.f32 %v8000, 1.0
      %v8054 = vadd.f32 %v8002, 1.0
      %v8055 = vadd.f32 %v8004, 1.0
      %v8056 = vadd.f32 %v8006, 1.0
      %v8057 = vadd.f32 %v8008, 1.0
      %v8058 = vadd.f32 %v8010, 1.0
      %v8059 = vadd.f32 %v8012, 1.0
      %v8060 = vadd.f32 %v8014, 1.0
      %v8061 = vadd.f32 %v8016, 1.0
      %v8062 = vadd.f32 %v8018, 1.0
      %v8063 = vadd.f32 %v8020, 1.0
      %v8064 = vadd.f32 %v8022, 1.0
      %v8065 = vadd.f32 %v8024, 1.0
      %v8066 = vadd.f32 %v8026, 1.0
      %v8067 = vadd.f32 %v8028, 1.0
      %v8068 = vadd.f32 %v8030, 1.0
      %v8069 = vadd.f32 %v8032, 1.0
      %v8070 = vadd.f32 %v8034, 1.0
      %v8071 = vrcp.pop %v8035
      %v8072 = vmul.f32 1.0, %v8071
      %v8073 = vrcp.pop %v8036
      %v8074 = vmul.f32 1.0, %v8073
      %v8075 = vrcp.pop %v8037
      %v8076 = vmul.f32 1.0, %v8075
      %v8077 = vrcp.pop %v8038
      %v8078 = vmul.f32 1.0, %v8077
      %v8079 = vrcp.pop %v8039
      %v8080 = vmul.f32 1.0, %v8079
      %v8081 = vrcp.pop %v8040
      %v8082 = vmul.f32 1.0, %v8081
      %v8083 = vrcp.pop %v8041
      %v8084 = vmul.f32 1.0, %v8083
      %v8085 = vrcp.pop %v8042
      %v8086 = vmul.f32 1.0, %v8085
      %v8087 = vrcp.pop %v8043
      %v8088 = vmul.f32 1.0, %v8087
      %v8089 = vrcp.pop %v8044
      %v8090 = vmul.f32 1.0, %v8089
      %v8091 = vrcp.pop %v8045
      %v8092 = vmul.f32 1.0, %v8091
      %v8093 = vrcp.pop %v8046
      %v8094 = vmul.f32 1.0, %v8093
      %v8095 = vrcp.pop %v8047
      %v8096 = vmul.f32 1.0, %v8095
      %v8097 = vrcp.pop %v8048
      %v8098 = vmul.f32 1.0, %v8097
      %v8099 = vrcp.pop %v8049
      %v8100 = vmul.f32 1.0, %v8099
      %v8101 = vrcp.pop %v8050
      %v8102 = vmul.f32 1.0, %v8101
      %v8103 = vrcp.pop %v8051
      %v8104 = vmul.f32 1.0, %v8103
      %v8105 = vrcp.pop %v8052
      %v8106 = vmul.f32 1.0, %v8105
      %v8107 = vrcp.pop %v8053
      %v8108 = vmul.f32 1.0, %v8107
      %v8109 = vrcp.pop %v8054
      %v8110 = vmul.f32 1.0, %v8109
      %v8111 = vrcp.pop %v8055
      %v8112 = vmul.f32 1.0, %v8111
      %v8113 = vrcp.pop %v8056
      %v8114 = vmul.f32 1.0, %v8113
      %v8115 = vrcp.pop %v8057
      %v8116 = vmul.f32 1.0, %v8115
      %v8117 = vrcp.pop %v8058
      %v8118 = vmul.f32 1.0, %v8117
      %v8119 = vrcp.pop %v8059
      %v8120 = vmul.f32 1.0, %v8119
      %v8121 = vrcp.pop %v8060
      %v8122 = vmul.f32 1.0, %v8121
      %v8123 = vrcp.pop %v8061
      %v8124 = vmul.f32 1.0, %v8123
      %v8125 = vrcp.pop %v8062
      %v8126 = vmul.f32 1.0, %v8125
      %v8127 = vrcp.pop %v8063
      %v8128 = vmul.f32 1.0, %v8127
      %v8129 = vrcp.pop %v8064
      %v8130 = vmul.f32 1.0, %v8129
      %v8131 = vrcp.pop %v8065
      %v8132 = vmul.f32 1.0, %v8131
      %v8133 = vrcp.pop %v8066
      %v8134 = vmul.f32 1.0, %v8133
      %v8135 = vrcp.pop %v8067
      %v8136 = vmul.f32 1.0, %v8135
      %v8137 = vrcp.pop %v8068
      %v8138 = vmul.f32 1.0, %v8137
      %v8139 = vrcp.pop %v8069
      %v8140 = vmul.f32 1.0, %v8139
      %v8141 = vrcp.pop %v8070
      %v8142 = vmul.f32 1.0, %v8141
      %v8143 = vmul.f32 %v7891, %v8072
      %v8144 = vmul.f32 %v7892, %v8074
      %v8145 = vmul.f32 %v7893, %v8076
      %v8146 = vmul.f32 %v7894, %v8078
      %v8147 = vmul.f32 %v7895, %v8080
      %v8148 = vmul.f32 %v7896, %v8082
      %v8149 = vmul.f32 %v7897, %v8084
      %v8150 = vmul.f32 %v7898, %v8086
      %v8151 = vmul.f32 %v7899, %v8088
      %v8152 = vmul.f32 %v7900, %v8090
      %v8153 = vmul.f32 %v7901, %v8092
      %v8154 = vmul.f32 %v7902, %v8094
      %v8155 = vmul.f32 %v7903, %v8096
      %v8156 = vmul.f32 %v7904, %v8098
      %v8157 = vmul.f32 %v7905, %v8100
      %v8158 = vmul.f32 %v7906, %v8102
      %v8159 = vmul.f32 %v7907, %v8104
      %v8160 = vmul.f32 %v7908, %v8106
      %v8161 = vmul.f32 %v7909, %v8108
      %v8162 = vmul.f32 %v7910, %v8110
      %v8163 = vmul.f32 %v7911, %v8112
      %v8164 = vmul.f32 %v7912, %v8114
      %v8165 = vmul.f32 %v7913, %v8116
      %v8166 = vmul.f32 %v7914, %v8118
      %v8167 = vmul.f32 %v7915, %v8120
      %v8168 = vmul.f32 %v7916, %v8122
      %v8169 = vmul.f32 %v7917, %v8124
      %v8170 = vmul.f32 %v7918, %v8126
      %v8171 = vmul.f32 %v7919, %v8128
      %v8172 = vmul.f32 %v7920, %v8130
      %v8173 = vmul.f32 %v7921, %v8132
      %v8174 = vmul.f32 %v7922, %v8134
      %v8175 = vmul.f32 %v7923, %v8136
      %v8176 = vmul.f32 %v7924, %v8138
      %v8177 = vmul.f32 %v7925, %v8140
      %v8178 = vmul.f32 %v7926, %v8142
      %v8179 = vpack.c.bf16 %v8144, %v8143
      %v8180 = vpack.c.bf16 %v8146, %v8145
      %v8181 = vpack.c.bf16 %v8148, %v8147
      %v8182 = vpack.c.bf16 %v8150, %v8149
      %v8183 = vpack.c.bf16 %v8152, %v8151
      %v8184 = vpack.c.bf16 %v8154, %v8153
      %v8185 = vpack.c.bf16 %v8156, %v8155
      %v8186 = vpack.c.bf16 %v8158, %v8157
      %v8187 = vpack.c.bf16 %v8160, %v8159
      %v8188 = vpack.c.bf16 %v8162, %v8161
      %v8189 = vpack.c.bf16 %v8164, %v8163
      %v8190 = vpack.c.bf16 %v8166, %v8165
      %v8191 = vpack.c.bf16 %v8168, %v8167
      %v8192 = vpack.c.bf16 %v8170, %v8169
      %v8193 = vpack.c.bf16 %v8172, %v8171
      %v8194 = vpack.c.bf16 %v8174, %v8173
      %v8195 = vpack.c.bf16 %v8176, %v8175
      %v8196 = vpack.c.bf16 %v8178, %v8177
      %v8197 = vld [vmem:[%s8] sm:$0xf]
      %v8198 = vld [vmem:[%s8 + $0x4] sm:$0xf]
      %v8199 = vld [vmem:[%s8 + $0x8] sm:$0xf]
      %v8200 = vld [vmem:[%s8 + $0xc] sm:$0xf]
      %v8201 = vld [vmem:[%s8 + $0x10] sm:$0xf]
      %v8202 = vld [vmem:[%s8 + $0x14] sm:$0xf]
      %v8203 = vld [vmem:[%s8 + $0x18] sm:$0xf]
      %v8204 = vld [vmem:[%s8 + $0x1c] sm:$0xf]
      %v8205 = vld [vmem:[%s8 + $0x20] sm:$0xf]
      %v8206 = vld [vmem:[%s8 + $0x24] sm:$0xf]
      %v8207 = vld [vmem:[%s8 + $0x28] sm:$0xf]
      %v8208 = vld [vmem:[%s8 + $0x2c] sm:$0xf]
      %v8209 = vld [vmem:[%s9] sm:$0x1]
      %v8211 = vlaneseq
      %v8212 = vshrl.u32 %v8211, 7
      %v8213 = vsub.s32 0, %v8212
      %v8214 = vrot.slane %v8209, %v8213
      %v8228 = vunpack.c.l.b16 %v8197
      %v8229 = vunpack.c.l.b16 %v8198
      %v8230 = vunpack.c.l.b16 %v8199
      %v8231 = vunpack.c.l.b16 %v8200
      %v8232 = vunpack.c.l.b16 %v8201
      %v8233 = vunpack.c.l.b16 %v8202
      %v8234 = vunpack.c.l.b16 %v8203
      %v8235 = vunpack.c.l.b16 %v8204
      %v8236 = vunpack.c.l.b16 %v8205
      %v8237 = vunpack.c.l.b16 %v8206
      %v8238 = vunpack.c.l.b16 %v8207
      %v8239 = vunpack.c.l.b16 %v8208
      %v8240 = vpack.c.b16 %v8229, %v8228
      %v8241 = vpack.c.b16 %v8231, %v8230
      %v8242 = vpack.c.b16 %v8233, %v8232
      %v8243 = vpack.c.b16 %v8235, %v8234
      %v8244 = vpack.c.b16 %v8237, %v8236
      %v8245 = vpack.c.b16 %v8239, %v8238
      %v8253 = vsel %vm4506, %v8179, 0
      %v8256 = vsel %vm4506, %v8180, 0
      %v8259 = vsel %vm4506, %v8181, 0
      %v8262 = vsel %vm4506, %v8182, 0
      %v8265 = vsel %vm4506, %v8183, 0
      %v8268 = vsel %vm4506, %v8184, 0
      %v8271 = vsel %vm4506, %v8185, 0
      %v8274 = vsel %vm4506, %v8186, 0
      %v8277 = vsel %vm4506, %v8187, 0
      %v8280 = vsel %vm4506, %v8188, 0
      %v8283 = vsel %vm4506, %v8189, 0
      %v8286 = vsel %vm4506, %v8190, 0
      %v8289 = vsel %vm4506, %v8191, 0
      %v8292 = vsel %vm4506, %v8192, 0
      %v8295 = vsel %vm4506, %v8193, 0
      %v8298 = vsel %vm4506, %v8194, 0
      %v8301 = vsel %vm4506, %v8195, 0
      %v8304 = vsel %vm4506, %v8196, 0
      %8306 = vmatprep.subr.bf16.mxu0 0
      %8307 = vmatpush1.bf16.msra.mxu0 %v8240
      %8308 = vmatprep.subr.bf16.mxu0 0
      %8309 = vmatpush1.bf16.msra.mxu0 %v8241
      %8310 = vmatprep.subr.bf16.mxu0 0
      %8311 = vmatpush1.bf16.msra.mxu0 %v8242
      %8312 = vmatprep.subr.bf16.mxu0 0
      %8313 = vmatpush1.bf16.msra.mxu0 %v8243
      %8314 = vmatprep.subr.bf16.mxu0 0
      %8315 = vmatpush1.bf16.msra.mxu0 %v8244
      %8316 = vmatprep.subr.bf16.mxu0 0
      %8317 = vmatpush1.bf16.msra.mxu0 %v8245
      %8318 = vmatprep.subr.bf16.mxu0 0
      %8319 = vmatpush1.bf16.msra.mxu0 0
      %8320 = vmatprep.subr.bf16.mxu0 0
      %8321 = vmatpush1.bf16.msra.mxu0 0
      %8322 = vmatprep.subr.bf16.mxu0 0
      %8323 = vmatpush1.bf16.msra.mxu0 0
      %8324 = vmatprep.subr.bf16.mxu0 0
      %8325 = vmatpush1.bf16.msra.mxu0 0
      %8326 = vmatprep.subr.bf16.mxu0 0
      %8327 = vmatpush1.bf16.msra.mxu0 0
      %8328 = vmatprep.subr.bf16.mxu0 0
      %8329 = vmatpush1.bf16.msra.mxu0 0
      %8330 = vmatprep.subr.bf16.mxu0 0
      %8331 = vmatpush1.bf16.msra.mxu0 0
      %8332 = vmatprep.subr.bf16.mxu0 0
      %8333 = vmatpush1.bf16.msra.mxu0 0
      %8334 = vmatprep.subr.bf16.mxu0 0
      %8335 = vmatpush1.bf16.msra.mxu0 0
      %8336 = vmatprep.subr.bf16.mxu0 0
      %8337 = vmatpush1.bf16.msra.mxu0 0
      %8338 = vmatprep.mubr.bf16.mxu0 0
      %8339 = vmatmul.mubr.bf16.gmra.mrb[0].mxu0 %v8253
      %v8340 = vpop.f32.mrb[0].mxu0
      %v8341 = vadd.f32 %v8214, %v8340
      %v8342 = vpop.f32.mrb[0].mxu0
      %v8343 = vpop.f32.mrb[0].mxu0
      %v8344 = vadd.f32 %v8214, %v8343
      %v8345 = vpop.f32.mrb[0].mxu0
      %8346 = vmatprep.mubr.bf16.mxu0 0
      %8347 = vmatmul.mubr.bf16.gmra.mrb[0].mxu0 %v8256
      %v8348 = vpop.f32.mrb[0].mxu0
      %v8349 = vadd.f32 %v8214, %v8348
      %v8350 = vpop.f32.mrb[0].mxu0
      %v8351 = vpop.f32.mrb[0].mxu0
      %v8352 = vadd.f32 %v8214, %v8351
      %v8353 = vpop.f32.mrb[0].mxu0
      %8354 = vmatprep.mubr.bf16.mxu0 0
      %8355 = vmatmul.mubr.bf16.gmra.mrb[0].mxu0 %v8259
      %v8356 = vpop.f32.mrb[0].mxu0
      %v8357 = vadd.f32 %v8214, %v8356
      %v8358 = vpop.f32.mrb[0].mxu0
      %v8359 = vpop.f32.mrb[0].mxu0
      %v8360 = vadd.f32 %v8214, %v8359
      %v8361 = vpop.f32.mrb[0].mxu0
      %8362 = vmatprep.mubr.bf16.mxu0 0
      %8363 = vmatmul.mubr.bf16.gmra.mrb[0].mxu0 %v8262
      %v8364 = vpop.f32.mrb[0].mxu0
      %v8365 = vadd.f32 %v8214, %v8364
      %v8366 = vpop.f32.mrb[0].mxu0
      %v8367 = vpop.f32.mrb[0].mxu0
      %v8368 = vadd.f32 %v8214, %v8367
      %v8369 = vpop.f32.mrb[0].mxu0
      %8370 = vmatprep.mubr.bf16.mxu0 0
      %8371 = vmatmul.mubr.bf16.gmra.mrb[0].mxu0 %v8265
      %v8372 = vpop.f32.mrb[0].mxu0
      %v8373 = vadd.f32 %v8214, %v8372
      %v8374 = vpop.f32.mrb[0].mxu0
      %v8375 = vpop.f32.mrb[0].mxu0
      %v8376 = vadd.f32 %v8214, %v8375
      %v8377 = vpop.f32.mrb[0].mxu0
      %8378 = vmatprep.mubr.bf16.mxu0 0
      %8379 = vmatmul.mubr.bf16.gmra.mrb[0].mxu0 %v8268
      %v8380 = vpop.f32.mrb[0].mxu0
      %v8381 = vadd.f32 %v8214, %v8380
      %v8382 = vpop.f32.mrb[0].mxu0
      %v8383 = vpop.f32.mrb[0].mxu0
      %v8384 = vadd.f32 %v8214, %v8383
      %v8385 = vpop.f32.mrb[0].mxu0
      %8386 = vmatprep.mubr.bf16.mxu0 0
      %8387 = vmatmul.mubr.bf16.gmra.mrb[0].mxu0 %v8271
      %v8388 = vpop.f32.mrb[0].mxu0
      %v8389 = vadd.f32 %v8214, %v8388
      %v8390 = vpop.f32.mrb[0].mxu0
      %v8391 = vpop.f32.mrb[0].mxu0
      %v8392 = vadd.f32 %v8214, %v8391
      %v8393 = vpop.f32.mrb[0].mxu0
      %8394 = vmatprep.mubr.bf16.mxu0 0
      %8395 = vmatmul.mubr.bf16.gmra.mrb[0].mxu0 %v8274
      %v8396 = vpop.f32.mrb[0].mxu0
      %v8397 = vadd.f32 %v8214, %v8396
      %v8398 = vpop.f32.mrb[0].mxu0
      %v8399 = vpop.f32.mrb[0].mxu0
      %v8400 = vadd.f32 %v8214, %v8399
      %v8401 = vpop.f32.mrb[0].mxu0
      %8402 = vmatprep.mubr.bf16.mxu0 0
      %8403 = vmatmul.mubr.bf16.gmra.mrb[0].mxu0 %v8277
      %v8404 = vpop.f32.mrb[0].mxu0
      %v8405 = vadd.f32 %v8214, %v8404
      %v8406 = vpop.f32.mrb[0].mxu0
      %v8407 = vpop.f32.mrb[0].mxu0
      %v8408 = vadd.f32 %v8214, %v8407
      %v8409 = vpop.f32.mrb[0].mxu0
      %8410 = vmatprep.mubr.bf16.mxu0 0
      %8411 = vmatmul.mubr.bf16.gmra.mrb[0].mxu0 %v8280
      %v8412 = vpop.f32.mrb[0].mxu0
      %v8413 = vadd.f32 %v8214, %v8412
      %v8414 = vpop.f32.mrb[0].mxu0
      %v8415 = vpop.f32.mrb[0].mxu0
      %v8416 = vadd.f32 %v8214, %v8415
      %v8417 = vpop.f32.mrb[0].mxu0
      %8418 = vmatprep.mubr.bf16.mxu0 0
      %8419 = vmatmul.mubr.bf16.gmra.mrb[0].mxu0 %v8283
      %v8420 = vpop.f32.mrb[0].mxu0
      %v8421 = vadd.f32 %v8214, %v8420
      %v8422 = vpop.f32.mrb[0].mxu0
      %v8423 = vpop.f32.mrb[0].mxu0
      %v8424 = vadd.f32 %v8214, %v8423
      %v8425 = vpop.f32.mrb[0].mxu0
      %8426 = vmatprep.mubr.bf16.mxu0 0
      %8427 = vmatmul.mubr.bf16.gmra.mrb[0].mxu0 %v8286
      %v8428 = vpop.f32.mrb[0].mxu0
      %v8429 = vadd.f32 %v8214, %v8428
      %v8430 = vpop.f32.mrb[0].mxu0
      %v8431 = vpop.f32.mrb[0].mxu0
      %v8432 = vadd.f32 %v8214, %v8431
      %v8433 = vpop.f32.mrb[0].mxu0
      %8434 = vmatprep.mubr.bf16.mxu0 0
      %8435 = vmatmul.mubr.bf16.gmra.mrb[0].mxu0 %v8289
      %v8436 = vpop.f32.mrb[0].mxu0
      %v8437 = vadd.f32 %v8214, %v8436
      %v8438 = vpop.f32.mrb[0].mxu0
      %v8439 = vpop.f32.mrb[0].mxu0
      %v8440 = vadd.f32 %v8214, %v8439
      %v8441 = vpop.f32.mrb[0].mxu0
      %8442 = vmatprep.mubr.bf16.mxu0 0
      %8443 = vmatmul.mubr.bf16.gmra.mrb[0].mxu0 %v8292
      %v8444 = vpop.f32.mrb[0].mxu0
      %v8445 = vadd.f32 %v8214, %v8444
      %v8446 = vpop.f32.mrb[0].mxu0
      %v8447 = vpop.f32.mrb[0].mxu0
      %v8448 = vadd.f32 %v8214, %v8447
      %v8449 = vpop.f32.mrb[0].mxu0
      %8450 = vmatprep.mubr.bf16.mxu0 0
      %8451 = vmatmul.mubr.bf16.gmra.mrb[0].mxu0 %v8295
      %v8452 = vpop.f32.mrb[0].mxu0
      %v8453 = vadd.f32 %v8214, %v8452
      %v8454 = vpop.f32.mrb[0].mxu0
      %v8455 = vpop.f32.mrb[0].mxu0
      %v8456 = vadd.f32 %v8214, %v8455
      %v8457 = vpop.f32.mrb[0].mxu0
      %8458 = vmatprep.mubr.bf16.mxu0 0
      %8459 = vmatmul.mubr.bf16.gmra.mrb[0].mxu0 %v8298
      %v8460 = vpop.f32.mrb[0].mxu0
      %v8461 = vadd.f32 %v8214, %v8460
      %v8462 = vpop.f32.mrb[0].mxu0
      %v8463 = vpop.f32.mrb[0].mxu0
      %v8464 = vadd.f32 %v8214, %v8463
      %v8465 = vpop.f32.mrb[0].mxu0
      %8466 = vmatprep.mubr.bf16.mxu0 0
      %8467 = vmatmul.mubr.bf16.gmra.mrb[0].mxu0 %v8301
      %v8468 = vpop.f32.mrb[0].mxu0
      %v8469 = vadd.f32 %v8214, %v8468
      %v8470 = vpop.f32.mrb[0].mxu0
      %v8471 = vpop.f32.mrb[0].mxu0
      %v8472 = vadd.f32 %v8214, %v8471
      %v8473 = vpop.f32.mrb[0].mxu0
      %8474 = vmatprep.mubr.bf16.mxu0 0
      %8475 = vmatmul.mubr.bf16.gmra.mrb[0].mxu0 %v8304
      %v8476 = vpop.f32.mrb[0].mxu0
      %v8477 = vadd.f32 %v8214, %v8476
      %v8478 = vpop.f32.mrb[0].mxu0
      %v8479 = vpop.f32.mrb[0].mxu0
      %v8480 = vadd.f32 %v8214, %v8479
      %v8481 = vpop.f32.mrb[0].mxu0
      %8482 = vdwg.mxu0
      %vm8483 = vcmask 654336
      %8484 = vst.msk [vmem:[%s359] sm:$0xff] %vm8483, %v8341
      %8485 = vst.msk [vmem:[%s359 + $0x8] sm:$0xff] %vm8483, %v8344
      %8486 = vst.msk [vmem:[%s359 + $0x10] sm:$0xff] %vm8483, %v8349
      %8487 = vst.msk [vmem:[%s359 + $0x18] sm:$0xff] %vm8483, %v8352
      %8488 = vst.msk [vmem:[%s359 + $0x20] sm:$0xff] %vm8483, %v8357
      %8489 = vst.msk [vmem:[%s359 + $0x28] sm:$0xff] %vm8483, %v8360
      %8490 = vst.msk [vmem:[%s359 + $0x30] sm:$0xff] %vm8483, %v8365
      %8491 = vst.msk [vmem:[%s359 + $0x38] sm:$0xff] %vm8483, %v8368
      %8492 = vst.msk [vmem:[%s359 + $0x40] sm:$0xff] %vm8483, %v8373
      %8493 = vst.msk [vmem:[%s359 + $0x48] sm:$0xff] %vm8483, %v8376
      %8494 = vst.msk [vmem:[%s359 + $0x50] sm:$0xff] %vm8483, %v8381
      %8495 = vst.msk [vmem:[%s359 + $0x58] sm:$0xff] %vm8483, %v8384
      %8496 = vst.msk [vmem:[%s359 + $0x60] sm:$0xff] %vm8483, %v8389
      %8497 = vst.msk [vmem:[%s359 + $0x68] sm:$0xff] %vm8483, %v8392
      %8498 = vst.msk [vmem:[%s359 + $0x70] sm:$0xff] %vm8483, %v8397
      %8499 = vst.msk [vmem:[%s359 + $0x78] sm:$0xff] %vm8483, %v8400
      %8500 = vst.msk [vmem:[%s359 + $0x80] sm:$0xff] %vm8483, %v8405
      %8501 = vst.msk [vmem:[%s359 + $0x88] sm:$0xff] %vm8483, %v8408
      %8502 = vst.msk [vmem:[%s359 + $0x90] sm:$0xff] %vm8483, %v8413
      %8503 = vst.msk [vmem:[%s359 + $0x98] sm:$0xff] %vm8483, %v8416
      %8504 = vst.msk [vmem:[%s359 + $0xa0] sm:$0xff] %vm8483, %v8421
      %8505 = vst.msk [vmem:[%s359 + $0xa8] sm:$0xff] %vm8483, %v8424
      %8506 = vst.msk [vmem:[%s359 + $0xb0] sm:$0xff] %vm8483, %v8429
      %8507 = vst.msk [vmem:[%s359 + $0xb8] sm:$0xff] %vm8483, %v8432
      %8508 = vst.msk [vmem:[%s359 + $0xc0] sm:$0xff] %vm8483, %v8437
      %8509 = vst.msk [vmem:[%s359 + $0xc8] sm:$0xff] %vm8483, %v8440
      %8510 = vst.msk [vmem:[%s359 + $0xd0] sm:$0xff] %vm8483, %v8445
      %8511 = vst.msk [vmem:[%s359 + $0xd8] sm:$0xff] %vm8483, %v8448
      %8512 = vst.msk [vmem:[%s359 + $0xe0] sm:$0xff] %vm8483, %v8453
      %8513 = vst.msk [vmem:[%s359 + $0xe8] sm:$0xff] %vm8483, %v8456
      %8514 = vst.msk [vmem:[%s359 + $0xf0] sm:$0xff] %vm8483, %v8461
      %8515 = vst.msk [vmem:[%s359 + $0xf8] sm:$0xff] %vm8483, %v8464
      %8516 = vst.msk [vmem:[%s359 + $0x100] sm:$0xff] %vm8483, %v8469
      %8517 = vst.msk [vmem:[%s359 + $0x108] sm:$0xff] %vm8483, %v8472
      %8518 = vst.msk [vmem:[%s359 + $0x110] sm:$0xff] %vm8483, %v8477
      %8519 = vst.msk [vmem:[%s359 + $0x118] sm:$0xff] %vm8483, %v8480
      %p8520 = scmp.lt.s32.totalorder %s21, 1
      %s8521 = scalar_select %p8520, %s21, 1
      %s8522 = smul.addr %s8521, 36
      %s8523 = smul.addr %s8522, 8
      %s8524 = scalar_lea.vmem %s10, %s8523
      // Predicated region
      $region61: #{tpu_custom_call.1} parent=59 // pred_check
        %p8525 = pneg %p254
      $region62: #{tpu_custom_call.1} parent=59 // pred_check_branch
        %8527 = sbr.rel (%p8525) target = $region64
      $region63: #{tpu_custom_call.1} parent=59 // pred_region
        _
      $region64: #{tpu_custom_call.1} parent=59 // pred_fallthru
        _
    $region60: #{tpu_custom_call.1} parent=5 // pred_fallthru
      _
    %p8528 = scmp.le.s32.totalorder 2, %s16
    // Predicated region
    $region65: #{tpu_custom_call.1} parent=5 // pred_check
      %p8529 = pneg %p8528
    $region66: #{tpu_custom_call.1} parent=5 // pred_check_branch
      %8531 = sbr.rel (%p8529) target = $region68
    $region67: #{tpu_custom_call.1} parent=5 // pred_region
      %s8532 = ssub.s32 %s16, 2
      // Predicated region
      $region69: #{tpu_custom_call.1} parent=67 // pred_check
        %p8533 = pneg %p260
      $region70: #{tpu_custom_call.1} parent=67 // pred_check_branch
        %8535 = sbr.rel (%p8533) target = $region72
      $region71: #{tpu_custom_call.1} parent=67 // pred_region
        %p8536 = scmp.lt.s32.totalorder %s22, 1
        %s8537 = scalar_select %p8536, %s22, 1
        %s8538 = smul.addr %s8537, 36
        %s8539 = smul.addr %s8538, 8
        %s8540 = scalar_lea.vmem %s10, %s8539
      $region72: #{tpu_custom_call.1} parent=67 // pred_fallthru
        _
    $region68: #{tpu_custom_call.1} parent=5 // pred_fallthru
      _
  $region6: #{tpu_custom_call.1} parent=0 // loop_footer
    %s20 = sadd.s32 1, %s16
  $region7: #{tpu_custom_call.1} parent=0 // loop_footer_branch
    %15 = sbr.rel target = $region3
  $region8: #{tpu_custom_call.1} parent=0 // loop_exit
    _

</llo_original>
